<compile_context>
chip_gen: v7x
topology: tpu7x:2x2x1
jax: 0.10.0
libtpu: 0.0.40
codegen_flags: <defaults>
</compile_context>

<pallas_src>
import jax
import jax.numpy as jnp
from jax.experimental import pallas as pl
from jax.experimental.pallas import tpu as pltpu

# Keep reference (XLA) matmuls at full f32 so the numerical check is tight on TPU.
jax.config.update("jax_default_matmul_precision", "float32")

# ---------------- model hyper-parameters (match the PyTorch module) ---------
WINDOW = 64            # window_size
C_IN = 3
C1 = 24                # conv1_filters
C2 = 4                 # conv2_filters
K1 = 4                 # kernel_size1
K2 = 4                 # kernel_size2
F1 = 20                # fc1_neurons
L1 = WINDOW - K1 + 1   # conv1 output length = 61
L2 = L1 - K2 + 1       # conv2 output length = 58
BATCH = 2

# ---------------- padded / packed layout constants --------------------------
LPAD = 128                         # lane extent of every sequence axis
ROWS_X = 32                        # xcol rows per shift block (24 data + ones + pad)
COL_ONES = BATCH * C_IN * K1       # 24: ones/mask row index inside each xcol block
ROWS_H1 = 56                       # conv1 output rows: 48 (b,c1) + mask row + pad
ROW_MASK = BATCH * C1              # 48: mask row of h1 (propagated ones row)
ROWS_H2 = 32                       # conv2 output rows: C2 blocks of 8 (b in first BATCH)

R_W1 = 0                           # rows [0,56):    conv1 block-diag weight (56,32)
R_W2 = R_W1 + ROWS_H1              # rows [56,184):  K2 conv2 tap weights (32,56) each
R_WF1 = R_W2 + K2 * ROWS_H2        # rows [184,696): C2 fc1 blocks (128,20) each
R_FC2 = R_WF1 + C2 * LPAD          # row 696: wf2 lanes [0,20), bf2 lane 20, bf1 lanes [32,52)
COL_BF1 = 32
SLAB_ROWS = 704                    # multiple of 8
SLAB_COLS = 128                    # lane-dense
# TODO(synk): the slab is ~360 KB but only ~60 KB is live; shrink only if the
# slab is not cached across calls in a tight serving loop (review: low priority).


def pwave_kernel(xcol_ref, slab_ref, out_ref):
    """xcol_ref: (32, 512) f32  -- K2 lane blocks of the im2col'd input,
                                   block k = input positions shifted by k,
                                   row 24 of each block = ones/validity mask.
    slab_ref : (704, 128) f32  -- packed parameters (see pack_params).
    out_ref  : (BATCH, 1) f32  -- sigmoid outputs.
    """
    # ---- conv1 + ReLU (b1 folded at pack time): ONE MXU matmul -------------
    # (56, 32) @ (32, 512) -> (56, 512); lane block k holds h1 shifted by k.
    h1 = jnp.dot(slab_ref[R_W1:R_W1 + ROWS_H1, 0:ROWS_X], xcol_ref[...],
                 preferred_element_type=jnp.float32)
    h1 = jnp.maximum(h1, 0.0)

    # ---- conv2 + ReLU (b2 folded into the tap-0 weight via the mask row) ---
    # K2 accumulated (32,56)@(56,128) matmuls; every RHS is a 128-lane-aligned
    # block of h1, so tap selection is free vreg selection (no XLU shuffles).
    h2 = jnp.dot(slab_ref[R_W2:R_W2 + ROWS_H2, 0:ROWS_H1], h1[:, 0:LPAD],
                 preferred_element_type=jnp.float32)
    for k in range(1, K2):
        h2 = h2 + jnp.dot(
            slab_ref[R_W2 + ROWS_H2 * k:R_W2 + ROWS_H2 * (k + 1), 0:ROWS_H1],
            h1[:, LPAD * k:LPAD * (k + 1)],
            preferred_element_type=jnp.float32)
    h2 = jnp.maximum(h2, 0.0)                     # (32, 128), rows = c2*8 + b

    # ---- fc1 + ReLU: C2 accumulated (8,128)@(128,20) matmuls ---------------
    # consuming h2's channel blocks via 8-row-aligned sublane slices; the
    # zero-padded rows [L2,128) of each packed wf1 block kill the seam lanes.
    z1 = jnp.dot(h2[0:8, :], slab_ref[R_WF1:R_WF1 + LPAD, 0:F1],
                 preferred_element_type=jnp.float32)
    for c2 in range(1, C2):
        z1 = z1 + jnp.dot(h2[8 * c2:8 * (c2 + 1), :],
                          slab_ref[R_WF1 + LPAD * c2:R_WF1 + LPAD * (c2 + 1), 0:F1],
                          preferred_element_type=jnp.float32)
    bf1 = slab_ref[R_FC2:R_FC2 + 1, COL_BF1:COL_BF1 + F1]        # (1, 20)
    z1 = jnp.maximum(z1 + bf1, 0.0)               # (8, 20); rows >= BATCH unused

    # ---- fc2 + sigmoid: VPU multiply + single lane reduce ------------------
    wf2 = slab_ref[R_FC2:R_FC2 + 1, 0:F1]                         # (1, 20)
    bf2 = slab_ref[R_FC2:R_FC2 + 1, F1:F1 + 1]                    # (1, 1)
    s = jnp.sum(z1 * wf2, axis=1, keepdims=True) + bf2            # (8, 1)
    out_ref[...] = (1.0 / (1.0 + jnp.exp(-s[0:BATCH, :]))).astype(out_ref.dtype)


def pack_params(params):
    """Pack all weights/biases into one lane-dense f32 slab.  Called ONCE,
    outside the per-call path (all layout / bias-folding work lives here)."""
    w1, b1, w2, b2, wf1, bf1, wf2, bf2 = params

    slab = jnp.zeros((SLAB_ROWS, SLAB_COLS), jnp.float32)

    # conv1: block-diagonal over batch; b1 folded via the ones column; the
    # mask row (ROW_MASK) copies the xcol ones row through to h1 for b2 folding.
    w1f = w1.reshape(C1, C_IN * K1)                               # cols (c, k1)
    W1 = jnp.zeros((ROWS_H1, ROWS_X), jnp.float32)
    for b in range(BATCH):
        W1 = W1.at[b * C1:(b + 1) * C1,
                   b * C_IN * K1:(b + 1) * C_IN * K1].set(w1f)
        W1 = W1.at[b * C1:(b + 1) * C1, COL_ONES].set(b1)
    W1 = W1.at[ROW_MASK, COL_ONES].set(1.0)
    slab = slab.at[R_W1:R_W1 + ROWS_H1, 0:ROWS_X].set(W1)

    # conv2: one (32, 56) weight per tap; rows = c2*8 + b (zero padding rows);
    # b2 folded into the tap-0 weight via the h1 mask row.
    for k in range(K2):
        W2 = jnp.zeros((ROWS_H2, ROWS_H1), jnp.float32)
        for c2 in range(C2):
            for b in range(BATCH):
                W2 = W2.at[c2 * 8 + b, b * C1:(b + 1) * C1].set(w2[c2, :, k])
                if k == 0:
                    W2 = W2.at[c2 * 8 + b, ROW_MASK].set(b2[c2])
        slab = slab.at[R_W2 + ROWS_H2 * k:R_W2 + ROWS_H2 * (k + 1),
                       0:ROWS_H1].set(W2)

    # fc1: one (128, 20) block per conv2 channel; rows [0,L2) = wf1 slice^T,
    # rows [L2,128) = 0 (kills h2's seam/padding lanes). Flatten order matches
    # torch .view: flat index = c2*L2 + l.
    for c2 in range(C2):
        blk = jnp.zeros((LPAD, F1), jnp.float32)
        blk = blk.at[0:L2, :].set(wf1[:, c2 * L2:(c2 + 1) * L2].T)
        slab = slab.at[R_WF1 + LPAD * c2:R_WF1 + LPAD * (c2 + 1), 0:F1].set(blk)

    # fc2 / bf1 row.
    slab = slab.at[R_FC2, 0:F1].set(wf2[0])
    slab = slab.at[R_FC2, F1].set(bf2[0])
    slab = slab.at[R_FC2, COL_BF1:COL_BF1 + F1].set(bf1)
    return slab


def build_xcol(x):
    """Wrapper-side im2col with the conv2 tap shift baked in: K2 lane blocks of
    128 lanes; block k2, row (b, c, k1), lane l = x[b, c, l + k2 + k1] (0 past
    the end); row 24 of each block = validity/ones mask for bias folding."""
    B = x.shape[0]
    xp = jnp.pad(x, ((0, 0), (0, 0), (0, LPAD + K1 + K2 - WINDOW)))
    lane = jnp.arange(LPAD)
    blocks = []
    for k2 in range(K2):
        taps = jnp.stack([xp[:, :, k2 + k1:k2 + k1 + LPAD] for k1 in range(K1)],
                         axis=2)                                  # (B, C, K1, 128)
        data = taps.reshape(B * C_IN * K1, LPAD)                  # rows (b, c, k1)
        ones = (lane + k2 < L1).astype(x.dtype)[None, :]          # valid conv1 starts
        pad = jnp.zeros((ROWS_X - B * C_IN * K1 - 1, LPAD), x.dtype)
        blocks.append(jnp.concatenate([data, ones, pad], axis=0))  # (32, 128)
    return jnp.concatenate(blocks, axis=1)                        # (32, 512)


@jax.jit
def pwave_forward(x, slab):
    # TODO(synk): to amortize dispatch+DMA overhead, batch many windows into a
    # single call (and only then consider a grid over window blocks).
    xcol = build_xcol(x)
    vmem = pl.BlockSpec(memory_space=pltpu.MemorySpace.VMEM)
    return pl.pallas_call(
        pwave_kernel,
        out_shape=jax.ShapeDtypeStruct((BATCH, 1), jnp.float32),
        in_specs=[vmem, vmem],
        out_specs=vmem,
    )(xcol, slab)


# ------------------------- pure-JAX reference --------------------------------
def conv1d_ref(x, w, b):
    # x: (B, Cin, W), w: (Cout, Cin, K), b: (Cout,)
    K = w.shape[2]
    L = x.shape[2] - K + 1
    out = jnp.zeros((x.shape[0], w.shape[0], L), jnp.float32)
    for k in range(K):
        out = out + jnp.einsum('oc,bcl->bol', w[:, :, k], x[:, :, k:k + L])
    return out + b[None, :, None]


def pwave_ref(x, params):
    w1, b1, w2, b2, wf1, bf1, wf2, bf2 = params
    h = jax.nn.relu(conv1d_ref(x, w1, b1))
    h = jax.nn.relu(conv1d_ref(h, w2, b2))
    h = h.reshape(h.shape[0], -1)                       # torch .view(B, -1)
    h = jax.nn.relu(h @ wf1.T + bf1[None, :])
    return jax.nn.sigmoid(h @ wf2.T + bf2[None, :])


def init_params(key):
    """Deterministic init mimicking PyTorch default U(-1/sqrt(fan_in), +)."""
    ks = jax.random.split(key, 8)

    def u(k, shape, fan_in):
        bound = 1.0 / jnp.sqrt(fan_in)
        return jax.random.uniform(k, shape, jnp.float32, -bound, bound)

    w1 = u(ks[0], (C1, C_IN, K1), C_IN * K1)
    b1 = u(ks[1], (C1,), C_IN * K1)
    w2 = u(ks[2], (C2, C1, K2), C1 * K2)
    b2 = u(ks[3], (C2,), C1 * K2)
    wf1 = u(ks[4], (F1, C2 * L2), C2 * L2)
    bf1 = u(ks[5], (F1,), C2 * L2)
    wf2 = u(ks[6], (1, F1), F1)
    bf2 = u(ks[7], (1,), F1)
    return (w1, b1, w2, b2, wf1, bf1, wf2, bf2)


if __name__ == "__main__":
    key = jax.random.PRNGKey(0)
    k_x, k_p = jax.random.split(key)
    x = jax.random.normal(k_x, (BATCH, C_IN, WINDOW), jnp.float32)
    params = init_params(k_p)
    slab = pack_params(params)          # pre-packed once, outside the hot path

    out = jax.block_until_ready(pwave_forward(x, slab))
    ref = jax.block_until_ready(pwave_ref(x, params))

    assert out.shape == (BATCH, 1), out.shape
    assert jnp.allclose(out, ref, atol=1e-4, rtol=1e-4), (out, ref)
    print("KERNEL_OK")
</pallas_src>

<mosaic_0001>
module attributes {stable_mosaic.version = 11 : i64} {
  func.func @pwave_kernel(%arg0: memref<32x512xf32, #tpu.memory_space<vmem>>, %arg1: memref<704x128xf32, #tpu.memory_space<vmem>>, %arg2: memref<2x1xf32, #tpu.memory_space<vmem>>) attributes {dimension_semantics = [], scalar_prefetch = 0 : i64, scratch_operands = 0 : i64, tpu.core_type = #tpu.core_type<tc>} {
    %c0 = arith.constant 0 : index
    %c0_0 = arith.constant 0 : index
    %0 = vector.load %arg1[%c0, %c0_0] : memref<704x128xf32, #tpu.memory_space<vmem>>, vector<56x32xf32>
    %c0_1 = arith.constant 0 : index
    %c0_2 = arith.constant 0 : index
    %1 = vector.load %arg0[%c0_1, %c0_2] : memref<32x512xf32, #tpu.memory_space<vmem>>, vector<32x512xf32>
    %cst = arith.constant dense<0.000000e+00> : vector<56x512xf32>
    %2 = tpu.matmul %0, %1, %cst {dimension_numbers = #tpu.dot_dimension_numbers<[1], [0], [0], [1], [0, 0, 1, 1], [], []>, precision = #tpu.contract_precision<fp32>} : vector<56x32xf32>, vector<32x512xf32>, vector<56x512xf32> -> vector<56x512xf32>
    %cst_3 = arith.constant 0.000000e+00 : f32
    %3 = vector.broadcast %cst_3 : f32 to vector<56x512xf32>
    %4 = arith.maximumf %2, %3 : vector<56x512xf32>
    %c56 = arith.constant 56 : index
    %c0_4 = arith.constant 0 : index
    %5 = vector.load %arg1[%c56, %c0_4] : memref<704x128xf32, #tpu.memory_space<vmem>>, vector<32x56xf32>
    %6 = vector.extract_strided_slice %4 {offsets = [0, 0], sizes = [56, 128], strides = [1, 1]} : vector<56x512xf32> to vector<56x128xf32>
    %cst_5 = arith.constant dense<0.000000e+00> : vector<32x128xf32>
    %7 = tpu.matmul %5, %6, %cst_5 {dimension_numbers = #tpu.dot_dimension_numbers<[1], [0], [0], [1], [0, 0, 1, 1], [], []>, precision = #tpu.contract_precision<fp32>} : vector<32x56xf32>, vector<56x128xf32>, vector<32x128xf32> -> vector<32x128xf32>
    %c88 = arith.constant 88 : index
    %c0_6 = arith.constant 0 : index
    %8 = vector.load %arg1[%c88, %c0_6] : memref<704x128xf32, #tpu.memory_space<vmem>>, vector<32x56xf32>
    %9 = vector.extract_strided_slice %4 {offsets = [0, 128], sizes = [56, 128], strides = [1, 1]} : vector<56x512xf32> to vector<56x128xf32>
    %cst_7 = arith.constant dense<0.000000e+00> : vector<32x128xf32>
    %10 = tpu.matmul %8, %9, %cst_7 {dimension_numbers = #tpu.dot_dimension_numbers<[1], [0], [0], [1], [0, 0, 1, 1], [], []>, precision = #tpu.contract_precision<fp32>} : vector<32x56xf32>, vector<56x128xf32>, vector<32x128xf32> -> vector<32x128xf32>
    %11 = arith.addf %7, %10 : vector<32x128xf32>
    %c120 = arith.constant 120 : index
    %c0_8 = arith.constant 0 : index
    %12 = vector.load %arg1[%c120, %c0_8] : memref<704x128xf32, #tpu.memory_space<vmem>>, vector<32x56xf32>
    %13 = vector.extract_strided_slice %4 {offsets = [0, 256], sizes = [56, 128], strides = [1, 1]} : vector<56x512xf32> to vector<56x128xf32>
    %cst_9 = arith.constant dense<0.000000e+00> : vector<32x128xf32>
    %14 = tpu.matmul %12, %13, %cst_9 {dimension_numbers = #tpu.dot_dimension_numbers<[1], [0], [0], [1], [0, 0, 1, 1], [], []>, precision = #tpu.contract_precision<fp32>} : vector<32x56xf32>, vector<56x128xf32>, vector<32x128xf32> -> vector<32x128xf32>
    %15 = arith.addf %11, %14 : vector<32x128xf32>
    %c152 = arith.constant 152 : index
    %c0_10 = arith.constant 0 : index
    %16 = vector.load %arg1[%c152, %c0_10] : memref<704x128xf32, #tpu.memory_space<vmem>>, vector<32x56xf32>
    %17 = vector.extract_strided_slice %4 {offsets = [0, 384], sizes = [56, 128], strides = [1, 1]} : vector<56x512xf32> to vector<56x128xf32>
    %cst_11 = arith.constant dense<0.000000e+00> : vector<32x128xf32>
    %18 = tpu.matmul %16, %17, %cst_11 {dimension_numbers = #tpu.dot_dimension_numbers<[1], [0], [0], [1], [0, 0, 1, 1], [], []>, precision = #tpu.contract_precision<fp32>} : vector<32x56xf32>, vector<56x128xf32>, vector<32x128xf32> -> vector<32x128xf32>
    %19 = arith.addf %15, %18 : vector<32x128xf32>
    %cst_12 = arith.constant 0.000000e+00 : f32
    %20 = vector.broadcast %cst_12 : f32 to vector<32x128xf32>
    %21 = arith.maximumf %19, %20 : vector<32x128xf32>
    %22 = vector.extract_strided_slice %21 {offsets = [0, 0], sizes = [8, 128], strides = [1, 1]} : vector<32x128xf32> to vector<8x128xf32>
    %c184 = arith.constant 184 : index
    %c0_13 = arith.constant 0 : index
    %23 = vector.load %arg1[%c184, %c0_13] : memref<704x128xf32, #tpu.memory_space<vmem>>, vector<128x20xf32>
    %cst_14 = arith.constant dense<0.000000e+00> : vector<8x20xf32>
    %24 = tpu.matmul %22, %23, %cst_14 {dimension_numbers = #tpu.dot_dimension_numbers<[1], [0], [0], [1], [0, 0, 1, 1], [], []>, precision = #tpu.contract_precision<fp32>} : vector<8x128xf32>, vector<128x20xf32>, vector<8x20xf32> -> vector<8x20xf32>
    %25 = vector.extract_strided_slice %21 {offsets = [8, 0], sizes = [8, 128], strides = [1, 1]} : vector<32x128xf32> to vector<8x128xf32>
    %c312 = arith.constant 312 : index
    %c0_15 = arith.constant 0 : index
    %26 = vector.load %arg1[%c312, %c0_15] : memref<704x128xf32, #tpu.memory_space<vmem>>, vector<128x20xf32>
    %cst_16 = arith.constant dense<0.000000e+00> : vector<8x20xf32>
    %27 = tpu.matmul %25, %26, %cst_16 {dimension_numbers = #tpu.dot_dimension_numbers<[1], [0], [0], [1], [0, 0, 1, 1], [], []>, precision = #tpu.contract_precision<fp32>} : vector<8x128xf32>, vector<128x20xf32>, vector<8x20xf32> -> vector<8x20xf32>
    %28 = arith.addf %24, %27 : vector<8x20xf32>
    %29 = vector.extract_strided_slice %21 {offsets = [16, 0], sizes = [8, 128], strides = [1, 1]} : vector<32x128xf32> to vector<8x128xf32>
    %c440 = arith.constant 440 : index
    %c0_17 = arith.constant 0 : index
    %30 = vector.load %arg1[%c440, %c0_17] : memref<704x128xf32, #tpu.memory_space<vmem>>, vector<128x20xf32>
    %cst_18 = arith.constant dense<0.000000e+00> : vector<8x20xf32>
    %31 = tpu.matmul %29, %30, %cst_18 {dimension_numbers = #tpu.dot_dimension_numbers<[1], [0], [0], [1], [0, 0, 1, 1], [], []>, precision = #tpu.contract_precision<fp32>} : vector<8x128xf32>, vector<128x20xf32>, vector<8x20xf32> -> vector<8x20xf32>
    %32 = arith.addf %28, %31 : vector<8x20xf32>
    %33 = vector.extract_strided_slice %21 {offsets = [24, 0], sizes = [8, 128], strides = [1, 1]} : vector<32x128xf32> to vector<8x128xf32>
    %c568 = arith.constant 568 : index
    %c0_19 = arith.constant 0 : index
    %34 = vector.load %arg1[%c568, %c0_19] : memref<704x128xf32, #tpu.memory_space<vmem>>, vector<128x20xf32>
    %cst_20 = arith.constant dense<0.000000e+00> : vector<8x20xf32>
    %35 = tpu.matmul %33, %34, %cst_20 {dimension_numbers = #tpu.dot_dimension_numbers<[1], [0], [0], [1], [0, 0, 1, 1], [], []>, precision = #tpu.contract_precision<fp32>} : vector<8x128xf32>, vector<128x20xf32>, vector<8x20xf32> -> vector<8x20xf32>
    %36 = arith.addf %32, %35 : vector<8x20xf32>
    %c696 = arith.constant 696 : index
    %c32 = arith.constant 32 : index
    %37 = vector.load %arg1[%c696, %c32] : memref<704x128xf32, #tpu.memory_space<vmem>>, vector<1x20xf32>
    %38 = vector.broadcast %37 : vector<1x20xf32> to vector<8x20xf32>
    %39 = arith.addf %36, %38 : vector<8x20xf32>
    %cst_21 = arith.constant 0.000000e+00 : f32
    %40 = vector.broadcast %cst_21 : f32 to vector<8x20xf32>
    %41 = arith.maximumf %39, %40 : vector<8x20xf32>
    %c696_22 = arith.constant 696 : index
    %c0_23 = arith.constant 0 : index
    %42 = vector.load %arg1[%c696_22, %c0_23] : memref<704x128xf32, #tpu.memory_space<vmem>>, vector<1x20xf32>
    %c696_24 = arith.constant 696 : index
    %c20 = arith.constant 20 : index
    %43 = vector.load %arg1[%c696_24, %c20] : memref<704x128xf32, #tpu.memory_space<vmem>>, vector<1x1xf32>
    %44 = vector.broadcast %42 : vector<1x20xf32> to vector<8x20xf32>
    %45 = arith.mulf %41, %44 : vector<8x20xf32>
    %cst_25 = arith.constant dense<0.000000e+00> : vector<8xf32>
    %46 = vector.multi_reduction <add>, %45, %cst_25 [1] : vector<8x20xf32> to vector<8xf32>
    %47 = vector.shape_cast %46 : vector<8xf32> to vector<8x1xf32>
    %48 = vector.broadcast %43 : vector<1x1xf32> to vector<8x1xf32>
    %49 = arith.addf %47, %48 : vector<8x1xf32>
    %50 = vector.extract_strided_slice %49 {offsets = [0, 0], sizes = [2, 1], strides = [1, 1]} : vector<8x1xf32> to vector<2x1xf32>
    %cst_26 = arith.constant 0.000000e+00 : f32
    %51 = vector.broadcast %cst_26 : f32 to vector<2x1xf32>
    %52 = arith.subf %51, %50 : vector<2x1xf32>
    %53 = math.exp %52 : vector<2x1xf32>
    %cst_27 = arith.constant 1.000000e+00 : f32
    %54 = vector.broadcast %cst_27 : f32 to vector<2x1xf32>
    %55 = arith.addf %54, %53 : vector<2x1xf32>
    %cst_28 = arith.constant 1.000000e+00 : f32
    %56 = vector.broadcast %cst_28 : f32 to vector<2x1xf32>
    %57 = arith.divf %56, %55 : vector<2x1xf32>
    %c0_29 = arith.constant 0 : index
    %c0_30 = arith.constant 0 : index
    %58 = vector.load %arg2[%c0_29, %c0_30] : memref<2x1xf32, #tpu.memory_space<vmem>>, vector<2x1xf32>
    tpu.vector_store %arg2[%c0_29, %c0_30], %57 {strides = array<i32>} : memref<2x1xf32, #tpu.memory_space<vmem>>, vector<2x1xf32>,
    return
  }
}

</mosaic_0001>

<llo_original>
// kernel: pwave_forward.1
$region0: #{pwave_forward.1}
  #allocation0 [shape = 'u32[]', space=smem, size = 0x4, offset = 0x4, fixed_abs, tag = 'smem constant byte address 0x4 - core index']
  #allocation1 [shape = 'u32[144,128]{1,0:T(1,128)}', space=vmem, size = 0x12000, scoped, tag = 'internal scratch']
  %s0 = inlined_call_operand.vmem [shape: f32[32,512], index: 0, kind: input, shape index: {}]
  %s1 = inlined_call_operand.vmem [shape: f32[704,128], index: 1, kind: input, shape index: {}]
  %s2 = inlined_call_operand.vmem [shape: f32[2,1], index: 2, kind: output, shape index: {}]
  %s3 = sld [smem:[#allocation0]]
  $region18: #{pwave_forward.1} parent=0
    _
  %s5 = ssub.s32 1, %s3
  %s6 = scalar_select 0, %s5, %s3
  // Predicated region
  $region2: #{pwave_forward.1} parent=0 // pred_check
    _
  $region3: #{pwave_forward.1} parent=0 // pred_check_branch
    %8 = sbr.rel (0) target = $region5
  $region4: #{pwave_forward.1} parent=0 // pred_region
    _
  $region5: #{pwave_forward.1} parent=0 // pred_fallthru
    _
  // Predicated region
  $region6: #{pwave_forward.1} parent=0 // pred_check
    _
  $region7: #{pwave_forward.1} parent=0 // pred_check_branch
    %10 = sbr.rel (0) target = $region9
  $region8: #{pwave_forward.1} parent=0 // pred_region
    _
  $region9: #{pwave_forward.1} parent=0 // pred_fallthru
    _
  %v11 = vld [vmem:[%s1] sm:$0xff]
  %v12 = vld [vmem:[%s1 + $0x8] sm:$0xff]
  %v13 = vld [vmem:[%s1 + $0x10] sm:$0xff]
  %v14 = vld [vmem:[%s1 + $0x18] sm:$0xff]
  %v15 = vld [vmem:[%s1 + $0x20] sm:$0xff]
  %v16 = vld [vmem:[%s1 + $0x28] sm:$0xff]
  %v17 = vld [vmem:[%s1 + $0x30] sm:$0xff]
  %v18 = vld [vmem:[%s0] sm:$0xff]
  %v19 = vld [vmem:[%s0 + $0x8] sm:$0xff]
  %v20 = vld [vmem:[%s0 + $0x10] sm:$0xff]
  %v21 = vld [vmem:[%s0 + $0x18] sm:$0xff]
  %v22 = vld [vmem:[%s0 + $0x20] sm:$0xff]
  %v23 = vld [vmem:[%s0 + $0x28] sm:$0xff]
  %v24 = vld [vmem:[%s0 + $0x30] sm:$0xff]
  %v25 = vld [vmem:[%s0 + $0x38] sm:$0xff]
  %v26 = vld [vmem:[%s0 + $0x40] sm:$0xff]
  %v27 = vld [vmem:[%s0 + $0x48] sm:$0xff]
  %v28 = vld [vmem:[%s0 + $0x50] sm:$0xff]
  %v29 = vld [vmem:[%s0 + $0x58] sm:$0xff]
  %v30 = vld [vmem:[%s0 + $0x60] sm:$0xff]
  %v31 = vld [vmem:[%s0 + $0x68] sm:$0xff]
  %v32 = vld [vmem:[%s0 + $0x70] sm:$0xff]
  %v33 = vld [vmem:[%s0 + $0x78] sm:$0xff]
  %vm34 = vcmask 261120
  %v36 = vsel %vm34, %v11, 0
  %v39 = vsel %vm34, %v12, 0
  %v42 = vsel %vm34, %v13, 0
  %v45 = vsel %vm34, %v14, 0
  %v48 = vsel %vm34, %v15, 0
  %v51 = vsel %vm34, %v16, 0
  %v54 = vsel %vm34, %v17, 0
  %v56 = vand.u32 %v19, 4294901760
  %57 = vmatprep.subr.mxu0 %v56
  %v58 = vand.u32 %v18, 4294901760
  %59 = vmatpush1.msra.mxu0 %v58
  %v60 = vand.u32 %v23, 4294901760
  %61 = vmatprep.subr.mxu0 %v60
  %v62 = vand.u32 %v22, 4294901760
  %63 = vmatpush1.msra.mxu0 %v62
  %v64 = vand.u32 %v27, 4294901760
  %65 = vmatprep.subr.mxu0 %v64
  %v66 = vand.u32 %v26, 4294901760
  %67 = vmatpush1.msra.mxu0 %v66
  %v68 = vand.u32 %v31, 4294901760
  %69 = vmatprep.subr.mxu0 %v68
  %v70 = vand.u32 %v30, 4294901760
  %71 = vmatpush1.msra.mxu0 %v70
  %72 = vmatprep.subr.mxu0 0.0
  %73 = vmatpush1.msra.mxu0 0.0
  %74 = vmatprep.subr.mxu0 0.0
  %75 = vmatpush1.msra.mxu0 0.0
  %76 = vmatprep.subr.mxu0 0.0
  %77 = vmatpush1.msra.mxu0 0.0
  %78 = vmatprep.subr.mxu0 0.0
  %79 = vmatpush1.msra.mxu0 0.0
  %80 = vmatprep.subr.mxu0 0.0
  %81 = vmatpush1.msra.mxu0 0.0
  %82 = vmatprep.subr.mxu0 0.0
  %83 = vmatpush1.msra.mxu0 0.0
  %84 = vmatprep.subr.mxu0 0.0
  %85 = vmatpush1.msra.mxu0 0.0
  %86 = vmatprep.subr.mxu0 0.0
  %87 = vmatpush1.msra.mxu0 0.0
  %88 = vmatprep.subr.mxu0 0.0
  %89 = vmatpush1.msra.mxu0 0.0
  %90 = vmatprep.subr.mxu0 0.0
  %91 = vmatpush1.msra.mxu0 0.0
  %92 = vmatprep.subr.mxu0 0.0
  %93 = vmatpush1.msra.mxu0 0.0
  %94 = vmatprep.subr.mxu0 0.0
  %95 = vmatpush1.msra.mxu0 0.0
  %96 = vmatprep.subr.mxu0 0.0
  %97 = vmatpush1.msra.mxu0 0.0
  %98 = vmatprep.subr.mxu0 0.0
  %99 = vmatpush1.msra.mxu0 0.0
  %100 = vmatprep.subr.mxu0 0.0
  %101 = vmatpush1.msra.mxu0 0.0
  %102 = vmatprep.subr.mxu0 0.0
  %103 = vmatpush1.msra.mxu0 0.0
  %104 = vmatprep.subr.mxu0 0.0
  %105 = vmatpush1.msra.mxu0 0.0
  %106 = vmatprep.subr.mxu0 0.0
  %107 = vmatpush1.msra.mxu0 0.0
  %108 = vmatprep.subr.mxu0 0.0
  %109 = vmatpush1.msra.mxu0 0.0
  %110 = vmatprep.subr.mxu0 0.0
  %111 = vmatpush1.msra.mxu0 0.0
  %112 = vmatprep.subr.mxu0 0.0
  %113 = vmatpush1.msra.mxu0 0.0
  %114 = vmatprep.subr.mxu0 0.0
  %115 = vmatpush1.msra.mxu0 0.0
  %116 = vmatprep.subr.mxu0 0.0
  %117 = vmatpush1.msra.mxu0 0.0
  %118 = vmatprep.subr.mxu0 0.0
  %119 = vmatpush1.msra.mxu0 0.0
  %120 = vmatprep.subr.mxu0 0.0
  %121 = vmatpush1.msra.mxu0 0.0
  %122 = vmatprep.subr.mxu0 0.0
  %123 = vmatpush1.msra.mxu0 0.0
  %124 = vmatprep.subr.mxu0 0.0
  %125 = vmatpush1.msra.mxu0 0.0
  %126 = vmatprep.subr.mxu0 0.0
  %127 = vmatpush1.msra.mxu0 0.0
  %128 = vmatprep.mubr.f32.mxu0 0.0
  %v129 = vand.u32 %v36, 4294901760
  %v130 = vsub.f32 %v36, %v129
  %v131 = vand.u32 %v130, 4294901760
  %v132 = vsub.f32 %v130, %v131
  %v133 = vand.u32 %v132, 4294901760
  %134 = vmatmul.mubr.f32.gmra.mrb[0].mxu0 %v133
  %v135 = vpop.f32.mrb[0].mxu0
  %v136 = vadd.f32 0.0, %v135
  %v137 = vpop.f32.mrb[0].mxu0
  %v138 = vadd.f32 0.0, %v137
  %139 = vmatprep.mubr.f32.mxu0 0.0
  %v140 = vand.u32 %v39, 4294901760
  %v141 = vsub.f32 %v39, %v140
  %v142 = vand.u32 %v141, 4294901760
  %v143 = vsub.f32 %v141, %v142
  %v144 = vand.u32 %v143, 4294901760
  %145 = vmatmul.mubr.f32.gmra.mrb[0].mxu0 %v144
  %v146 = vpop.f32.mrb[0].mxu0
  %v147 = vadd.f32 0.0, %v146
  %v148 = vpop.f32.mrb[0].mxu0
  %v149 = vadd.f32 0.0, %v148
  %150 = vmatprep.mubr.f32.mxu0 0.0
  %v151 = vand.u32 %v42, 4294901760
  %v152 = vsub.f32 %v42, %v151
  %v153 = vand.u32 %v152, 4294901760
  %v154 = vsub.f32 %v152, %v153
  %v155 = vand.u32 %v154, 4294901760
  %156 = vmatmul.mubr.f32.gmra.mrb[0].mxu0 %v155
  %v157 = vpop.f32.mrb[0].mxu0
  %v158 = vadd.f32 0.0, %v157
  %v159 = vpop.f32.mrb[0].mxu0
  %v160 = vadd.f32 0.0, %v159
  %161 = vmatprep.mubr.f32.mxu0 0.0
  %v162 = vand.u32 %v45, 4294901760
  %v163 = vsub.f32 %v45, %v162
  %v164 = vand.u32 %v163, 4294901760
  %v165 = vsub.f32 %v163, %v164
  %v166 = vand.u32 %v165, 4294901760
  %167 = vmatmul.mubr.f32.gmra.mrb[0].mxu0 %v166
  %v168 = vpop.f32.mrb[0].mxu0
  %v169 = vadd.f32 0.0, %v168
  %v170 = vpop.f32.mrb[0].mxu0
  %v171 = vadd.f32 0.0, %v170
  %172 = vmatprep.mubr.f32.mxu0 0.0
  %v173 = vand.u32 %v48, 4294901760
  %v174 = vsub.f32 %v48, %v173
  %v175 = vand.u32 %v174, 4294901760
  %v176 = vsub.f32 %v174, %v175
  %v177 = vand.u32 %v176, 4294901760
  %178 = vmatmul.mubr.f32.gmra.mrb[0].mxu0 %v177
  %v179 = vpop.f32.mrb[0].mxu0
  %v180 = vadd.f32 0.0, %v179
  %v181 = vpop.f32.mrb[0].mxu0
  %v182 = vadd.f32 0.0, %v181
  %183 = vmatprep.mubr.f32.mxu0 0.0
  %v184 = vand.u32 %v51, 4294901760
  %v185 = vsub.f32 %v51, %v184
  %v186 = vand.u32 %v185, 4294901760
  %v187 = vsub.f32 %v185, %v186
  %v188 = vand.u32 %v187, 4294901760
  %189 = vmatmul.mubr.f32.gmra.mrb[0].mxu0 %v188
  %v190 = vpop.f32.mrb[0].mxu0
  %v191 = vadd.f32 0.0, %v190
  %v192 = vpop.f32.mrb[0].mxu0
  %v193 = vadd.f32 0.0, %v192
  %194 = vmatprep.mubr.f32.mxu0 0.0
  %v195 = vand.u32 %v54, 4294901760
  %v196 = vsub.f32 %v54, %v195
  %v197 = vand.u32 %v196, 4294901760
  %v198 = vsub.f32 %v196, %v197
  %v199 = vand.u32 %v198, 4294901760
  %200 = vmatmul.mubr.f32.gmra.mrb[0].mxu0 %v199
  %v201 = vpop.f32.mrb[0].mxu0
  %v202 = vadd.f32 0.0, %v201
  %v203 = vpop.f32.mrb[0].mxu0
  %v204 = vadd.f32 0.0, %v203
  %205 = vdwg.mxu0
  %v206 = vand.u32 %v19, 4294901760
  %v207 = vsub.f32 %v19, %v206
  %v208 = vand.u32 %v207, 4294901760
  %v209 = vsub.f32 %v207, %v208
  %v210 = vand.u32 %v209, 4294901760
  %211 = vmatprep.subr.mxu0 %v210
  %v212 = vand.u32 %v18, 4294901760
  %v213 = vsub.f32 %v18, %v212
  %v214 = vand.u32 %v213, 4294901760
  %v215 = vsub.f32 %v213, %v214
  %v216 = vand.u32 %v215, 4294901760
  %217 = vmatpush1.msra.mxu0 %v216
  %v218 = vand.u32 %v23, 4294901760
  %v219 = vsub.f32 %v23, %v218
  %v220 = vand.u32 %v219, 4294901760
  %v221 = vsub.f32 %v219, %v220
  %v222 = vand.u32 %v221, 4294901760
  %223 = vmatprep.subr.mxu0 %v222
  %v224 = vand.u32 %v22, 4294901760
  %v225 = vsub.f32 %v22, %v224
  %v226 = vand.u32 %v225, 4294901760
  %v227 = vsub.f32 %v225, %v226
  %v228 = vand.u32 %v227, 4294901760
  %229 = vmatpush1.msra.mxu0 %v228
  %v230 = vand.u32 %v27, 4294901760
  %v231 = vsub.f32 %v27, %v230
  %v232 = vand.u32 %v231, 4294901760
  %v233 = vsub.f32 %v231, %v232
  %v234 = vand.u32 %v233, 4294901760
  %235 = vmatprep.subr.mxu0 %v234
  %v236 = vand.u32 %v26, 4294901760
  %v237 = vsub.f32 %v26, %v236
  %v238 = vand.u32 %v237, 4294901760
  %v239 = vsub.f32 %v237, %v238
  %v240 = vand.u32 %v239, 4294901760
  %241 = vmatpush1.msra.mxu0 %v240
  %v242 = vand.u32 %v31, 4294901760
  %v243 = vsub.f32 %v31, %v242
  %v244 = vand.u32 %v243, 4294901760
  %v245 = vsub.f32 %v243, %v244
  %v246 = vand.u32 %v245, 4294901760
  %247 = vmatprep.subr.mxu0 %v246
  %v248 = vand.u32 %v30, 4294901760
  %v249 = vsub.f32 %v30, %v248
  %v250 = vand.u32 %v249, 4294901760
  %v251 = vsub.f32 %v249, %v250
  %v252 = vand.u32 %v251, 4294901760
  %253 = vmatpush1.msra.mxu0 %v252
  %254 = vmatprep.subr.mxu0 0.0
  %255 = vmatpush1.msra.mxu0 0.0
  %256 = vmatprep.subr.mxu0 0.0
  %257 = vmatpush1.msra.mxu0 0.0
  %258 = vmatprep.subr.mxu0 0.0
  %259 = vmatpush1.msra.mxu0 0.0
  %260 = vmatprep.subr.mxu0 0.0
  %261 = vmatpush1.msra.mxu0 0.0
  %262 = vmatprep.subr.mxu0 0.0
  %263 = vmatpush1.msra.mxu0 0.0
  %264 = vmatprep.subr.mxu0 0.0
  %265 = vmatpush1.msra.mxu0 0.0
  %266 = vmatprep.subr.mxu0 0.0
  %267 = vmatpush1.msra.mxu0 0.0
  %268 = vmatprep.subr.mxu0 0.0
  %269 = vmatpush1.msra.mxu0 0.0
  %270 = vmatprep.subr.mxu0 0.0
  %271 = vmatpush1.msra.mxu0 0.0
  %272 = vmatprep.subr.mxu0 0.0
  %273 = vmatpush1.msra.mxu0 0.0
  %274 = vmatprep.subr.mxu0 0.0
  %275 = vmatpush1.msra.mxu0 0.0
  %276 = vmatprep.subr.mxu0 0.0
  %277 = vmatpush1.msra.mxu0 0.0
  %278 = vmatprep.subr.mxu0 0.0
  %279 = vmatpush1.msra.mxu0 0.0
  %280 = vmatprep.subr.mxu0 0.0
  %281 = vmatpush1.msra.mxu0 0.0
  %282 = vmatprep.subr.mxu0 0.0
  %283 = vmatpush1.msra.mxu0 0.0
  %284 = vmatprep.subr.mxu0 0.0
  %285 = vmatpush1.msra.mxu0 0.0
  %286 = vmatprep.subr.mxu0 0.0
  %287 = vmatpush1.msra.mxu0 0.0
  %288 = vmatprep.subr.mxu0 0.0
  %289 = vmatpush1.msra.mxu0 0.0
  %290 = vmatprep.subr.mxu0 0.0
  %291 = vmatpush1.msra.mxu0 0.0
  %292 = vmatprep.subr.mxu0 0.0
  %293 = vmatpush1.msra.mxu0 0.0
  %294 = vmatprep.subr.mxu0 0.0
  %295 = vmatpush1.msra.mxu0 0.0
  %296 = vmatprep.subr.mxu0 0.0
  %297 = vmatpush1.msra.mxu0 0.0
  %298 = vmatprep.subr.mxu0 0.0
  %299 = vmatpush1.msra.mxu0 0.0
  %300 = vmatprep.subr.mxu0 0.0
  %301 = vmatpush1.msra.mxu0 0.0
  %302 = vmatprep.subr.mxu0 0.0
  %303 = vmatpush1.msra.mxu0 0.0
  %304 = vmatprep.subr.mxu0 0.0
  %305 = vmatpush1.msra.mxu0 0.0
  %306 = vmatprep.subr.mxu0 0.0
  %307 = vmatpush1.msra.mxu0 0.0
  %308 = vmatprep.subr.mxu0 0.0
  %309 = vmatpush1.msra.mxu0 0.0
  %310 = vmatprep.mubr.f32.mxu0 0.0
  %v311 = vand.u32 %v36, 4294901760
  %312 = vmatmul.mubr.f32.gmra.mrb[0].mxu0 %v311
  %v313 = vpop.f32.mrb[0].mxu0
  %v314 = vadd.f32 %v136, %v313
  %v315 = vpop.f32.mrb[0].mxu0
  %v316 = vadd.f32 %v138, %v315
  %317 = vmatprep.mubr.f32.mxu0 0.0
  %v318 = vand.u32 %v39, 4294901760
  %319 = vmatmul.mubr.f32.gmra.mrb[0].mxu0 %v318
  %v320 = vpop.f32.mrb[0].mxu0
  %v321 = vadd.f32 %v147, %v320
  %v322 = vpop.f32.mrb[0].mxu0
  %v323 = vadd.f32 %v149, %v322
  %324 = vmatprep.mubr.f32.mxu0 0.0
  %v325 = vand.u32 %v42, 4294901760
  %326 = vmatmul.mubr.f32.gmra.mrb[0].mxu0 %v325
  %v327 = vpop.f32.mrb[0].mxu0
  %v328 = vadd.f32 %v158, %v327
  %v329 = vpop.f32.mrb[0].mxu0
  %v330 = vadd.f32 %v160, %v329
  %331 = vmatprep.mubr.f32.mxu0 0.0
  %v332 = vand.u32 %v45, 4294901760
  %333 = vmatmul.mubr.f32.gmra.mrb[0].mxu0 %v332
  %v334 = vpop.f32.mrb[0].mxu0
  %v335 = vadd.f32 %v169, %v334
  %v336 = vpop.f32.mrb[0].mxu0
  %v337 = vadd.f32 %v171, %v336
  %338 = vmatprep.mubr.f32.mxu0 0.0
  %v339 = vand.u32 %v48, 4294901760
  %340 = vmatmul.mubr.f32.gmra.mrb[0].mxu0 %v339
  %v341 = vpop.f32.mrb[0].mxu0
  %v342 = vadd.f32 %v180, %v341
  %v343 = vpop.f32.mrb[0].mxu0
  %v344 = vadd.f32 %v182, %v343
  %345 = vmatprep.mubr.f32.mxu0 0.0
  %v346 = vand.u32 %v51, 4294901760
  %347 = vmatmul.mubr.f32.gmra.mrb[0].mxu0 %v346
  %v348 = vpop.f32.mrb[0].mxu0
  %v349 = vadd.f32 %v191, %v348
  %v350 = vpop.f32.mrb[0].mxu0
  %v351 = vadd.f32 %v193, %v350
  %352 = vmatprep.mubr.f32.mxu0 0.0
  %v353 = vand.u32 %v54, 4294901760
  %354 = vmatmul.mubr.f32.gmra.mrb[0].mxu0 %v353
  %v355 = vpop.f32.mrb[0].mxu0
  %v356 = vadd.f32 %v202, %v355
  %v357 = vpop.f32.mrb[0].mxu0
  %v358 = vadd.f32 %v204, %v357
  %359 = vdwg.mxu0
  %v360 = vand.u32 %v19, 4294901760
  %v361 = vsub.f32 %v19, %v360
  %362 = vmatprep.subr.mxu0 %v361
  %v363 = vand.u32 %v18, 4294901760
  %v364 = vsub.f32 %v18, %v363
  %365 = vmatpush1.msra.mxu0 %v364
  %v366 = vand.u32 %v23, 4294901760
  %v367 = vsub.f32 %v23, %v366
  %368 = vmatprep.subr.mxu0 %v367
  %v369 = vand.u32 %v22, 4294901760
  %v370 = vsub.f32 %v22, %v369
  %371 = vmatpush1.msra.mxu0 %v370
  %v372 = vand.u32 %v27, 4294901760
  %v373 = vsub.f32 %v27, %v372
  %374 = vmatprep.subr.mxu0 %v373
  %v375 = vand.u32 %v26, 4294901760
  %v376 = vsub.f32 %v26, %v375
  %377 = vmatpush1.msra.mxu0 %v376
  %v378 = vand.u32 %v31, 4294901760
  %v379 = vsub.f32 %v31, %v378
  %380 = vmatprep.subr.mxu0 %v379
  %v381 = vand.u32 %v30, 4294901760
  %v382 = vsub.f32 %v30, %v381
  %383 = vmatpush1.msra.mxu0 %v382
  %384 = vmatprep.subr.mxu0 0.0
  %385 = vmatpush1.msra.mxu0 0.0
  %386 = vmatprep.subr.mxu0 0.0
  %387 = vmatpush1.msra.mxu0 0.0
  %388 = vmatprep.subr.mxu0 0.0
  %389 = vmatpush1.msra.mxu0 0.0
  %390 = vmatprep.subr.mxu0 0.0
  %391 = vmatpush1.msra.mxu0 0.0
  %392 = vmatprep.subr.mxu0 0.0
  %393 = vmatpush1.msra.mxu0 0.0
  %394 = vmatprep.subr.mxu0 0.0
  %395 = vmatpush1.msra.mxu0 0.0
  %396 = vmatprep.subr.mxu0 0.0
  %397 = vmatpush1.msra.mxu0 0.0
  %398 = vmatprep.subr.mxu0 0.0
  %399 = vmatpush1.msra.mxu0 0.0
  %400 = vmatprep.subr.mxu0 0.0
  %401 = vmatpush1.msra.mxu0 0.0
  %402 = vmatprep.subr.mxu0 0.0
  %403 = vmatpush1.msra.mxu0 0.0
  %404 = vmatprep.subr.mxu0 0.0
  %405 = vmatpush1.msra.mxu0 0.0
  %406 = vmatprep.subr.mxu0 0.0
  %407 = vmatpush1.msra.mxu0 0.0
  %408 = vmatprep.subr.mxu0 0.0
  %409 = vmatpush1.msra.mxu0 0.0
  %410 = vmatprep.subr.mxu0 0.0
  %411 = vmatpush1.msra.mxu0 0.0
  %412 = vmatprep.subr.mxu0 0.0
  %413 = vmatpush1.msra.mxu0 0.0
  %414 = vmatprep.subr.mxu0 0.0
  %415 = vmatpush1.msra.mxu0 0.0
  %416 = vmatprep.subr.mxu0 0.0
  %417 = vmatpush1.msra.mxu0 0.0
  %418 = vmatprep.subr.mxu0 0.0
  %419 = vmatpush1.msra.mxu0 0.0
  %420 = vmatprep.subr.mxu0 0.0
  %421 = vmatpush1.msra.mxu0 0.0
  %422 = vmatprep.subr.mxu0 0.0
  %423 = vmatpush1.msra.mxu0 0.0
  %424 = vmatprep.subr.mxu0 0.0
  %425 = vmatpush1.msra.mxu0 0.0
  %426 = vmatprep.subr.mxu0 0.0
  %427 = vmatpush1.msra.mxu0 0.0
  %428 = vmatprep.subr.mxu0 0.0
  %429 = vmatpush1.msra.mxu0 0.0
  %430 = vmatprep.subr.mxu0 0.0
  %431 = vmatpush1.msra.mxu0 0.0
  %432 = vmatprep.subr.mxu0 0.0
  %433 = vmatpush1.msra.mxu0 0.0
  %434 = vmatprep.subr.mxu0 0.0
  %435 = vmatpush1.msra.mxu0 0.0
  %436 = vmatprep.subr.mxu0 0.0
  %437 = vmatpush1.msra.mxu0 0.0
  %438 = vmatprep.subr.mxu0 0.0
  %439 = vmatpush1.msra.mxu0 0.0
  %440 = vmatprep.mubr.f32.mxu0 0.0
  %v441 = vand.u32 %v36, 4294901760
  %v442 = vsub.f32 %v36, %v441
  %443 = vmatmul.mubr.f32.gmra.mrb[0].mxu0 %v442
  %v444 = vpop.f32.mrb[0].mxu0
  %v445 = vadd.f32 %v314, %v444
  %v446 = vpop.f32.mrb[0].mxu0
  %v447 = vadd.f32 %v316, %v446
  %448 = vmatprep.mubr.f32.mxu0 0.0
  %v449 = vand.u32 %v39, 4294901760
  %v450 = vsub.f32 %v39, %v449
  %451 = vmatmul.mubr.f32.gmra.mrb[0].mxu0 %v450
  %v452 = vpop.f32.mrb[0].mxu0
  %v453 = vadd.f32 %v321, %v452
  %v454 = vpop.f32.mrb[0].mxu0
  %v455 = vadd.f32 %v323, %v454
  %456 = vmatprep.mubr.f32.mxu0 0.0
  %v457 = vand.u32 %v42, 4294901760
  %v458 = vsub.f32 %v42, %v457
  %459 = vmatmul.mubr.f32.gmra.mrb[0].mxu0 %v458
  %v460 = vpop.f32.mrb[0].mxu0
  %v461 = vadd.f32 %v328, %v460
  %v462 = vpop.f32.mrb[0].mxu0
  %v463 = vadd.f32 %v330, %v462
  %464 = vmatprep.mubr.f32.mxu0 0.0
  %v465 = vand.u32 %v45, 4294901760
  %v466 = vsub.f32 %v45, %v465
  %467 = vmatmul.mubr.f32.gmra.mrb[0].mxu0 %v466
  %v468 = vpop.f32.mrb[0].mxu0
  %v469 = vadd.f32 %v335, %v468
  %v470 = vpop.f32.mrb[0].mxu0
  %v471 = vadd.f32 %v337, %v470
  %472 = vmatprep.mubr.f32.mxu0 0.0
  %v473 = vand.u32 %v48, 4294901760
  %v474 = vsub.f32 %v48, %v473
  %475 = vmatmul.mubr.f32.gmra.mrb[0].mxu0 %v474
  %v476 = vpop.f32.mrb[0].mxu0
  %v477 = vadd.f32 %v342, %v476
  %v478 = vpop.f32.mrb[0].mxu0
  %v479 = vadd.f32 %v344, %v478
  %480 = vmatprep.mubr.f32.mxu0 0.0
  %v481 = vand.u32 %v51, 4294901760
  %v482 = vsub.f32 %v51, %v481
  %483 = vmatmul.mubr.f32.gmra.mrb[0].mxu0 %v482
  %v484 = vpop.f32.mrb[0].mxu0
  %v485 = vadd.f32 %v349, %v484
  %v486 = vpop.f32.mrb[0].mxu0
  %v487 = vadd.f32 %v351, %v486
  %488 = vmatprep.mubr.f32.mxu0 0.0
  %v489 = vand.u32 %v54, 4294901760
  %v490 = vsub.f32 %v54, %v489
  %491 = vmatmul.mubr.f32.gmra.mrb[0].mxu0 %v490
  %v492 = vpop.f32.mrb[0].mxu0
  %v493 = vadd.f32 %v356, %v492
  %v494 = vpop.f32.mrb[0].mxu0
  %v495 = vadd.f32 %v358, %v494
  %496 = vdwg.mxu0
  %v497 = vand.u32 %v19, 4294901760
  %498 = vmatprep.subr.mxu0 %v497
  %v499 = vand.u32 %v18, 4294901760
  %500 = vmatpush1.msra.mxu0 %v499
  %v501 = vand.u32 %v23, 4294901760
  %502 = vmatprep.subr.mxu0 %v501
  %v503 = vand.u32 %v22, 4294901760
  %504 = vmatpush1.msra.mxu0 %v503
  %v505 = vand.u32 %v27, 4294901760
  %506 = vmatprep.subr.mxu0 %v505
  %v507 = vand.u32 %v26, 4294901760
  %508 = vmatpush1.msra.mxu0 %v507
  %v509 = vand.u32 %v31, 4294901760
  %510 = vmatprep.subr.mxu0 %v509
  %v511 = vand.u32 %v30, 4294901760
  %512 = vmatpush1.msra.mxu0 %v511
  %513 = vmatprep.subr.mxu0 0.0
  %514 = vmatpush1.msra.mxu0 0.0
  %515 = vmatprep.subr.mxu0 0.0
  %516 = vmatpush1.msra.mxu0 0.0
  %517 = vmatprep.subr.mxu0 0.0
  %518 = vmatpush1.msra.mxu0 0.0
  %519 = vmatprep.subr.mxu0 0.0
  %520 = vmatpush1.msra.mxu0 0.0
  %521 = vmatprep.subr.mxu0 0.0
  %522 = vmatpush1.msra.mxu0 0.0
  %523 = vmatprep.subr.mxu0 0.0
  %524 = vmatpush1.msra.mxu0 0.0
  %525 = vmatprep.subr.mxu0 0.0
  %526 = vmatpush1.msra.mxu0 0.0
  %527 = vmatprep.subr.mxu0 0.0
  %528 = vmatpush1.msra.mxu0 0.0
  %529 = vmatprep.subr.mxu0 0.0
  %530 = vmatpush1.msra.mxu0 0.0
  %531 = vmatprep.subr.mxu0 0.0
  %532 = vmatpush1.msra.mxu0 0.0
  %533 = vmatprep.subr.mxu0 0.0
  %534 = vmatpush1.msra.mxu0 0.0
  %535 = vmatprep.subr.mxu0 0.0
  %536 = vmatpush1.msra.mxu0 0.0
  %537 = vmatprep.subr.mxu0 0.0
  %538 = vmatpush1.msra.mxu0 0.0
  %539 = vmatprep.subr.mxu0 0.0
  %540 = vmatpush1.msra.mxu0 0.0
  %541 = vmatprep.subr.mxu0 0.0
  %542 = vmatpush1.msra.mxu0 0.0
  %543 = vmatprep.subr.mxu0 0.0
  %544 = vmatpush1.msra.mxu0 0.0
  %545 = vmatprep.subr.mxu0 0.0
  %546 = vmatpush1.msra.mxu0 0.0
  %547 = vmatprep.subr.mxu0 0.0
  %548 = vmatpush1.msra.mxu0 0.0
  %549 = vmatprep.subr.mxu0 0.0
  %550 = vmatpush1.msra.mxu0 0.0
  %551 = vmatprep.subr.mxu0 0.0
  %552 = vmatpush1.msra.mxu0 0.0
  %553 = vmatprep.subr.mxu0 0.0
  %554 = vmatpush1.msra.mxu0 0.0
  %555 = vmatprep.subr.mxu0 0.0
  %556 = vmatpush1.msra.mxu0 0.0
  %557 = vmatprep.subr.mxu0 0.0
  %558 = vmatpush1.msra.mxu0 0.0
  %559 = vmatprep.subr.mxu0 0.0
  %560 = vmatpush1.msra.mxu0 0.0
  %561 = vmatprep.subr.mxu0 0.0
  %562 = vmatpush1.msra.mxu0 0.0
  %563 = vmatprep.subr.mxu0 0.0
  %564 = vmatpush1.msra.mxu0 0.0
  %565 = vmatprep.subr.mxu0 0.0
  %566 = vmatpush1.msra.mxu0 0.0
  %567 = vmatprep.subr.mxu0 0.0
  %568 = vmatpush1.msra.mxu0 0.0
  %569 = vmatprep.mubr.f32.mxu0 0.0
  %v570 = vand.u32 %v36, 4294901760
  %v571 = vsub.f32 %v36, %v570
  %v572 = vand.u32 %v571, 4294901760
  %573 = vmatmul.mubr.f32.gmra.mrb[0].mxu0 %v572
  %v574 = vpop.f32.mrb[0].mxu0
  %v575 = vadd.f32 %v445, %v574
  %v576 = vpop.f32.mrb[0].mxu0
  %v577 = vadd.f32 %v447, %v576
  %578 = vmatprep.mubr.f32.mxu0 0.0
  %v579 = vand.u32 %v39, 4294901760
  %v580 = vsub.f32 %v39, %v579
  %v581 = vand.u32 %v580, 4294901760
  %582 = vmatmul.mubr.f32.gmra.mrb[0].mxu0 %v581
  %v583 = vpop.f32.mrb[0].mxu0
  %v584 = vadd.f32 %v453, %v583
  %v585 = vpop.f32.mrb[0].mxu0
  %v586 = vadd.f32 %v455, %v585
  %587 = vmatprep.mubr.f32.mxu0 0.0
  %v588 = vand.u32 %v42, 4294901760
  %v589 = vsub.f32 %v42, %v588
  %v590 = vand.u32 %v589, 4294901760
  %591 = vmatmul.mubr.f32.gmra.mrb[0].mxu0 %v590
  %v592 = vpop.f32.mrb[0].mxu0
  %v593 = vadd.f32 %v461, %v592
  %v594 = vpop.f32.mrb[0].mxu0
  %v595 = vadd.f32 %v463, %v594
  %596 = vmatprep.mubr.f32.mxu0 0.0
  %v597 = vand.u32 %v45, 4294901760
  %v598 = vsub.f32 %v45, %v597
  %v599 = vand.u32 %v598, 4294901760
  %600 = vmatmul.mubr.f32.gmra.mrb[0].mxu0 %v599
  %v601 = vpop.f32.mrb[0].mxu0
  %v602 = vadd.f32 %v469, %v601
  %v603 = vpop.f32.mrb[0].mxu0
  %v604 = vadd.f32 %v471, %v603
  %605 = vmatprep.mubr.f32.mxu0 0.0
  %v606 = vand.u32 %v48, 4294901760
  %v607 = vsub.f32 %v48, %v606
  %v608 = vand.u32 %v607, 4294901760
  %609 = vmatmul.mubr.f32.gmra.mrb[0].mxu0 %v608
  %v610 = vpop.f32.mrb[0].mxu0
  %v611 = vadd.f32 %v477, %v610
  %v612 = vpop.f32.mrb[0].mxu0
  %v613 = vadd.f32 %v479, %v612
  %614 = vmatprep.mubr.f32.mxu0 0.0
  %v615 = vand.u32 %v51, 4294901760
  %v616 = vsub.f32 %v51, %v615
  %v617 = vand.u32 %v616, 4294901760
  %618 = vmatmul.mubr.f32.gmra.mrb[0].mxu0 %v617
  %v619 = vpop.f32.mrb[0].mxu0
  %v620 = vadd.f32 %v485, %v619
  %v621 = vpop.f32.mrb[0].mxu0
  %v622 = vadd.f32 %v487, %v621
  %623 = vmatprep.mubr.f32.mxu0 0.0
  %v624 = vand.u32 %v54, 4294901760
  %v625 = vsub.f32 %v54, %v624
  %v626 = vand.u32 %v625, 4294901760
  %627 = vmatmul.mubr.f32.gmra.mrb[0].mxu0 %v626
  %v628 = vpop.f32.mrb[0].mxu0
  %v629 = vadd.f32 %v493, %v628
  %v630 = vpop.f32.mrb[0].mxu0
  %v631 = vadd.f32 %v495, %v630
  %632 = vdwg.mxu0
  %v633 = vand.u32 %v19, 4294901760
  %v634 = vsub.f32 %v19, %v633
  %v635 = vand.u32 %v634, 4294901760
  %636 = vmatprep.subr.mxu0 %v635
  %v637 = vand.u32 %v18, 4294901760
  %v638 = vsub.f32 %v18, %v637
  %v639 = vand.u32 %v638, 4294901760
  %640 = vmatpush1.msra.mxu0 %v639
  %v641 = vand.u32 %v23, 4294901760
  %v642 = vsub.f32 %v23, %v641
  %v643 = vand.u32 %v642, 4294901760
  %644 = vmatprep.subr.mxu0 %v643
  %v645 = vand.u32 %v22, 4294901760
  %v646 = vsub.f32 %v22, %v645
  %v647 = vand.u32 %v646, 4294901760
  %648 = vmatpush1.msra.mxu0 %v647
  %v649 = vand.u32 %v27, 4294901760
  %v650 = vsub.f32 %v27, %v649
  %v651 = vand.u32 %v650, 4294901760
  %652 = vmatprep.subr.mxu0 %v651
  %v653 = vand.u32 %v26, 4294901760
  %v654 = vsub.f32 %v26, %v653
  %v655 = vand.u32 %v654, 4294901760
  %656 = vmatpush1.msra.mxu0 %v655
  %v657 = vand.u32 %v31, 4294901760
  %v658 = vsub.f32 %v31, %v657
  %v659 = vand.u32 %v658, 4294901760
  %660 = vmatprep.subr.mxu0 %v659
  %v661 = vand.u32 %v30, 4294901760
  %v662 = vsub.f32 %v30, %v661
  %v663 = vand.u32 %v662, 4294901760
  %664 = vmatpush1.msra.mxu0 %v663
  %665 = vmatprep.subr.mxu0 0.0
  %666 = vmatpush1.msra.mxu0 0.0
  %667 = vmatprep.subr.mxu0 0.0
  %668 = vmatpush1.msra.mxu0 0.0
  %669 = vmatprep.subr.mxu0 0.0
  %670 = vmatpush1.msra.mxu0 0.0
  %671 = vmatprep.subr.mxu0 0.0
  %672 = vmatpush1.msra.mxu0 0.0
  %673 = vmatprep.subr.mxu0 0.0
  %674 = vmatpush1.msra.mxu0 0.0
  %675 = vmatprep.subr.mxu0 0.0
  %676 = vmatpush1.msra.mxu0 0.0
  %677 = vmatprep.subr.mxu0 0.0
  %678 = vmatpush1.msra.mxu0 0.0
  %679 = vmatprep.subr.mxu0 0.0
  %680 = vmatpush1.msra.mxu0 0.0
  %681 = vmatprep.subr.mxu0 0.0
  %682 = vmatpush1.msra.mxu0 0.0
  %683 = vmatprep.subr.mxu0 0.0
  %684 = vmatpush1.msra.mxu0 0.0
  %685 = vmatprep.subr.mxu0 0.0
  %686 = vmatpush1.msra.mxu0 0.0
  %687 = vmatprep.subr.mxu0 0.0
  %688 = vmatpush1.msra.mxu0 0.0
  %689 = vmatprep.subr.mxu0 0.0
  %690 = vmatpush1.msra.mxu0 0.0
  %691 = vmatprep.subr.mxu0 0.0
  %692 = vmatpush1.msra.mxu0 0.0
  %693 = vmatprep.subr.mxu0 0.0
  %694 = vmatpush1.msra.mxu0 0.0
  %695 = vmatprep.subr.mxu0 0.0
  %696 = vmatpush1.msra.mxu0 0.0
  %697 = vmatprep.subr.mxu0 0.0
  %698 = vmatpush1.msra.mxu0 0.0
  %699 = vmatprep.subr.mxu0 0.0
  %700 = vmatpush1.msra.mxu0 0.0
  %701 = vmatprep.subr.mxu0 0.0
  %702 = vmatpush1.msra.mxu0 0.0
  %703 = vmatprep.subr.mxu0 0.0
  %704 = vmatpush1.msra.mxu0 0.0
  %705 = vmatprep.subr.mxu0 0.0
  %706 = vmatpush1.msra.mxu0 0.0
  %707 = vmatprep.subr.mxu0 0.0
  %708 = vmatpush1.msra.mxu0 0.0
  %709 = vmatprep.subr.mxu0 0.0
  %710 = vmatpush1.msra.mxu0 0.0
  %711 = vmatprep.subr.mxu0 0.0
  %712 = vmatpush1.msra.mxu0 0.0
  %713 = vmatprep.subr.mxu0 0.0
  %714 = vmatpush1.msra.mxu0 0.0
  %715 = vmatprep.subr.mxu0 0.0
  %716 = vmatpush1.msra.mxu0 0.0
  %717 = vmatprep.subr.mxu0 0.0
  %718 = vmatpush1.msra.mxu0 0.0
  %719 = vmatprep.subr.mxu0 0.0
  %720 = vmatpush1.msra.mxu0 0.0
  %721 = vmatprep.mubr.f32.mxu0 0.0
  %v722 = vand.u32 %v36, 4294901760
  %723 = vmatmul.mubr.f32.gmra.mrb[0].mxu0 %v722
  %v724 = vpop.f32.mrb[0].mxu0
  %v725 = vadd.f32 %v575, %v724
  %v726 = vpop.f32.mrb[0].mxu0
  %v727 = vadd.f32 %v577, %v726
  %728 = vmatprep.mubr.f32.mxu0 0.0
  %v729 = vand.u32 %v39, 4294901760
  %730 = vmatmul.mubr.f32.gmra.mrb[0].mxu0 %v729
  %v731 = vpop.f32.mrb[0].mxu0
  %v732 = vadd.f32 %v584, %v731
  %v733 = vpop.f32.mrb[0].mxu0
  %v734 = vadd.f32 %v586, %v733
  %735 = vmatprep.mubr.f32.mxu0 0.0
  %v736 = vand.u32 %v42, 4294901760
  %737 = vmatmul.mubr.f32.gmra.mrb[0].mxu0 %v736
  %v738 = vpop.f32.mrb[0].mxu0
  %v739 = vadd.f32 %v593, %v738
  %v740 = vpop.f32.mrb[0].mxu0
  %v741 = vadd.f32 %v595, %v740
  %742 = vmatprep.mubr.f32.mxu0 0.0
  %v743 = vand.u32 %v45, 4294901760
  %744 = vmatmul.mubr.f32.gmra.mrb[0].mxu0 %v743
  %v745 = vpop.f32.mrb[0].mxu0
  %v746 = vadd.f32 %v602, %v745
  %v747 = vpop.f32.mrb[0].mxu0
  %v748 = vadd.f32 %v604, %v747
  %749 = vmatprep.mubr.f32.mxu0 0.0
  %v750 = vand.u32 %v48, 4294901760
  %751 = vmatmul.mubr.f32.gmra.mrb[0].mxu0 %v750
  %v752 = vpop.f32.mrb[0].mxu0
  %v753 = vadd.f32 %v611, %v752
  %v754 = vpop.f32.mrb[0].mxu0
  %v755 = vadd.f32 %v613, %v754
  %756 = vmatprep.mubr.f32.mxu0 0.0
  %v757 = vand.u32 %v51, 4294901760
  %758 = vmatmul.mubr.f32.gmra.mrb[0].mxu0 %v757
  %v759 = vpop.f32.mrb[0].mxu0
  %v760 = vadd.f32 %v620, %v759
  %v761 = vpop.f32.mrb[0].mxu0
  %v762 = vadd.f32 %v622, %v761
  %763 = vmatprep.mubr.f32.mxu0 0.0
  %v764 = vand.u32 %v54, 4294901760
  %765 = vmatmul.mubr.f32.gmra.mrb[0].mxu0 %v764
  %v766 = vpop.f32.mrb[0].mxu0
  %v767 = vadd.f32 %v629, %v766
  %v768 = vpop.f32.mrb[0].mxu0
  %v769 = vadd.f32 %v631, %v768
  %770 = vdwg.mxu0
  %v771 = vand.u32 %v19, 4294901760
  %772 = vmatprep.subr.mxu0 %v771
  %v773 = vand.u32 %v18, 4294901760
  %774 = vmatpush1.msra.mxu0 %v773
  %v775 = vand.u32 %v23, 4294901760
  %776 = vmatprep.subr.mxu0 %v775
  %v777 = vand.u32 %v22, 4294901760
  %778 = vmatpush1.msra.mxu0 %v777
  %v779 = vand.u32 %v27, 4294901760
  %780 = vmatprep.subr.mxu0 %v779
  %v781 = vand.u32 %v26, 4294901760
  %782 = vmatpush1.msra.mxu0 %v781
  %v783 = vand.u32 %v31, 4294901760
  %784 = vmatprep.subr.mxu0 %v783
  %v785 = vand.u32 %v30, 4294901760
  %786 = vmatpush1.msra.mxu0 %v785
  %787 = vmatprep.subr.mxu0 0.0
  %788 = vmatpush1.msra.mxu0 0.0
  %789 = vmatprep.subr.mxu0 0.0
  %790 = vmatpush1.msra.mxu0 0.0
  %791 = vmatprep.subr.mxu0 0.0
  %792 = vmatpush1.msra.mxu0 0.0
  %793 = vmatprep.subr.mxu0 0.0
  %794 = vmatpush1.msra.mxu0 0.0
  %795 = vmatprep.subr.mxu0 0.0
  %796 = vmatpush1.msra.mxu0 0.0
  %797 = vmatprep.subr.mxu0 0.0
  %798 = vmatpush1.msra.mxu0 0.0
  %799 = vmatprep.subr.mxu0 0.0
  %800 = vmatpush1.msra.mxu0 0.0
  %801 = vmatprep.subr.mxu0 0.0
  %802 = vmatpush1.msra.mxu0 0.0
  %803 = vmatprep.subr.mxu0 0.0
  %804 = vmatpush1.msra.mxu0 0.0
  %805 = vmatprep.subr.mxu0 0.0
  %806 = vmatpush1.msra.mxu0 0.0
  %807 = vmatprep.subr.mxu0 0.0
  %808 = vmatpush1.msra.mxu0 0.0
  %809 = vmatprep.subr.mxu0 0.0
  %810 = vmatpush1.msra.mxu0 0.0
  %811 = vmatprep.subr.mxu0 0.0
  %812 = vmatpush1.msra.mxu0 0.0
  %813 = vmatprep.subr.mxu0 0.0
  %814 = vmatpush1.msra.mxu0 0.0
  %815 = vmatprep.subr.mxu0 0.0
  %816 = vmatpush1.msra.mxu0 0.0
  %817 = vmatprep.subr.mxu0 0.0
  %818 = vmatpush1.msra.mxu0 0.0
  %819 = vmatprep.subr.mxu0 0.0
  %820 = vmatpush1.msra.mxu0 0.0
  %821 = vmatprep.subr.mxu0 0.0
  %822 = vmatpush1.msra.mxu0 0.0
  %823 = vmatprep.subr.mxu0 0.0
  %824 = vmatpush1.msra.mxu0 0.0
  %825 = vmatprep.subr.mxu0 0.0
  %826 = vmatpush1.msra.mxu0 0.0
  %827 = vmatprep.subr.mxu0 0.0
  %828 = vmatpush1.msra.mxu0 0.0
  %829 = vmatprep.subr.mxu0 0.0
  %830 = vmatpush1.msra.mxu0 0.0
  %831 = vmatprep.subr.mxu0 0.0
  %832 = vmatpush1.msra.mxu0 0.0
  %833 = vmatprep.subr.mxu0 0.0
  %834 = vmatpush1.msra.mxu0 0.0
  %835 = vmatprep.subr.mxu0 0.0
  %836 = vmatpush1.msra.mxu0 0.0
  %837 = vmatprep.subr.mxu0 0.0
  %838 = vmatpush1.msra.mxu0 0.0
  %839 = vmatprep.subr.mxu0 0.0
  %840 = vmatpush1.msra.mxu0 0.0
  %841 = vmatprep.subr.mxu0 0.0
  %842 = vmatpush1.msra.mxu0 0.0
  %843 = vmatprep.mubr.f32.mxu0 0.0
  %v844 = vand.u32 %v36, 4294901760
  %845 = vmatmul.mubr.f32.gmra.mrb[0].mxu0 %v844
  %v846 = vpop.f32.mrb[0].mxu0
  %v847 = vadd.f32 %v725, %v846
  %v848 = vpop.f32.mrb[0].mxu0
  %v849 = vadd.f32 %v727, %v848
  %850 = vmatprep.mubr.f32.mxu0 0.0
  %v851 = vand.u32 %v39, 4294901760
  %852 = vmatmul.mubr.f32.gmra.mrb[0].mxu0 %v851
  %v853 = vpop.f32.mrb[0].mxu0
  %v854 = vadd.f32 %v732, %v853
  %v855 = vpop.f32.mrb[0].mxu0
  %v856 = vadd.f32 %v734, %v855
  %857 = vmatprep.mubr.f32.mxu0 0.0
  %v858 = vand.u32 %v42, 4294901760
  %859 = vmatmul.mubr.f32.gmra.mrb[0].mxu0 %v858
  %v860 = vpop.f32.mrb[0].mxu0
  %v861 = vadd.f32 %v739, %v860
  %v862 = vpop.f32.mrb[0].mxu0
  %v863 = vadd.f32 %v741, %v862
  %864 = vmatprep.mubr.f32.mxu0 0.0
  %v865 = vand.u32 %v45, 4294901760
  %866 = vmatmul.mubr.f32.gmra.mrb[0].mxu0 %v865
  %v867 = vpop.f32.mrb[0].mxu0
  %v868 = vadd.f32 %v746, %v867
  %v869 = vpop.f32.mrb[0].mxu0
  %v870 = vadd.f32 %v748, %v869
  %871 = vmatprep.mubr.f32.mxu0 0.0
  %v872 = vand.u32 %v48, 4294901760
  %873 = vmatmul.mubr.f32.gmra.mrb[0].mxu0 %v872
  %v874 = vpop.f32.mrb[0].mxu0
  %v875 = vadd.f32 %v753, %v874
  %v876 = vpop.f32.mrb[0].mxu0
  %v877 = vadd.f32 %v755, %v876
  %878 = vmatprep.mubr.f32.mxu0 0.0
  %v879 = vand.u32 %v51, 4294901760
  %880 = vmatmul.mubr.f32.gmra.mrb[0].mxu0 %v879
  %v881 = vpop.f32.mrb[0].mxu0
  %v882 = vadd.f32 %v760, %v881
  %v883 = vpop.f32.mrb[0].mxu0
  %v884 = vadd.f32 %v762, %v883
  %885 = vmatprep.mubr.f32.mxu0 0.0
  %v886 = vand.u32 %v54, 4294901760
  %887 = vmatmul.mubr.f32.gmra.mrb[0].mxu0 %v886
  %v888 = vpop.f32.mrb[0].mxu0
  %v889 = vadd.f32 %v767, %v888
  %v890 = vpop.f32.mrb[0].mxu0
  %v891 = vadd.f32 %v769, %v890
  %892 = vdwg.mxu0
  %v893 = vand.u32 %v21, 4294901760
  %894 = vmatprep.subr.mxu0 %v893
  %v895 = vand.u32 %v20, 4294901760
  %896 = vmatpush1.msra.mxu0 %v895
  %v897 = vand.u32 %v25, 4294901760
  %898 = vmatprep.subr.mxu0 %v897
  %v899 = vand.u32 %v24, 4294901760
  %900 = vmatpush1.msra.mxu0 %v899
  %v901 = vand.u32 %v29, 4294901760
  %902 = vmatprep.subr.mxu0 %v901
  %v903 = vand.u32 %v28, 4294901760
  %904 = vmatpush1.msra.mxu0 %v903
  %v905 = vand.u32 %v33, 4294901760
  %906 = vmatprep.subr.mxu0 %v905
  %v907 = vand.u32 %v32, 4294901760
  %908 = vmatpush1.msra.mxu0 %v907
  %909 = vmatprep.subr.mxu0 0.0
  %910 = vmatpush1.msra.mxu0 0.0
  %911 = vmatprep.subr.mxu0 0.0
  %912 = vmatpush1.msra.mxu0 0.0
  %913 = vmatprep.subr.mxu0 0.0
  %914 = vmatpush1.msra.mxu0 0.0
  %915 = vmatprep.subr.mxu0 0.0
  %916 = vmatpush1.msra.mxu0 0.0
  %917 = vmatprep.subr.mxu0 0.0
  %918 = vmatpush1.msra.mxu0 0.0
  %919 = vmatprep.subr.mxu0 0.0
  %920 = vmatpush1.msra.mxu0 0.0
  %921 = vmatprep.subr.mxu0 0.0
  %922 = vmatpush1.msra.mxu0 0.0
  %923 = vmatprep.subr.mxu0 0.0
  %924 = vmatpush1.msra.mxu0 0.0
  %925 = vmatprep.subr.mxu0 0.0
  %926 = vmatpush1.msra.mxu0 0.0
  %927 = vmatprep.subr.mxu0 0.0
  %928 = vmatpush1.msra.mxu0 0.0
  %929 = vmatprep.subr.mxu0 0.0
  %930 = vmatpush1.msra.mxu0 0.0
  %931 = vmatprep.subr.mxu0 0.0
  %932 = vmatpush1.msra.mxu0 0.0
  %933 = vmatprep.subr.mxu0 0.0
  %934 = vmatpush1.msra.mxu0 0.0
  %935 = vmatprep.subr.mxu0 0.0
  %936 = vmatpush1.msra.mxu0 0.0
  %937 = vmatprep.subr.mxu0 0.0
  %938 = vmatpush1.msra.mxu0 0.0
  %939 = vmatprep.subr.mxu0 0.0
  %940 = vmatpush1.msra.mxu0 0.0
  %941 = vmatprep.subr.mxu0 0.0
  %942 = vmatpush1.msra.mxu0 0.0
  %943 = vmatprep.subr.mxu0 0.0
  %944 = vmatpush1.msra.mxu0 0.0
  %945 = vmatprep.subr.mxu0 0.0
  %946 = vmatpush1.msra.mxu0 0.0
  %947 = vmatprep.subr.mxu0 0.0
  %948 = vmatpush1.msra.mxu0 0.0
  %949 = vmatprep.subr.mxu0 0.0
  %950 = vmatpush1.msra.mxu0 0.0
  %951 = vmatprep.subr.mxu0 0.0
  %952 = vmatpush1.msra.mxu0 0.0
  %953 = vmatprep.subr.mxu0 0.0
  %954 = vmatpush1.msra.mxu0 0.0
  %955 = vmatprep.subr.mxu0 0.0
  %956 = vmatpush1.msra.mxu0 0.0
  %957 = vmatprep.subr.mxu0 0.0
  %958 = vmatpush1.msra.mxu0 0.0
  %959 = vmatprep.subr.mxu0 0.0
  %960 = vmatpush1.msra.mxu0 0.0
  %961 = vmatprep.subr.mxu0 0.0
  %962 = vmatpush1.msra.mxu0 0.0
  %963 = vmatprep.subr.mxu0 0.0
  %964 = vmatpush1.msra.mxu0 0.0
  %965 = vmatprep.mubr.f32.mxu0 0.0
  %v966 = vand.u32 %v36, 4294901760
  %v967 = vsub.f32 %v36, %v966
  %v968 = vand.u32 %v967, 4294901760
  %v969 = vsub.f32 %v967, %v968
  %v970 = vand.u32 %v969, 4294901760
  %971 = vmatmul.mubr.f32.gmra.mrb[0].mxu0 %v970
  %v972 = vpop.f32.mrb[0].mxu0
  %v973 = vadd.f32 0.0, %v972
  %v974 = vpop.f32.mrb[0].mxu0
  %v975 = vadd.f32 0.0, %v974
  %976 = vmatprep.mubr.f32.mxu0 0.0
  %v977 = vand.u32 %v39, 4294901760
  %v978 = vsub.f32 %v39, %v977
  %v979 = vand.u32 %v978, 4294901760
  %v980 = vsub.f32 %v978, %v979
  %v981 = vand.u32 %v980, 4294901760
  %982 = vmatmul.mubr.f32.gmra.mrb[0].mxu0 %v981
  %v983 = vpop.f32.mrb[0].mxu0
  %v984 = vadd.f32 0.0, %v983
  %v985 = vpop.f32.mrb[0].mxu0
  %v986 = vadd.f32 0.0, %v985
  %987 = vmatprep.mubr.f32.mxu0 0.0
  %v988 = vand.u32 %v42, 4294901760
  %v989 = vsub.f32 %v42, %v988
  %v990 = vand.u32 %v989, 4294901760
  %v991 = vsub.f32 %v989, %v990
  %v992 = vand.u32 %v991, 4294901760
  %993 = vmatmul.mubr.f32.gmra.mrb[0].mxu0 %v992
  %v994 = vpop.f32.mrb[0].mxu0
  %v995 = vadd.f32 0.0, %v994
  %v996 = vpop.f32.mrb[0].mxu0
  %v997 = vadd.f32 0.0, %v996
  %998 = vmatprep.mubr.f32.mxu0 0.0
  %v999 = vand.u32 %v45, 4294901760
  %v1000 = vsub.f32 %v45, %v999
  %v1001 = vand.u32 %v1000, 4294901760
  %v1002 = vsub.f32 %v1000, %v1001
  %v1003 = vand.u32 %v1002, 4294901760
  %1004 = vmatmul.mubr.f32.gmra.mrb[0].mxu0 %v1003
  %v1005 = vpop.f32.mrb[0].mxu0
  %v1006 = vadd.f32 0.0, %v1005
  %v1007 = vpop.f32.mrb[0].mxu0
  %v1008 = vadd.f32 0.0, %v1007
  %1009 = vmatprep.mubr.f32.mxu0 0.0
  %v1010 = vand.u32 %v48, 4294901760
  %v1011 = vsub.f32 %v48, %v1010
  %v1012 = vand.u32 %v1011, 4294901760
  %v1013 = vsub.f32 %v1011, %v1012
  %v1014 = vand.u32 %v1013, 4294901760
  %1015 = vmatmul.mubr.f32.gmra.mrb[0].mxu0 %v1014
  %v1016 = vpop.f32.mrb[0].mxu0
  %v1017 = vadd.f32 0.0, %v1016
  %v1018 = vpop.f32.mrb[0].mxu0
  %v1019 = vadd.f32 0.0, %v1018
  %1020 = vmatprep.mubr.f32.mxu0 0.0
  %v1021 = vand.u32 %v51, 4294901760
  %v1022 = vsub.f32 %v51, %v1021
  %v1023 = vand.u32 %v1022, 4294901760
  %v1024 = vsub.f32 %v1022, %v1023
  %v1025 = vand.u32 %v1024, 4294901760
  %1026 = vmatmul.mubr.f32.gmra.mrb[0].mxu0 %v1025
  %v1027 = vpop.f32.mrb[0].mxu0
  %v1028 = vadd.f32 0.0, %v1027
  %v1029 = vpop.f32.mrb[0].mxu0
  %v1030 = vadd.f32 0.0, %v1029
  %1031 = vmatprep.mubr.f32.mxu0 0.0
  %v1032 = vand.u32 %v54, 4294901760
  %v1033 = vsub.f32 %v54, %v1032
  %v1034 = vand.u32 %v1033, 4294901760
  %v1035 = vsub.f32 %v1033, %v1034
  %v1036 = vand.u32 %v1035, 4294901760
  %1037 = vmatmul.mubr.f32.gmra.mrb[0].mxu0 %v1036
  %v1038 = vpop.f32.mrb[0].mxu0
  %v1039 = vadd.f32 0.0, %v1038
  %v1040 = vpop.f32.mrb[0].mxu0
  %v1041 = vadd.f32 0.0, %v1040
  %1042 = vdwg.mxu0
  %v1043 = vand.u32 %v21, 4294901760
  %v1044 = vsub.f32 %v21, %v1043
  %v1045 = vand.u32 %v1044, 4294901760
  %v1046 = vsub.f32 %v1044, %v1045
  %v1047 = vand.u32 %v1046, 4294901760
  %1048 = vmatprep.subr.mxu0 %v1047
  %v1049 = vand.u32 %v20, 4294901760
  %v1050 = vsub.f32 %v20, %v1049
  %v1051 = vand.u32 %v1050, 4294901760
  %v1052 = vsub.f32 %v1050, %v1051
  %v1053 = vand.u32 %v1052, 4294901760
  %1054 = vmatpush1.msra.mxu0 %v1053
  %v1055 = vand.u32 %v25, 4294901760
  %v1056 = vsub.f32 %v25, %v1055
  %v1057 = vand.u32 %v1056, 4294901760
  %v1058 = vsub.f32 %v1056, %v1057
  %v1059 = vand.u32 %v1058, 4294901760
  %1060 = vmatprep.subr.mxu0 %v1059
  %v1061 = vand.u32 %v24, 4294901760
  %v1062 = vsub.f32 %v24, %v1061
  %v1063 = vand.u32 %v1062, 4294901760
  %v1064 = vsub.f32 %v1062, %v1063
  %v1065 = vand.u32 %v1064, 4294901760
  %1066 = vmatpush1.msra.mxu0 %v1065
  %v1067 = vand.u32 %v29, 4294901760
  %v1068 = vsub.f32 %v29, %v1067
  %v1069 = vand.u32 %v1068, 4294901760
  %v1070 = vsub.f32 %v1068, %v1069
  %v1071 = vand.u32 %v1070, 4294901760
  %1072 = vmatprep.subr.mxu0 %v1071
  %v1073 = vand.u32 %v28, 4294901760
  %v1074 = vsub.f32 %v28, %v1073
  %v1075 = vand.u32 %v1074, 4294901760
  %v1076 = vsub.f32 %v1074, %v1075
  %v1077 = vand.u32 %v1076, 4294901760
  %1078 = vmatpush1.msra.mxu0 %v1077
  %v1079 = vand.u32 %v33, 4294901760
  %v1080 = vsub.f32 %v33, %v1079
  %v1081 = vand.u32 %v1080, 4294901760
  %v1082 = vsub.f32 %v1080, %v1081
  %v1083 = vand.u32 %v1082, 4294901760
  %1084 = vmatprep.subr.mxu0 %v1083
  %v1085 = vand.u32 %v32, 4294901760
  %v1086 = vsub.f32 %v32, %v1085
  %v1087 = vand.u32 %v1086, 4294901760
  %v1088 = vsub.f32 %v1086, %v1087
  %v1089 = vand.u32 %v1088, 4294901760
  %1090 = vmatpush1.msra.mxu0 %v1089
  %1091 = vmatprep.subr.mxu0 0.0
  %1092 = vmatpush1.msra.mxu0 0.0
  %1093 = vmatprep.subr.mxu0 0.0
  %1094 = vmatpush1.msra.mxu0 0.0
  %1095 = vmatprep.subr.mxu0 0.0
  %1096 = vmatpush1.msra.mxu0 0.0
  %1097 = vmatprep.subr.mxu0 0.0
  %1098 = vmatpush1.msra.mxu0 0.0
  %1099 = vmatprep.subr.mxu0 0.0
  %1100 = vmatpush1.msra.mxu0 0.0
  %1101 = vmatprep.subr.mxu0 0.0
  %1102 = vmatpush1.msra.mxu0 0.0
  %1103 = vmatprep.subr.mxu0 0.0
  %1104 = vmatpush1.msra.mxu0 0.0
  %1105 = vmatprep.subr.mxu0 0.0
  %1106 = vmatpush1.msra.mxu0 0.0
  %1107 = vmatprep.subr.mxu0 0.0
  %1108 = vmatpush1.msra.mxu0 0.0
  %1109 = vmatprep.subr.mxu0 0.0
  %1110 = vmatpush1.msra.mxu0 0.0
  %1111 = vmatprep.subr.mxu0 0.0
  %1112 = vmatpush1.msra.mxu0 0.0
  %1113 = vmatprep.subr.mxu0 0.0
  %1114 = vmatpush1.msra.mxu0 0.0
  %1115 = vmatprep.subr.mxu0 0.0
  %1116 = vmatpush1.msra.mxu0 0.0
  %1117 = vmatprep.subr.mxu0 0.0
  %1118 = vmatpush1.msra.mxu0 0.0
  %1119 = vmatprep.subr.mxu0 0.0
  %1120 = vmatpush1.msra.mxu0 0.0
  %1121 = vmatprep.subr.mxu0 0.0
  %1122 = vmatpush1.msra.mxu0 0.0
  %1123 = vmatprep.subr.mxu0 0.0
  %1124 = vmatpush1.msra.mxu0 0.0
  %1125 = vmatprep.subr.mxu0 0.0
  %1126 = vmatpush1.msra.mxu0 0.0
  %1127 = vmatprep.subr.mxu0 0.0
  %1128 = vmatpush1.msra.mxu0 0.0
  %1129 = vmatprep.subr.mxu0 0.0
  %1130 = vmatpush1.msra.mxu0 0.0
  %1131 = vmatprep.subr.mxu0 0.0
  %1132 = vmatpush1.msra.mxu0 0.0
  %1133 = vmatprep.subr.mxu0 0.0
  %1134 = vmatpush1.msra.mxu0 0.0
  %1135 = vmatprep.subr.mxu0 0.0
  %1136 = vmatpush1.msra.mxu0 0.0
  %1137 = vmatprep.subr.mxu0 0.0
  %1138 = vmatpush1.msra.mxu0 0.0
  %1139 = vmatprep.subr.mxu0 0.0
  %1140 = vmatpush1.msra.mxu0 0.0
  %1141 = vmatprep.subr.mxu0 0.0
  %1142 = vmatpush1.msra.mxu0 0.0
  %1143 = vmatprep.subr.mxu0 0.0
  %1144 = vmatpush1.msra.mxu0 0.0
  %1145 = vmatprep.subr.mxu0 0.0
  %1146 = vmatpush1.msra.mxu0 0.0
  %1147 = vmatprep.mubr.f32.mxu0 0.0
  %v1148 = vand.u32 %v36, 4294901760
  %1149 = vmatmul.mubr.f32.gmra.mrb[0].mxu0 %v1148
  %v1150 = vpop.f32.mrb[0].mxu0
  %v1151 = vadd.f32 %v973, %v1150
  %v1152 = vpop.f32.mrb[0].mxu0
  %v1153 = vadd.f32 %v975, %v1152
  %1154 = vmatprep.mubr.f32.mxu0 0.0
  %v1155 = vand.u32 %v39, 4294901760
  %1156 = vmatmul.mubr.f32.gmra.mrb[0].mxu0 %v1155
  %v1157 = vpop.f32.mrb[0].mxu0
  %v1158 = vadd.f32 %v984, %v1157
  %v1159 = vpop.f32.mrb[0].mxu0
  %v1160 = vadd.f32 %v986, %v1159
  %1161 = vmatprep.mubr.f32.mxu0 0.0
  %v1162 = vand.u32 %v42, 4294901760
  %1163 = vmatmul.mubr.f32.gmra.mrb[0].mxu0 %v1162
  %v1164 = vpop.f32.mrb[0].mxu0
  %v1165 = vadd.f32 %v995, %v1164
  %v1166 = vpop.f32.mrb[0].mxu0
  %v1167 = vadd.f32 %v997, %v1166
  %1168 = vmatprep.mubr.f32.mxu0 0.0
  %v1169 = vand.u32 %v45, 4294901760
  %1170 = vmatmul.mubr.f32.gmra.mrb[0].mxu0 %v1169
  %v1171 = vpop.f32.mrb[0].mxu0
  %v1172 = vadd.f32 %v1006, %v1171
  %v1173 = vpop.f32.mrb[0].mxu0
  %v1174 = vadd.f32 %v1008, %v1173
  %1175 = vmatprep.mubr.f32.mxu0 0.0
  %v1176 = vand.u32 %v48, 4294901760
  %1177 = vmatmul.mubr.f32.gmra.mrb[0].mxu0 %v1176
  %v1178 = vpop.f32.mrb[0].mxu0
  %v1179 = vadd.f32 %v1017, %v1178
  %v1180 = vpop.f32.mrb[0].mxu0
  %v1181 = vadd.f32 %v1019, %v1180
  %1182 = vmatprep.mubr.f32.mxu0 0.0
  %v1183 = vand.u32 %v51, 4294901760
  %1184 = vmatmul.mubr.f32.gmra.mrb[0].mxu0 %v1183
  %v1185 = vpop.f32.mrb[0].mxu0
  %v1186 = vadd.f32 %v1028, %v1185
  %v1187 = vpop.f32.mrb[0].mxu0
  %v1188 = vadd.f32 %v1030, %v1187
  %1189 = vmatprep.mubr.f32.mxu0 0.0
  %v1190 = vand.u32 %v54, 4294901760
  %1191 = vmatmul.mubr.f32.gmra.mrb[0].mxu0 %v1190
  %v1192 = vpop.f32.mrb[0].mxu0
  %v1193 = vadd.f32 %v1039, %v1192
  %v1194 = vpop.f32.mrb[0].mxu0
  %v1195 = vadd.f32 %v1041, %v1194
  %1196 = vdwg.mxu0
  %v1197 = vand.u32 %v21, 4294901760
  %v1198 = vsub.f32 %v21, %v1197
  %1199 = vmatprep.subr.mxu0 %v1198
  %v1200 = vand.u32 %v20, 4294901760
  %v1201 = vsub.f32 %v20, %v1200
  %1202 = vmatpush1.msra.mxu0 %v1201
  %v1203 = vand.u32 %v25, 4294901760
  %v1204 = vsub.f32 %v25, %v1203
  %1205 = vmatprep.subr.mxu0 %v1204
  %v1206 = vand.u32 %v24, 4294901760
  %v1207 = vsub.f32 %v24, %v1206
  %1208 = vmatpush1.msra.mxu0 %v1207
  %v1209 = vand.u32 %v29, 4294901760
  %v1210 = vsub.f32 %v29, %v1209
  %1211 = vmatprep.subr.mxu0 %v1210
  %v1212 = vand.u32 %v28, 4294901760
  %v1213 = vsub.f32 %v28, %v1212
  %1214 = vmatpush1.msra.mxu0 %v1213
  %v1215 = vand.u32 %v33, 4294901760
  %v1216 = vsub.f32 %v33, %v1215
  %1217 = vmatprep.subr.mxu0 %v1216
  %v1218 = vand.u32 %v32, 4294901760
  %v1219 = vsub.f32 %v32, %v1218
  %1220 = vmatpush1.msra.mxu0 %v1219
  %1221 = vmatprep.subr.mxu0 0.0
  %1222 = vmatpush1.msra.mxu0 0.0
  %1223 = vmatprep.subr.mxu0 0.0
  %1224 = vmatpush1.msra.mxu0 0.0
  %1225 = vmatprep.subr.mxu0 0.0
  %1226 = vmatpush1.msra.mxu0 0.0
  %1227 = vmatprep.subr.mxu0 0.0
  %1228 = vmatpush1.msra.mxu0 0.0
  %1229 = vmatprep.subr.mxu0 0.0
  %1230 = vmatpush1.msra.mxu0 0.0
  %1231 = vmatprep.subr.mxu0 0.0
  %1232 = vmatpush1.msra.mxu0 0.0
  %1233 = vmatprep.subr.mxu0 0.0
  %1234 = vmatpush1.msra.mxu0 0.0
  %1235 = vmatprep.subr.mxu0 0.0
  %1236 = vmatpush1.msra.mxu0 0.0
  %1237 = vmatprep.subr.mxu0 0.0
  %1238 = vmatpush1.msra.mxu0 0.0
  %1239 = vmatprep.subr.mxu0 0.0
  %1240 = vmatpush1.msra.mxu0 0.0
  %1241 = vmatprep.subr.mxu0 0.0
  %1242 = vmatpush1.msra.mxu0 0.0
  %1243 = vmatprep.subr.mxu0 0.0
  %1244 = vmatpush1.msra.mxu0 0.0
  %1245 = vmatprep.subr.mxu0 0.0
  %1246 = vmatpush1.msra.mxu0 0.0
  %1247 = vmatprep.subr.mxu0 0.0
  %1248 = vmatpush1.msra.mxu0 0.0
  %1249 = vmatprep.subr.mxu0 0.0
  %1250 = vmatpush1.msra.mxu0 0.0
  %1251 = vmatprep.subr.mxu0 0.0
  %1252 = vmatpush1.msra.mxu0 0.0
  %1253 = vmatprep.subr.mxu0 0.0
  %1254 = vmatpush1.msra.mxu0 0.0
  %1255 = vmatprep.subr.mxu0 0.0
  %1256 = vmatpush1.msra.mxu0 0.0
  %1257 = vmatprep.subr.mxu0 0.0
  %1258 = vmatpush1.msra.mxu0 0.0
  %1259 = vmatprep.subr.mxu0 0.0
  %1260 = vmatpush1.msra.mxu0 0.0
  %1261 = vmatprep.subr.mxu0 0.0
  %1262 = vmatpush1.msra.mxu0 0.0
  %1263 = vmatprep.subr.mxu0 0.0
  %1264 = vmatpush1.msra.mxu0 0.0
  %1265 = vmatprep.subr.mxu0 0.0
  %1266 = vmatpush1.msra.mxu0 0.0
  %1267 = vmatprep.subr.mxu0 0.0
  %1268 = vmatpush1.msra.mxu0 0.0
  %1269 = vmatprep.subr.mxu0 0.0
  %1270 = vmatpush1.msra.mxu0 0.0
  %1271 = vmatprep.subr.mxu0 0.0
  %1272 = vmatpush1.msra.mxu0 0.0
  %1273 = vmatprep.subr.mxu0 0.0
  %1274 = vmatpush1.msra.mxu0 0.0
  %1275 = vmatprep.subr.mxu0 0.0
  %1276 = vmatpush1.msra.mxu0 0.0
  %1277 = vmatprep.mubr.f32.mxu0 0.0
  %v1278 = vand.u32 %v36, 4294901760
  %v1279 = vsub.f32 %v36, %v1278
  %1280 = vmatmul.mubr.f32.gmra.mrb[0].mxu0 %v1279
  %v1281 = vpop.f32.mrb[0].mxu0
  %v1282 = vadd.f32 %v1151, %v1281
  %v1283 = vpop.f32.mrb[0].mxu0
  %v1284 = vadd.f32 %v1153, %v1283
  %1285 = vmatprep.mubr.f32.mxu0 0.0
  %v1286 = vand.u32 %v39, 4294901760
  %v1287 = vsub.f32 %v39, %v1286
  %1288 = vmatmul.mubr.f32.gmra.mrb[0].mxu0 %v1287
  %v1289 = vpop.f32.mrb[0].mxu0
  %v1290 = vadd.f32 %v1158, %v1289
  %v1291 = vpop.f32.mrb[0].mxu0
  %v1292 = vadd.f32 %v1160, %v1291
  %1293 = vmatprep.mubr.f32.mxu0 0.0
  %v1294 = vand.u32 %v42, 4294901760
  %v1295 = vsub.f32 %v42, %v1294
  %1296 = vmatmul.mubr.f32.gmra.mrb[0].mxu0 %v1295
  %v1297 = vpop.f32.mrb[0].mxu0
  %v1298 = vadd.f32 %v1165, %v1297
  %v1299 = vpop.f32.mrb[0].mxu0
  %v1300 = vadd.f32 %v1167, %v1299
  %1301 = vmatprep.mubr.f32.mxu0 0.0
  %v1302 = vand.u32 %v45, 4294901760
  %v1303 = vsub.f32 %v45, %v1302
  %1304 = vmatmul.mubr.f32.gmra.mrb[0].mxu0 %v1303
  %v1305 = vpop.f32.mrb[0].mxu0
  %v1306 = vadd.f32 %v1172, %v1305
  %v1307 = vpop.f32.mrb[0].mxu0
  %v1308 = vadd.f32 %v1174, %v1307
  %1309 = vmatprep.mubr.f32.mxu0 0.0
  %v1310 = vand.u32 %v48, 4294901760
  %v1311 = vsub.f32 %v48, %v1310
  %1312 = vmatmul.mubr.f32.gmra.mrb[0].mxu0 %v1311
  %v1313 = vpop.f32.mrb[0].mxu0
  %v1314 = vadd.f32 %v1179, %v1313
  %v1315 = vpop.f32.mrb[0].mxu0
  %v1316 = vadd.f32 %v1181, %v1315
  %1317 = vmatprep.mubr.f32.mxu0 0.0
  %v1318 = vand.u32 %v51, 4294901760
  %v1319 = vsub.f32 %v51, %v1318
  %1320 = vmatmul.mubr.f32.gmra.mrb[0].mxu0 %v1319
  %v1321 = vpop.f32.mrb[0].mxu0
  %v1322 = vadd.f32 %v1186, %v1321
  %v1323 = vpop.f32.mrb[0].mxu0
  %v1324 = vadd.f32 %v1188, %v1323
  %1325 = vmatprep.mubr.f32.mxu0 0.0
  %v1326 = vand.u32 %v54, 4294901760
  %v1327 = vsub.f32 %v54, %v1326
  %1328 = vmatmul.mubr.f32.gmra.mrb[0].mxu0 %v1327
  %v1329 = vpop.f32.mrb[0].mxu0
  %v1330 = vadd.f32 %v1193, %v1329
  %v1331 = vpop.f32.mrb[0].mxu0
  %v1332 = vadd.f32 %v1195, %v1331
  %1333 = vdwg.mxu0
  %v1334 = vand.u32 %v21, 4294901760
  %1335 = vmatprep.subr.mxu0 %v1334
  %v1336 = vand.u32 %v20, 4294901760
  %1337 = vmatpush1.msra.mxu0 %v1336
  %v1338 = vand.u32 %v25, 4294901760
  %1339 = vmatprep.subr.mxu0 %v1338
  %v1340 = vand.u32 %v24, 4294901760
  %1341 = vmatpush1.msra.mxu0 %v1340
  %v1342 = vand.u32 %v29, 4294901760
  %1343 = vmatprep.subr.mxu0 %v1342
  %v1344 = vand.u32 %v28, 4294901760
  %1345 = vmatpush1.msra.mxu0 %v1344
  %v1346 = vand.u32 %v33, 4294901760
  %1347 = vmatprep.subr.mxu0 %v1346
  %v1348 = vand.u32 %v32, 4294901760
  %1349 = vmatpush1.msra.mxu0 %v1348
  %1350 = vmatprep.subr.mxu0 0.0
  %1351 = vmatpush1.msra.mxu0 0.0
  %1352 = vmatprep.subr.mxu0 0.0
  %1353 = vmatpush1.msra.mxu0 0.0
  %1354 = vmatprep.subr.mxu0 0.0
  %1355 = vmatpush1.msra.mxu0 0.0
  %1356 = vmatprep.subr.mxu0 0.0
  %1357 = vmatpush1.msra.mxu0 0.0
  %1358 = vmatprep.subr.mxu0 0.0
  %1359 = vmatpush1.msra.mxu0 0.0
  %1360 = vmatprep.subr.mxu0 0.0
  %1361 = vmatpush1.msra.mxu0 0.0
  %1362 = vmatprep.subr.mxu0 0.0
  %1363 = vmatpush1.msra.mxu0 0.0
  %1364 = vmatprep.subr.mxu0 0.0
  %1365 = vmatpush1.msra.mxu0 0.0
  %1366 = vmatprep.subr.mxu0 0.0
  %1367 = vmatpush1.msra.mxu0 0.0
  %1368 = vmatprep.subr.mxu0 0.0
  %1369 = vmatpush1.msra.mxu0 0.0
  %1370 = vmatprep.subr.mxu0 0.0
  %1371 = vmatpush1.msra.mxu0 0.0
  %1372 = vmatprep.subr.mxu0 0.0
  %1373 = vmatpush1.msra.mxu0 0.0
  %1374 = vmatprep.subr.mxu0 0.0
  %1375 = vmatpush1.msra.mxu0 0.0
  %1376 = vmatprep.subr.mxu0 0.0
  %1377 = vmatpush1.msra.mxu0 0.0
  %1378 = vmatprep.subr.mxu0 0.0
  %1379 = vmatpush1.msra.mxu0 0.0
  %1380 = vmatprep.subr.mxu0 0.0
  %1381 = vmatpush1.msra.mxu0 0.0
  %1382 = vmatprep.subr.mxu0 0.0
  %1383 = vmatpush1.msra.mxu0 0.0
  %1384 = vmatprep.subr.mxu0 0.0
  %1385 = vmatpush1.msra.mxu0 0.0
  %1386 = vmatprep.subr.mxu0 0.0
  %1387 = vmatpush1.msra.mxu0 0.0
  %1388 = vmatprep.subr.mxu0 0.0
  %1389 = vmatpush1.msra.mxu0 0.0
  %1390 = vmatprep.subr.mxu0 0.0
  %1391 = vmatpush1.msra.mxu0 0.0
  %1392 = vmatprep.subr.mxu0 0.0
  %1393 = vmatpush1.msra.mxu0 0.0
  %1394 = vmatprep.subr.mxu0 0.0
  %1395 = vmatpush1.msra.mxu0 0.0
  %1396 = vmatprep.subr.mxu0 0.0
  %1397 = vmatpush1.msra.mxu0 0.0
  %1398 = vmatprep.subr.mxu0 0.0
  %1399 = vmatpush1.msra.mxu0 0.0
  %1400 = vmatprep.subr.mxu0 0.0
  %1401 = vmatpush1.msra.mxu0 0.0
  %1402 = vmatprep.subr.mxu0 0.0
  %1403 = vmatpush1.msra.mxu0 0.0
  %1404 = vmatprep.subr.mxu0 0.0
  %1405 = vmatpush1.msra.mxu0 0.0
  %1406 = vmatprep.mubr.f32.mxu0 0.0
  %v1407 = vand.u32 %v36, 4294901760
  %v1408 = vsub.f32 %v36, %v1407
  %v1409 = vand.u32 %v1408, 4294901760
  %1410 = vmatmul.mubr.f32.gmra.mrb[0].mxu0 %v1409
  %v1411 = vpop.f32.mrb[0].mxu0
  %v1412 = vadd.f32 %v1282, %v1411
  %v1413 = vpop.f32.mrb[0].mxu0
  %v1414 = vadd.f32 %v1284, %v1413
  %1415 = vmatprep.mubr.f32.mxu0 0.0
  %v1416 = vand.u32 %v39, 4294901760
  %v1417 = vsub.f32 %v39, %v1416
  %v1418 = vand.u32 %v1417, 4294901760
  %1419 = vmatmul.mubr.f32.gmra.mrb[0].mxu0 %v1418
  %v1420 = vpop.f32.mrb[0].mxu0
  %v1421 = vadd.f32 %v1290, %v1420
  %v1422 = vpop.f32.mrb[0].mxu0
  %v1423 = vadd.f32 %v1292, %v1422
  %1424 = vmatprep.mubr.f32.mxu0 0.0
  %v1425 = vand.u32 %v42, 4294901760
  %v1426 = vsub.f32 %v42, %v1425
  %v1427 = vand.u32 %v1426, 4294901760
  %1428 = vmatmul.mubr.f32.gmra.mrb[0].mxu0 %v1427
  %v1429 = vpop.f32.mrb[0].mxu0
  %v1430 = vadd.f32 %v1298, %v1429
  %v1431 = vpop.f32.mrb[0].mxu0
  %v1432 = vadd.f32 %v1300, %v1431
  %1433 = vmatprep.mubr.f32.mxu0 0.0
  %v1434 = vand.u32 %v45, 4294901760
  %v1435 = vsub.f32 %v45, %v1434
  %v1436 = vand.u32 %v1435, 4294901760
  %1437 = vmatmul.mubr.f32.gmra.mrb[0].mxu0 %v1436
  %v1438 = vpop.f32.mrb[0].mxu0
  %v1439 = vadd.f32 %v1306, %v1438
  %v1440 = vpop.f32.mrb[0].mxu0
  %v1441 = vadd.f32 %v1308, %v1440
  %1442 = vmatprep.mubr.f32.mxu0 0.0
  %v1443 = vand.u32 %v48, 4294901760
  %v1444 = vsub.f32 %v48, %v1443
  %v1445 = vand.u32 %v1444, 4294901760
  %1446 = vmatmul.mubr.f32.gmra.mrb[0].mxu0 %v1445
  %v1447 = vpop.f32.mrb[0].mxu0
  %v1448 = vadd.f32 %v1314, %v1447
  %v1449 = vpop.f32.mrb[0].mxu0
  %v1450 = vadd.f32 %v1316, %v1449
  %1451 = vmatprep.mubr.f32.mxu0 0.0
  %v1452 = vand.u32 %v51, 4294901760
  %v1453 = vsub.f32 %v51, %v1452
  %v1454 = vand.u32 %v1453, 4294901760
  %1455 = vmatmul.mubr.f32.gmra.mrb[0].mxu0 %v1454
  %v1456 = vpop.f32.mrb[0].mxu0
  %v1457 = vadd.f32 %v1322, %v1456
  %v1458 = vpop.f32.mrb[0].mxu0
  %v1459 = vadd.f32 %v1324, %v1458
  %1460 = vmatprep.mubr.f32.mxu0 0.0
  %v1461 = vand.u32 %v54, 4294901760
  %v1462 = vsub.f32 %v54, %v1461
  %v1463 = vand.u32 %v1462, 4294901760
  %1464 = vmatmul.mubr.f32.gmra.mrb[0].mxu0 %v1463
  %v1465 = vpop.f32.mrb[0].mxu0
  %v1466 = vadd.f32 %v1330, %v1465
  %v1467 = vpop.f32.mrb[0].mxu0
  %v1468 = vadd.f32 %v1332, %v1467
  %1469 = vdwg.mxu0
  %v1470 = vand.u32 %v21, 4294901760
  %v1471 = vsub.f32 %v21, %v1470
  %v1472 = vand.u32 %v1471, 4294901760
  %1473 = vmatprep.subr.mxu0 %v1472
  %v1474 = vand.u32 %v20, 4294901760
  %v1475 = vsub.f32 %v20, %v1474
  %v1476 = vand.u32 %v1475, 4294901760
  %1477 = vmatpush1.msra.mxu0 %v1476
  %v1478 = vand.u32 %v25, 4294901760
  %v1479 = vsub.f32 %v25, %v1478
  %v1480 = vand.u32 %v1479, 4294901760
  %1481 = vmatprep.subr.mxu0 %v1480
  %v1482 = vand.u32 %v24, 4294901760
  %v1483 = vsub.f32 %v24, %v1482
  %v1484 = vand.u32 %v1483, 4294901760
  %1485 = vmatpush1.msra.mxu0 %v1484
  %v1486 = vand.u32 %v29, 4294901760
  %v1487 = vsub.f32 %v29, %v1486
  %v1488 = vand.u32 %v1487, 4294901760
  %1489 = vmatprep.subr.mxu0 %v1488
  %v1490 = vand.u32 %v28, 4294901760
  %v1491 = vsub.f32 %v28, %v1490
  %v1492 = vand.u32 %v1491, 4294901760
  %1493 = vmatpush1.msra.mxu0 %v1492
  %v1494 = vand.u32 %v33, 4294901760
  %v1495 = vsub.f32 %v33, %v1494
  %v1496 = vand.u32 %v1495, 4294901760
  %1497 = vmatprep.subr.mxu0 %v1496
  %v1498 = vand.u32 %v32, 4294901760
  %v1499 = vsub.f32 %v32, %v1498
  %v1500 = vand.u32 %v1499, 4294901760
  %1501 = vmatpush1.msra.mxu0 %v1500
  %1502 = vmatprep.subr.mxu0 0.0
  %1503 = vmatpush1.msra.mxu0 0.0
  %1504 = vmatprep.subr.mxu0 0.0
  %1505 = vmatpush1.msra.mxu0 0.0
  %1506 = vmatprep.subr.mxu0 0.0
  %1507 = vmatpush1.msra.mxu0 0.0
  %1508 = vmatprep.subr.mxu0 0.0
  %1509 = vmatpush1.msra.mxu0 0.0
  %1510 = vmatprep.subr.mxu0 0.0
  %1511 = vmatpush1.msra.mxu0 0.0
  %1512 = vmatprep.subr.mxu0 0.0
  %1513 = vmatpush1.msra.mxu0 0.0
  %1514 = vmatprep.subr.mxu0 0.0
  %1515 = vmatpush1.msra.mxu0 0.0
  %1516 = vmatprep.subr.mxu0 0.0
  %1517 = vmatpush1.msra.mxu0 0.0
  %1518 = vmatprep.subr.mxu0 0.0
  %1519 = vmatpush1.msra.mxu0 0.0
  %1520 = vmatprep.subr.mxu0 0.0
  %1521 = vmatpush1.msra.mxu0 0.0
  %1522 = vmatprep.subr.mxu0 0.0
  %1523 = vmatpush1.msra.mxu0 0.0
  %1524 = vmatprep.subr.mxu0 0.0
  %1525 = vmatpush1.msra.mxu0 0.0
  %1526 = vmatprep.subr.mxu0 0.0
  %1527 = vmatpush1.msra.mxu0 0.0
  %1528 = vmatprep.subr.mxu0 0.0
  %1529 = vmatpush1.msra.mxu0 0.0
  %1530 = vmatprep.subr.mxu0 0.0
  %1531 = vmatpush1.msra.mxu0 0.0
  %1532 = vmatprep.subr.mxu0 0.0
  %1533 = vmatpush1.msra.mxu0 0.0
  %1534 = vmatprep.subr.mxu0 0.0
  %1535 = vmatpush1.msra.mxu0 0.0
  %1536 = vmatprep.subr.mxu0 0.0
  %1537 = vmatpush1.msra.mxu0 0.0
  %1538 = vmatprep.subr.mxu0 0.0
  %1539 = vmatpush1.msra.mxu0 0.0
  %1540 = vmatprep.subr.mxu0 0.0
  %1541 = vmatpush1.msra.mxu0 0.0
  %1542 = vmatprep.subr.mxu0 0.0
  %1543 = vmatpush1.msra.mxu0 0.0
  %1544 = vmatprep.subr.mxu0 0.0
  %1545 = vmatpush1.msra.mxu0 0.0
  %1546 = vmatprep.subr.mxu0 0.0
  %1547 = vmatpush1.msra.mxu0 0.0
  %1548 = vmatprep.subr.mxu0 0.0
  %1549 = vmatpush1.msra.mxu0 0.0
  %1550 = vmatprep.subr.mxu0 0.0
  %1551 = vmatpush1.msra.mxu0 0.0
  %1552 = vmatprep.subr.mxu0 0.0
  %1553 = vmatpush1.msra.mxu0 0.0
  %1554 = vmatprep.subr.mxu0 0.0
  %1555 = vmatpush1.msra.mxu0 0.0
  %1556 = vmatprep.subr.mxu0 0.0
  %1557 = vmatpush1.msra.mxu0 0.0
  %1558 = vmatprep.mubr.f32.mxu0 0.0
  %v1559 = vand.u32 %v36, 4294901760
  %1560 = vmatmul.mubr.f32.gmra.mrb[0].mxu0 %v1559
  %v1561 = vpop.f32.mrb[0].mxu0
  %v1562 = vadd.f32 %v1412, %v1561
  %v1563 = vpop.f32.mrb[0].mxu0
  %v1564 = vadd.f32 %v1414, %v1563
  %1565 = vmatprep.mubr.f32.mxu0 0.0
  %v1566 = vand.u32 %v39, 4294901760
  %1567 = vmatmul.mubr.f32.gmra.mrb[0].mxu0 %v1566
  %v1568 = vpop.f32.mrb[0].mxu0
  %v1569 = vadd.f32 %v1421, %v1568
  %v1570 = vpop.f32.mrb[0].mxu0
  %v1571 = vadd.f32 %v1423, %v1570
  %1572 = vmatprep.mubr.f32.mxu0 0.0
  %v1573 = vand.u32 %v42, 4294901760
  %1574 = vmatmul.mubr.f32.gmra.mrb[0].mxu0 %v1573
  %v1575 = vpop.f32.mrb[0].mxu0
  %v1576 = vadd.f32 %v1430, %v1575
  %v1577 = vpop.f32.mrb[0].mxu0
  %v1578 = vadd.f32 %v1432, %v1577
  %1579 = vmatprep.mubr.f32.mxu0 0.0
  %v1580 = vand.u32 %v45, 4294901760
  %1581 = vmatmul.mubr.f32.gmra.mrb[0].mxu0 %v1580
  %v1582 = vpop.f32.mrb[0].mxu0
  %v1583 = vadd.f32 %v1439, %v1582
  %v1584 = vpop.f32.mrb[0].mxu0
  %v1585 = vadd.f32 %v1441, %v1584
  %1586 = vmatprep.mubr.f32.mxu0 0.0
  %v1587 = vand.u32 %v48, 4294901760
  %1588 = vmatmul.mubr.f32.gmra.mrb[0].mxu0 %v1587
  %v1589 = vpop.f32.mrb[0].mxu0
  %v1590 = vadd.f32 %v1448, %v1589
  %v1591 = vpop.f32.mrb[0].mxu0
  %v1592 = vadd.f32 %v1450, %v1591
  %1593 = vmatprep.mubr.f32.mxu0 0.0
  %v1594 = vand.u32 %v51, 4294901760
  %1595 = vmatmul.mubr.f32.gmra.mrb[0].mxu0 %v1594
  %v1596 = vpop.f32.mrb[0].mxu0
  %v1597 = vadd.f32 %v1457, %v1596
  %v1598 = vpop.f32.mrb[0].mxu0
  %v1599 = vadd.f32 %v1459, %v1598
  %1600 = vmatprep.mubr.f32.mxu0 0.0
  %v1601 = vand.u32 %v54, 4294901760
  %1602 = vmatmul.mubr.f32.gmra.mrb[0].mxu0 %v1601
  %v1603 = vpop.f32.mrb[0].mxu0
  %v1604 = vadd.f32 %v1466, %v1603
  %v1605 = vpop.f32.mrb[0].mxu0
  %v1606 = vadd.f32 %v1468, %v1605
  %1607 = vdwg.mxu0
  %v1608 = vand.u32 %v21, 4294901760
  %1609 = vmatprep.subr.mxu0 %v1608
  %v1610 = vand.u32 %v20, 4294901760
  %1611 = vmatpush1.msra.mxu0 %v1610
  %v1612 = vand.u32 %v25, 4294901760
  %1613 = vmatprep.subr.mxu0 %v1612
  %v1614 = vand.u32 %v24, 4294901760
  %1615 = vmatpush1.msra.mxu0 %v1614
  %v1616 = vand.u32 %v29, 4294901760
  %1617 = vmatprep.subr.mxu0 %v1616
  %v1618 = vand.u32 %v28, 4294901760
  %1619 = vmatpush1.msra.mxu0 %v1618
  %v1620 = vand.u32 %v33, 4294901760
  %1621 = vmatprep.subr.mxu0 %v1620
  %v1622 = vand.u32 %v32, 4294901760
  %1623 = vmatpush1.msra.mxu0 %v1622
  %1624 = vmatprep.subr.mxu0 0.0
  %1625 = vmatpush1.msra.mxu0 0.0
  %1626 = vmatprep.subr.mxu0 0.0
  %1627 = vmatpush1.msra.mxu0 0.0
  %1628 = vmatprep.subr.mxu0 0.0
  %1629 = vmatpush1.msra.mxu0 0.0
  %1630 = vmatprep.subr.mxu0 0.0
  %1631 = vmatpush1.msra.mxu0 0.0
  %1632 = vmatprep.subr.mxu0 0.0
  %1633 = vmatpush1.msra.mxu0 0.0
  %1634 = vmatprep.subr.mxu0 0.0
  %1635 = vmatpush1.msra.mxu0 0.0
  %1636 = vmatprep.subr.mxu0 0.0
  %1637 = vmatpush1.msra.mxu0 0.0
  %1638 = vmatprep.subr.mxu0 0.0
  %1639 = vmatpush1.msra.mxu0 0.0
  %1640 = vmatprep.subr.mxu0 0.0
  %1641 = vmatpush1.msra.mxu0 0.0
  %1642 = vmatprep.subr.mxu0 0.0
  %1643 = vmatpush1.msra.mxu0 0.0
  %1644 = vmatprep.subr.mxu0 0.0
  %1645 = vmatpush1.msra.mxu0 0.0
  %1646 = vmatprep.subr.mxu0 0.0
  %1647 = vmatpush1.msra.mxu0 0.0
  %1648 = vmatprep.subr.mxu0 0.0
  %1649 = vmatpush1.msra.mxu0 0.0
  %1650 = vmatprep.subr.mxu0 0.0
  %1651 = vmatpush1.msra.mxu0 0.0
  %1652 = vmatprep.subr.mxu0 0.0
  %1653 = vmatpush1.msra.mxu0 0.0
  %1654 = vmatprep.subr.mxu0 0.0
  %1655 = vmatpush1.msra.mxu0 0.0
  %1656 = vmatprep.subr.mxu0 0.0
  %1657 = vmatpush1.msra.mxu0 0.0
  %1658 = vmatprep.subr.mxu0 0.0
  %1659 = vmatpush1.msra.mxu0 0.0
  %1660 = vmatprep.subr.mxu0 0.0
  %1661 = vmatpush1.msra.mxu0 0.0
  %1662 = vmatprep.subr.mxu0 0.0
  %1663 = vmatpush1.msra.mxu0 0.0
  %1664 = vmatprep.subr.mxu0 0.0
  %1665 = vmatpush1.msra.mxu0 0.0
  %1666 = vmatprep.subr.mxu0 0.0
  %1667 = vmatpush1.msra.mxu0 0.0
  %1668 = vmatprep.subr.mxu0 0.0
  %1669 = vmatpush1.msra.mxu0 0.0
  %1670 = vmatprep.subr.mxu0 0.0
  %1671 = vmatpush1.msra.mxu0 0.0
  %1672 = vmatprep.subr.mxu0 0.0
  %1673 = vmatpush1.msra.mxu0 0.0
  %1674 = vmatprep.subr.mxu0 0.0
  %1675 = vmatpush1.msra.mxu0 0.0
  %1676 = vmatprep.subr.mxu0 0.0
  %1677 = vmatpush1.msra.mxu0 0.0
  %1678 = vmatprep.subr.mxu0 0.0
  %1679 = vmatpush1.msra.mxu0 0.0
  %1680 = vmatprep.mubr.f32.mxu0 0.0
  %v1681 = vand.u32 %v36, 4294901760
  %1682 = vmatmul.mubr.f32.gmra.mrb[0].mxu0 %v1681
  %v1683 = vpop.f32.mrb[0].mxu0
  %v1684 = vadd.f32 %v1562, %v1683
  %v1685 = vpop.f32.mrb[0].mxu0
  %v1686 = vadd.f32 %v1564, %v1685
  %1687 = vmatprep.mubr.f32.mxu0 0.0
  %v1688 = vand.u32 %v39, 4294901760
  %1689 = vmatmul.mubr.f32.gmra.mrb[0].mxu0 %v1688
  %v1690 = vpop.f32.mrb[0].mxu0
  %v1691 = vadd.f32 %v1569, %v1690
  %v1692 = vpop.f32.mrb[0].mxu0
  %v1693 = vadd.f32 %v1571, %v1692
  %1694 = vmatprep.mubr.f32.mxu0 0.0
  %v1695 = vand.u32 %v42, 4294901760
  %1696 = vmatmul.mubr.f32.gmra.mrb[0].mxu0 %v1695
  %v1697 = vpop.f32.mrb[0].mxu0
  %v1698 = vadd.f32 %v1576, %v1697
  %v1699 = vpop.f32.mrb[0].mxu0
  %v1700 = vadd.f32 %v1578, %v1699
  %1701 = vmatprep.mubr.f32.mxu0 0.0
  %v1702 = vand.u32 %v45, 4294901760
  %1703 = vmatmul.mubr.f32.gmra.mrb[0].mxu0 %v1702
  %v1704 = vpop.f32.mrb[0].mxu0
  %v1705 = vadd.f32 %v1583, %v1704
  %v1706 = vpop.f32.mrb[0].mxu0
  %v1707 = vadd.f32 %v1585, %v1706
  %1708 = vmatprep.mubr.f32.mxu0 0.0
  %v1709 = vand.u32 %v48, 4294901760
  %1710 = vmatmul.mubr.f32.gmra.mrb[0].mxu0 %v1709
  %v1711 = vpop.f32.mrb[0].mxu0
  %v1712 = vadd.f32 %v1590, %v1711
  %v1713 = vpop.f32.mrb[0].mxu0
  %v1714 = vadd.f32 %v1592, %v1713
  %1715 = vmatprep.mubr.f32.mxu0 0.0
  %v1716 = vand.u32 %v51, 4294901760
  %1717 = vmatmul.mubr.f32.gmra.mrb[0].mxu0 %v1716
  %v1718 = vpop.f32.mrb[0].mxu0
  %v1719 = vadd.f32 %v1597, %v1718
  %v1720 = vpop.f32.mrb[0].mxu0
  %v1721 = vadd.f32 %v1599, %v1720
  %1722 = vmatprep.mubr.f32.mxu0 0.0
  %v1723 = vand.u32 %v54, 4294901760
  %1724 = vmatmul.mubr.f32.gmra.mrb[0].mxu0 %v1723
  %v1725 = vpop.f32.mrb[0].mxu0
  %v1726 = vadd.f32 %v1604, %v1725
  %v1727 = vpop.f32.mrb[0].mxu0
  %v1728 = vadd.f32 %v1606, %v1727
  %1729 = vdwg.mxu0
  %v1730 = vmax.f32 %v847, 0.0
  %v1731 = vmax.f32 %v849, 0.0
  %v1732 = vmax.f32 %v1684, 0.0
  %v1733 = vmax.f32 %v1686, 0.0
  %v1734 = vmax.f32 %v854, 0.0
  %v1735 = vmax.f32 %v856, 0.0
  %v1736 = vmax.f32 %v1691, 0.0
  %v1737 = vmax.f32 %v1693, 0.0
  %v1738 = vmax.f32 %v861, 0.0
  %v1739 = vmax.f32 %v863, 0.0
  %v1740 = vmax.f32 %v1698, 0.0
  %v1741 = vmax.f32 %v1700, 0.0
  %v1742 = vmax.f32 %v868, 0.0
  %v1743 = vmax.f32 %v870, 0.0
  %v1744 = vmax.f32 %v1705, 0.0
  %v1745 = vmax.f32 %v1707, 0.0
  %v1746 = vmax.f32 %v875, 0.0
  %v1747 = vmax.f32 %v877, 0.0
  %v1748 = vmax.f32 %v1712, 0.0
  %v1749 = vmax.f32 %v1714, 0.0
  %v1750 = vmax.f32 %v882, 0.0
  %v1751 = vmax.f32 %v884, 0.0
  %v1752 = vmax.f32 %v1719, 0.0
  %v1753 = vmax.f32 %v1721, 0.0
  %v1754 = vmax.f32 %v889, 0.0
  %v1755 = vmax.f32 %v891, 0.0
  %v1756 = vmax.f32 %v1726, 0.0
  %v1757 = vmax.f32 %v1728, 0.0
  %v1758 = vld [vmem:[%s1 + $0x38] sm:$0xff]
  %v1759 = vld [vmem:[%s1 + $0x40] sm:$0xff]
  %v1760 = vld [vmem:[%s1 + $0x48] sm:$0xff]
  %v1761 = vld [vmem:[%s1 + $0x50] sm:$0xff]
  %v1762 = vld [vmem:[%s1 + $0x58] sm:$0xff]
  %v1763 = vld [vmem:[%s1 + $0x60] sm:$0xff]
  %v1764 = vld [vmem:[%s1 + $0x68] sm:$0xff]
  %v1765 = vld [vmem:[%s1 + $0x70] sm:$0xff]
  %vm1766 = vcmask 457728
  %v1768 = vsel %vm1766, %v1762, 0
  %v1771 = vsel %vm1766, %v1763, 0
  %v1774 = vsel %vm1766, %v1764, 0
  %v1777 = vsel %vm1766, %v1765, 0
  %1779 = vmatprep.subr.mxu0 0.0
  %v1780 = vand.u32 %v1731, 4294901760
  %1781 = vmatpush1.msra.mxu0 %v1780
  %1782 = vmatprep.subr.mxu0 0.0
  %v1783 = vand.u32 %v1735, 4294901760
  %1784 = vmatpush1.msra.mxu0 %v1783
  %1785 = vmatprep.subr.mxu0 0.0
  %v1786 = vand.u32 %v1739, 4294901760
  %1787 = vmatpush1.msra.mxu0 %v1786
  %1788 = vmatprep.subr.mxu0 0.0
  %v1789 = vand.u32 %v1743, 4294901760
  %1790 = vmatpush1.msra.mxu0 %v1789
  %1791 = vmatprep.subr.mxu0 0.0
  %v1792 = vand.u32 %v1747, 4294901760
  %1793 = vmatpush1.msra.mxu0 %v1792
  %1794 = vmatprep.subr.mxu0 0.0
  %v1795 = vand.u32 %v1751, 4294901760
  %1796 = vmatpush1.msra.mxu0 %v1795
  %1797 = vmatprep.subr.mxu0 0.0
  %v1798 = vand.u32 %v1755, 4294901760
  %1799 = vmatpush1.msra.mxu0 %v1798
  %1800 = vmatprep.subr.mxu0 0.0
  %1801 = vmatpush1.msra.mxu0 0.0
  %1802 = vmatprep.subr.mxu0 0.0
  %1803 = vmatpush1.msra.mxu0 0.0
  %1804 = vmatprep.subr.mxu0 0.0
  %1805 = vmatpush1.msra.mxu0 0.0
  %1806 = vmatprep.subr.mxu0 0.0
  %1807 = vmatpush1.msra.mxu0 0.0
  %1808 = vmatprep.subr.mxu0 0.0
  %1809 = vmatpush1.msra.mxu0 0.0
  %1810 = vmatprep.subr.mxu0 0.0
  %1811 = vmatpush1.msra.mxu0 0.0
  %1812 = vmatprep.subr.mxu0 0.0
  %1813 = vmatpush1.msra.mxu0 0.0
  %1814 = vmatprep.subr.mxu0 0.0
  %1815 = vmatpush1.msra.mxu0 0.0
  %1816 = vmatprep.subr.mxu0 0.0
  %1817 = vmatpush1.msra.mxu0 0.0
  %1818 = vmatprep.subr.mxu0 0.0
  %1819 = vmatpush1.msra.mxu0 0.0
  %1820 = vmatprep.subr.mxu0 0.0
  %1821 = vmatpush1.msra.mxu0 0.0
  %1822 = vmatprep.subr.mxu0 0.0
  %1823 = vmatpush1.msra.mxu0 0.0
  %1824 = vmatprep.subr.mxu0 0.0
  %1825 = vmatpush1.msra.mxu0 0.0
  %1826 = vmatprep.subr.mxu0 0.0
  %1827 = vmatpush1.msra.mxu0 0.0
  %1828 = vmatprep.subr.mxu0 0.0
  %1829 = vmatpush1.msra.mxu0 0.0
  %1830 = vmatprep.subr.mxu0 0.0
  %1831 = vmatpush1.msra.mxu0 0.0
  %1832 = vmatprep.subr.mxu0 0.0
  %1833 = vmatpush1.msra.mxu0 0.0
  %1834 = vmatprep.subr.mxu0 0.0
  %1835 = vmatpush1.msra.mxu0 0.0
  %1836 = vmatprep.subr.mxu0 0.0
  %1837 = vmatpush1.msra.mxu0 0.0
  %1838 = vmatprep.subr.mxu0 0.0
  %1839 = vmatpush1.msra.mxu0 0.0
  %1840 = vmatprep.subr.mxu0 0.0
  %1841 = vmatpush1.msra.mxu0 0.0
  %1842 = vmatprep.subr.mxu0 0.0
  %1843 = vmatpush1.msra.mxu0 0.0
  %1844 = vmatprep.subr.mxu0 0.0
  %1845 = vmatpush1.msra.mxu0 0.0
  %1846 = vmatprep.subr.mxu0 0.0
  %1847 = vmatpush1.msra.mxu0 0.0
  %1848 = vmatprep.subr.mxu0 0.0
  %1849 = vmatpush1.msra.mxu0 0.0
  %1850 = vmatprep.mubr.f32.mxu0 0.0
  %v1851 = vand.u32 %v1768, 4294901760
  %v1852 = vsub.f32 %v1768, %v1851
  %v1853 = vand.u32 %v1852, 4294901760
  %v1854 = vsub.f32 %v1852, %v1853
  %v1855 = vand.u32 %v1854, 4294901760
  %1856 = vmatmul.mubr.f32.gmra.mrb[0].mxu0 %v1855
  %v1857 = vpop.f32.mrb[0].mxu0
  %v1858 = vadd.f32 0.0, %v1857
  %v1859 = vpop.f32.mrb[0].mxu0
  %1860 = vmatprep.mubr.f32.mxu0 0.0
  %v1861 = vand.u32 %v1771, 4294901760
  %v1862 = vsub.f32 %v1771, %v1861
  %v1863 = vand.u32 %v1862, 4294901760
  %v1864 = vsub.f32 %v1862, %v1863
  %v1865 = vand.u32 %v1864, 4294901760
  %1866 = vmatmul.mubr.f32.gmra.mrb[0].mxu0 %v1865
  %v1867 = vpop.f32.mrb[0].mxu0
  %v1868 = vadd.f32 0.0, %v1867
  %v1869 = vpop.f32.mrb[0].mxu0
  %1870 = vmatprep.mubr.f32.mxu0 0.0
  %v1871 = vand.u32 %v1774, 4294901760
  %v1872 = vsub.f32 %v1774, %v1871
  %v1873 = vand.u32 %v1872, 4294901760
  %v1874 = vsub.f32 %v1872, %v1873
  %v1875 = vand.u32 %v1874, 4294901760
  %1876 = vmatmul.mubr.f32.gmra.mrb[0].mxu0 %v1875
  %v1877 = vpop.f32.mrb[0].mxu0
  %v1878 = vadd.f32 0.0, %v1877
  %v1879 = vpop.f32.mrb[0].mxu0
  %1880 = vmatprep.mubr.f32.mxu0 0.0
  %v1881 = vand.u32 %v1777, 4294901760
  %v1882 = vsub.f32 %v1777, %v1881
  %v1883 = vand.u32 %v1882, 4294901760
  %v1884 = vsub.f32 %v1882, %v1883
  %v1885 = vand.u32 %v1884, 4294901760
  %1886 = vmatmul.mubr.f32.gmra.mrb[0].mxu0 %v1885
  %v1887 = vpop.f32.mrb[0].mxu0
  %v1888 = vadd.f32 0.0, %v1887
  %v1889 = vpop.f32.mrb[0].mxu0
  %1890 = vdwg.mxu0
  %1891 = vmatprep.subr.mxu0 0.0
  %v1892 = vand.u32 %v1731, 4294901760
  %v1893 = vsub.f32 %v1731, %v1892
  %v1894 = vand.u32 %v1893, 4294901760
  %v1895 = vsub.f32 %v1893, %v1894
  %v1896 = vand.u32 %v1895, 4294901760
  %1897 = vmatpush1.msra.mxu0 %v1896
  %1898 = vmatprep.subr.mxu0 0.0
  %v1899 = vand.u32 %v1735, 4294901760
  %v1900 = vsub.f32 %v1735, %v1899
  %v1901 = vand.u32 %v1900, 4294901760
  %v1902 = vsub.f32 %v1900, %v1901
  %v1903 = vand.u32 %v1902, 4294901760
  %1904 = vmatpush1.msra.mxu0 %v1903
  %1905 = vmatprep.subr.mxu0 0.0
  %v1906 = vand.u32 %v1739, 4294901760
  %v1907 = vsub.f32 %v1739, %v1906
  %v1908 = vand.u32 %v1907, 4294901760
  %v1909 = vsub.f32 %v1907, %v1908
  %v1910 = vand.u32 %v1909, 4294901760
  %1911 = vmatpush1.msra.mxu0 %v1910
  %1912 = vmatprep.subr.mxu0 0.0
  %v1913 = vand.u32 %v1743, 4294901760
  %v1914 = vsub.f32 %v1743, %v1913
  %v1915 = vand.u32 %v1914, 4294901760
  %v1916 = vsub.f32 %v1914, %v1915
  %v1917 = vand.u32 %v1916, 4294901760
  %1918 = vmatpush1.msra.mxu0 %v1917
  %1919 = vmatprep.subr.mxu0 0.0
  %v1920 = vand.u32 %v1747, 4294901760
  %v1921 = vsub.f32 %v1747, %v1920
  %v1922 = vand.u32 %v1921, 4294901760
  %v1923 = vsub.f32 %v1921, %v1922
  %v1924 = vand.u32 %v1923, 4294901760
  %1925 = vmatpush1.msra.mxu0 %v1924
  %1926 = vmatprep.subr.mxu0 0.0
  %v1927 = vand.u32 %v1751, 4294901760
  %v1928 = vsub.f32 %v1751, %v1927
  %v1929 = vand.u32 %v1928, 4294901760
  %v1930 = vsub.f32 %v1928, %v1929
  %v1931 = vand.u32 %v1930, 4294901760
  %1932 = vmatpush1.msra.mxu0 %v1931
  %1933 = vmatprep.subr.mxu0 0.0
  %v1934 = vand.u32 %v1755, 4294901760
  %v1935 = vsub.f32 %v1755, %v1934
  %v1936 = vand.u32 %v1935, 4294901760
  %v1937 = vsub.f32 %v1935, %v1936
  %v1938 = vand.u32 %v1937, 4294901760
  %1939 = vmatpush1.msra.mxu0 %v1938
  %1940 = vmatprep.subr.mxu0 0.0
  %1941 = vmatpush1.msra.mxu0 0.0
  %1942 = vmatprep.subr.mxu0 0.0
  %1943 = vmatpush1.msra.mxu0 0.0
  %1944 = vmatprep.subr.mxu0 0.0
  %1945 = vmatpush1.msra.mxu0 0.0
  %1946 = vmatprep.subr.mxu0 0.0
  %1947 = vmatpush1.msra.mxu0 0.0
  %1948 = vmatprep.subr.mxu0 0.0
  %1949 = vmatpush1.msra.mxu0 0.0
  %1950 = vmatprep.subr.mxu0 0.0
  %1951 = vmatpush1.msra.mxu0 0.0
  %1952 = vmatprep.subr.mxu0 0.0
  %1953 = vmatpush1.msra.mxu0 0.0
  %1954 = vmatprep.subr.mxu0 0.0
  %1955 = vmatpush1.msra.mxu0 0.0
  %1956 = vmatprep.subr.mxu0 0.0
  %1957 = vmatpush1.msra.mxu0 0.0
  %1958 = vmatprep.subr.mxu0 0.0
  %1959 = vmatpush1.msra.mxu0 0.0
  %1960 = vmatprep.subr.mxu0 0.0
  %1961 = vmatpush1.msra.mxu0 0.0
  %1962 = vmatprep.subr.mxu0 0.0
  %1963 = vmatpush1.msra.mxu0 0.0
  %1964 = vmatprep.subr.mxu0 0.0
  %1965 = vmatpush1.msra.mxu0 0.0
  %1966 = vmatprep.subr.mxu0 0.0
  %1967 = vmatpush1.msra.mxu0 0.0
  %1968 = vmatprep.subr.mxu0 0.0
  %1969 = vmatpush1.msra.mxu0 0.0
  %1970 = vmatprep.subr.mxu0 0.0
  %1971 = vmatpush1.msra.mxu0 0.0
  %1972 = vmatprep.subr.mxu0 0.0
  %1973 = vmatpush1.msra.mxu0 0.0
  %1974 = vmatprep.subr.mxu0 0.0
  %1975 = vmatpush1.msra.mxu0 0.0
  %1976 = vmatprep.subr.mxu0 0.0
  %1977 = vmatpush1.msra.mxu0 0.0
  %1978 = vmatprep.subr.mxu0 0.0
  %1979 = vmatpush1.msra.mxu0 0.0
  %1980 = vmatprep.subr.mxu0 0.0
  %1981 = vmatpush1.msra.mxu0 0.0
  %1982 = vmatprep.subr.mxu0 0.0
  %1983 = vmatpush1.msra.mxu0 0.0
  %1984 = vmatprep.subr.mxu0 0.0
  %1985 = vmatpush1.msra.mxu0 0.0
  %1986 = vmatprep.subr.mxu0 0.0
  %1987 = vmatpush1.msra.mxu0 0.0
  %1988 = vmatprep.subr.mxu0 0.0
  %1989 = vmatpush1.msra.mxu0 0.0
  %1990 = vmatprep.mubr.f32.mxu0 0.0
  %v1991 = vand.u32 %v1768, 4294901760
  %1992 = vmatmul.mubr.f32.gmra.mrb[0].mxu0 %v1991
  %v1993 = vpop.f32.mrb[0].mxu0
  %v1994 = vadd.f32 %v1858, %v1993
  %v1995 = vpop.f32.mrb[0].mxu0
  %1996 = vmatprep.mubr.f32.mxu0 0.0
  %v1997 = vand.u32 %v1771, 4294901760
  %1998 = vmatmul.mubr.f32.gmra.mrb[0].mxu0 %v1997
  %v1999 = vpop.f32.mrb[0].mxu0
  %v2000 = vadd.f32 %v1868, %v1999
  %v2001 = vpop.f32.mrb[0].mxu0
  %2002 = vmatprep.mubr.f32.mxu0 0.0
  %v2003 = vand.u32 %v1774, 4294901760
  %2004 = vmatmul.mubr.f32.gmra.mrb[0].mxu0 %v2003
  %v2005 = vpop.f32.mrb[0].mxu0
  %v2006 = vadd.f32 %v1878, %v2005
  %v2007 = vpop.f32.mrb[0].mxu0
  %2008 = vmatprep.mubr.f32.mxu0 0.0
  %v2009 = vand.u32 %v1777, 4294901760
  %2010 = vmatmul.mubr.f32.gmra.mrb[0].mxu0 %v2009
  %v2011 = vpop.f32.mrb[0].mxu0
  %v2012 = vadd.f32 %v1888, %v2011
  %v2013 = vpop.f32.mrb[0].mxu0
  %2014 = vdwg.mxu0
  %2015 = vmatprep.subr.mxu0 0.0
  %v2016 = vand.u32 %v1731, 4294901760
  %v2017 = vsub.f32 %v1731, %v2016
  %2018 = vmatpush1.msra.mxu0 %v2017
  %2019 = vmatprep.subr.mxu0 0.0
  %v2020 = vand.u32 %v1735, 4294901760
  %v2021 = vsub.f32 %v1735, %v2020
  %2022 = vmatpush1.msra.mxu0 %v2021
  %2023 = vmatprep.subr.mxu0 0.0
  %v2024 = vand.u32 %v1739, 4294901760
  %v2025 = vsub.f32 %v1739, %v2024
  %2026 = vmatpush1.msra.mxu0 %v2025
  %2027 = vmatprep.subr.mxu0 0.0
  %v2028 = vand.u32 %v1743, 4294901760
  %v2029 = vsub.f32 %v1743, %v2028
  %2030 = vmatpush1.msra.mxu0 %v2029
  %2031 = vmatprep.subr.mxu0 0.0
  %v2032 = vand.u32 %v1747, 4294901760
  %v2033 = vsub.f32 %v1747, %v2032
  %2034 = vmatpush1.msra.mxu0 %v2033
  %2035 = vmatprep.subr.mxu0 0.0
  %v2036 = vand.u32 %v1751, 4294901760
  %v2037 = vsub.f32 %v1751, %v2036
  %2038 = vmatpush1.msra.mxu0 %v2037
  %2039 = vmatprep.subr.mxu0 0.0
  %v2040 = vand.u32 %v1755, 4294901760
  %v2041 = vsub.f32 %v1755, %v2040
  %2042 = vmatpush1.msra.mxu0 %v2041
  %2043 = vmatprep.subr.mxu0 0.0
  %2044 = vmatpush1.msra.mxu0 0.0
  %2045 = vmatprep.subr.mxu0 0.0
  %2046 = vmatpush1.msra.mxu0 0.0
  %2047 = vmatprep.subr.mxu0 0.0
  %2048 = vmatpush1.msra.mxu0 0.0
  %2049 = vmatprep.subr.mxu0 0.0
  %2050 = vmatpush1.msra.mxu0 0.0
  %2051 = vmatprep.subr.mxu0 0.0
  %2052 = vmatpush1.msra.mxu0 0.0
  %2053 = vmatprep.subr.mxu0 0.0
  %2054 = vmatpush1.msra.mxu0 0.0
  %2055 = vmatprep.subr.mxu0 0.0
  %2056 = vmatpush1.msra.mxu0 0.0
  %2057 = vmatprep.subr.mxu0 0.0
  %2058 = vmatpush1.msra.mxu0 0.0
  %2059 = vmatprep.subr.mxu0 0.0
  %2060 = vmatpush1.msra.mxu0 0.0
  %2061 = vmatprep.subr.mxu0 0.0
  %2062 = vmatpush1.msra.mxu0 0.0
  %2063 = vmatprep.subr.mxu0 0.0
  %2064 = vmatpush1.msra.mxu0 0.0
  %2065 = vmatprep.subr.mxu0 0.0
  %2066 = vmatpush1.msra.mxu0 0.0
  %2067 = vmatprep.subr.mxu0 0.0
  %2068 = vmatpush1.msra.mxu0 0.0
  %2069 = vmatprep.subr.mxu0 0.0
  %2070 = vmatpush1.msra.mxu0 0.0
  %2071 = vmatprep.subr.mxu0 0.0
  %2072 = vmatpush1.msra.mxu0 0.0
  %2073 = vmatprep.subr.mxu0 0.0
  %2074 = vmatpush1.msra.mxu0 0.0
  %2075 = vmatprep.subr.mxu0 0.0
  %2076 = vmatpush1.msra.mxu0 0.0
  %2077 = vmatprep.subr.mxu0 0.0
  %2078 = vmatpush1.msra.mxu0 0.0
  %2079 = vmatprep.subr.mxu0 0.0
  %2080 = vmatpush1.msra.mxu0 0.0
  %2081 = vmatprep.subr.mxu0 0.0
  %2082 = vmatpush1.msra.mxu0 0.0
  %2083 = vmatprep.subr.mxu0 0.0
  %2084 = vmatpush1.msra.mxu0 0.0
  %2085 = vmatprep.subr.mxu0 0.0
  %2086 = vmatpush1.msra.mxu0 0.0
  %2087 = vmatprep.subr.mxu0 0.0
  %2088 = vmatpush1.msra.mxu0 0.0
  %2089 = vmatprep.subr.mxu0 0.0
  %2090 = vmatpush1.msra.mxu0 0.0
  %2091 = vmatprep.subr.mxu0 0.0
  %2092 = vmatpush1.msra.mxu0 0.0
  %2093 = vmatprep.mubr.f32.mxu0 0.0
  %v2094 = vand.u32 %v1768, 4294901760
  %v2095 = vsub.f32 %v1768, %v2094
  %2096 = vmatmul.mubr.f32.gmra.mrb[0].mxu0 %v2095
  %v2097 = vpop.f32.mrb[0].mxu0
  %v2098 = vadd.f32 %v1994, %v2097
  %v2099 = vpop.f32.mrb[0].mxu0
  %2100 = vmatprep.mubr.f32.mxu0 0.0
  %v2101 = vand.u32 %v1771, 4294901760
  %v2102 = vsub.f32 %v1771, %v2101
  %2103 = vmatmul.mubr.f32.gmra.mrb[0].mxu0 %v2102
  %v2104 = vpop.f32.mrb[0].mxu0
  %v2105 = vadd.f32 %v2000, %v2104
  %v2106 = vpop.f32.mrb[0].mxu0
  %2107 = vmatprep.mubr.f32.mxu0 0.0
  %v2108 = vand.u32 %v1774, 4294901760
  %v2109 = vsub.f32 %v1774, %v2108
  %2110 = vmatmul.mubr.f32.gmra.mrb[0].mxu0 %v2109
  %v2111 = vpop.f32.mrb[0].mxu0
  %v2112 = vadd.f32 %v2006, %v2111
  %v2113 = vpop.f32.mrb[0].mxu0
  %2114 = vmatprep.mubr.f32.mxu0 0.0
  %v2115 = vand.u32 %v1777, 4294901760
  %v2116 = vsub.f32 %v1777, %v2115
  %2117 = vmatmul.mubr.f32.gmra.mrb[0].mxu0 %v2116
  %v2118 = vpop.f32.mrb[0].mxu0
  %v2119 = vadd.f32 %v2012, %v2118
  %v2120 = vpop.f32.mrb[0].mxu0
  %2121 = vdwg.mxu0
  %2122 = vmatprep.subr.mxu0 0.0
  %v2123 = vand.u32 %v1731, 4294901760
  %2124 = vmatpush1.msra.mxu0 %v2123
  %2125 = vmatprep.subr.mxu0 0.0
  %v2126 = vand.u32 %v1735, 4294901760
  %2127 = vmatpush1.msra.mxu0 %v2126
  %2128 = vmatprep.subr.mxu0 0.0
  %v2129 = vand.u32 %v1739, 4294901760
  %2130 = vmatpush1.msra.mxu0 %v2129
  %2131 = vmatprep.subr.mxu0 0.0
  %v2132 = vand.u32 %v1743, 4294901760
  %2133 = vmatpush1.msra.mxu0 %v2132
  %2134 = vmatprep.subr.mxu0 0.0
  %v2135 = vand.u32 %v1747, 4294901760
  %2136 = vmatpush1.msra.mxu0 %v2135
  %2137 = vmatprep.subr.mxu0 0.0
  %v2138 = vand.u32 %v1751, 4294901760
  %2139 = vmatpush1.msra.mxu0 %v2138
  %2140 = vmatprep.subr.mxu0 0.0
  %v2141 = vand.u32 %v1755, 4294901760
  %2142 = vmatpush1.msra.mxu0 %v2141
  %2143 = vmatprep.subr.mxu0 0.0
  %2144 = vmatpush1.msra.mxu0 0.0
  %2145 = vmatprep.subr.mxu0 0.0
  %2146 = vmatpush1.msra.mxu0 0.0
  %2147 = vmatprep.subr.mxu0 0.0
  %2148 = vmatpush1.msra.mxu0 0.0
  %2149 = vmatprep.subr.mxu0 0.0
  %2150 = vmatpush1.msra.mxu0 0.0
  %2151 = vmatprep.subr.mxu0 0.0
  %2152 = vmatpush1.msra.mxu0 0.0
  %2153 = vmatprep.subr.mxu0 0.0
  %2154 = vmatpush1.msra.mxu0 0.0
  %2155 = vmatprep.subr.mxu0 0.0
  %2156 = vmatpush1.msra.mxu0 0.0
  %2157 = vmatprep.subr.mxu0 0.0
  %2158 = vmatpush1.msra.mxu0 0.0
  %2159 = vmatprep.subr.mxu0 0.0
  %2160 = vmatpush1.msra.mxu0 0.0
  %2161 = vmatprep.subr.mxu0 0.0
  %2162 = vmatpush1.msra.mxu0 0.0
  %2163 = vmatprep.subr.mxu0 0.0
  %2164 = vmatpush1.msra.mxu0 0.0
  %2165 = vmatprep.subr.mxu0 0.0
  %2166 = vmatpush1.msra.mxu0 0.0
  %2167 = vmatprep.subr.mxu0 0.0
  %2168 = vmatpush1.msra.mxu0 0.0
  %2169 = vmatprep.subr.mxu0 0.0
  %2170 = vmatpush1.msra.mxu0 0.0
  %2171 = vmatprep.subr.mxu0 0.0
  %2172 = vmatpush1.msra.mxu0 0.0
  %2173 = vmatprep.subr.mxu0 0.0
  %2174 = vmatpush1.msra.mxu0 0.0
  %2175 = vmatprep.subr.mxu0 0.0
  %2176 = vmatpush1.msra.mxu0 0.0
  %2177 = vmatprep.subr.mxu0 0.0
  %2178 = vmatpush1.msra.mxu0 0.0
  %2179 = vmatprep.subr.mxu0 0.0
  %2180 = vmatpush1.msra.mxu0 0.0
  %2181 = vmatprep.subr.mxu0 0.0
  %2182 = vmatpush1.msra.mxu0 0.0
  %2183 = vmatprep.subr.mxu0 0.0
  %2184 = vmatpush1.msra.mxu0 0.0
  %2185 = vmatprep.subr.mxu0 0.0
  %2186 = vmatpush1.msra.mxu0 0.0
  %2187 = vmatprep.subr.mxu0 0.0
  %2188 = vmatpush1.msra.mxu0 0.0
  %2189 = vmatprep.subr.mxu0 0.0
  %2190 = vmatpush1.msra.mxu0 0.0
  %2191 = vmatprep.subr.mxu0 0.0
  %2192 = vmatpush1.msra.mxu0 0.0
  %2193 = vmatprep.mubr.f32.mxu0 0.0
  %v2194 = vand.u32 %v1768, 4294901760
  %v2195 = vsub.f32 %v1768, %v2194
  %v2196 = vand.u32 %v2195, 4294901760
  %2197 = vmatmul.mubr.f32.gmra.mrb[0].mxu0 %v2196
  %v2198 = vpop.f32.mrb[0].mxu0
  %v2199 = vadd.f32 %v2098, %v2198
  %v2200 = vpop.f32.mrb[0].mxu0
  %2201 = vmatprep.mubr.f32.mxu0 0.0
  %v2202 = vand.u32 %v1771, 4294901760
  %v2203 = vsub.f32 %v1771, %v2202
  %v2204 = vand.u32 %v2203, 4294901760
  %2205 = vmatmul.mubr.f32.gmra.mrb[0].mxu0 %v2204
  %v2206 = vpop.f32.mrb[0].mxu0
  %v2207 = vadd.f32 %v2105, %v2206
  %v2208 = vpop.f32.mrb[0].mxu0
  %2209 = vmatprep.mubr.f32.mxu0 0.0
  %v2210 = vand.u32 %v1774, 4294901760
  %v2211 = vsub.f32 %v1774, %v2210
  %v2212 = vand.u32 %v2211, 4294901760
  %2213 = vmatmul.mubr.f32.gmra.mrb[0].mxu0 %v2212
  %v2214 = vpop.f32.mrb[0].mxu0
  %v2215 = vadd.f32 %v2112, %v2214
  %v2216 = vpop.f32.mrb[0].mxu0
  %2217 = vmatprep.mubr.f32.mxu0 0.0
  %v2218 = vand.u32 %v1777, 4294901760
  %v2219 = vsub.f32 %v1777, %v2218
  %v2220 = vand.u32 %v2219, 4294901760
  %2221 = vmatmul.mubr.f32.gmra.mrb[0].mxu0 %v2220
  %v2222 = vpop.f32.mrb[0].mxu0
  %v2223 = vadd.f32 %v2119, %v2222
  %v2224 = vpop.f32.mrb[0].mxu0
  %2225 = vdwg.mxu0
  %2226 = vmatprep.subr.mxu0 0.0
  %v2227 = vand.u32 %v1731, 4294901760
  %v2228 = vsub.f32 %v1731, %v2227
  %v2229 = vand.u32 %v2228, 4294901760
  %2230 = vmatpush1.msra.mxu0 %v2229
  %2231 = vmatprep.subr.mxu0 0.0
  %v2232 = vand.u32 %v1735, 4294901760
  %v2233 = vsub.f32 %v1735, %v2232
  %v2234 = vand.u32 %v2233, 4294901760
  %2235 = vmatpush1.msra.mxu0 %v2234
  %2236 = vmatprep.subr.mxu0 0.0
  %v2237 = vand.u32 %v1739, 4294901760
  %v2238 = vsub.f32 %v1739, %v2237
  %v2239 = vand.u32 %v2238, 4294901760
  %2240 = vmatpush1.msra.mxu0 %v2239
  %2241 = vmatprep.subr.mxu0 0.0
  %v2242 = vand.u32 %v1743, 4294901760
  %v2243 = vsub.f32 %v1743, %v2242
  %v2244 = vand.u32 %v2243, 4294901760
  %2245 = vmatpush1.msra.mxu0 %v2244
  %2246 = vmatprep.subr.mxu0 0.0
  %v2247 = vand.u32 %v1747, 4294901760
  %v2248 = vsub.f32 %v1747, %v2247
  %v2249 = vand.u32 %v2248, 4294901760
  %2250 = vmatpush1.msra.mxu0 %v2249
  %2251 = vmatprep.subr.mxu0 0.0
  %v2252 = vand.u32 %v1751, 4294901760
  %v2253 = vsub.f32 %v1751, %v2252
  %v2254 = vand.u32 %v2253, 4294901760
  %2255 = vmatpush1.msra.mxu0 %v2254
  %2256 = vmatprep.subr.mxu0 0.0
  %v2257 = vand.u32 %v1755, 4294901760
  %v2258 = vsub.f32 %v1755, %v2257
  %v2259 = vand.u32 %v2258, 4294901760
  %2260 = vmatpush1.msra.mxu0 %v2259
  %2261 = vmatprep.subr.mxu0 0.0
  %2262 = vmatpush1.msra.mxu0 0.0
  %2263 = vmatprep.subr.mxu0 0.0
  %2264 = vmatpush1.msra.mxu0 0.0
  %2265 = vmatprep.subr.mxu0 0.0
  %2266 = vmatpush1.msra.mxu0 0.0
  %2267 = vmatprep.subr.mxu0 0.0
  %2268 = vmatpush1.msra.mxu0 0.0
  %2269 = vmatprep.subr.mxu0 0.0
  %2270 = vmatpush1.msra.mxu0 0.0
  %2271 = vmatprep.subr.mxu0 0.0
  %2272 = vmatpush1.msra.mxu0 0.0
  %2273 = vmatprep.subr.mxu0 0.0
  %2274 = vmatpush1.msra.mxu0 0.0
  %2275 = vmatprep.subr.mxu0 0.0
  %2276 = vmatpush1.msra.mxu0 0.0
  %2277 = vmatprep.subr.mxu0 0.0
  %2278 = vmatpush1.msra.mxu0 0.0
  %2279 = vmatprep.subr.mxu0 0.0
  %2280 = vmatpush1.msra.mxu0 0.0
  %2281 = vmatprep.subr.mxu0 0.0
  %2282 = vmatpush1.msra.mxu0 0.0
  %2283 = vmatprep.subr.mxu0 0.0
  %2284 = vmatpush1.msra.mxu0 0.0
  %2285 = vmatprep.subr.mxu0 0.0
  %2286 = vmatpush1.msra.mxu0 0.0
  %2287 = vmatprep.subr.mxu0 0.0
  %2288 = vmatpush1.msra.mxu0 0.0
  %2289 = vmatprep.subr.mxu0 0.0
  %2290 = vmatpush1.msra.mxu0 0.0
  %2291 = vmatprep.subr.mxu0 0.0
  %2292 = vmatpush1.msra.mxu0 0.0
  %2293 = vmatprep.subr.mxu0 0.0
  %2294 = vmatpush1.msra.mxu0 0.0
  %2295 = vmatprep.subr.mxu0 0.0
  %2296 = vmatpush1.msra.mxu0 0.0
  %2297 = vmatprep.subr.mxu0 0.0
  %2298 = vmatpush1.msra.mxu0 0.0
  %2299 = vmatprep.subr.mxu0 0.0
  %2300 = vmatpush1.msra.mxu0 0.0
  %2301 = vmatprep.subr.mxu0 0.0
  %2302 = vmatpush1.msra.mxu0 0.0
  %2303 = vmatprep.subr.mxu0 0.0
  %2304 = vmatpush1.msra.mxu0 0.0
  %2305 = vmatprep.subr.mxu0 0.0
  %2306 = vmatpush1.msra.mxu0 0.0
  %2307 = vmatprep.subr.mxu0 0.0
  %2308 = vmatpush1.msra.mxu0 0.0
  %2309 = vmatprep.subr.mxu0 0.0
  %2310 = vmatpush1.msra.mxu0 0.0
  %2311 = vmatprep.mubr.f32.mxu0 0.0
  %v2312 = vand.u32 %v1768, 4294901760
  %2313 = vmatmul.mubr.f32.gmra.mrb[0].mxu0 %v2312
  %v2314 = vpop.f32.mrb[0].mxu0
  %v2315 = vadd.f32 %v2199, %v2314
  %v2316 = vpop.f32.mrb[0].mxu0
  %2317 = vmatprep.mubr.f32.mxu0 0.0
  %v2318 = vand.u32 %v1771, 4294901760
  %2319 = vmatmul.mubr.f32.gmra.mrb[0].mxu0 %v2318
  %v2320 = vpop.f32.mrb[0].mxu0
  %v2321 = vadd.f32 %v2207, %v2320
  %v2322 = vpop.f32.mrb[0].mxu0
  %2323 = vmatprep.mubr.f32.mxu0 0.0
  %v2324 = vand.u32 %v1774, 4294901760
  %2325 = vmatmul.mubr.f32.gmra.mrb[0].mxu0 %v2324
  %v2326 = vpop.f32.mrb[0].mxu0
  %v2327 = vadd.f32 %v2215, %v2326
  %v2328 = vpop.f32.mrb[0].mxu0
  %2329 = vmatprep.mubr.f32.mxu0 0.0
  %v2330 = vand.u32 %v1777, 4294901760
  %2331 = vmatmul.mubr.f32.gmra.mrb[0].mxu0 %v2330
  %v2332 = vpop.f32.mrb[0].mxu0
  %v2333 = vadd.f32 %v2223, %v2332
  %v2334 = vpop.f32.mrb[0].mxu0
  %2335 = vdwg.mxu0
  %2336 = vmatprep.subr.mxu0 0.0
  %v2337 = vand.u32 %v1731, 4294901760
  %2338 = vmatpush1.msra.mxu0 %v2337
  %2339 = vmatprep.subr.mxu0 0.0
  %v2340 = vand.u32 %v1735, 4294901760
  %2341 = vmatpush1.msra.mxu0 %v2340
  %2342 = vmatprep.subr.mxu0 0.0
  %v2343 = vand.u32 %v1739, 4294901760
  %2344 = vmatpush1.msra.mxu0 %v2343
  %2345 = vmatprep.subr.mxu0 0.0
  %v2346 = vand.u32 %v1743, 4294901760
  %2347 = vmatpush1.msra.mxu0 %v2346
  %2348 = vmatprep.subr.mxu0 0.0
  %v2349 = vand.u32 %v1747, 4294901760
  %2350 = vmatpush1.msra.mxu0 %v2349
  %2351 = vmatprep.subr.mxu0 0.0
  %v2352 = vand.u32 %v1751, 4294901760
  %2353 = vmatpush1.msra.mxu0 %v2352
  %2354 = vmatprep.subr.mxu0 0.0
  %v2355 = vand.u32 %v1755, 4294901760
  %2356 = vmatpush1.msra.mxu0 %v2355
  %2357 = vmatprep.subr.mxu0 0.0
  %2358 = vmatpush1.msra.mxu0 0.0
  %2359 = vmatprep.subr.mxu0 0.0
  %2360 = vmatpush1.msra.mxu0 0.0
  %2361 = vmatprep.subr.mxu0 0.0
  %2362 = vmatpush1.msra.mxu0 0.0
  %2363 = vmatprep.subr.mxu0 0.0
  %2364 = vmatpush1.msra.mxu0 0.0
  %2365 = vmatprep.subr.mxu0 0.0
  %2366 = vmatpush1.msra.mxu0 0.0
  %2367 = vmatprep.subr.mxu0 0.0
  %2368 = vmatpush1.msra.mxu0 0.0
  %2369 = vmatprep.subr.mxu0 0.0
  %2370 = vmatpush1.msra.mxu0 0.0
  %2371 = vmatprep.subr.mxu0 0.0
  %2372 = vmatpush1.msra.mxu0 0.0
  %2373 = vmatprep.subr.mxu0 0.0
  %2374 = vmatpush1.msra.mxu0 0.0
  %2375 = vmatprep.subr.mxu0 0.0
  %2376 = vmatpush1.msra.mxu0 0.0
  %2377 = vmatprep.subr.mxu0 0.0
  %2378 = vmatpush1.msra.mxu0 0.0
  %2379 = vmatprep.subr.mxu0 0.0
  %2380 = vmatpush1.msra.mxu0 0.0
  %2381 = vmatprep.subr.mxu0 0.0
  %2382 = vmatpush1.msra.mxu0 0.0
  %2383 = vmatprep.subr.mxu0 0.0
  %2384 = vmatpush1.msra.mxu0 0.0
  %2385 = vmatprep.subr.mxu0 0.0
  %2386 = vmatpush1.msra.mxu0 0.0
  %2387 = vmatprep.subr.mxu0 0.0
  %2388 = vmatpush1.msra.mxu0 0.0
  %2389 = vmatprep.subr.mxu0 0.0
  %2390 = vmatpush1.msra.mxu0 0.0
  %2391 = vmatprep.subr.mxu0 0.0
  %2392 = vmatpush1.msra.mxu0 0.0
  %2393 = vmatprep.subr.mxu0 0.0
  %2394 = vmatpush1.msra.mxu0 0.0
  %2395 = vmatprep.subr.mxu0 0.0
  %2396 = vmatpush1.msra.mxu0 0.0
  %2397 = vmatprep.subr.mxu0 0.0
  %2398 = vmatpush1.msra.mxu0 0.0
  %2399 = vmatprep.subr.mxu0 0.0
  %2400 = vmatpush1.msra.mxu0 0.0
  %2401 = vmatprep.subr.mxu0 0.0
  %2402 = vmatpush1.msra.mxu0 0.0
  %2403 = vmatprep.subr.mxu0 0.0
  %2404 = vmatpush1.msra.mxu0 0.0
  %2405 = vmatprep.subr.mxu0 0.0
  %2406 = vmatpush1.msra.mxu0 0.0
  %2407 = vmatprep.mubr.f32.mxu0 0.0
  %v2408 = vand.u32 %v1768, 4294901760
  %2409 = vmatmul.mubr.f32.gmra.mrb[0].mxu0 %v2408
  %v2410 = vpop.f32.mrb[0].mxu0
  %v2411 = vadd.f32 %v2315, %v2410
  %v2412 = vpop.f32.mrb[0].mxu0
  %2413 = vmatprep.mubr.f32.mxu0 0.0
  %v2414 = vand.u32 %v1771, 4294901760
  %2415 = vmatmul.mubr.f32.gmra.mrb[0].mxu0 %v2414
  %v2416 = vpop.f32.mrb[0].mxu0
  %v2417 = vadd.f32 %v2321, %v2416
  %v2418 = vpop.f32.mrb[0].mxu0
  %2419 = vmatprep.mubr.f32.mxu0 0.0
  %v2420 = vand.u32 %v1774, 4294901760
  %2421 = vmatmul.mubr.f32.gmra.mrb[0].mxu0 %v2420
  %v2422 = vpop.f32.mrb[0].mxu0
  %v2423 = vadd.f32 %v2327, %v2422
  %v2424 = vpop.f32.mrb[0].mxu0
  %2425 = vmatprep.mubr.f32.mxu0 0.0
  %v2426 = vand.u32 %v1777, 4294901760
  %2427 = vmatmul.mubr.f32.gmra.mrb[0].mxu0 %v2426
  %v2428 = vpop.f32.mrb[0].mxu0
  %v2429 = vadd.f32 %v2333, %v2428
  %v2430 = vpop.f32.mrb[0].mxu0
  %2431 = vdwg.mxu0
  %v2433 = vsel %vm1766, %v1758, 0
  %v2436 = vsel %vm1766, %v1759, 0
  %v2439 = vsel %vm1766, %v1760, 0
  %v2442 = vsel %vm1766, %v1761, 0
  %2444 = vmatprep.subr.mxu0 0.0
  %v2445 = vand.u32 %v1730, 4294901760
  %2446 = vmatpush1.msra.mxu0 %v2445
  %2447 = vmatprep.subr.mxu0 0.0
  %v2448 = vand.u32 %v1734, 4294901760
  %2449 = vmatpush1.msra.mxu0 %v2448
  %2450 = vmatprep.subr.mxu0 0.0
  %v2451 = vand.u32 %v1738, 4294901760
  %2452 = vmatpush1.msra.mxu0 %v2451
  %2453 = vmatprep.subr.mxu0 0.0
  %v2454 = vand.u32 %v1742, 4294901760
  %2455 = vmatpush1.msra.mxu0 %v2454
  %2456 = vmatprep.subr.mxu0 0.0
  %v2457 = vand.u32 %v1746, 4294901760
  %2458 = vmatpush1.msra.mxu0 %v2457
  %2459 = vmatprep.subr.mxu0 0.0
  %v2460 = vand.u32 %v1750, 4294901760
  %2461 = vmatpush1.msra.mxu0 %v2460
  %2462 = vmatprep.subr.mxu0 0.0
  %v2463 = vand.u32 %v1754, 4294901760
  %2464 = vmatpush1.msra.mxu0 %v2463
  %2465 = vmatprep.subr.mxu0 0.0
  %2466 = vmatpush1.msra.mxu0 0.0
  %2467 = vmatprep.subr.mxu0 0.0
  %2468 = vmatpush1.msra.mxu0 0.0
  %2469 = vmatprep.subr.mxu0 0.0
  %2470 = vmatpush1.msra.mxu0 0.0
  %2471 = vmatprep.subr.mxu0 0.0
  %2472 = vmatpush1.msra.mxu0 0.0
  %2473 = vmatprep.subr.mxu0 0.0
  %2474 = vmatpush1.msra.mxu0 0.0
  %2475 = vmatprep.subr.mxu0 0.0
  %2476 = vmatpush1.msra.mxu0 0.0
  %2477 = vmatprep.subr.mxu0 0.0
  %2478 = vmatpush1.msra.mxu0 0.0
  %2479 = vmatprep.subr.mxu0 0.0
  %2480 = vmatpush1.msra.mxu0 0.0
  %2481 = vmatprep.subr.mxu0 0.0
  %2482 = vmatpush1.msra.mxu0 0.0
  %2483 = vmatprep.subr.mxu0 0.0
  %2484 = vmatpush1.msra.mxu0 0.0
  %2485 = vmatprep.subr.mxu0 0.0
  %2486 = vmatpush1.msra.mxu0 0.0
  %2487 = vmatprep.subr.mxu0 0.0
  %2488 = vmatpush1.msra.mxu0 0.0
  %2489 = vmatprep.subr.mxu0 0.0
  %2490 = vmatpush1.msra.mxu0 0.0
  %2491 = vmatprep.subr.mxu0 0.0
  %2492 = vmatpush1.msra.mxu0 0.0
  %2493 = vmatprep.subr.mxu0 0.0
  %2494 = vmatpush1.msra.mxu0 0.0
  %2495 = vmatprep.subr.mxu0 0.0
  %2496 = vmatpush1.msra.mxu0 0.0
  %2497 = vmatprep.subr.mxu0 0.0
  %2498 = vmatpush1.msra.mxu0 0.0
  %2499 = vmatprep.subr.mxu0 0.0
  %2500 = vmatpush1.msra.mxu0 0.0
  %2501 = vmatprep.subr.mxu0 0.0
  %2502 = vmatpush1.msra.mxu0 0.0
  %2503 = vmatprep.subr.mxu0 0.0
  %2504 = vmatpush1.msra.mxu0 0.0
  %2505 = vmatprep.subr.mxu0 0.0
  %2506 = vmatpush1.msra.mxu0 0.0
  %2507 = vmatprep.subr.mxu0 0.0
  %2508 = vmatpush1.msra.mxu0 0.0
  %2509 = vmatprep.subr.mxu0 0.0
  %2510 = vmatpush1.msra.mxu0 0.0
  %2511 = vmatprep.subr.mxu0 0.0
  %2512 = vmatpush1.msra.mxu0 0.0
  %2513 = vmatprep.subr.mxu0 0.0
  %2514 = vmatpush1.msra.mxu0 0.0
  %2515 = vmatprep.mubr.f32.mxu0 0.0
  %v2516 = vand.u32 %v2433, 4294901760
  %v2517 = vsub.f32 %v2433, %v2516
  %v2518 = vand.u32 %v2517, 4294901760
  %v2519 = vsub.f32 %v2517, %v2518
  %v2520 = vand.u32 %v2519, 4294901760
  %2521 = vmatmul.mubr.f32.gmra.mrb[0].mxu0 %v2520
  %v2522 = vpop.f32.mrb[0].mxu0
  %v2523 = vadd.f32 %v2411, %v2522
  %v2524 = vpop.f32.mrb[0].mxu0
  %2525 = vmatprep.mubr.f32.mxu0 0.0
  %v2526 = vand.u32 %v2436, 4294901760
  %v2527 = vsub.f32 %v2436, %v2526
  %v2528 = vand.u32 %v2527, 4294901760
  %v2529 = vsub.f32 %v2527, %v2528
  %v2530 = vand.u32 %v2529, 4294901760
  %2531 = vmatmul.mubr.f32.gmra.mrb[0].mxu0 %v2530
  %v2532 = vpop.f32.mrb[0].mxu0
  %v2533 = vadd.f32 %v2417, %v2532
  %v2534 = vpop.f32.mrb[0].mxu0
  %2535 = vmatprep.mubr.f32.mxu0 0.0
  %v2536 = vand.u32 %v2439, 4294901760
  %v2537 = vsub.f32 %v2439, %v2536
  %v2538 = vand.u32 %v2537, 4294901760
  %v2539 = vsub.f32 %v2537, %v2538
  %v2540 = vand.u32 %v2539, 4294901760
  %2541 = vmatmul.mubr.f32.gmra.mrb[0].mxu0 %v2540
  %v2542 = vpop.f32.mrb[0].mxu0
  %v2543 = vadd.f32 %v2423, %v2542
  %v2544 = vpop.f32.mrb[0].mxu0
  %2545 = vmatprep.mubr.f32.mxu0 0.0
  %v2546 = vand.u32 %v2442, 4294901760
  %v2547 = vsub.f32 %v2442, %v2546
  %v2548 = vand.u32 %v2547, 4294901760
  %v2549 = vsub.f32 %v2547, %v2548
  %v2550 = vand.u32 %v2549, 4294901760
  %2551 = vmatmul.mubr.f32.gmra.mrb[0].mxu0 %v2550
  %v2552 = vpop.f32.mrb[0].mxu0
  %v2553 = vadd.f32 %v2429, %v2552
  %v2554 = vpop.f32.mrb[0].mxu0
  %2555 = vdwg.mxu0
  %2556 = vmatprep.subr.mxu0 0.0
  %v2557 = vand.u32 %v1730, 4294901760
  %v2558 = vsub.f32 %v1730, %v2557
  %v2559 = vand.u32 %v2558, 4294901760
  %v2560 = vsub.f32 %v2558, %v2559
  %v2561 = vand.u32 %v2560, 4294901760
  %2562 = vmatpush1.msra.mxu0 %v2561
  %2563 = vmatprep.subr.mxu0 0.0
  %v2564 = vand.u32 %v1734, 4294901760
  %v2565 = vsub.f32 %v1734, %v2564
  %v2566 = vand.u32 %v2565, 4294901760
  %v2567 = vsub.f32 %v2565, %v2566
  %v2568 = vand.u32 %v2567, 4294901760
  %2569 = vmatpush1.msra.mxu0 %v2568
  %2570 = vmatprep.subr.mxu0 0.0
  %v2571 = vand.u32 %v1738, 4294901760
  %v2572 = vsub.f32 %v1738, %v2571
  %v2573 = vand.u32 %v2572, 4294901760
  %v2574 = vsub.f32 %v2572, %v2573
  %v2575 = vand.u32 %v2574, 4294901760
  %2576 = vmatpush1.msra.mxu0 %v2575
  %2577 = vmatprep.subr.mxu0 0.0
  %v2578 = vand.u32 %v1742, 4294901760
  %v2579 = vsub.f32 %v1742, %v2578
  %v2580 = vand.u32 %v2579, 4294901760
  %v2581 = vsub.f32 %v2579, %v2580
  %v2582 = vand.u32 %v2581, 4294901760
  %2583 = vmatpush1.msra.mxu0 %v2582
  %2584 = vmatprep.subr.mxu0 0.0
  %v2585 = vand.u32 %v1746, 4294901760
  %v2586 = vsub.f32 %v1746, %v2585
  %v2587 = vand.u32 %v2586, 4294901760
  %v2588 = vsub.f32 %v2586, %v2587
  %v2589 = vand.u32 %v2588, 4294901760
  %2590 = vmatpush1.msra.mxu0 %v2589
  %2591 = vmatprep.subr.mxu0 0.0
  %v2592 = vand.u32 %v1750, 4294901760
  %v2593 = vsub.f32 %v1750, %v2592
  %v2594 = vand.u32 %v2593, 4294901760
  %v2595 = vsub.f32 %v2593, %v2594
  %v2596 = vand.u32 %v2595, 4294901760
  %2597 = vmatpush1.msra.mxu0 %v2596
  %2598 = vmatprep.subr.mxu0 0.0
  %v2599 = vand.u32 %v1754, 4294901760
  %v2600 = vsub.f32 %v1754, %v2599
  %v2601 = vand.u32 %v2600, 4294901760
  %v2602 = vsub.f32 %v2600, %v2601
  %v2603 = vand.u32 %v2602, 4294901760
  %2604 = vmatpush1.msra.mxu0 %v2603
  %2605 = vmatprep.subr.mxu0 0.0
  %2606 = vmatpush1.msra.mxu0 0.0
  %2607 = vmatprep.subr.mxu0 0.0
  %2608 = vmatpush1.msra.mxu0 0.0
  %2609 = vmatprep.subr.mxu0 0.0
  %2610 = vmatpush1.msra.mxu0 0.0
  %2611 = vmatprep.subr.mxu0 0.0
  %2612 = vmatpush1.msra.mxu0 0.0
  %2613 = vmatprep.subr.mxu0 0.0
  %2614 = vmatpush1.msra.mxu0 0.0
  %2615 = vmatprep.subr.mxu0 0.0
  %2616 = vmatpush1.msra.mxu0 0.0
  %2617 = vmatprep.subr.mxu0 0.0
  %2618 = vmatpush1.msra.mxu0 0.0
  %2619 = vmatprep.subr.mxu0 0.0
  %2620 = vmatpush1.msra.mxu0 0.0
  %2621 = vmatprep.subr.mxu0 0.0
  %2622 = vmatpush1.msra.mxu0 0.0
  %2623 = vmatprep.subr.mxu0 0.0
  %2624 = vmatpush1.msra.mxu0 0.0
  %2625 = vmatprep.subr.mxu0 0.0
  %2626 = vmatpush1.msra.mxu0 0.0
  %2627 = vmatprep.subr.mxu0 0.0
  %2628 = vmatpush1.msra.mxu0 0.0
  %2629 = vmatprep.subr.mxu0 0.0
  %2630 = vmatpush1.msra.mxu0 0.0
  %2631 = vmatprep.subr.mxu0 0.0
  %2632 = vmatpush1.msra.mxu0 0.0
  %2633 = vmatprep.subr.mxu0 0.0
  %2634 = vmatpush1.msra.mxu0 0.0
  %2635 = vmatprep.subr.mxu0 0.0
  %2636 = vmatpush1.msra.mxu0 0.0
  %2637 = vmatprep.subr.mxu0 0.0
  %2638 = vmatpush1.msra.mxu0 0.0
  %2639 = vmatprep.subr.mxu0 0.0
  %2640 = vmatpush1.msra.mxu0 0.0
  %2641 = vmatprep.subr.mxu0 0.0
  %2642 = vmatpush1.msra.mxu0 0.0
  %2643 = vmatprep.subr.mxu0 0.0
  %2644 = vmatpush1.msra.mxu0 0.0
  %2645 = vmatprep.subr.mxu0 0.0
  %2646 = vmatpush1.msra.mxu0 0.0
  %2647 = vmatprep.subr.mxu0 0.0
  %2648 = vmatpush1.msra.mxu0 0.0
  %2649 = vmatprep.subr.mxu0 0.0
  %2650 = vmatpush1.msra.mxu0 0.0
  %2651 = vmatprep.subr.mxu0 0.0
  %2652 = vmatpush1.msra.mxu0 0.0
  %2653 = vmatprep.subr.mxu0 0.0
  %2654 = vmatpush1.msra.mxu0 0.0
  %2655 = vmatprep.mubr.f32.mxu0 0.0
  %v2656 = vand.u32 %v2433, 4294901760
  %2657 = vmatmul.mubr.f32.gmra.mrb[0].mxu0 %v2656
  %v2658 = vpop.f32.mrb[0].mxu0
  %v2659 = vadd.f32 %v2523, %v2658
  %v2660 = vpop.f32.mrb[0].mxu0
  %2661 = vmatprep.mubr.f32.mxu0 0.0
  %v2662 = vand.u32 %v2436, 4294901760
  %2663 = vmatmul.mubr.f32.gmra.mrb[0].mxu0 %v2662
  %v2664 = vpop.f32.mrb[0].mxu0
  %v2665 = vadd.f32 %v2533, %v2664
  %v2666 = vpop.f32.mrb[0].mxu0
  %2667 = vmatprep.mubr.f32.mxu0 0.0
  %v2668 = vand.u32 %v2439, 4294901760
  %2669 = vmatmul.mubr.f32.gmra.mrb[0].mxu0 %v2668
  %v2670 = vpop.f32.mrb[0].mxu0
  %v2671 = vadd.f32 %v2543, %v2670
  %v2672 = vpop.f32.mrb[0].mxu0
  %2673 = vmatprep.mubr.f32.mxu0 0.0
  %v2674 = vand.u32 %v2442, 4294901760
  %2675 = vmatmul.mubr.f32.gmra.mrb[0].mxu0 %v2674
  %v2676 = vpop.f32.mrb[0].mxu0
  %v2677 = vadd.f32 %v2553, %v2676
  %v2678 = vpop.f32.mrb[0].mxu0
  %2679 = vdwg.mxu0
  %2680 = vmatprep.subr.mxu0 0.0
  %v2681 = vand.u32 %v1730, 4294901760
  %v2682 = vsub.f32 %v1730, %v2681
  %2683 = vmatpush1.msra.mxu0 %v2682
  %2684 = vmatprep.subr.mxu0 0.0
  %v2685 = vand.u32 %v1734, 4294901760
  %v2686 = vsub.f32 %v1734, %v2685
  %2687 = vmatpush1.msra.mxu0 %v2686
  %2688 = vmatprep.subr.mxu0 0.0
  %v2689 = vand.u32 %v1738, 4294901760
  %v2690 = vsub.f32 %v1738, %v2689
  %2691 = vmatpush1.msra.mxu0 %v2690
  %2692 = vmatprep.subr.mxu0 0.0
  %v2693 = vand.u32 %v1742, 4294901760
  %v2694 = vsub.f32 %v1742, %v2693
  %2695 = vmatpush1.msra.mxu0 %v2694
  %2696 = vmatprep.subr.mxu0 0.0
  %v2697 = vand.u32 %v1746, 4294901760
  %v2698 = vsub.f32 %v1746, %v2697
  %2699 = vmatpush1.msra.mxu0 %v2698
  %2700 = vmatprep.subr.mxu0 0.0
  %v2701 = vand.u32 %v1750, 4294901760
  %v2702 = vsub.f32 %v1750, %v2701
  %2703 = vmatpush1.msra.mxu0 %v2702
  %2704 = vmatprep.subr.mxu0 0.0
  %v2705 = vand.u32 %v1754, 4294901760
  %v2706 = vsub.f32 %v1754, %v2705
  %2707 = vmatpush1.msra.mxu0 %v2706
  %2708 = vmatprep.subr.mxu0 0.0
  %2709 = vmatpush1.msra.mxu0 0.0
  %2710 = vmatprep.subr.mxu0 0.0
  %2711 = vmatpush1.msra.mxu0 0.0
  %2712 = vmatprep.subr.mxu0 0.0
  %2713 = vmatpush1.msra.mxu0 0.0
  %2714 = vmatprep.subr.mxu0 0.0
  %2715 = vmatpush1.msra.mxu0 0.0
  %2716 = vmatprep.subr.mxu0 0.0
  %2717 = vmatpush1.msra.mxu0 0.0
  %2718 = vmatprep.subr.mxu0 0.0
  %2719 = vmatpush1.msra.mxu0 0.0
  %2720 = vmatprep.subr.mxu0 0.0
  %2721 = vmatpush1.msra.mxu0 0.0
  %2722 = vmatprep.subr.mxu0 0.0
  %2723 = vmatpush1.msra.mxu0 0.0
  %2724 = vmatprep.subr.mxu0 0.0
  %2725 = vmatpush1.msra.mxu0 0.0
  %2726 = vmatprep.subr.mxu0 0.0
  %2727 = vmatpush1.msra.mxu0 0.0
  %2728 = vmatprep.subr.mxu0 0.0
  %2729 = vmatpush1.msra.mxu0 0.0
  %2730 = vmatprep.subr.mxu0 0.0
  %2731 = vmatpush1.msra.mxu0 0.0
  %2732 = vmatprep.subr.mxu0 0.0
  %2733 = vmatpush1.msra.mxu0 0.0
  %2734 = vmatprep.subr.mxu0 0.0
  %2735 = vmatpush1.msra.mxu0 0.0
  %2736 = vmatprep.subr.mxu0 0.0
  %2737 = vmatpush1.msra.mxu0 0.0
  %2738 = vmatprep.subr.mxu0 0.0
  %2739 = vmatpush1.msra.mxu0 0.0
  %2740 = vmatprep.subr.mxu0 0.0
  %2741 = vmatpush1.msra.mxu0 0.0
  %2742 = vmatprep.subr.mxu0 0.0
  %2743 = vmatpush1.msra.mxu0 0.0
  %2744 = vmatprep.subr.mxu0 0.0
  %2745 = vmatpush1.msra.mxu0 0.0
  %2746 = vmatprep.subr.mxu0 0.0
  %2747 = vmatpush1.msra.mxu0 0.0
  %2748 = vmatprep.subr.mxu0 0.0
  %2749 = vmatpush1.msra.mxu0 0.0
  %2750 = vmatprep.subr.mxu0 0.0
  %2751 = vmatpush1.msra.mxu0 0.0
  %2752 = vmatprep.subr.mxu0 0.0
  %2753 = vmatpush1.msra.mxu0 0.0
  %2754 = vmatprep.subr.mxu0 0.0
  %2755 = vmatpush1.msra.mxu0 0.0
  %2756 = vmatprep.subr.mxu0 0.0
  %2757 = vmatpush1.msra.mxu0 0.0
  %2758 = vmatprep.mubr.f32.mxu0 0.0
  %v2759 = vand.u32 %v2433, 4294901760
  %v2760 = vsub.f32 %v2433, %v2759
  %2761 = vmatmul.mubr.f32.gmra.mrb[0].mxu0 %v2760
  %v2762 = vpop.f32.mrb[0].mxu0
  %v2763 = vadd.f32 %v2659, %v2762
  %v2764 = vpop.f32.mrb[0].mxu0
  %2765 = vmatprep.mubr.f32.mxu0 0.0
  %v2766 = vand.u32 %v2436, 4294901760
  %v2767 = vsub.f32 %v2436, %v2766
  %2768 = vmatmul.mubr.f32.gmra.mrb[0].mxu0 %v2767
  %v2769 = vpop.f32.mrb[0].mxu0
  %v2770 = vadd.f32 %v2665, %v2769
  %v2771 = vpop.f32.mrb[0].mxu0
  %2772 = vmatprep.mubr.f32.mxu0 0.0
  %v2773 = vand.u32 %v2439, 4294901760
  %v2774 = vsub.f32 %v2439, %v2773
  %2775 = vmatmul.mubr.f32.gmra.mrb[0].mxu0 %v2774
  %v2776 = vpop.f32.mrb[0].mxu0
  %v2777 = vadd.f32 %v2671, %v2776
  %v2778 = vpop.f32.mrb[0].mxu0
  %2779 = vmatprep.mubr.f32.mxu0 0.0
  %v2780 = vand.u32 %v2442, 4294901760
  %v2781 = vsub.f32 %v2442, %v2780
  %2782 = vmatmul.mubr.f32.gmra.mrb[0].mxu0 %v2781
  %v2783 = vpop.f32.mrb[0].mxu0
  %v2784 = vadd.f32 %v2677, %v2783
  %v2785 = vpop.f32.mrb[0].mxu0
  %2786 = vdwg.mxu0
  %2787 = vmatprep.subr.mxu0 0.0
  %v2788 = vand.u32 %v1730, 4294901760
  %2789 = vmatpush1.msra.mxu0 %v2788
  %2790 = vmatprep.subr.mxu0 0.0
  %v2791 = vand.u32 %v1734, 4294901760
  %2792 = vmatpush1.msra.mxu0 %v2791
  %2793 = vmatprep.subr.mxu0 0.0
  %v2794 = vand.u32 %v1738, 4294901760
  %2795 = vmatpush1.msra.mxu0 %v2794
  %2796 = vmatprep.subr.mxu0 0.0
  %v2797 = vand.u32 %v1742, 4294901760
  %2798 = vmatpush1.msra.mxu0 %v2797
  %2799 = vmatprep.subr.mxu0 0.0
  %v2800 = vand.u32 %v1746, 4294901760
  %2801 = vmatpush1.msra.mxu0 %v2800
  %2802 = vmatprep.subr.mxu0 0.0
  %v2803 = vand.u32 %v1750, 4294901760
  %2804 = vmatpush1.msra.mxu0 %v2803
  %2805 = vmatprep.subr.mxu0 0.0
  %v2806 = vand.u32 %v1754, 4294901760
  %2807 = vmatpush1.msra.mxu0 %v2806
  %2808 = vmatprep.subr.mxu0 0.0
  %2809 = vmatpush1.msra.mxu0 0.0
  %2810 = vmatprep.subr.mxu0 0.0
  %2811 = vmatpush1.msra.mxu0 0.0
  %2812 = vmatprep.subr.mxu0 0.0
  %2813 = vmatpush1.msra.mxu0 0.0
  %2814 = vmatprep.subr.mxu0 0.0
  %2815 = vmatpush1.msra.mxu0 0.0
  %2816 = vmatprep.subr.mxu0 0.0
  %2817 = vmatpush1.msra.mxu0 0.0
  %2818 = vmatprep.subr.mxu0 0.0
  %2819 = vmatpush1.msra.mxu0 0.0
  %2820 = vmatprep.subr.mxu0 0.0
  %2821 = vmatpush1.msra.mxu0 0.0
  %2822 = vmatprep.subr.mxu0 0.0
  %2823 = vmatpush1.msra.mxu0 0.0
  %2824 = vmatprep.subr.mxu0 0.0
  %2825 = vmatpush1.msra.mxu0 0.0
  %2826 = vmatprep.subr.mxu0 0.0
  %2827 = vmatpush1.msra.mxu0 0.0
  %2828 = vmatprep.subr.mxu0 0.0
  %2829 = vmatpush1.msra.mxu0 0.0
  %2830 = vmatprep.subr.mxu0 0.0
  %2831 = vmatpush1.msra.mxu0 0.0
  %2832 = vmatprep.subr.mxu0 0.0
  %2833 = vmatpush1.msra.mxu0 0.0
  %2834 = vmatprep.subr.mxu0 0.0
  %2835 = vmatpush1.msra.mxu0 0.0
  %2836 = vmatprep.subr.mxu0 0.0
  %2837 = vmatpush1.msra.mxu0 0.0
  %2838 = vmatprep.subr.mxu0 0.0
  %2839 = vmatpush1.msra.mxu0 0.0
  %2840 = vmatprep.subr.mxu0 0.0
  %2841 = vmatpush1.msra.mxu0 0.0
  %2842 = vmatprep.subr.mxu0 0.0
  %2843 = vmatpush1.msra.mxu0 0.0
  %2844 = vmatprep.subr.mxu0 0.0
  %2845 = vmatpush1.msra.mxu0 0.0
  %2846 = vmatprep.subr.mxu0 0.0
  %2847 = vmatpush1.msra.mxu0 0.0
  %2848 = vmatprep.subr.mxu0 0.0
  %2849 = vmatpush1.msra.mxu0 0.0
  %2850 = vmatprep.subr.mxu0 0.0
  %2851 = vmatpush1.msra.mxu0 0.0
  %2852 = vmatprep.subr.mxu0 0.0
  %2853 = vmatpush1.msra.mxu0 0.0
  %2854 = vmatprep.subr.mxu0 0.0
  %2855 = vmatpush1.msra.mxu0 0.0
  %2856 = vmatprep.subr.mxu0 0.0
  %2857 = vmatpush1.msra.mxu0 0.0
  %2858 = vmatprep.mubr.f32.mxu0 0.0
  %v2859 = vand.u32 %v2433, 4294901760
  %v2860 = vsub.f32 %v2433, %v2859
  %v2861 = vand.u32 %v2860, 4294901760
  %2862 = vmatmul.mubr.f32.gmra.mrb[0].mxu0 %v2861
  %v2863 = vpop.f32.mrb[0].mxu0
  %v2864 = vadd.f32 %v2763, %v2863
  %v2865 = vpop.f32.mrb[0].mxu0
  %2866 = vmatprep.mubr.f32.mxu0 0.0
  %v2867 = vand.u32 %v2436, 4294901760
  %v2868 = vsub.f32 %v2436, %v2867
  %v2869 = vand.u32 %v2868, 4294901760
  %2870 = vmatmul.mubr.f32.gmra.mrb[0].mxu0 %v2869
  %v2871 = vpop.f32.mrb[0].mxu0
  %v2872 = vadd.f32 %v2770, %v2871
  %v2873 = vpop.f32.mrb[0].mxu0
  %2874 = vmatprep.mubr.f32.mxu0 0.0
  %v2875 = vand.u32 %v2439, 4294901760
  %v2876 = vsub.f32 %v2439, %v2875
  %v2877 = vand.u32 %v2876, 4294901760
  %2878 = vmatmul.mubr.f32.gmra.mrb[0].mxu0 %v2877
  %v2879 = vpop.f32.mrb[0].mxu0
  %v2880 = vadd.f32 %v2777, %v2879
  %v2881 = vpop.f32.mrb[0].mxu0
  %2882 = vmatprep.mubr.f32.mxu0 0.0
  %v2883 = vand.u32 %v2442, 4294901760
  %v2884 = vsub.f32 %v2442, %v2883
  %v2885 = vand.u32 %v2884, 4294901760
  %2886 = vmatmul.mubr.f32.gmra.mrb[0].mxu0 %v2885
  %v2887 = vpop.f32.mrb[0].mxu0
  %v2888 = vadd.f32 %v2784, %v2887
  %v2889 = vpop.f32.mrb[0].mxu0
  %2890 = vdwg.mxu0
  %2891 = vmatprep.subr.mxu0 0.0
  %v2892 = vand.u32 %v1730, 4294901760
  %v2893 = vsub.f32 %v1730, %v2892
  %v2894 = vand.u32 %v2893, 4294901760
  %2895 = vmatpush1.msra.mxu0 %v2894
  %2896 = vmatprep.subr.mxu0 0.0
  %v2897 = vand.u32 %v1734, 4294901760
  %v2898 = vsub.f32 %v1734, %v2897
  %v2899 = vand.u32 %v2898, 4294901760
  %2900 = vmatpush1.msra.mxu0 %v2899
  %2901 = vmatprep.subr.mxu0 0.0
  %v2902 = vand.u32 %v1738, 4294901760
  %v2903 = vsub.f32 %v1738, %v2902
  %v2904 = vand.u32 %v2903, 4294901760
  %2905 = vmatpush1.msra.mxu0 %v2904
  %2906 = vmatprep.subr.mxu0 0.0
  %v2907 = vand.u32 %v1742, 4294901760
  %v2908 = vsub.f32 %v1742, %v2907
  %v2909 = vand.u32 %v2908, 4294901760
  %2910 = vmatpush1.msra.mxu0 %v2909
  %2911 = vmatprep.subr.mxu0 0.0
  %v2912 = vand.u32 %v1746, 4294901760
  %v2913 = vsub.f32 %v1746, %v2912
  %v2914 = vand.u32 %v2913, 4294901760
  %2915 = vmatpush1.msra.mxu0 %v2914
  %2916 = vmatprep.subr.mxu0 0.0
  %v2917 = vand.u32 %v1750, 4294901760
  %v2918 = vsub.f32 %v1750, %v2917
  %v2919 = vand.u32 %v2918, 4294901760
  %2920 = vmatpush1.msra.mxu0 %v2919
  %2921 = vmatprep.subr.mxu0 0.0
  %v2922 = vand.u32 %v1754, 4294901760
  %v2923 = vsub.f32 %v1754, %v2922
  %v2924 = vand.u32 %v2923, 4294901760
  %2925 = vmatpush1.msra.mxu0 %v2924
  %2926 = vmatprep.subr.mxu0 0.0
  %2927 = vmatpush1.msra.mxu0 0.0
  %2928 = vmatprep.subr.mxu0 0.0
  %2929 = vmatpush1.msra.mxu0 0.0
  %2930 = vmatprep.subr.mxu0 0.0
  %2931 = vmatpush1.msra.mxu0 0.0
  %2932 = vmatprep.subr.mxu0 0.0
  %2933 = vmatpush1.msra.mxu0 0.0
  %2934 = vmatprep.subr.mxu0 0.0
  %2935 = vmatpush1.msra.mxu0 0.0
  %2936 = vmatprep.subr.mxu0 0.0
  %2937 = vmatpush1.msra.mxu0 0.0
  %2938 = vmatprep.subr.mxu0 0.0
  %2939 = vmatpush1.msra.mxu0 0.0
  %2940 = vmatprep.subr.mxu0 0.0
  %2941 = vmatpush1.msra.mxu0 0.0
  %2942 = vmatprep.subr.mxu0 0.0
  %2943 = vmatpush1.msra.mxu0 0.0
  %2944 = vmatprep.subr.mxu0 0.0
  %2945 = vmatpush1.msra.mxu0 0.0
  %2946 = vmatprep.subr.mxu0 0.0
  %2947 = vmatpush1.msra.mxu0 0.0
  %2948 = vmatprep.subr.mxu0 0.0
  %2949 = vmatpush1.msra.mxu0 0.0
  %2950 = vmatprep.subr.mxu0 0.0
  %2951 = vmatpush1.msra.mxu0 0.0
  %2952 = vmatprep.subr.mxu0 0.0
  %2953 = vmatpush1.msra.mxu0 0.0
  %2954 = vmatprep.subr.mxu0 0.0
  %2955 = vmatpush1.msra.mxu0 0.0
  %2956 = vmatprep.subr.mxu0 0.0
  %2957 = vmatpush1.msra.mxu0 0.0
  %2958 = vmatprep.subr.mxu0 0.0
  %2959 = vmatpush1.msra.mxu0 0.0
  %2960 = vmatprep.subr.mxu0 0.0
  %2961 = vmatpush1.msra.mxu0 0.0
  %2962 = vmatprep.subr.mxu0 0.0
  %2963 = vmatpush1.msra.mxu0 0.0
  %2964 = vmatprep.subr.mxu0 0.0
  %2965 = vmatpush1.msra.mxu0 0.0
  %2966 = vmatprep.subr.mxu0 0.0
  %2967 = vmatpush1.msra.mxu0 0.0
  %2968 = vmatprep.subr.mxu0 0.0
  %2969 = vmatpush1.msra.mxu0 0.0
  %2970 = vmatprep.subr.mxu0 0.0
  %2971 = vmatpush1.msra.mxu0 0.0
  %2972 = vmatprep.subr.mxu0 0.0
  %2973 = vmatpush1.msra.mxu0 0.0
  %2974 = vmatprep.subr.mxu0 0.0
  %2975 = vmatpush1.msra.mxu0 0.0
  %2976 = vmatprep.mubr.f32.mxu0 0.0
  %v2977 = vand.u32 %v2433, 4294901760
  %2978 = vmatmul.mubr.f32.gmra.mrb[0].mxu0 %v2977
  %v2979 = vpop.f32.mrb[0].mxu0
  %v2980 = vadd.f32 %v2864, %v2979
  %v2981 = vpop.f32.mrb[0].mxu0
  %2982 = vmatprep.mubr.f32.mxu0 0.0
  %v2983 = vand.u32 %v2436, 4294901760
  %2984 = vmatmul.mubr.f32.gmra.mrb[0].mxu0 %v2983
  %v2985 = vpop.f32.mrb[0].mxu0
  %v2986 = vadd.f32 %v2872, %v2985
  %v2987 = vpop.f32.mrb[0].mxu0
  %2988 = vmatprep.mubr.f32.mxu0 0.0
  %v2989 = vand.u32 %v2439, 4294901760
  %2990 = vmatmul.mubr.f32.gmra.mrb[0].mxu0 %v2989
  %v2991 = vpop.f32.mrb[0].mxu0
  %v2992 = vadd.f32 %v2880, %v2991
  %v2993 = vpop.f32.mrb[0].mxu0
  %2994 = vmatprep.mubr.f32.mxu0 0.0
  %v2995 = vand.u32 %v2442, 4294901760
  %2996 = vmatmul.mubr.f32.gmra.mrb[0].mxu0 %v2995
  %v2997 = vpop.f32.mrb[0].mxu0
  %v2998 = vadd.f32 %v2888, %v2997
  %v2999 = vpop.f32.mrb[0].mxu0
  %3000 = vdwg.mxu0
  %3001 = vmatprep.subr.mxu0 0.0
  %v3002 = vand.u32 %v1730, 4294901760
  %3003 = vmatpush1.msra.mxu0 %v3002
  %3004 = vmatprep.subr.mxu0 0.0
  %v3005 = vand.u32 %v1734, 4294901760
  %3006 = vmatpush1.msra.mxu0 %v3005
  %3007 = vmatprep.subr.mxu0 0.0
  %v3008 = vand.u32 %v1738, 4294901760
  %3009 = vmatpush1.msra.mxu0 %v3008
  %3010 = vmatprep.subr.mxu0 0.0
  %v3011 = vand.u32 %v1742, 4294901760
  %3012 = vmatpush1.msra.mxu0 %v3011
  %3013 = vmatprep.subr.mxu0 0.0
  %v3014 = vand.u32 %v1746, 4294901760
  %3015 = vmatpush1.msra.mxu0 %v3014
  %3016 = vmatprep.subr.mxu0 0.0
  %v3017 = vand.u32 %v1750, 4294901760
  %3018 = vmatpush1.msra.mxu0 %v3017
  %3019 = vmatprep.subr.mxu0 0.0
  %v3020 = vand.u32 %v1754, 4294901760
  %3021 = vmatpush1.msra.mxu0 %v3020
  %3022 = vmatprep.subr.mxu0 0.0
  %3023 = vmatpush1.msra.mxu0 0.0
  %3024 = vmatprep.subr.mxu0 0.0
  %3025 = vmatpush1.msra.mxu0 0.0
  %3026 = vmatprep.subr.mxu0 0.0
  %3027 = vmatpush1.msra.mxu0 0.0
  %3028 = vmatprep.subr.mxu0 0.0
  %3029 = vmatpush1.msra.mxu0 0.0
  %3030 = vmatprep.subr.mxu0 0.0
  %3031 = vmatpush1.msra.mxu0 0.0
  %3032 = vmatprep.subr.mxu0 0.0
  %3033 = vmatpush1.msra.mxu0 0.0
  %3034 = vmatprep.subr.mxu0 0.0
  %3035 = vmatpush1.msra.mxu0 0.0
  %3036 = vmatprep.subr.mxu0 0.0
  %3037 = vmatpush1.msra.mxu0 0.0
  %3038 = vmatprep.subr.mxu0 0.0
  %3039 = vmatpush1.msra.mxu0 0.0
  %3040 = vmatprep.subr.mxu0 0.0
  %3041 = vmatpush1.msra.mxu0 0.0
  %3042 = vmatprep.subr.mxu0 0.0
  %3043 = vmatpush1.msra.mxu0 0.0
  %3044 = vmatprep.subr.mxu0 0.0
  %3045 = vmatpush1.msra.mxu0 0.0
  %3046 = vmatprep.subr.mxu0 0.0
  %3047 = vmatpush1.msra.mxu0 0.0
  %3048 = vmatprep.subr.mxu0 0.0
  %3049 = vmatpush1.msra.mxu0 0.0
  %3050 = vmatprep.subr.mxu0 0.0
  %3051 = vmatpush1.msra.mxu0 0.0
  %3052 = vmatprep.subr.mxu0 0.0
  %3053 = vmatpush1.msra.mxu0 0.0
  %3054 = vmatprep.subr.mxu0 0.0
  %3055 = vmatpush1.msra.mxu0 0.0
  %3056 = vmatprep.subr.mxu0 0.0
  %3057 = vmatpush1.msra.mxu0 0.0
  %3058 = vmatprep.subr.mxu0 0.0
  %3059 = vmatpush1.msra.mxu0 0.0
  %3060 = vmatprep.subr.mxu0 0.0
  %3061 = vmatpush1.msra.mxu0 0.0
  %3062 = vmatprep.subr.mxu0 0.0
  %3063 = vmatpush1.msra.mxu0 0.0
  %3064 = vmatprep.subr.mxu0 0.0
  %3065 = vmatpush1.msra.mxu0 0.0
  %3066 = vmatprep.subr.mxu0 0.0
  %3067 = vmatpush1.msra.mxu0 0.0
  %3068 = vmatprep.subr.mxu0 0.0
  %3069 = vmatpush1.msra.mxu0 0.0
  %3070 = vmatprep.subr.mxu0 0.0
  %3071 = vmatpush1.msra.mxu0 0.0
  %3072 = vmatprep.mubr.f32.mxu0 0.0
  %v3073 = vand.u32 %v2433, 4294901760
  %3074 = vmatmul.mubr.f32.gmra.mrb[0].mxu0 %v3073
  %v3075 = vpop.f32.mrb[0].mxu0
  %v3076 = vadd.f32 %v2980, %v3075
  %v3077 = vpop.f32.mrb[0].mxu0
  %3078 = vmatprep.mubr.f32.mxu0 0.0
  %v3079 = vand.u32 %v2436, 4294901760
  %3080 = vmatmul.mubr.f32.gmra.mrb[0].mxu0 %v3079
  %v3081 = vpop.f32.mrb[0].mxu0
  %v3082 = vadd.f32 %v2986, %v3081
  %v3083 = vpop.f32.mrb[0].mxu0
  %3084 = vmatprep.mubr.f32.mxu0 0.0
  %v3085 = vand.u32 %v2439, 4294901760
  %3086 = vmatmul.mubr.f32.gmra.mrb[0].mxu0 %v3085
  %v3087 = vpop.f32.mrb[0].mxu0
  %v3088 = vadd.f32 %v2992, %v3087
  %v3089 = vpop.f32.mrb[0].mxu0
  %3090 = vmatprep.mubr.f32.mxu0 0.0
  %v3091 = vand.u32 %v2442, 4294901760
  %3092 = vmatmul.mubr.f32.gmra.mrb[0].mxu0 %v3091
  %v3093 = vpop.f32.mrb[0].mxu0
  %v3094 = vadd.f32 %v2998, %v3093
  %v3095 = vpop.f32.mrb[0].mxu0
  %3096 = vdwg.mxu0
  %v3097 = vld [vmem:[%s1 + $0x78] sm:$0xff]
  %v3098 = vld [vmem:[%s1 + $0x80] sm:$0xff]
  %v3099 = vld [vmem:[%s1 + $0x88] sm:$0xff]
  %v3100 = vld [vmem:[%s1 + $0x90] sm:$0xff]
  %v3102 = vsel %vm1766, %v3097, 0
  %v3105 = vsel %vm1766, %v3098, 0
  %v3108 = vsel %vm1766, %v3099, 0
  %v3111 = vsel %vm1766, %v3100, 0
  %3113 = vmatprep.subr.mxu0 0.0
  %v3114 = vand.u32 %v1732, 4294901760
  %3115 = vmatpush1.msra.mxu0 %v3114
  %3116 = vmatprep.subr.mxu0 0.0
  %v3117 = vand.u32 %v1736, 4294901760
  %3118 = vmatpush1.msra.mxu0 %v3117
  %3119 = vmatprep.subr.mxu0 0.0
  %v3120 = vand.u32 %v1740, 4294901760
  %3121 = vmatpush1.msra.mxu0 %v3120
  %3122 = vmatprep.subr.mxu0 0.0
  %v3123 = vand.u32 %v1744, 4294901760
  %3124 = vmatpush1.msra.mxu0 %v3123
  %3125 = vmatprep.subr.mxu0 0.0
  %v3126 = vand.u32 %v1748, 4294901760
  %3127 = vmatpush1.msra.mxu0 %v3126
  %3128 = vmatprep.subr.mxu0 0.0
  %v3129 = vand.u32 %v1752, 4294901760
  %3130 = vmatpush1.msra.mxu0 %v3129
  %3131 = vmatprep.subr.mxu0 0.0
  %v3132 = vand.u32 %v1756, 4294901760
  %3133 = vmatpush1.msra.mxu0 %v3132
  %3134 = vmatprep.subr.mxu0 0.0
  %3135 = vmatpush1.msra.mxu0 0.0
  %3136 = vmatprep.subr.mxu0 0.0
  %3137 = vmatpush1.msra.mxu0 0.0
  %3138 = vmatprep.subr.mxu0 0.0
  %3139 = vmatpush1.msra.mxu0 0.0
  %3140 = vmatprep.subr.mxu0 0.0
  %3141 = vmatpush1.msra.mxu0 0.0
  %3142 = vmatprep.subr.mxu0 0.0
  %3143 = vmatpush1.msra.mxu0 0.0
  %3144 = vmatprep.subr.mxu0 0.0
  %3145 = vmatpush1.msra.mxu0 0.0
  %3146 = vmatprep.subr.mxu0 0.0
  %3147 = vmatpush1.msra.mxu0 0.0
  %3148 = vmatprep.subr.mxu0 0.0
  %3149 = vmatpush1.msra.mxu0 0.0
  %3150 = vmatprep.subr.mxu0 0.0
  %3151 = vmatpush1.msra.mxu0 0.0
  %3152 = vmatprep.subr.mxu0 0.0
  %3153 = vmatpush1.msra.mxu0 0.0
  %3154 = vmatprep.subr.mxu0 0.0
  %3155 = vmatpush1.msra.mxu0 0.0
  %3156 = vmatprep.subr.mxu0 0.0
  %3157 = vmatpush1.msra.mxu0 0.0
  %3158 = vmatprep.subr.mxu0 0.0
  %3159 = vmatpush1.msra.mxu0 0.0
  %3160 = vmatprep.subr.mxu0 0.0
  %3161 = vmatpush1.msra.mxu0 0.0
  %3162 = vmatprep.subr.mxu0 0.0
  %3163 = vmatpush1.msra.mxu0 0.0
  %3164 = vmatprep.subr.mxu0 0.0
  %3165 = vmatpush1.msra.mxu0 0.0
  %3166 = vmatprep.subr.mxu0 0.0
  %3167 = vmatpush1.msra.mxu0 0.0
  %3168 = vmatprep.subr.mxu0 0.0
  %3169 = vmatpush1.msra.mxu0 0.0
  %3170 = vmatprep.subr.mxu0 0.0
  %3171 = vmatpush1.msra.mxu0 0.0
  %3172 = vmatprep.subr.mxu0 0.0
  %3173 = vmatpush1.msra.mxu0 0.0
  %3174 = vmatprep.subr.mxu0 0.0
  %3175 = vmatpush1.msra.mxu0 0.0
  %3176 = vmatprep.subr.mxu0 0.0
  %3177 = vmatpush1.msra.mxu0 0.0
  %3178 = vmatprep.subr.mxu0 0.0
  %3179 = vmatpush1.msra.mxu0 0.0
  %3180 = vmatprep.subr.mxu0 0.0
  %3181 = vmatpush1.msra.mxu0 0.0
  %3182 = vmatprep.subr.mxu0 0.0
  %3183 = vmatpush1.msra.mxu0 0.0
  %3184 = vmatprep.mubr.f32.mxu0 0.0
  %v3185 = vand.u32 %v3102, 4294901760
  %v3186 = vsub.f32 %v3102, %v3185
  %v3187 = vand.u32 %v3186, 4294901760
  %v3188 = vsub.f32 %v3186, %v3187
  %v3189 = vand.u32 %v3188, 4294901760
  %3190 = vmatmul.mubr.f32.gmra.mrb[0].mxu0 %v3189
  %v3191 = vpop.f32.mrb[0].mxu0
  %v3192 = vadd.f32 0.0, %v3191
  %v3193 = vpop.f32.mrb[0].mxu0
  %3194 = vmatprep.mubr.f32.mxu0 0.0
  %v3195 = vand.u32 %v3105, 4294901760
  %v3196 = vsub.f32 %v3105, %v3195
  %v3197 = vand.u32 %v3196, 4294901760
  %v3198 = vsub.f32 %v3196, %v3197
  %v3199 = vand.u32 %v3198, 4294901760
  %3200 = vmatmul.mubr.f32.gmra.mrb[0].mxu0 %v3199
  %v3201 = vpop.f32.mrb[0].mxu0
  %v3202 = vadd.f32 0.0, %v3201
  %v3203 = vpop.f32.mrb[0].mxu0
  %3204 = vmatprep.mubr.f32.mxu0 0.0
  %v3205 = vand.u32 %v3108, 4294901760
  %v3206 = vsub.f32 %v3108, %v3205
  %v3207 = vand.u32 %v3206, 4294901760
  %v3208 = vsub.f32 %v3206, %v3207
  %v3209 = vand.u32 %v3208, 4294901760
  %3210 = vmatmul.mubr.f32.gmra.mrb[0].mxu0 %v3209
  %v3211 = vpop.f32.mrb[0].mxu0
  %v3212 = vadd.f32 0.0, %v3211
  %v3213 = vpop.f32.mrb[0].mxu0
  %3214 = vmatprep.mubr.f32.mxu0 0.0
  %v3215 = vand.u32 %v3111, 4294901760
  %v3216 = vsub.f32 %v3111, %v3215
  %v3217 = vand.u32 %v3216, 4294901760
  %v3218 = vsub.f32 %v3216, %v3217
  %v3219 = vand.u32 %v3218, 4294901760
  %3220 = vmatmul.mubr.f32.gmra.mrb[0].mxu0 %v3219
  %v3221 = vpop.f32.mrb[0].mxu0
  %v3222 = vadd.f32 0.0, %v3221
  %v3223 = vpop.f32.mrb[0].mxu0
  %3224 = vdwg.mxu0
  %3225 = vmatprep.subr.mxu0 0.0
  %v3226 = vand.u32 %v1732, 4294901760
  %v3227 = vsub.f32 %v1732, %v3226
  %v3228 = vand.u32 %v3227, 4294901760
  %v3229 = vsub.f32 %v3227, %v3228
  %v3230 = vand.u32 %v3229, 4294901760
  %3231 = vmatpush1.msra.mxu0 %v3230
  %3232 = vmatprep.subr.mxu0 0.0
  %v3233 = vand.u32 %v1736, 4294901760
  %v3234 = vsub.f32 %v1736, %v3233
  %v3235 = vand.u32 %v3234, 4294901760
  %v3236 = vsub.f32 %v3234, %v3235
  %v3237 = vand.u32 %v3236, 4294901760
  %3238 = vmatpush1.msra.mxu0 %v3237
  %3239 = vmatprep.subr.mxu0 0.0
  %v3240 = vand.u32 %v1740, 4294901760
  %v3241 = vsub.f32 %v1740, %v3240
  %v3242 = vand.u32 %v3241, 4294901760
  %v3243 = vsub.f32 %v3241, %v3242
  %v3244 = vand.u32 %v3243, 4294901760
  %3245 = vmatpush1.msra.mxu0 %v3244
  %3246 = vmatprep.subr.mxu0 0.0
  %v3247 = vand.u32 %v1744, 4294901760
  %v3248 = vsub.f32 %v1744, %v3247
  %v3249 = vand.u32 %v3248, 4294901760
  %v3250 = vsub.f32 %v3248, %v3249
  %v3251 = vand.u32 %v3250, 4294901760
  %3252 = vmatpush1.msra.mxu0 %v3251
  %3253 = vmatprep.subr.mxu0 0.0
  %v3254 = vand.u32 %v1748, 4294901760
  %v3255 = vsub.f32 %v1748, %v3254
  %v3256 = vand.u32 %v3255, 4294901760
  %v3257 = vsub.f32 %v3255, %v3256
  %v3258 = vand.u32 %v3257, 4294901760
  %3259 = vmatpush1.msra.mxu0 %v3258
  %3260 = vmatprep.subr.mxu0 0.0
  %v3261 = vand.u32 %v1752, 4294901760
  %v3262 = vsub.f32 %v1752, %v3261
  %v3263 = vand.u32 %v3262, 4294901760
  %v3264 = vsub.f32 %v3262, %v3263
  %v3265 = vand.u32 %v3264, 4294901760
  %3266 = vmatpush1.msra.mxu0 %v3265
  %3267 = vmatprep.subr.mxu0 0.0
  %v3268 = vand.u32 %v1756, 4294901760
  %v3269 = vsub.f32 %v1756, %v3268
  %v3270 = vand.u32 %v3269, 4294901760
  %v3271 = vsub.f32 %v3269, %v3270
  %v3272 = vand.u32 %v3271, 4294901760
  %3273 = vmatpush1.msra.mxu0 %v3272
  %3274 = vmatprep.subr.mxu0 0.0
  %3275 = vmatpush1.msra.mxu0 0.0
  %3276 = vmatprep.subr.mxu0 0.0
  %3277 = vmatpush1.msra.mxu0 0.0
  %3278 = vmatprep.subr.mxu0 0.0
  %3279 = vmatpush1.msra.mxu0 0.0
  %3280 = vmatprep.subr.mxu0 0.0
  %3281 = vmatpush1.msra.mxu0 0.0
  %3282 = vmatprep.subr.mxu0 0.0
  %3283 = vmatpush1.msra.mxu0 0.0
  %3284 = vmatprep.subr.mxu0 0.0
  %3285 = vmatpush1.msra.mxu0 0.0
  %3286 = vmatprep.subr.mxu0 0.0
  %3287 = vmatpush1.msra.mxu0 0.0
  %3288 = vmatprep.subr.mxu0 0.0
  %3289 = vmatpush1.msra.mxu0 0.0
  %3290 = vmatprep.subr.mxu0 0.0
  %3291 = vmatpush1.msra.mxu0 0.0
  %3292 = vmatprep.subr.mxu0 0.0
  %3293 = vmatpush1.msra.mxu0 0.0
  %3294 = vmatprep.subr.mxu0 0.0
  %3295 = vmatpush1.msra.mxu0 0.0
  %3296 = vmatprep.subr.mxu0 0.0
  %3297 = vmatpush1.msra.mxu0 0.0
  %3298 = vmatprep.subr.mxu0 0.0
  %3299 = vmatpush1.msra.mxu0 0.0
  %3300 = vmatprep.subr.mxu0 0.0
  %3301 = vmatpush1.msra.mxu0 0.0
  %3302 = vmatprep.subr.mxu0 0.0
  %3303 = vmatpush1.msra.mxu0 0.0
  %3304 = vmatprep.subr.mxu0 0.0
  %3305 = vmatpush1.msra.mxu0 0.0
  %3306 = vmatprep.subr.mxu0 0.0
  %3307 = vmatpush1.msra.mxu0 0.0
  %3308 = vmatprep.subr.mxu0 0.0
  %3309 = vmatpush1.msra.mxu0 0.0
  %3310 = vmatprep.subr.mxu0 0.0
  %3311 = vmatpush1.msra.mxu0 0.0
  %3312 = vmatprep.subr.mxu0 0.0
  %3313 = vmatpush1.msra.mxu0 0.0
  %3314 = vmatprep.subr.mxu0 0.0
  %3315 = vmatpush1.msra.mxu0 0.0
  %3316 = vmatprep.subr.mxu0 0.0
  %3317 = vmatpush1.msra.mxu0 0.0
  %3318 = vmatprep.subr.mxu0 0.0
  %3319 = vmatpush1.msra.mxu0 0.0
  %3320 = vmatprep.subr.mxu0 0.0
  %3321 = vmatpush1.msra.mxu0 0.0
  %3322 = vmatprep.subr.mxu0 0.0
  %3323 = vmatpush1.msra.mxu0 0.0
  %3324 = vmatprep.mubr.f32.mxu0 0.0
  %v3325 = vand.u32 %v3102, 4294901760
  %3326 = vmatmul.mubr.f32.gmra.mrb[0].mxu0 %v3325
  %v3327 = vpop.f32.mrb[0].mxu0
  %v3328 = vadd.f32 %v3192, %v3327
  %v3329 = vpop.f32.mrb[0].mxu0
  %3330 = vmatprep.mubr.f32.mxu0 0.0
  %v3331 = vand.u32 %v3105, 4294901760
  %3332 = vmatmul.mubr.f32.gmra.mrb[0].mxu0 %v3331
  %v3333 = vpop.f32.mrb[0].mxu0
  %v3334 = vadd.f32 %v3202, %v3333
  %v3335 = vpop.f32.mrb[0].mxu0
  %3336 = vmatprep.mubr.f32.mxu0 0.0
  %v3337 = vand.u32 %v3108, 4294901760
  %3338 = vmatmul.mubr.f32.gmra.mrb[0].mxu0 %v3337
  %v3339 = vpop.f32.mrb[0].mxu0
  %v3340 = vadd.f32 %v3212, %v3339
  %v3341 = vpop.f32.mrb[0].mxu0
  %3342 = vmatprep.mubr.f32.mxu0 0.0
  %v3343 = vand.u32 %v3111, 4294901760
  %3344 = vmatmul.mubr.f32.gmra.mrb[0].mxu0 %v3343
  %v3345 = vpop.f32.mrb[0].mxu0
  %v3346 = vadd.f32 %v3222, %v3345
  %v3347 = vpop.f32.mrb[0].mxu0
  %3348 = vdwg.mxu0
  %3349 = vmatprep.subr.mxu0 0.0
  %v3350 = vand.u32 %v1732, 4294901760
  %v3351 = vsub.f32 %v1732, %v3350
  %3352 = vmatpush1.msra.mxu0 %v3351
  %3353 = vmatprep.subr.mxu0 0.0
  %v3354 = vand.u32 %v1736, 4294901760
  %v3355 = vsub.f32 %v1736, %v3354
  %3356 = vmatpush1.msra.mxu0 %v3355
  %3357 = vmatprep.subr.mxu0 0.0
  %v3358 = vand.u32 %v1740, 4294901760
  %v3359 = vsub.f32 %v1740, %v3358
  %3360 = vmatpush1.msra.mxu0 %v3359
  %3361 = vmatprep.subr.mxu0 0.0
  %v3362 = vand.u32 %v1744, 4294901760
  %v3363 = vsub.f32 %v1744, %v3362
  %3364 = vmatpush1.msra.mxu0 %v3363
  %3365 = vmatprep.subr.mxu0 0.0
  %v3366 = vand.u32 %v1748, 4294901760
  %v3367 = vsub.f32 %v1748, %v3366
  %3368 = vmatpush1.msra.mxu0 %v3367
  %3369 = vmatprep.subr.mxu0 0.0
  %v3370 = vand.u32 %v1752, 4294901760
  %v3371 = vsub.f32 %v1752, %v3370
  %3372 = vmatpush1.msra.mxu0 %v3371
  %3373 = vmatprep.subr.mxu0 0.0
  %v3374 = vand.u32 %v1756, 4294901760
  %v3375 = vsub.f32 %v1756, %v3374
  %3376 = vmatpush1.msra.mxu0 %v3375
  %3377 = vmatprep.subr.mxu0 0.0
  %3378 = vmatpush1.msra.mxu0 0.0
  %3379 = vmatprep.subr.mxu0 0.0
  %3380 = vmatpush1.msra.mxu0 0.0
  %3381 = vmatprep.subr.mxu0 0.0
  %3382 = vmatpush1.msra.mxu0 0.0
  %3383 = vmatprep.subr.mxu0 0.0
  %3384 = vmatpush1.msra.mxu0 0.0
  %3385 = vmatprep.subr.mxu0 0.0
  %3386 = vmatpush1.msra.mxu0 0.0
  %3387 = vmatprep.subr.mxu0 0.0
  %3388 = vmatpush1.msra.mxu0 0.0
  %3389 = vmatprep.subr.mxu0 0.0
  %3390 = vmatpush1.msra.mxu0 0.0
  %3391 = vmatprep.subr.mxu0 0.0
  %3392 = vmatpush1.msra.mxu0 0.0
  %3393 = vmatprep.subr.mxu0 0.0
  %3394 = vmatpush1.msra.mxu0 0.0
  %3395 = vmatprep.subr.mxu0 0.0
  %3396 = vmatpush1.msra.mxu0 0.0
  %3397 = vmatprep.subr.mxu0 0.0
  %3398 = vmatpush1.msra.mxu0 0.0
  %3399 = vmatprep.subr.mxu0 0.0
  %3400 = vmatpush1.msra.mxu0 0.0
  %3401 = vmatprep.subr.mxu0 0.0
  %3402 = vmatpush1.msra.mxu0 0.0
  %3403 = vmatprep.subr.mxu0 0.0
  %3404 = vmatpush1.msra.mxu0 0.0
  %3405 = vmatprep.subr.mxu0 0.0
  %3406 = vmatpush1.msra.mxu0 0.0
  %3407 = vmatprep.subr.mxu0 0.0
  %3408 = vmatpush1.msra.mxu0 0.0
  %3409 = vmatprep.subr.mxu0 0.0
  %3410 = vmatpush1.msra.mxu0 0.0
  %3411 = vmatprep.subr.mxu0 0.0
  %3412 = vmatpush1.msra.mxu0 0.0
  %3413 = vmatprep.subr.mxu0 0.0
  %3414 = vmatpush1.msra.mxu0 0.0
  %3415 = vmatprep.subr.mxu0 0.0
  %3416 = vmatpush1.msra.mxu0 0.0
  %3417 = vmatprep.subr.mxu0 0.0
  %3418 = vmatpush1.msra.mxu0 0.0
  %3419 = vmatprep.subr.mxu0 0.0
  %3420 = vmatpush1.msra.mxu0 0.0
  %3421 = vmatprep.subr.mxu0 0.0
  %3422 = vmatpush1.msra.mxu0 0.0
  %3423 = vmatprep.subr.mxu0 0.0
  %3424 = vmatpush1.msra.mxu0 0.0
  %3425 = vmatprep.subr.mxu0 0.0
  %3426 = vmatpush1.msra.mxu0 0.0
  %3427 = vmatprep.mubr.f32.mxu0 0.0
  %v3428 = vand.u32 %v3102, 4294901760
  %v3429 = vsub.f32 %v3102, %v3428
  %3430 = vmatmul.mubr.f32.gmra.mrb[0].mxu0 %v3429
  %v3431 = vpop.f32.mrb[0].mxu0
  %v3432 = vadd.f32 %v3328, %v3431
  %v3433 = vpop.f32.mrb[0].mxu0
  %3434 = vmatprep.mubr.f32.mxu0 0.0
  %v3435 = vand.u32 %v3105, 4294901760
  %v3436 = vsub.f32 %v3105, %v3435
  %3437 = vmatmul.mubr.f32.gmra.mrb[0].mxu0 %v3436
  %v3438 = vpop.f32.mrb[0].mxu0
  %v3439 = vadd.f32 %v3334, %v3438
  %v3440 = vpop.f32.mrb[0].mxu0
  %3441 = vmatprep.mubr.f32.mxu0 0.0
  %v3442 = vand.u32 %v3108, 4294901760
  %v3443 = vsub.f32 %v3108, %v3442
  %3444 = vmatmul.mubr.f32.gmra.mrb[0].mxu0 %v3443
  %v3445 = vpop.f32.mrb[0].mxu0
  %v3446 = vadd.f32 %v3340, %v3445
  %v3447 = vpop.f32.mrb[0].mxu0
  %3448 = vmatprep.mubr.f32.mxu0 0.0
  %v3449 = vand.u32 %v3111, 4294901760
  %v3450 = vsub.f32 %v3111, %v3449
  %3451 = vmatmul.mubr.f32.gmra.mrb[0].mxu0 %v3450
  %v3452 = vpop.f32.mrb[0].mxu0
  %v3453 = vadd.f32 %v3346, %v3452
  %v3454 = vpop.f32.mrb[0].mxu0
  %3455 = vdwg.mxu0
  %3456 = vmatprep.subr.mxu0 0.0
  %v3457 = vand.u32 %v1732, 4294901760
  %3458 = vmatpush1.msra.mxu0 %v3457
  %3459 = vmatprep.subr.mxu0 0.0
  %v3460 = vand.u32 %v1736, 4294901760
  %3461 = vmatpush1.msra.mxu0 %v3460
  %3462 = vmatprep.subr.mxu0 0.0
  %v3463 = vand.u32 %v1740, 4294901760
  %3464 = vmatpush1.msra.mxu0 %v3463
  %3465 = vmatprep.subr.mxu0 0.0
  %v3466 = vand.u32 %v1744, 4294901760
  %3467 = vmatpush1.msra.mxu0 %v3466
  %3468 = vmatprep.subr.mxu0 0.0
  %v3469 = vand.u32 %v1748, 4294901760
  %3470 = vmatpush1.msra.mxu0 %v3469
  %3471 = vmatprep.subr.mxu0 0.0
  %v3472 = vand.u32 %v1752, 4294901760
  %3473 = vmatpush1.msra.mxu0 %v3472
  %3474 = vmatprep.subr.mxu0 0.0
  %v3475 = vand.u32 %v1756, 4294901760
  %3476 = vmatpush1.msra.mxu0 %v3475
  %3477 = vmatprep.subr.mxu0 0.0
  %3478 = vmatpush1.msra.mxu0 0.0
  %3479 = vmatprep.subr.mxu0 0.0
  %3480 = vmatpush1.msra.mxu0 0.0
  %3481 = vmatprep.subr.mxu0 0.0
  %3482 = vmatpush1.msra.mxu0 0.0
  %3483 = vmatprep.subr.mxu0 0.0
  %3484 = vmatpush1.msra.mxu0 0.0
  %3485 = vmatprep.subr.mxu0 0.0
  %3486 = vmatpush1.msra.mxu0 0.0
  %3487 = vmatprep.subr.mxu0 0.0
  %3488 = vmatpush1.msra.mxu0 0.0
  %3489 = vmatprep.subr.mxu0 0.0
  %3490 = vmatpush1.msra.mxu0 0.0
  %3491 = vmatprep.subr.mxu0 0.0
  %3492 = vmatpush1.msra.mxu0 0.0
  %3493 = vmatprep.subr.mxu0 0.0
  %3494 = vmatpush1.msra.mxu0 0.0
  %3495 = vmatprep.subr.mxu0 0.0
  %3496 = vmatpush1.msra.mxu0 0.0
  %3497 = vmatprep.subr.mxu0 0.0
  %3498 = vmatpush1.msra.mxu0 0.0
  %3499 = vmatprep.subr.mxu0 0.0
  %3500 = vmatpush1.msra.mxu0 0.0
  %3501 = vmatprep.subr.mxu0 0.0
  %3502 = vmatpush1.msra.mxu0 0.0
  %3503 = vmatprep.subr.mxu0 0.0
  %3504 = vmatpush1.msra.mxu0 0.0
  %3505 = vmatprep.subr.mxu0 0.0
  %3506 = vmatpush1.msra.mxu0 0.0
  %3507 = vmatprep.subr.mxu0 0.0
  %3508 = vmatpush1.msra.mxu0 0.0
  %3509 = vmatprep.subr.mxu0 0.0
  %3510 = vmatpush1.msra.mxu0 0.0
  %3511 = vmatprep.subr.mxu0 0.0
  %3512 = vmatpush1.msra.mxu0 0.0
  %3513 = vmatprep.subr.mxu0 0.0
  %3514 = vmatpush1.msra.mxu0 0.0
  %3515 = vmatprep.subr.mxu0 0.0
  %3516 = vmatpush1.msra.mxu0 0.0
  %3517 = vmatprep.subr.mxu0 0.0
  %3518 = vmatpush1.msra.mxu0 0.0
  %3519 = vmatprep.subr.mxu0 0.0
  %3520 = vmatpush1.msra.mxu0 0.0
  %3521 = vmatprep.subr.mxu0 0.0
  %3522 = vmatpush1.msra.mxu0 0.0
  %3523 = vmatprep.subr.mxu0 0.0
  %3524 = vmatpush1.msra.mxu0 0.0
  %3525 = vmatprep.subr.mxu0 0.0
  %3526 = vmatpush1.msra.mxu0 0.0
  %3527 = vmatprep.mubr.f32.mxu0 0.0
  %v3528 = vand.u32 %v3102, 4294901760
  %v3529 = vsub.f32 %v3102, %v3528
  %v3530 = vand.u32 %v3529, 4294901760
  %3531 = vmatmul.mubr.f32.gmra.mrb[0].mxu0 %v3530
  %v3532 = vpop.f32.mrb[0].mxu0
  %v3533 = vadd.f32 %v3432, %v3532
  %v3534 = vpop.f32.mrb[0].mxu0
  %3535 = vmatprep.mubr.f32.mxu0 0.0
  %v3536 = vand.u32 %v3105, 4294901760
  %v3537 = vsub.f32 %v3105, %v3536
  %v3538 = vand.u32 %v3537, 4294901760
  %3539 = vmatmul.mubr.f32.gmra.mrb[0].mxu0 %v3538
  %v3540 = vpop.f32.mrb[0].mxu0
  %v3541 = vadd.f32 %v3439, %v3540
  %v3542 = vpop.f32.mrb[0].mxu0
  %3543 = vmatprep.mubr.f32.mxu0 0.0
  %v3544 = vand.u32 %v3108, 4294901760
  %v3545 = vsub.f32 %v3108, %v3544
  %v3546 = vand.u32 %v3545, 4294901760
  %3547 = vmatmul.mubr.f32.gmra.mrb[0].mxu0 %v3546
  %v3548 = vpop.f32.mrb[0].mxu0
  %v3549 = vadd.f32 %v3446, %v3548
  %v3550 = vpop.f32.mrb[0].mxu0
  %3551 = vmatprep.mubr.f32.mxu0 0.0
  %v3552 = vand.u32 %v3111, 4294901760
  %v3553 = vsub.f32 %v3111, %v3552
  %v3554 = vand.u32 %v3553, 4294901760
  %3555 = vmatmul.mubr.f32.gmra.mrb[0].mxu0 %v3554
  %v3556 = vpop.f32.mrb[0].mxu0
  %v3557 = vadd.f32 %v3453, %v3556
  %v3558 = vpop.f32.mrb[0].mxu0
  %3559 = vdwg.mxu0
  %3560 = vmatprep.subr.mxu0 0.0
  %v3561 = vand.u32 %v1732, 4294901760
  %v3562 = vsub.f32 %v1732, %v3561
  %v3563 = vand.u32 %v3562, 4294901760
  %3564 = vmatpush1.msra.mxu0 %v3563
  %3565 = vmatprep.subr.mxu0 0.0
  %v3566 = vand.u32 %v1736, 4294901760
  %v3567 = vsub.f32 %v1736, %v3566
  %v3568 = vand.u32 %v3567, 4294901760
  %3569 = vmatpush1.msra.mxu0 %v3568
  %3570 = vmatprep.subr.mxu0 0.0
  %v3571 = vand.u32 %v1740, 4294901760
  %v3572 = vsub.f32 %v1740, %v3571
  %v3573 = vand.u32 %v3572, 4294901760
  %3574 = vmatpush1.msra.mxu0 %v3573
  %3575 = vmatprep.subr.mxu0 0.0
  %v3576 = vand.u32 %v1744, 4294901760
  %v3577 = vsub.f32 %v1744, %v3576
  %v3578 = vand.u32 %v3577, 4294901760
  %3579 = vmatpush1.msra.mxu0 %v3578
  %3580 = vmatprep.subr.mxu0 0.0
  %v3581 = vand.u32 %v1748, 4294901760
  %v3582 = vsub.f32 %v1748, %v3581
  %v3583 = vand.u32 %v3582, 4294901760
  %3584 = vmatpush1.msra.mxu0 %v3583
  %3585 = vmatprep.subr.mxu0 0.0
  %v3586 = vand.u32 %v1752, 4294901760
  %v3587 = vsub.f32 %v1752, %v3586
  %v3588 = vand.u32 %v3587, 4294901760
  %3589 = vmatpush1.msra.mxu0 %v3588
  %3590 = vmatprep.subr.mxu0 0.0
  %v3591 = vand.u32 %v1756, 4294901760
  %v3592 = vsub.f32 %v1756, %v3591
  %v3593 = vand.u32 %v3592, 4294901760
  %3594 = vmatpush1.msra.mxu0 %v3593
  %3595 = vmatprep.subr.mxu0 0.0
  %3596 = vmatpush1.msra.mxu0 0.0
  %3597 = vmatprep.subr.mxu0 0.0
  %3598 = vmatpush1.msra.mxu0 0.0
  %3599 = vmatprep.subr.mxu0 0.0
  %3600 = vmatpush1.msra.mxu0 0.0
  %3601 = vmatprep.subr.mxu0 0.0
  %3602 = vmatpush1.msra.mxu0 0.0
  %3603 = vmatprep.subr.mxu0 0.0
  %3604 = vmatpush1.msra.mxu0 0.0
  %3605 = vmatprep.subr.mxu0 0.0
  %3606 = vmatpush1.msra.mxu0 0.0
  %3607 = vmatprep.subr.mxu0 0.0
  %3608 = vmatpush1.msra.mxu0 0.0
  %3609 = vmatprep.subr.mxu0 0.0
  %3610 = vmatpush1.msra.mxu0 0.0
  %3611 = vmatprep.subr.mxu0 0.0
  %3612 = vmatpush1.msra.mxu0 0.0
  %3613 = vmatprep.subr.mxu0 0.0
  %3614 = vmatpush1.msra.mxu0 0.0
  %3615 = vmatprep.subr.mxu0 0.0
  %3616 = vmatpush1.msra.mxu0 0.0
  %3617 = vmatprep.subr.mxu0 0.0
  %3618 = vmatpush1.msra.mxu0 0.0
  %3619 = vmatprep.subr.mxu0 0.0
  %3620 = vmatpush1.msra.mxu0 0.0
  %3621 = vmatprep.subr.mxu0 0.0
  %3622 = vmatpush1.msra.mxu0 0.0
  %3623 = vmatprep.subr.mxu0 0.0
  %3624 = vmatpush1.msra.mxu0 0.0
  %3625 = vmatprep.subr.mxu0 0.0
  %3626 = vmatpush1.msra.mxu0 0.0
  %3627 = vmatprep.subr.mxu0 0.0
  %3628 = vmatpush1.msra.mxu0 0.0
  %3629 = vmatprep.subr.mxu0 0.0
  %3630 = vmatpush1.msra.mxu0 0.0
  %3631 = vmatprep.subr.mxu0 0.0
  %3632 = vmatpush1.msra.mxu0 0.0
  %3633 = vmatprep.subr.mxu0 0.0
  %3634 = vmatpush1.msra.mxu0 0.0
  %3635 = vmatprep.subr.mxu0 0.0
  %3636 = vmatpush1.msra.mxu0 0.0
  %3637 = vmatprep.subr.mxu0 0.0
  %3638 = vmatpush1.msra.mxu0 0.0
  %3639 = vmatprep.subr.mxu0 0.0
  %3640 = vmatpush1.msra.mxu0 0.0
  %3641 = vmatprep.subr.mxu0 0.0
  %3642 = vmatpush1.msra.mxu0 0.0
  %3643 = vmatprep.subr.mxu0 0.0
  %3644 = vmatpush1.msra.mxu0 0.0
  %3645 = vmatprep.mubr.f32.mxu0 0.0
  %v3646 = vand.u32 %v3102, 4294901760
  %3647 = vmatmul.mubr.f32.gmra.mrb[0].mxu0 %v3646
  %v3648 = vpop.f32.mrb[0].mxu0
  %v3649 = vadd.f32 %v3533, %v3648
  %v3650 = vpop.f32.mrb[0].mxu0
  %3651 = vmatprep.mubr.f32.mxu0 0.0
  %v3652 = vand.u32 %v3105, 4294901760
  %3653 = vmatmul.mubr.f32.gmra.mrb[0].mxu0 %v3652
  %v3654 = vpop.f32.mrb[0].mxu0
  %v3655 = vadd.f32 %v3541, %v3654
  %v3656 = vpop.f32.mrb[0].mxu0
  %3657 = vmatprep.mubr.f32.mxu0 0.0
  %v3658 = vand.u32 %v3108, 4294901760
  %3659 = vmatmul.mubr.f32.gmra.mrb[0].mxu0 %v3658
  %v3660 = vpop.f32.mrb[0].mxu0
  %v3661 = vadd.f32 %v3549, %v3660
  %v3662 = vpop.f32.mrb[0].mxu0
  %3663 = vmatprep.mubr.f32.mxu0 0.0
  %v3664 = vand.u32 %v3111, 4294901760
  %3665 = vmatmul.mubr.f32.gmra.mrb[0].mxu0 %v3664
  %v3666 = vpop.f32.mrb[0].mxu0
  %v3667 = vadd.f32 %v3557, %v3666
  %v3668 = vpop.f32.mrb[0].mxu0
  %3669 = vdwg.mxu0
  %3670 = vmatprep.subr.mxu0 0.0
  %v3671 = vand.u32 %v1732, 4294901760
  %3672 = vmatpush1.msra.mxu0 %v3671
  %3673 = vmatprep.subr.mxu0 0.0
  %v3674 = vand.u32 %v1736, 4294901760
  %3675 = vmatpush1.msra.mxu0 %v3674
  %3676 = vmatprep.subr.mxu0 0.0
  %v3677 = vand.u32 %v1740, 4294901760
  %3678 = vmatpush1.msra.mxu0 %v3677
  %3679 = vmatprep.subr.mxu0 0.0
  %v3680 = vand.u32 %v1744, 4294901760
  %3681 = vmatpush1.msra.mxu0 %v3680
  %3682 = vmatprep.subr.mxu0 0.0
  %v3683 = vand.u32 %v1748, 4294901760
  %3684 = vmatpush1.msra.mxu0 %v3683
  %3685 = vmatprep.subr.mxu0 0.0
  %v3686 = vand.u32 %v1752, 4294901760
  %3687 = vmatpush1.msra.mxu0 %v3686
  %3688 = vmatprep.subr.mxu0 0.0
  %v3689 = vand.u32 %v1756, 4294901760
  %3690 = vmatpush1.msra.mxu0 %v3689
  %3691 = vmatprep.subr.mxu0 0.0
  %3692 = vmatpush1.msra.mxu0 0.0
  %3693 = vmatprep.subr.mxu0 0.0
  %3694 = vmatpush1.msra.mxu0 0.0
  %3695 = vmatprep.subr.mxu0 0.0
  %3696 = vmatpush1.msra.mxu0 0.0
  %3697 = vmatprep.subr.mxu0 0.0
  %3698 = vmatpush1.msra.mxu0 0.0
  %3699 = vmatprep.subr.mxu0 0.0
  %3700 = vmatpush1.msra.mxu0 0.0
  %3701 = vmatprep.subr.mxu0 0.0
  %3702 = vmatpush1.msra.mxu0 0.0
  %3703 = vmatprep.subr.mxu0 0.0
  %3704 = vmatpush1.msra.mxu0 0.0
  %3705 = vmatprep.subr.mxu0 0.0
  %3706 = vmatpush1.msra.mxu0 0.0
  %3707 = vmatprep.subr.mxu0 0.0
  %3708 = vmatpush1.msra.mxu0 0.0
  %3709 = vmatprep.subr.mxu0 0.0
  %3710 = vmatpush1.msra.mxu0 0.0
  %3711 = vmatprep.subr.mxu0 0.0
  %3712 = vmatpush1.msra.mxu0 0.0
  %3713 = vmatprep.subr.mxu0 0.0
  %3714 = vmatpush1.msra.mxu0 0.0
  %3715 = vmatprep.subr.mxu0 0.0
  %3716 = vmatpush1.msra.mxu0 0.0
  %3717 = vmatprep.subr.mxu0 0.0
  %3718 = vmatpush1.msra.mxu0 0.0
  %3719 = vmatprep.subr.mxu0 0.0
  %3720 = vmatpush1.msra.mxu0 0.0
  %3721 = vmatprep.subr.mxu0 0.0
  %3722 = vmatpush1.msra.mxu0 0.0
  %3723 = vmatprep.subr.mxu0 0.0
  %3724 = vmatpush1.msra.mxu0 0.0
  %3725 = vmatprep.subr.mxu0 0.0
  %3726 = vmatpush1.msra.mxu0 0.0
  %3727 = vmatprep.subr.mxu0 0.0
  %3728 = vmatpush1.msra.mxu0 0.0
  %3729 = vmatprep.subr.mxu0 0.0
  %3730 = vmatpush1.msra.mxu0 0.0
  %3731 = vmatprep.subr.mxu0 0.0
  %3732 = vmatpush1.msra.mxu0 0.0
  %3733 = vmatprep.subr.mxu0 0.0
  %3734 = vmatpush1.msra.mxu0 0.0
  %3735 = vmatprep.subr.mxu0 0.0
  %3736 = vmatpush1.msra.mxu0 0.0
  %3737 = vmatprep.subr.mxu0 0.0
  %3738 = vmatpush1.msra.mxu0 0.0
  %3739 = vmatprep.subr.mxu0 0.0
  %3740 = vmatpush1.msra.mxu0 0.0
  %3741 = vmatprep.mubr.f32.mxu0 0.0
  %v3742 = vand.u32 %v3102, 4294901760
  %3743 = vmatmul.mubr.f32.gmra.mrb[0].mxu0 %v3742
  %v3744 = vpop.f32.mrb[0].mxu0
  %v3745 = vadd.f32 %v3649, %v3744
  %v3746 = vpop.f32.mrb[0].mxu0
  %3747 = vmatprep.mubr.f32.mxu0 0.0
  %v3748 = vand.u32 %v3105, 4294901760
  %3749 = vmatmul.mubr.f32.gmra.mrb[0].mxu0 %v3748
  %v3750 = vpop.f32.mrb[0].mxu0
  %v3751 = vadd.f32 %v3655, %v3750
  %v3752 = vpop.f32.mrb[0].mxu0
  %3753 = vmatprep.mubr.f32.mxu0 0.0
  %v3754 = vand.u32 %v3108, 4294901760
  %3755 = vmatmul.mubr.f32.gmra.mrb[0].mxu0 %v3754
  %v3756 = vpop.f32.mrb[0].mxu0
  %v3757 = vadd.f32 %v3661, %v3756
  %v3758 = vpop.f32.mrb[0].mxu0
  %3759 = vmatprep.mubr.f32.mxu0 0.0
  %v3760 = vand.u32 %v3111, 4294901760
  %3761 = vmatmul.mubr.f32.gmra.mrb[0].mxu0 %v3760
  %v3762 = vpop.f32.mrb[0].mxu0
  %v3763 = vadd.f32 %v3667, %v3762
  %v3764 = vpop.f32.mrb[0].mxu0
  %3765 = vdwg.mxu0
  %v3766 = vadd.f32 %v3076, %v3745
  %v3767 = vadd.f32 %v3082, %v3751
  %v3768 = vadd.f32 %v3088, %v3757
  %v3769 = vadd.f32 %v3094, %v3763
  %v3770 = vld [vmem:[%s1 + $0x98] sm:$0xff]
  %v3771 = vld [vmem:[%s1 + $0xa0] sm:$0xff]
  %v3772 = vld [vmem:[%s1 + $0xa8] sm:$0xff]
  %v3773 = vld [vmem:[%s1 + $0xb0] sm:$0xff]
  %v3775 = vsel %vm1766, %v3770, 0
  %v3778 = vsel %vm1766, %v3771, 0
  %v3781 = vsel %vm1766, %v3772, 0
  %v3784 = vsel %vm1766, %v3773, 0
  %3786 = vmatprep.subr.mxu0 0.0
  %v3787 = vand.u32 %v1733, 4294901760
  %3788 = vmatpush1.msra.mxu0 %v3787
  %3789 = vmatprep.subr.mxu0 0.0
  %v3790 = vand.u32 %v1737, 4294901760
  %3791 = vmatpush1.msra.mxu0 %v3790
  %3792 = vmatprep.subr.mxu0 0.0
  %v3793 = vand.u32 %v1741, 4294901760
  %3794 = vmatpush1.msra.mxu0 %v3793
  %3795 = vmatprep.subr.mxu0 0.0
  %v3796 = vand.u32 %v1745, 4294901760
  %3797 = vmatpush1.msra.mxu0 %v3796
  %3798 = vmatprep.subr.mxu0 0.0
  %v3799 = vand.u32 %v1749, 4294901760
  %3800 = vmatpush1.msra.mxu0 %v3799
  %3801 = vmatprep.subr.mxu0 0.0
  %v3802 = vand.u32 %v1753, 4294901760
  %3803 = vmatpush1.msra.mxu0 %v3802
  %3804 = vmatprep.subr.mxu0 0.0
  %v3805 = vand.u32 %v1757, 4294901760
  %3806 = vmatpush1.msra.mxu0 %v3805
  %3807 = vmatprep.subr.mxu0 0.0
  %3808 = vmatpush1.msra.mxu0 0.0
  %3809 = vmatprep.subr.mxu0 0.0
  %3810 = vmatpush1.msra.mxu0 0.0
  %3811 = vmatprep.subr.mxu0 0.0
  %3812 = vmatpush1.msra.mxu0 0.0
  %3813 = vmatprep.subr.mxu0 0.0
  %3814 = vmatpush1.msra.mxu0 0.0
  %3815 = vmatprep.subr.mxu0 0.0
  %3816 = vmatpush1.msra.mxu0 0.0
  %3817 = vmatprep.subr.mxu0 0.0
  %3818 = vmatpush1.msra.mxu0 0.0
  %3819 = vmatprep.subr.mxu0 0.0
  %3820 = vmatpush1.msra.mxu0 0.0
  %3821 = vmatprep.subr.mxu0 0.0
  %3822 = vmatpush1.msra.mxu0 0.0
  %3823 = vmatprep.subr.mxu0 0.0
  %3824 = vmatpush1.msra.mxu0 0.0
  %3825 = vmatprep.subr.mxu0 0.0
  %3826 = vmatpush1.msra.mxu0 0.0
  %3827 = vmatprep.subr.mxu0 0.0
  %3828 = vmatpush1.msra.mxu0 0.0
  %3829 = vmatprep.subr.mxu0 0.0
  %3830 = vmatpush1.msra.mxu0 0.0
  %3831 = vmatprep.subr.mxu0 0.0
  %3832 = vmatpush1.msra.mxu0 0.0
  %3833 = vmatprep.subr.mxu0 0.0
  %3834 = vmatpush1.msra.mxu0 0.0
  %3835 = vmatprep.subr.mxu0 0.0
  %3836 = vmatpush1.msra.mxu0 0.0
  %3837 = vmatprep.subr.mxu0 0.0
  %3838 = vmatpush1.msra.mxu0 0.0
  %3839 = vmatprep.subr.mxu0 0.0
  %3840 = vmatpush1.msra.mxu0 0.0
  %3841 = vmatprep.subr.mxu0 0.0
  %3842 = vmatpush1.msra.mxu0 0.0
  %3843 = vmatprep.subr.mxu0 0.0
  %3844 = vmatpush1.msra.mxu0 0.0
  %3845 = vmatprep.subr.mxu0 0.0
  %3846 = vmatpush1.msra.mxu0 0.0
  %3847 = vmatprep.subr.mxu0 0.0
  %3848 = vmatpush1.msra.mxu0 0.0
  %3849 = vmatprep.subr.mxu0 0.0
  %3850 = vmatpush1.msra.mxu0 0.0
  %3851 = vmatprep.subr.mxu0 0.0
  %3852 = vmatpush1.msra.mxu0 0.0
  %3853 = vmatprep.subr.mxu0 0.0
  %3854 = vmatpush1.msra.mxu0 0.0
  %3855 = vmatprep.subr.mxu0 0.0
  %3856 = vmatpush1.msra.mxu0 0.0
  %3857 = vmatprep.mubr.f32.mxu0 0.0
  %v3858 = vand.u32 %v3775, 4294901760
  %v3859 = vsub.f32 %v3775, %v3858
  %v3860 = vand.u32 %v3859, 4294901760
  %v3861 = vsub.f32 %v3859, %v3860
  %v3862 = vand.u32 %v3861, 4294901760
  %3863 = vmatmul.mubr.f32.gmra.mrb[0].mxu0 %v3862
  %v3864 = vpop.f32.mrb[0].mxu0
  %v3865 = vadd.f32 0.0, %v3864
  %v3866 = vpop.f32.mrb[0].mxu0
  %3867 = vmatprep.mubr.f32.mxu0 0.0
  %v3868 = vand.u32 %v3778, 4294901760
  %v3869 = vsub.f32 %v3778, %v3868
  %v3870 = vand.u32 %v3869, 4294901760
  %v3871 = vsub.f32 %v3869, %v3870
  %v3872 = vand.u32 %v3871, 4294901760
  %3873 = vmatmul.mubr.f32.gmra.mrb[0].mxu0 %v3872
  %v3874 = vpop.f32.mrb[0].mxu0
  %v3875 = vadd.f32 0.0, %v3874
  %v3876 = vpop.f32.mrb[0].mxu0
  %3877 = vmatprep.mubr.f32.mxu0 0.0
  %v3878 = vand.u32 %v3781, 4294901760
  %v3879 = vsub.f32 %v3781, %v3878
  %v3880 = vand.u32 %v3879, 4294901760
  %v3881 = vsub.f32 %v3879, %v3880
  %v3882 = vand.u32 %v3881, 4294901760
  %3883 = vmatmul.mubr.f32.gmra.mrb[0].mxu0 %v3882
  %v3884 = vpop.f32.mrb[0].mxu0
  %v3885 = vadd.f32 0.0, %v3884
  %v3886 = vpop.f32.mrb[0].mxu0
  %3887 = vmatprep.mubr.f32.mxu0 0.0
  %v3888 = vand.u32 %v3784, 4294901760
  %v3889 = vsub.f32 %v3784, %v3888
  %v3890 = vand.u32 %v3889, 4294901760
  %v3891 = vsub.f32 %v3889, %v3890
  %v3892 = vand.u32 %v3891, 4294901760
  %3893 = vmatmul.mubr.f32.gmra.mrb[0].mxu0 %v3892
  %v3894 = vpop.f32.mrb[0].mxu0
  %v3895 = vadd.f32 0.0, %v3894
  %v3896 = vpop.f32.mrb[0].mxu0
  %3897 = vdwg.mxu0
  %3898 = vmatprep.subr.mxu0 0.0
  %v3899 = vand.u32 %v1733, 4294901760
  %v3900 = vsub.f32 %v1733, %v3899
  %v3901 = vand.u32 %v3900, 4294901760
  %v3902 = vsub.f32 %v3900, %v3901
  %v3903 = vand.u32 %v3902, 4294901760
  %3904 = vmatpush1.msra.mxu0 %v3903
  %3905 = vmatprep.subr.mxu0 0.0
  %v3906 = vand.u32 %v1737, 4294901760
  %v3907 = vsub.f32 %v1737, %v3906
  %v3908 = vand.u32 %v3907, 4294901760
  %v3909 = vsub.f32 %v3907, %v3908
  %v3910 = vand.u32 %v3909, 4294901760
  %3911 = vmatpush1.msra.mxu0 %v3910
  %3912 = vmatprep.subr.mxu0 0.0
  %v3913 = vand.u32 %v1741, 4294901760
  %v3914 = vsub.f32 %v1741, %v3913
  %v3915 = vand.u32 %v3914, 4294901760
  %v3916 = vsub.f32 %v3914, %v3915
  %v3917 = vand.u32 %v3916, 4294901760
  %3918 = vmatpush1.msra.mxu0 %v3917
  %3919 = vmatprep.subr.mxu0 0.0
  %v3920 = vand.u32 %v1745, 4294901760
  %v3921 = vsub.f32 %v1745, %v3920
  %v3922 = vand.u32 %v3921, 4294901760
  %v3923 = vsub.f32 %v3921, %v3922
  %v3924 = vand.u32 %v3923, 4294901760
  %3925 = vmatpush1.msra.mxu0 %v3924
  %3926 = vmatprep.subr.mxu0 0.0
  %v3927 = vand.u32 %v1749, 4294901760
  %v3928 = vsub.f32 %v1749, %v3927
  %v3929 = vand.u32 %v3928, 4294901760
  %v3930 = vsub.f32 %v3928, %v3929
  %v3931 = vand.u32 %v3930, 4294901760
  %3932 = vmatpush1.msra.mxu0 %v3931
  %3933 = vmatprep.subr.mxu0 0.0
  %v3934 = vand.u32 %v1753, 4294901760
  %v3935 = vsub.f32 %v1753, %v3934
  %v3936 = vand.u32 %v3935, 4294901760
  %v3937 = vsub.f32 %v3935, %v3936
  %v3938 = vand.u32 %v3937, 4294901760
  %3939 = vmatpush1.msra.mxu0 %v3938
  %3940 = vmatprep.subr.mxu0 0.0
  %v3941 = vand.u32 %v1757, 4294901760
  %v3942 = vsub.f32 %v1757, %v3941
  %v3943 = vand.u32 %v3942, 4294901760
  %v3944 = vsub.f32 %v3942, %v3943
  %v3945 = vand.u32 %v3944, 4294901760
  %3946 = vmatpush1.msra.mxu0 %v3945
  %3947 = vmatprep.subr.mxu0 0.0
  %3948 = vmatpush1.msra.mxu0 0.0
  %3949 = vmatprep.subr.mxu0 0.0
  %3950 = vmatpush1.msra.mxu0 0.0
  %3951 = vmatprep.subr.mxu0 0.0
  %3952 = vmatpush1.msra.mxu0 0.0
  %3953 = vmatprep.subr.mxu0 0.0
  %3954 = vmatpush1.msra.mxu0 0.0
  %3955 = vmatprep.subr.mxu0 0.0
  %3956 = vmatpush1.msra.mxu0 0.0
  %3957 = vmatprep.subr.mxu0 0.0
  %3958 = vmatpush1.msra.mxu0 0.0
  %3959 = vmatprep.subr.mxu0 0.0
  %3960 = vmatpush1.msra.mxu0 0.0
  %3961 = vmatprep.subr.mxu0 0.0
  %3962 = vmatpush1.msra.mxu0 0.0
  %3963 = vmatprep.subr.mxu0 0.0
  %3964 = vmatpush1.msra.mxu0 0.0
  %3965 = vmatprep.subr.mxu0 0.0
  %3966 = vmatpush1.msra.mxu0 0.0
  %3967 = vmatprep.subr.mxu0 0.0
  %3968 = vmatpush1.msra.mxu0 0.0
  %3969 = vmatprep.subr.mxu0 0.0
  %3970 = vmatpush1.msra.mxu0 0.0
  %3971 = vmatprep.subr.mxu0 0.0
  %3972 = vmatpush1.msra.mxu0 0.0
  %3973 = vmatprep.subr.mxu0 0.0
  %3974 = vmatpush1.msra.mxu0 0.0
  %3975 = vmatprep.subr.mxu0 0.0
  %3976 = vmatpush1.msra.mxu0 0.0
  %3977 = vmatprep.subr.mxu0 0.0
  %3978 = vmatpush1.msra.mxu0 0.0
  %3979 = vmatprep.subr.mxu0 0.0
  %3980 = vmatpush1.msra.mxu0 0.0
  %3981 = vmatprep.subr.mxu0 0.0
  %3982 = vmatpush1.msra.mxu0 0.0
  %3983 = vmatprep.subr.mxu0 0.0
  %3984 = vmatpush1.msra.mxu0 0.0
  %3985 = vmatprep.subr.mxu0 0.0
  %3986 = vmatpush1.msra.mxu0 0.0
  %3987 = vmatprep.subr.mxu0 0.0
  %3988 = vmatpush1.msra.mxu0 0.0
  %3989 = vmatprep.subr.mxu0 0.0
  %3990 = vmatpush1.msra.mxu0 0.0
  %3991 = vmatprep.subr.mxu0 0.0
  %3992 = vmatpush1.msra.mxu0 0.0
  %3993 = vmatprep.subr.mxu0 0.0
  %3994 = vmatpush1.msra.mxu0 0.0
  %3995 = vmatprep.subr.mxu0 0.0
  %3996 = vmatpush1.msra.mxu0 0.0
  %3997 = vmatprep.mubr.f32.mxu0 0.0
  %v3998 = vand.u32 %v3775, 4294901760
  %3999 = vmatmul.mubr.f32.gmra.mrb[0].mxu0 %v3998
  %v4000 = vpop.f32.mrb[0].mxu0
  %v4001 = vadd.f32 %v3865, %v4000
  %v4002 = vpop.f32.mrb[0].mxu0
  %4003 = vmatprep.mubr.f32.mxu0 0.0
  %v4004 = vand.u32 %v3778, 4294901760
  %4005 = vmatmul.mubr.f32.gmra.mrb[0].mxu0 %v4004
  %v4006 = vpop.f32.mrb[0].mxu0
  %v4007 = vadd.f32 %v3875, %v4006
  %v4008 = vpop.f32.mrb[0].mxu0
  %4009 = vmatprep.mubr.f32.mxu0 0.0
  %v4010 = vand.u32 %v3781, 4294901760
  %4011 = vmatmul.mubr.f32.gmra.mrb[0].mxu0 %v4010
  %v4012 = vpop.f32.mrb[0].mxu0
  %v4013 = vadd.f32 %v3885, %v4012
  %v4014 = vpop.f32.mrb[0].mxu0
  %4015 = vmatprep.mubr.f32.mxu0 0.0
  %v4016 = vand.u32 %v3784, 4294901760
  %4017 = vmatmul.mubr.f32.gmra.mrb[0].mxu0 %v4016
  %v4018 = vpop.f32.mrb[0].mxu0
  %v4019 = vadd.f32 %v3895, %v4018
  %v4020 = vpop.f32.mrb[0].mxu0
  %4021 = vdwg.mxu0
  %4022 = vmatprep.subr.mxu0 0.0
  %v4023 = vand.u32 %v1733, 4294901760
  %v4024 = vsub.f32 %v1733, %v4023
  %4025 = vmatpush1.msra.mxu0 %v4024
  %4026 = vmatprep.subr.mxu0 0.0
  %v4027 = vand.u32 %v1737, 4294901760
  %v4028 = vsub.f32 %v1737, %v4027
  %4029 = vmatpush1.msra.mxu0 %v4028
  %4030 = vmatprep.subr.mxu0 0.0
  %v4031 = vand.u32 %v1741, 4294901760
  %v4032 = vsub.f32 %v1741, %v4031
  %4033 = vmatpush1.msra.mxu0 %v4032
  %4034 = vmatprep.subr.mxu0 0.0
  %v4035 = vand.u32 %v1745, 4294901760
  %v4036 = vsub.f32 %v1745, %v4035
  %4037 = vmatpush1.msra.mxu0 %v4036
  %4038 = vmatprep.subr.mxu0 0.0
  %v4039 = vand.u32 %v1749, 4294901760
  %v4040 = vsub.f32 %v1749, %v4039
  %4041 = vmatpush1.msra.mxu0 %v4040
  %4042 = vmatprep.subr.mxu0 0.0
  %v4043 = vand.u32 %v1753, 4294901760
  %v4044 = vsub.f32 %v1753, %v4043
  %4045 = vmatpush1.msra.mxu0 %v4044
  %4046 = vmatprep.subr.mxu0 0.0
  %v4047 = vand.u32 %v1757, 4294901760
  %v4048 = vsub.f32 %v1757, %v4047
  %4049 = vmatpush1.msra.mxu0 %v4048
  %4050 = vmatprep.subr.mxu0 0.0
  %4051 = vmatpush1.msra.mxu0 0.0
  %4052 = vmatprep.subr.mxu0 0.0
  %4053 = vmatpush1.msra.mxu0 0.0
  %4054 = vmatprep.subr.mxu0 0.0
  %4055 = vmatpush1.msra.mxu0 0.0
  %4056 = vmatprep.subr.mxu0 0.0
  %4057 = vmatpush1.msra.mxu0 0.0
  %4058 = vmatprep.subr.mxu0 0.0
  %4059 = vmatpush1.msra.mxu0 0.0
  %4060 = vmatprep.subr.mxu0 0.0
  %4061 = vmatpush1.msra.mxu0 0.0
  %4062 = vmatprep.subr.mxu0 0.0
  %4063 = vmatpush1.msra.mxu0 0.0
  %4064 = vmatprep.subr.mxu0 0.0
  %4065 = vmatpush1.msra.mxu0 0.0
  %4066 = vmatprep.subr.mxu0 0.0
  %4067 = vmatpush1.msra.mxu0 0.0
  %4068 = vmatprep.subr.mxu0 0.0
  %4069 = vmatpush1.msra.mxu0 0.0
  %4070 = vmatprep.subr.mxu0 0.0
  %4071 = vmatpush1.msra.mxu0 0.0
  %4072 = vmatprep.subr.mxu0 0.0
  %4073 = vmatpush1.msra.mxu0 0.0
  %4074 = vmatprep.subr.mxu0 0.0
  %4075 = vmatpush1.msra.mxu0 0.0
  %4076 = vmatprep.subr.mxu0 0.0
  %4077 = vmatpush1.msra.mxu0 0.0
  %4078 = vmatprep.subr.mxu0 0.0
  %4079 = vmatpush1.msra.mxu0 0.0
  %4080 = vmatprep.subr.mxu0 0.0
  %4081 = vmatpush1.msra.mxu0 0.0
  %4082 = vmatprep.subr.mxu0 0.0
  %4083 = vmatpush1.msra.mxu0 0.0
  %4084 = vmatprep.subr.mxu0 0.0
  %4085 = vmatpush1.msra.mxu0 0.0
  %4086 = vmatprep.subr.mxu0 0.0
  %4087 = vmatpush1.msra.mxu0 0.0
  %4088 = vmatprep.subr.mxu0 0.0
  %4089 = vmatpush1.msra.mxu0 0.0
  %4090 = vmatprep.subr.mxu0 0.0
  %4091 = vmatpush1.msra.mxu0 0.0
  %4092 = vmatprep.subr.mxu0 0.0
  %4093 = vmatpush1.msra.mxu0 0.0
  %4094 = vmatprep.subr.mxu0 0.0
  %4095 = vmatpush1.msra.mxu0 0.0
  %4096 = vmatprep.subr.mxu0 0.0
  %4097 = vmatpush1.msra.mxu0 0.0
  %4098 = vmatprep.subr.mxu0 0.0
  %4099 = vmatpush1.msra.mxu0 0.0
  %4100 = vmatprep.mubr.f32.mxu0 0.0
  %v4101 = vand.u32 %v3775, 4294901760
  %v4102 = vsub.f32 %v3775, %v4101
  %4103 = vmatmul.mubr.f32.gmra.mrb[0].mxu0 %v4102
  %v4104 = vpop.f32.mrb[0].mxu0
  %v4105 = vadd.f32 %v4001, %v4104
  %v4106 = vpop.f32.mrb[0].mxu0
  %4107 = vmatprep.mubr.f32.mxu0 0.0
  %v4108 = vand.u32 %v3778, 4294901760
  %v4109 = vsub.f32 %v3778, %v4108
  %4110 = vmatmul.mubr.f32.gmra.mrb[0].mxu0 %v4109
  %v4111 = vpop.f32.mrb[0].mxu0
  %v4112 = vadd.f32 %v4007, %v4111
  %v4113 = vpop.f32.mrb[0].mxu0
  %4114 = vmatprep.mubr.f32.mxu0 0.0
  %v4115 = vand.u32 %v3781, 4294901760
  %v4116 = vsub.f32 %v3781, %v4115
  %4117 = vmatmul.mubr.f32.gmra.mrb[0].mxu0 %v4116
  %v4118 = vpop.f32.mrb[0].mxu0
  %v4119 = vadd.f32 %v4013, %v4118
  %v4120 = vpop.f32.mrb[0].mxu0
  %4121 = vmatprep.mubr.f32.mxu0 0.0
  %v4122 = vand.u32 %v3784, 4294901760
  %v4123 = vsub.f32 %v3784, %v4122
  %4124 = vmatmul.mubr.f32.gmra.mrb[0].mxu0 %v4123
  %v4125 = vpop.f32.mrb[0].mxu0
  %v4126 = vadd.f32 %v4019, %v4125
  %v4127 = vpop.f32.mrb[0].mxu0
  %4128 = vdwg.mxu0
  %4129 = vmatprep.subr.mxu0 0.0
  %v4130 = vand.u32 %v1733, 4294901760
  %4131 = vmatpush1.msra.mxu0 %v4130
  %4132 = vmatprep.subr.mxu0 0.0
  %v4133 = vand.u32 %v1737, 4294901760
  %4134 = vmatpush1.msra.mxu0 %v4133
  %4135 = vmatprep.subr.mxu0 0.0
  %v4136 = vand.u32 %v1741, 4294901760
  %4137 = vmatpush1.msra.mxu0 %v4136
  %4138 = vmatprep.subr.mxu0 0.0
  %v4139 = vand.u32 %v1745, 4294901760
  %4140 = vmatpush1.msra.mxu0 %v4139
  %4141 = vmatprep.subr.mxu0 0.0
  %v4142 = vand.u32 %v1749, 4294901760
  %4143 = vmatpush1.msra.mxu0 %v4142
  %4144 = vmatprep.subr.mxu0 0.0
  %v4145 = vand.u32 %v1753, 4294901760
  %4146 = vmatpush1.msra.mxu0 %v4145
  %4147 = vmatprep.subr.mxu0 0.0
  %v4148 = vand.u32 %v1757, 4294901760
  %4149 = vmatpush1.msra.mxu0 %v4148
  %4150 = vmatprep.subr.mxu0 0.0
  %4151 = vmatpush1.msra.mxu0 0.0
  %4152 = vmatprep.subr.mxu0 0.0
  %4153 = vmatpush1.msra.mxu0 0.0
  %4154 = vmatprep.subr.mxu0 0.0
  %4155 = vmatpush1.msra.mxu0 0.0
  %4156 = vmatprep.subr.mxu0 0.0
  %4157 = vmatpush1.msra.mxu0 0.0
  %4158 = vmatprep.subr.mxu0 0.0
  %4159 = vmatpush1.msra.mxu0 0.0
  %4160 = vmatprep.subr.mxu0 0.0
  %4161 = vmatpush1.msra.mxu0 0.0
  %4162 = vmatprep.subr.mxu0 0.0
  %4163 = vmatpush1.msra.mxu0 0.0
  %4164 = vmatprep.subr.mxu0 0.0
  %4165 = vmatpush1.msra.mxu0 0.0
  %4166 = vmatprep.subr.mxu0 0.0
  %4167 = vmatpush1.msra.mxu0 0.0
  %4168 = vmatprep.subr.mxu0 0.0
  %4169 = vmatpush1.msra.mxu0 0.0
  %4170 = vmatprep.subr.mxu0 0.0
  %4171 = vmatpush1.msra.mxu0 0.0
  %4172 = vmatprep.subr.mxu0 0.0
  %4173 = vmatpush1.msra.mxu0 0.0
  %4174 = vmatprep.subr.mxu0 0.0
  %4175 = vmatpush1.msra.mxu0 0.0
  %4176 = vmatprep.subr.mxu0 0.0
  %4177 = vmatpush1.msra.mxu0 0.0
  %4178 = vmatprep.subr.mxu0 0.0
  %4179 = vmatpush1.msra.mxu0 0.0
  %4180 = vmatprep.subr.mxu0 0.0
  %4181 = vmatpush1.msra.mxu0 0.0
  %4182 = vmatprep.subr.mxu0 0.0
  %4183 = vmatpush1.msra.mxu0 0.0
  %4184 = vmatprep.subr.mxu0 0.0
  %4185 = vmatpush1.msra.mxu0 0.0
  %4186 = vmatprep.subr.mxu0 0.0
  %4187 = vmatpush1.msra.mxu0 0.0
  %4188 = vmatprep.subr.mxu0 0.0
  %4189 = vmatpush1.msra.mxu0 0.0
  %4190 = vmatprep.subr.mxu0 0.0
  %4191 = vmatpush1.msra.mxu0 0.0
  %4192 = vmatprep.subr.mxu0 0.0
  %4193 = vmatpush1.msra.mxu0 0.0
  %4194 = vmatprep.subr.mxu0 0.0
  %4195 = vmatpush1.msra.mxu0 0.0
  %4196 = vmatprep.subr.mxu0 0.0
  %4197 = vmatpush1.msra.mxu0 0.0
  %4198 = vmatprep.subr.mxu0 0.0
  %4199 = vmatpush1.msra.mxu0 0.0
  %4200 = vmatprep.mubr.f32.mxu0 0.0
  %v4201 = vand.u32 %v3775, 4294901760
  %v4202 = vsub.f32 %v3775, %v4201
  %v4203 = vand.u32 %v4202, 4294901760
  %4204 = vmatmul.mubr.f32.gmra.mrb[0].mxu0 %v4203
  %v4205 = vpop.f32.mrb[0].mxu0
  %v4206 = vadd.f32 %v4105, %v4205
  %v4207 = vpop.f32.mrb[0].mxu0
  %4208 = vmatprep.mubr.f32.mxu0 0.0
  %v4209 = vand.u32 %v3778, 4294901760
  %v4210 = vsub.f32 %v3778, %v4209
  %v4211 = vand.u32 %v4210, 4294901760
  %4212 = vmatmul.mubr.f32.gmra.mrb[0].mxu0 %v4211
  %v4213 = vpop.f32.mrb[0].mxu0
  %v4214 = vadd.f32 %v4112, %v4213
  %v4215 = vpop.f32.mrb[0].mxu0
  %4216 = vmatprep.mubr.f32.mxu0 0.0
  %v4217 = vand.u32 %v3781, 4294901760
  %v4218 = vsub.f32 %v3781, %v4217
  %v4219 = vand.u32 %v4218, 4294901760
  %4220 = vmatmul.mubr.f32.gmra.mrb[0].mxu0 %v4219
  %v4221 = vpop.f32.mrb[0].mxu0
  %v4222 = vadd.f32 %v4119, %v4221
  %v4223 = vpop.f32.mrb[0].mxu0
  %4224 = vmatprep.mubr.f32.mxu0 0.0
  %v4225 = vand.u32 %v3784, 4294901760
  %v4226 = vsub.f32 %v3784, %v4225
  %v4227 = vand.u32 %v4226, 4294901760
  %4228 = vmatmul.mubr.f32.gmra.mrb[0].mxu0 %v4227
  %v4229 = vpop.f32.mrb[0].mxu0
  %v4230 = vadd.f32 %v4126, %v4229
  %v4231 = vpop.f32.mrb[0].mxu0
  %4232 = vdwg.mxu0
  %4233 = vmatprep.subr.mxu0 0.0
  %v4234 = vand.u32 %v1733, 4294901760
  %v4235 = vsub.f32 %v1733, %v4234
  %v4236 = vand.u32 %v4235, 4294901760
  %4237 = vmatpush1.msra.mxu0 %v4236
  %4238 = vmatprep.subr.mxu0 0.0
  %v4239 = vand.u32 %v1737, 4294901760
  %v4240 = vsub.f32 %v1737, %v4239
  %v4241 = vand.u32 %v4240, 4294901760
  %4242 = vmatpush1.msra.mxu0 %v4241
  %4243 = vmatprep.subr.mxu0 0.0
  %v4244 = vand.u32 %v1741, 4294901760
  %v4245 = vsub.f32 %v1741, %v4244
  %v4246 = vand.u32 %v4245, 4294901760
  %4247 = vmatpush1.msra.mxu0 %v4246
  %4248 = vmatprep.subr.mxu0 0.0
  %v4249 = vand.u32 %v1745, 4294901760
  %v4250 = vsub.f32 %v1745, %v4249
  %v4251 = vand.u32 %v4250, 4294901760
  %4252 = vmatpush1.msra.mxu0 %v4251
  %4253 = vmatprep.subr.mxu0 0.0
  %v4254 = vand.u32 %v1749, 4294901760
  %v4255 = vsub.f32 %v1749, %v4254
  %v4256 = vand.u32 %v4255, 4294901760
  %4257 = vmatpush1.msra.mxu0 %v4256
  %4258 = vmatprep.subr.mxu0 0.0
  %v4259 = vand.u32 %v1753, 4294901760
  %v4260 = vsub.f32 %v1753, %v4259
  %v4261 = vand.u32 %v4260, 4294901760
  %4262 = vmatpush1.msra.mxu0 %v4261
  %4263 = vmatprep.subr.mxu0 0.0
  %v4264 = vand.u32 %v1757, 4294901760
  %v4265 = vsub.f32 %v1757, %v4264
  %v4266 = vand.u32 %v4265, 4294901760
  %4267 = vmatpush1.msra.mxu0 %v4266
  %4268 = vmatprep.subr.mxu0 0.0
  %4269 = vmatpush1.msra.mxu0 0.0
  %4270 = vmatprep.subr.mxu0 0.0
  %4271 = vmatpush1.msra.mxu0 0.0
  %4272 = vmatprep.subr.mxu0 0.0
  %4273 = vmatpush1.msra.mxu0 0.0
  %4274 = vmatprep.subr.mxu0 0.0
  %4275 = vmatpush1.msra.mxu0 0.0
  %4276 = vmatprep.subr.mxu0 0.0
  %4277 = vmatpush1.msra.mxu0 0.0
  %4278 = vmatprep.subr.mxu0 0.0
  %4279 = vmatpush1.msra.mxu0 0.0
  %4280 = vmatprep.subr.mxu0 0.0
  %4281 = vmatpush1.msra.mxu0 0.0
  %4282 = vmatprep.subr.mxu0 0.0
  %4283 = vmatpush1.msra.mxu0 0.0
  %4284 = vmatprep.subr.mxu0 0.0
  %4285 = vmatpush1.msra.mxu0 0.0
  %4286 = vmatprep.subr.mxu0 0.0
  %4287 = vmatpush1.msra.mxu0 0.0
  %4288 = vmatprep.subr.mxu0 0.0
  %4289 = vmatpush1.msra.mxu0 0.0
  %4290 = vmatprep.subr.mxu0 0.0
  %4291 = vmatpush1.msra.mxu0 0.0
  %4292 = vmatprep.subr.mxu0 0.0
  %4293 = vmatpush1.msra.mxu0 0.0
  %4294 = vmatprep.subr.mxu0 0.0
  %4295 = vmatpush1.msra.mxu0 0.0
  %4296 = vmatprep.subr.mxu0 0.0
  %4297 = vmatpush1.msra.mxu0 0.0
  %4298 = vmatprep.subr.mxu0 0.0
  %4299 = vmatpush1.msra.mxu0 0.0
  %4300 = vmatprep.subr.mxu0 0.0
  %4301 = vmatpush1.msra.mxu0 0.0
  %4302 = vmatprep.subr.mxu0 0.0
  %4303 = vmatpush1.msra.mxu0 0.0
  %4304 = vmatprep.subr.mxu0 0.0
  %4305 = vmatpush1.msra.mxu0 0.0
  %4306 = vmatprep.subr.mxu0 0.0
  %4307 = vmatpush1.msra.mxu0 0.0
  %4308 = vmatprep.subr.mxu0 0.0
  %4309 = vmatpush1.msra.mxu0 0.0
  %4310 = vmatprep.subr.mxu0 0.0
  %4311 = vmatpush1.msra.mxu0 0.0
  %4312 = vmatprep.subr.mxu0 0.0
  %4313 = vmatpush1.msra.mxu0 0.0
  %4314 = vmatprep.subr.mxu0 0.0
  %4315 = vmatpush1.msra.mxu0 0.0
  %4316 = vmatprep.subr.mxu0 0.0
  %4317 = vmatpush1.msra.mxu0 0.0
  %4318 = vmatprep.mubr.f32.mxu0 0.0
  %v4319 = vand.u32 %v3775, 4294901760
  %4320 = vmatmul.mubr.f32.gmra.mrb[0].mxu0 %v4319
  %v4321 = vpop.f32.mrb[0].mxu0
  %v4322 = vadd.f32 %v4206, %v4321
  %v4323 = vpop.f32.mrb[0].mxu0
  %4324 = vmatprep.mubr.f32.mxu0 0.0
  %v4325 = vand.u32 %v3778, 4294901760
  %4326 = vmatmul.mubr.f32.gmra.mrb[0].mxu0 %v4325
  %v4327 = vpop.f32.mrb[0].mxu0
  %v4328 = vadd.f32 %v4214, %v4327
  %v4329 = vpop.f32.mrb[0].mxu0
  %4330 = vmatprep.mubr.f32.mxu0 0.0
  %v4331 = vand.u32 %v3781, 4294901760
  %4332 = vmatmul.mubr.f32.gmra.mrb[0].mxu0 %v4331
  %v4333 = vpop.f32.mrb[0].mxu0
  %v4334 = vadd.f32 %v4222, %v4333
  %v4335 = vpop.f32.mrb[0].mxu0
  %4336 = vmatprep.mubr.f32.mxu0 0.0
  %v4337 = vand.u32 %v3784, 4294901760
  %4338 = vmatmul.mubr.f32.gmra.mrb[0].mxu0 %v4337
  %v4339 = vpop.f32.mrb[0].mxu0
  %v4340 = vadd.f32 %v4230, %v4339
  %v4341 = vpop.f32.mrb[0].mxu0
  %4342 = vdwg.mxu0
  %4343 = vmatprep.subr.mxu0 0.0
  %v4344 = vand.u32 %v1733, 4294901760
  %4345 = vmatpush1.msra.mxu0 %v4344
  %4346 = vmatprep.subr.mxu0 0.0
  %v4347 = vand.u32 %v1737, 4294901760
  %4348 = vmatpush1.msra.mxu0 %v4347
  %4349 = vmatprep.subr.mxu0 0.0
  %v4350 = vand.u32 %v1741, 4294901760
  %4351 = vmatpush1.msra.mxu0 %v4350
  %4352 = vmatprep.subr.mxu0 0.0
  %v4353 = vand.u32 %v1745, 4294901760
  %4354 = vmatpush1.msra.mxu0 %v4353
  %4355 = vmatprep.subr.mxu0 0.0
  %v4356 = vand.u32 %v1749, 4294901760
  %4357 = vmatpush1.msra.mxu0 %v4356
  %4358 = vmatprep.subr.mxu0 0.0
  %v4359 = vand.u32 %v1753, 4294901760
  %4360 = vmatpush1.msra.mxu0 %v4359
  %4361 = vmatprep.subr.mxu0 0.0
  %v4362 = vand.u32 %v1757, 4294901760
  %4363 = vmatpush1.msra.mxu0 %v4362
  %4364 = vmatprep.subr.mxu0 0.0
  %4365 = vmatpush1.msra.mxu0 0.0
  %4366 = vmatprep.subr.mxu0 0.0
  %4367 = vmatpush1.msra.mxu0 0.0
  %4368 = vmatprep.subr.mxu0 0.0
  %4369 = vmatpush1.msra.mxu0 0.0
  %4370 = vmatprep.subr.mxu0 0.0
  %4371 = vmatpush1.msra.mxu0 0.0
  %4372 = vmatprep.subr.mxu0 0.0
  %4373 = vmatpush1.msra.mxu0 0.0
  %4374 = vmatprep.subr.mxu0 0.0
  %4375 = vmatpush1.msra.mxu0 0.0
  %4376 = vmatprep.subr.mxu0 0.0
  %4377 = vmatpush1.msra.mxu0 0.0
  %4378 = vmatprep.subr.mxu0 0.0
  %4379 = vmatpush1.msra.mxu0 0.0
  %4380 = vmatprep.subr.mxu0 0.0
  %4381 = vmatpush1.msra.mxu0 0.0
  %4382 = vmatprep.subr.mxu0 0.0
  %4383 = vmatpush1.msra.mxu0 0.0
  %4384 = vmatprep.subr.mxu0 0.0
  %4385 = vmatpush1.msra.mxu0 0.0
  %4386 = vmatprep.subr.mxu0 0.0
  %4387 = vmatpush1.msra.mxu0 0.0
  %4388 = vmatprep.subr.mxu0 0.0
  %4389 = vmatpush1.msra.mxu0 0.0
  %4390 = vmatprep.subr.mxu0 0.0
  %4391 = vmatpush1.msra.mxu0 0.0
  %4392 = vmatprep.subr.mxu0 0.0
  %4393 = vmatpush1.msra.mxu0 0.0
  %4394 = vmatprep.subr.mxu0 0.0
  %4395 = vmatpush1.msra.mxu0 0.0
  %4396 = vmatprep.subr.mxu0 0.0
  %4397 = vmatpush1.msra.mxu0 0.0
  %4398 = vmatprep.subr.mxu0 0.0
  %4399 = vmatpush1.msra.mxu0 0.0
  %4400 = vmatprep.subr.mxu0 0.0
  %4401 = vmatpush1.msra.mxu0 0.0
  %4402 = vmatprep.subr.mxu0 0.0
  %4403 = vmatpush1.msra.mxu0 0.0
  %4404 = vmatprep.subr.mxu0 0.0
  %4405 = vmatpush1.msra.mxu0 0.0
  %4406 = vmatprep.subr.mxu0 0.0
  %4407 = vmatpush1.msra.mxu0 0.0
  %4408 = vmatprep.subr.mxu0 0.0
  %4409 = vmatpush1.msra.mxu0 0.0
  %4410 = vmatprep.subr.mxu0 0.0
  %4411 = vmatpush1.msra.mxu0 0.0
  %4412 = vmatprep.subr.mxu0 0.0
  %4413 = vmatpush1.msra.mxu0 0.0
  %4414 = vmatprep.mubr.f32.mxu0 0.0
  %v4415 = vand.u32 %v3775, 4294901760
  %4416 = vmatmul.mubr.f32.gmra.mrb[0].mxu0 %v4415
  %v4417 = vpop.f32.mrb[0].mxu0
  %v4418 = vadd.f32 %v4322, %v4417
  %v4419 = vpop.f32.mrb[0].mxu0
  %4420 = vmatprep.mubr.f32.mxu0 0.0
  %v4421 = vand.u32 %v3778, 4294901760
  %4422 = vmatmul.mubr.f32.gmra.mrb[0].mxu0 %v4421
  %v4423 = vpop.f32.mrb[0].mxu0
  %v4424 = vadd.f32 %v4328, %v4423
  %v4425 = vpop.f32.mrb[0].mxu0
  %4426 = vmatprep.mubr.f32.mxu0 0.0
  %v4427 = vand.u32 %v3781, 4294901760
  %4428 = vmatmul.mubr.f32.gmra.mrb[0].mxu0 %v4427
  %v4429 = vpop.f32.mrb[0].mxu0
  %v4430 = vadd.f32 %v4334, %v4429
  %v4431 = vpop.f32.mrb[0].mxu0
  %4432 = vmatprep.mubr.f32.mxu0 0.0
  %v4433 = vand.u32 %v3784, 4294901760
  %4434 = vmatmul.mubr.f32.gmra.mrb[0].mxu0 %v4433
  %v4435 = vpop.f32.mrb[0].mxu0
  %v4436 = vadd.f32 %v4340, %v4435
  %v4437 = vpop.f32.mrb[0].mxu0
  %4438 = vdwg.mxu0
  %v4439 = vadd.f32 %v3766, %v4418
  %v4440 = vadd.f32 %v3767, %v4424
  %v4441 = vadd.f32 %v3768, %v4430
  %v4442 = vadd.f32 %v3769, %v4436
  %v4443 = vmax.f32 %v4439, 0.0
  %v4444 = vmax.f32 %v4440, 0.0
  %v4445 = vmax.f32 %v4441, 0.0
  %v4446 = vmax.f32 %v4442, 0.0
  %v4447 = vld [vmem:[%s1 + $0xb8] sm:$0xff]
  %v4448 = vld [vmem:[%s1 + $0xc0] sm:$0xff]
  %v4449 = vld [vmem:[%s1 + $0xc8] sm:$0xff]
  %v4450 = vld [vmem:[%s1 + $0xd0] sm:$0xff]
  %v4451 = vld [vmem:[%s1 + $0xd8] sm:$0xff]
  %v4452 = vld [vmem:[%s1 + $0xe0] sm:$0xff]
  %v4453 = vld [vmem:[%s1 + $0xe8] sm:$0xff]
  %v4454 = vld [vmem:[%s1 + $0xf0] sm:$0xff]
  %v4455 = vld [vmem:[%s1 + $0xf8] sm:$0xff]
  %v4456 = vld [vmem:[%s1 + $0x100] sm:$0xff]
  %v4457 = vld [vmem:[%s1 + $0x108] sm:$0xff]
  %v4458 = vld [vmem:[%s1 + $0x110] sm:$0xff]
  %v4459 = vld [vmem:[%s1 + $0x118] sm:$0xff]
  %v4460 = vld [vmem:[%s1 + $0x120] sm:$0xff]
  %v4461 = vld [vmem:[%s1 + $0x128] sm:$0xff]
  %v4462 = vld [vmem:[%s1 + $0x130] sm:$0xff]
  %v4463 = vld [vmem:[%s1 + $0x138] sm:$0xff]
  %v4464 = vld [vmem:[%s1 + $0x140] sm:$0xff]
  %v4465 = vld [vmem:[%s1 + $0x148] sm:$0xff]
  %v4466 = vld [vmem:[%s1 + $0x150] sm:$0xff]
  %v4467 = vld [vmem:[%s1 + $0x158] sm:$0xff]
  %v4468 = vld [vmem:[%s1 + $0x160] sm:$0xff]
  %v4469 = vld [vmem:[%s1 + $0x168] sm:$0xff]
  %v4470 = vld [vmem:[%s1 + $0x170] sm:$0xff]
  %v4471 = vld [vmem:[%s1 + $0x178] sm:$0xff]
  %v4472 = vld [vmem:[%s1 + $0x180] sm:$0xff]
  %v4473 = vld [vmem:[%s1 + $0x188] sm:$0xff]
  %v4474 = vld [vmem:[%s1 + $0x190] sm:$0xff]
  %v4475 = vld [vmem:[%s1 + $0x198] sm:$0xff]
  %v4476 = vld [vmem:[%s1 + $0x1a0] sm:$0xff]
  %v4477 = vld [vmem:[%s1 + $0x1a8] sm:$0xff]
  %v4478 = vld [vmem:[%s1 + $0x1b0] sm:$0xff]
  %4479 = vmatprep.subr.mxu0 0.0
  %v4480 = vand.u32 %v4463, 4294901760
  %4481 = vmatpush1.msra.mxu0 %v4480
  %4482 = vmatprep.subr.mxu0 0.0
  %v4483 = vand.u32 %v4464, 4294901760
  %4484 = vmatpush1.msra.mxu0 %v4483
  %4485 = vmatprep.subr.mxu0 0.0
  %v4486 = vand.u32 %v4465, 4294901760
  %4487 = vmatpush1.msra.mxu0 %v4486
  %4488 = vmatprep.subr.mxu0 0.0
  %v4489 = vand.u32 %v4466, 4294901760
  %4490 = vmatpush1.msra.mxu0 %v4489
  %4491 = vmatprep.subr.mxu0 0.0
  %v4492 = vand.u32 %v4467, 4294901760
  %4493 = vmatpush1.msra.mxu0 %v4492
  %4494 = vmatprep.subr.mxu0 0.0
  %v4495 = vand.u32 %v4468, 4294901760
  %4496 = vmatpush1.msra.mxu0 %v4495
  %4497 = vmatprep.subr.mxu0 0.0
  %v4498 = vand.u32 %v4469, 4294901760
  %4499 = vmatpush1.msra.mxu0 %v4498
  %4500 = vmatprep.subr.mxu0 0.0
  %v4501 = vand.u32 %v4470, 4294901760
  %4502 = vmatpush1.msra.mxu0 %v4501
  %4503 = vmatprep.subr.mxu0 0.0
  %v4504 = vand.u32 %v4471, 4294901760
  %4505 = vmatpush1.msra.mxu0 %v4504
  %4506 = vmatprep.subr.mxu0 0.0
  %v4507 = vand.u32 %v4472, 4294901760
  %4508 = vmatpush1.msra.mxu0 %v4507
  %4509 = vmatprep.subr.mxu0 0.0
  %v4510 = vand.u32 %v4473, 4294901760
  %4511 = vmatpush1.msra.mxu0 %v4510
  %4512 = vmatprep.subr.mxu0 0.0
  %v4513 = vand.u32 %v4474, 4294901760
  %4514 = vmatpush1.msra.mxu0 %v4513
  %4515 = vmatprep.subr.mxu0 0.0
  %v4516 = vand.u32 %v4475, 4294901760
  %4517 = vmatpush1.msra.mxu0 %v4516
  %4518 = vmatprep.subr.mxu0 0.0
  %v4519 = vand.u32 %v4476, 4294901760
  %4520 = vmatpush1.msra.mxu0 %v4519
  %4521 = vmatprep.subr.mxu0 0.0
  %v4522 = vand.u32 %v4477, 4294901760
  %4523 = vmatpush1.msra.mxu0 %v4522
  %4524 = vmatprep.subr.mxu0 0.0
  %v4525 = vand.u32 %v4478, 4294901760
  %4526 = vmatpush1.msra.mxu0 %v4525
  %4527 = vmatprep.subr.mxu0 0.0
  %4528 = vmatpush1.msra.mxu0 0.0
  %4529 = vmatprep.subr.mxu0 0.0
  %4530 = vmatpush1.msra.mxu0 0.0
  %4531 = vmatprep.subr.mxu0 0.0
  %4532 = vmatpush1.msra.mxu0 0.0
  %4533 = vmatprep.subr.mxu0 0.0
  %4534 = vmatpush1.msra.mxu0 0.0
  %4535 = vmatprep.subr.mxu0 0.0
  %4536 = vmatpush1.msra.mxu0 0.0
  %4537 = vmatprep.subr.mxu0 0.0
  %4538 = vmatpush1.msra.mxu0 0.0
  %4539 = vmatprep.subr.mxu0 0.0
  %4540 = vmatpush1.msra.mxu0 0.0
  %4541 = vmatprep.subr.mxu0 0.0
  %4542 = vmatpush1.msra.mxu0 0.0
  %4543 = vmatprep.subr.mxu0 0.0
  %4544 = vmatpush1.msra.mxu0 0.0
  %4545 = vmatprep.subr.mxu0 0.0
  %4546 = vmatpush1.msra.mxu0 0.0
  %4547 = vmatprep.subr.mxu0 0.0
  %4548 = vmatpush1.msra.mxu0 0.0
  %4549 = vmatprep.subr.mxu0 0.0
  %4550 = vmatpush1.msra.mxu0 0.0
  %4551 = vmatprep.subr.mxu0 0.0
  %4552 = vmatpush1.msra.mxu0 0.0
  %4553 = vmatprep.subr.mxu0 0.0
  %4554 = vmatpush1.msra.mxu0 0.0
  %4555 = vmatprep.subr.mxu0 0.0
  %4556 = vmatpush1.msra.mxu0 0.0
  %4557 = vmatprep.subr.mxu0 0.0
  %4558 = vmatpush1.msra.mxu0 0.0
  %4559 = vmatprep.mubr.f32.mxu0 0.0
  %v4560 = vand.u32 %v4444, 4294901760
  %v4561 = vsub.f32 %v4444, %v4560
  %v4562 = vand.u32 %v4561, 4294901760
  %v4563 = vsub.f32 %v4561, %v4562
  %v4564 = vand.u32 %v4563, 4294901760
  %4565 = vmatmul.mubr.f32.gmra.mrb[0].mxu0 %v4564
  %v4566 = vpop.f32.mrb[0].mxu0
  %v4567 = vadd.f32 0.0, %v4566
  %v4568 = vpop.f32.mrb[0].mxu0
  %4569 = vdwg.mxu0
  %4570 = vmatprep.subr.mxu0 0.0
  %v4571 = vand.u32 %v4463, 4294901760
  %v4572 = vsub.f32 %v4463, %v4571
  %v4573 = vand.u32 %v4572, 4294901760
  %v4574 = vsub.f32 %v4572, %v4573
  %v4575 = vand.u32 %v4574, 4294901760
  %4576 = vmatpush1.msra.mxu0 %v4575
  %4577 = vmatprep.subr.mxu0 0.0
  %v4578 = vand.u32 %v4464, 4294901760
  %v4579 = vsub.f32 %v4464, %v4578
  %v4580 = vand.u32 %v4579, 4294901760
  %v4581 = vsub.f32 %v4579, %v4580
  %v4582 = vand.u32 %v4581, 4294901760
  %4583 = vmatpush1.msra.mxu0 %v4582
  %4584 = vmatprep.subr.mxu0 0.0
  %v4585 = vand.u32 %v4465, 4294901760
  %v4586 = vsub.f32 %v4465, %v4585
  %v4587 = vand.u32 %v4586, 4294901760
  %v4588 = vsub.f32 %v4586, %v4587
  %v4589 = vand.u32 %v4588, 4294901760
  %4590 = vmatpush1.msra.mxu0 %v4589
  %4591 = vmatprep.subr.mxu0 0.0
  %v4592 = vand.u32 %v4466, 4294901760
  %v4593 = vsub.f32 %v4466, %v4592
  %v4594 = vand.u32 %v4593, 4294901760
  %v4595 = vsub.f32 %v4593, %v4594
  %v4596 = vand.u32 %v4595, 4294901760
  %4597 = vmatpush1.msra.mxu0 %v4596
  %4598 = vmatprep.subr.mxu0 0.0
  %v4599 = vand.u32 %v4467, 4294901760
  %v4600 = vsub.f32 %v4467, %v4599
  %v4601 = vand.u32 %v4600, 4294901760
  %v4602 = vsub.f32 %v4600, %v4601
  %v4603 = vand.u32 %v4602, 4294901760
  %4604 = vmatpush1.msra.mxu0 %v4603
  %4605 = vmatprep.subr.mxu0 0.0
  %v4606 = vand.u32 %v4468, 4294901760
  %v4607 = vsub.f32 %v4468, %v4606
  %v4608 = vand.u32 %v4607, 4294901760
  %v4609 = vsub.f32 %v4607, %v4608
  %v4610 = vand.u32 %v4609, 4294901760
  %4611 = vmatpush1.msra.mxu0 %v4610
  %4612 = vmatprep.subr.mxu0 0.0
  %v4613 = vand.u32 %v4469, 4294901760
  %v4614 = vsub.f32 %v4469, %v4613
  %v4615 = vand.u32 %v4614, 4294901760
  %v4616 = vsub.f32 %v4614, %v4615
  %v4617 = vand.u32 %v4616, 4294901760
  %4618 = vmatpush1.msra.mxu0 %v4617
  %4619 = vmatprep.subr.mxu0 0.0
  %v4620 = vand.u32 %v4470, 4294901760
  %v4621 = vsub.f32 %v4470, %v4620
  %v4622 = vand.u32 %v4621, 4294901760
  %v4623 = vsub.f32 %v4621, %v4622
  %v4624 = vand.u32 %v4623, 4294901760
  %4625 = vmatpush1.msra.mxu0 %v4624
  %4626 = vmatprep.subr.mxu0 0.0
  %v4627 = vand.u32 %v4471, 4294901760
  %v4628 = vsub.f32 %v4471, %v4627
  %v4629 = vand.u32 %v4628, 4294901760
  %v4630 = vsub.f32 %v4628, %v4629
  %v4631 = vand.u32 %v4630, 4294901760
  %4632 = vmatpush1.msra.mxu0 %v4631
  %4633 = vmatprep.subr.mxu0 0.0
  %v4634 = vand.u32 %v4472, 4294901760
  %v4635 = vsub.f32 %v4472, %v4634
  %v4636 = vand.u32 %v4635, 4294901760
  %v4637 = vsub.f32 %v4635, %v4636
  %v4638 = vand.u32 %v4637, 4294901760
  %4639 = vmatpush1.msra.mxu0 %v4638
  %4640 = vmatprep.subr.mxu0 0.0
  %v4641 = vand.u32 %v4473, 4294901760
  %v4642 = vsub.f32 %v4473, %v4641
  %v4643 = vand.u32 %v4642, 4294901760
  %v4644 = vsub.f32 %v4642, %v4643
  %v4645 = vand.u32 %v4644, 4294901760
  %4646 = vmatpush1.msra.mxu0 %v4645
  %4647 = vmatprep.subr.mxu0 0.0
  %v4648 = vand.u32 %v4474, 4294901760
  %v4649 = vsub.f32 %v4474, %v4648
  %v4650 = vand.u32 %v4649, 4294901760
  %v4651 = vsub.f32 %v4649, %v4650
  %v4652 = vand.u32 %v4651, 4294901760
  %4653 = vmatpush1.msra.mxu0 %v4652
  %4654 = vmatprep.subr.mxu0 0.0
  %v4655 = vand.u32 %v4475, 4294901760
  %v4656 = vsub.f32 %v4475, %v4655
  %v4657 = vand.u32 %v4656, 4294901760
  %v4658 = vsub.f32 %v4656, %v4657
  %v4659 = vand.u32 %v4658, 4294901760
  %4660 = vmatpush1.msra.mxu0 %v4659
  %4661 = vmatprep.subr.mxu0 0.0
  %v4662 = vand.u32 %v4476, 4294901760
  %v4663 = vsub.f32 %v4476, %v4662
  %v4664 = vand.u32 %v4663, 4294901760
  %v4665 = vsub.f32 %v4663, %v4664
  %v4666 = vand.u32 %v4665, 4294901760
  %4667 = vmatpush1.msra.mxu0 %v4666
  %4668 = vmatprep.subr.mxu0 0.0
  %v4669 = vand.u32 %v4477, 4294901760
  %v4670 = vsub.f32 %v4477, %v4669
  %v4671 = vand.u32 %v4670, 4294901760
  %v4672 = vsub.f32 %v4670, %v4671
  %v4673 = vand.u32 %v4672, 4294901760
  %4674 = vmatpush1.msra.mxu0 %v4673
  %4675 = vmatprep.subr.mxu0 0.0
  %v4676 = vand.u32 %v4478, 4294901760
  %v4677 = vsub.f32 %v4478, %v4676
  %v4678 = vand.u32 %v4677, 4294901760
  %v4679 = vsub.f32 %v4677, %v4678
  %v4680 = vand.u32 %v4679, 4294901760
  %4681 = vmatpush1.msra.mxu0 %v4680
  %4682 = vmatprep.subr.mxu0 0.0
  %4683 = vmatpush1.msra.mxu0 0.0
  %4684 = vmatprep.subr.mxu0 0.0
  %4685 = vmatpush1.msra.mxu0 0.0
  %4686 = vmatprep.subr.mxu0 0.0
  %4687 = vmatpush1.msra.mxu0 0.0
  %4688 = vmatprep.subr.mxu0 0.0
  %4689 = vmatpush1.msra.mxu0 0.0
  %4690 = vmatprep.subr.mxu0 0.0
  %4691 = vmatpush1.msra.mxu0 0.0
  %4692 = vmatprep.subr.mxu0 0.0
  %4693 = vmatpush1.msra.mxu0 0.0
  %4694 = vmatprep.subr.mxu0 0.0
  %4695 = vmatpush1.msra.mxu0 0.0
  %4696 = vmatprep.subr.mxu0 0.0
  %4697 = vmatpush1.msra.mxu0 0.0
  %4698 = vmatprep.subr.mxu0 0.0
  %4699 = vmatpush1.msra.mxu0 0.0
  %4700 = vmatprep.subr.mxu0 0.0
  %4701 = vmatpush1.msra.mxu0 0.0
  %4702 = vmatprep.subr.mxu0 0.0
  %4703 = vmatpush1.msra.mxu0 0.0
  %4704 = vmatprep.subr.mxu0 0.0
  %4705 = vmatpush1.msra.mxu0 0.0
  %4706 = vmatprep.subr.mxu0 0.0
  %4707 = vmatpush1.msra.mxu0 0.0
  %4708 = vmatprep.subr.mxu0 0.0
  %4709 = vmatpush1.msra.mxu0 0.0
  %4710 = vmatprep.subr.mxu0 0.0
  %4711 = vmatpush1.msra.mxu0 0.0
  %4712 = vmatprep.subr.mxu0 0.0
  %4713 = vmatpush1.msra.mxu0 0.0
  %4714 = vmatprep.mubr.f32.mxu0 0.0
  %v4715 = vand.u32 %v4444, 4294901760
  %4716 = vmatmul.mubr.f32.gmra.mrb[0].mxu0 %v4715
  %v4717 = vpop.f32.mrb[0].mxu0
  %v4718 = vadd.f32 %v4567, %v4717
  %v4719 = vpop.f32.mrb[0].mxu0
  %4720 = vdwg.mxu0
  %4721 = vmatprep.subr.mxu0 0.0
  %v4722 = vand.u32 %v4463, 4294901760
  %v4723 = vsub.f32 %v4463, %v4722
  %4724 = vmatpush1.msra.mxu0 %v4723
  %4725 = vmatprep.subr.mxu0 0.0
  %v4726 = vand.u32 %v4464, 4294901760
  %v4727 = vsub.f32 %v4464, %v4726
  %4728 = vmatpush1.msra.mxu0 %v4727
  %4729 = vmatprep.subr.mxu0 0.0
  %v4730 = vand.u32 %v4465, 4294901760
  %v4731 = vsub.f32 %v4465, %v4730
  %4732 = vmatpush1.msra.mxu0 %v4731
  %4733 = vmatprep.subr.mxu0 0.0
  %v4734 = vand.u32 %v4466, 4294901760
  %v4735 = vsub.f32 %v4466, %v4734
  %4736 = vmatpush1.msra.mxu0 %v4735
  %4737 = vmatprep.subr.mxu0 0.0
  %v4738 = vand.u32 %v4467, 4294901760
  %v4739 = vsub.f32 %v4467, %v4738
  %4740 = vmatpush1.msra.mxu0 %v4739
  %4741 = vmatprep.subr.mxu0 0.0
  %v4742 = vand.u32 %v4468, 4294901760
  %v4743 = vsub.f32 %v4468, %v4742
  %4744 = vmatpush1.msra.mxu0 %v4743
  %4745 = vmatprep.subr.mxu0 0.0
  %v4746 = vand.u32 %v4469, 4294901760
  %v4747 = vsub.f32 %v4469, %v4746
  %4748 = vmatpush1.msra.mxu0 %v4747
  %4749 = vmatprep.subr.mxu0 0.0
  %v4750 = vand.u32 %v4470, 4294901760
  %v4751 = vsub.f32 %v4470, %v4750
  %4752 = vmatpush1.msra.mxu0 %v4751
  %4753 = vmatprep.subr.mxu0 0.0
  %v4754 = vand.u32 %v4471, 4294901760
  %v4755 = vsub.f32 %v4471, %v4754
  %4756 = vmatpush1.msra.mxu0 %v4755
  %4757 = vmatprep.subr.mxu0 0.0
  %v4758 = vand.u32 %v4472, 4294901760
  %v4759 = vsub.f32 %v4472, %v4758
  %4760 = vmatpush1.msra.mxu0 %v4759
  %4761 = vmatprep.subr.mxu0 0.0
  %v4762 = vand.u32 %v4473, 4294901760
  %v4763 = vsub.f32 %v4473, %v4762
  %4764 = vmatpush1.msra.mxu0 %v4763
  %4765 = vmatprep.subr.mxu0 0.0
  %v4766 = vand.u32 %v4474, 4294901760
  %v4767 = vsub.f32 %v4474, %v4766
  %4768 = vmatpush1.msra.mxu0 %v4767
  %4769 = vmatprep.subr.mxu0 0.0
  %v4770 = vand.u32 %v4475, 4294901760
  %v4771 = vsub.f32 %v4475, %v4770
  %4772 = vmatpush1.msra.mxu0 %v4771
  %4773 = vmatprep.subr.mxu0 0.0
  %v4774 = vand.u32 %v4476, 4294901760
  %v4775 = vsub.f32 %v4476, %v4774
  %4776 = vmatpush1.msra.mxu0 %v4775
  %4777 = vmatprep.subr.mxu0 0.0
  %v4778 = vand.u32 %v4477, 4294901760
  %v4779 = vsub.f32 %v4477, %v4778
  %4780 = vmatpush1.msra.mxu0 %v4779
  %4781 = vmatprep.subr.mxu0 0.0
  %v4782 = vand.u32 %v4478, 4294901760
  %v4783 = vsub.f32 %v4478, %v4782
  %4784 = vmatpush1.msra.mxu0 %v4783
  %4785 = vmatprep.subr.mxu0 0.0
  %4786 = vmatpush1.msra.mxu0 0.0
  %4787 = vmatprep.subr.mxu0 0.0
  %4788 = vmatpush1.msra.mxu0 0.0
  %4789 = vmatprep.subr.mxu0 0.0
  %4790 = vmatpush1.msra.mxu0 0.0
  %4791 = vmatprep.subr.mxu0 0.0
  %4792 = vmatpush1.msra.mxu0 0.0
  %4793 = vmatprep.subr.mxu0 0.0
  %4794 = vmatpush1.msra.mxu0 0.0
  %4795 = vmatprep.subr.mxu0 0.0
  %4796 = vmatpush1.msra.mxu0 0.0
  %4797 = vmatprep.subr.mxu0 0.0
  %4798 = vmatpush1.msra.mxu0 0.0
  %4799 = vmatprep.subr.mxu0 0.0
  %4800 = vmatpush1.msra.mxu0 0.0
  %4801 = vmatprep.subr.mxu0 0.0
  %4802 = vmatpush1.msra.mxu0 0.0
  %4803 = vmatprep.subr.mxu0 0.0
  %4804 = vmatpush1.msra.mxu0 0.0
  %4805 = vmatprep.subr.mxu0 0.0
  %4806 = vmatpush1.msra.mxu0 0.0
  %4807 = vmatprep.subr.mxu0 0.0
  %4808 = vmatpush1.msra.mxu0 0.0
  %4809 = vmatprep.subr.mxu0 0.0
  %4810 = vmatpush1.msra.mxu0 0.0
  %4811 = vmatprep.subr.mxu0 0.0
  %4812 = vmatpush1.msra.mxu0 0.0
  %4813 = vmatprep.subr.mxu0 0.0
  %4814 = vmatpush1.msra.mxu0 0.0
  %4815 = vmatprep.subr.mxu0 0.0
  %4816 = vmatpush1.msra.mxu0 0.0
  %4817 = vmatprep.mubr.f32.mxu0 0.0
  %v4818 = vand.u32 %v4444, 4294901760
  %v4819 = vsub.f32 %v4444, %v4818
  %4820 = vmatmul.mubr.f32.gmra.mrb[0].mxu0 %v4819
  %v4821 = vpop.f32.mrb[0].mxu0
  %v4822 = vadd.f32 %v4718, %v4821
  %v4823 = vpop.f32.mrb[0].mxu0
  %4824 = vdwg.mxu0
  %4825 = vmatprep.subr.mxu0 0.0
  %v4826 = vand.u32 %v4463, 4294901760
  %4827 = vmatpush1.msra.mxu0 %v4826
  %4828 = vmatprep.subr.mxu0 0.0
  %v4829 = vand.u32 %v4464, 4294901760
  %4830 = vmatpush1.msra.mxu0 %v4829
  %4831 = vmatprep.subr.mxu0 0.0
  %v4832 = vand.u32 %v4465, 4294901760
  %4833 = vmatpush1.msra.mxu0 %v4832
  %4834 = vmatprep.subr.mxu0 0.0
  %v4835 = vand.u32 %v4466, 4294901760
  %4836 = vmatpush1.msra.mxu0 %v4835
  %4837 = vmatprep.subr.mxu0 0.0
  %v4838 = vand.u32 %v4467, 4294901760
  %4839 = vmatpush1.msra.mxu0 %v4838
  %4840 = vmatprep.subr.mxu0 0.0
  %v4841 = vand.u32 %v4468, 4294901760
  %4842 = vmatpush1.msra.mxu0 %v4841
  %4843 = vmatprep.subr.mxu0 0.0
  %v4844 = vand.u32 %v4469, 4294901760
  %4845 = vmatpush1.msra.mxu0 %v4844
  %4846 = vmatprep.subr.mxu0 0.0
  %v4847 = vand.u32 %v4470, 4294901760
  %4848 = vmatpush1.msra.mxu0 %v4847
  %4849 = vmatprep.subr.mxu0 0.0
  %v4850 = vand.u32 %v4471, 4294901760
  %4851 = vmatpush1.msra.mxu0 %v4850
  %4852 = vmatprep.subr.mxu0 0.0
  %v4853 = vand.u32 %v4472, 4294901760
  %4854 = vmatpush1.msra.mxu0 %v4853
  %4855 = vmatprep.subr.mxu0 0.0
  %v4856 = vand.u32 %v4473, 4294901760
  %4857 = vmatpush1.msra.mxu0 %v4856
  %4858 = vmatprep.subr.mxu0 0.0
  %v4859 = vand.u32 %v4474, 4294901760
  %4860 = vmatpush1.msra.mxu0 %v4859
  %4861 = vmatprep.subr.mxu0 0.0
  %v4862 = vand.u32 %v4475, 4294901760
  %4863 = vmatpush1.msra.mxu0 %v4862
  %4864 = vmatprep.subr.mxu0 0.0
  %v4865 = vand.u32 %v4476, 4294901760
  %4866 = vmatpush1.msra.mxu0 %v4865
  %4867 = vmatprep.subr.mxu0 0.0
  %v4868 = vand.u32 %v4477, 4294901760
  %4869 = vmatpush1.msra.mxu0 %v4868
  %4870 = vmatprep.subr.mxu0 0.0
  %v4871 = vand.u32 %v4478, 4294901760
  %4872 = vmatpush1.msra.mxu0 %v4871
  %4873 = vmatprep.subr.mxu0 0.0
  %4874 = vmatpush1.msra.mxu0 0.0
  %4875 = vmatprep.subr.mxu0 0.0
  %4876 = vmatpush1.msra.mxu0 0.0
  %4877 = vmatprep.subr.mxu0 0.0
  %4878 = vmatpush1.msra.mxu0 0.0
  %4879 = vmatprep.subr.mxu0 0.0
  %4880 = vmatpush1.msra.mxu0 0.0
  %4881 = vmatprep.subr.mxu0 0.0
  %4882 = vmatpush1.msra.mxu0 0.0
  %4883 = vmatprep.subr.mxu0 0.0
  %4884 = vmatpush1.msra.mxu0 0.0
  %4885 = vmatprep.subr.mxu0 0.0
  %4886 = vmatpush1.msra.mxu0 0.0
  %4887 = vmatprep.subr.mxu0 0.0
  %4888 = vmatpush1.msra.mxu0 0.0
  %4889 = vmatprep.subr.mxu0 0.0
  %4890 = vmatpush1.msra.mxu0 0.0
  %4891 = vmatprep.subr.mxu0 0.0
  %4892 = vmatpush1.msra.mxu0 0.0
  %4893 = vmatprep.subr.mxu0 0.0
  %4894 = vmatpush1.msra.mxu0 0.0
  %4895 = vmatprep.subr.mxu0 0.0
  %4896 = vmatpush1.msra.mxu0 0.0
  %4897 = vmatprep.subr.mxu0 0.0
  %4898 = vmatpush1.msra.mxu0 0.0
  %4899 = vmatprep.subr.mxu0 0.0
  %4900 = vmatpush1.msra.mxu0 0.0
  %4901 = vmatprep.subr.mxu0 0.0
  %4902 = vmatpush1.msra.mxu0 0.0
  %4903 = vmatprep.subr.mxu0 0.0
  %4904 = vmatpush1.msra.mxu0 0.0
  %4905 = vmatprep.mubr.f32.mxu0 0.0
  %v4906 = vand.u32 %v4444, 4294901760
  %v4907 = vsub.f32 %v4444, %v4906
  %v4908 = vand.u32 %v4907, 4294901760
  %4909 = vmatmul.mubr.f32.gmra.mrb[0].mxu0 %v4908
  %v4910 = vpop.f32.mrb[0].mxu0
  %v4911 = vadd.f32 %v4822, %v4910
  %v4912 = vpop.f32.mrb[0].mxu0
  %4913 = vdwg.mxu0
  %4914 = vmatprep.subr.mxu0 0.0
  %v4915 = vand.u32 %v4463, 4294901760
  %v4916 = vsub.f32 %v4463, %v4915
  %v4917 = vand.u32 %v4916, 4294901760
  %4918 = vmatpush1.msra.mxu0 %v4917
  %4919 = vmatprep.subr.mxu0 0.0
  %v4920 = vand.u32 %v4464, 4294901760
  %v4921 = vsub.f32 %v4464, %v4920
  %v4922 = vand.u32 %v4921, 4294901760
  %4923 = vmatpush1.msra.mxu0 %v4922
  %4924 = vmatprep.subr.mxu0 0.0
  %v4925 = vand.u32 %v4465, 4294901760
  %v4926 = vsub.f32 %v4465, %v4925
  %v4927 = vand.u32 %v4926, 4294901760
  %4928 = vmatpush1.msra.mxu0 %v4927
  %4929 = vmatprep.subr.mxu0 0.0
  %v4930 = vand.u32 %v4466, 4294901760
  %v4931 = vsub.f32 %v4466, %v4930
  %v4932 = vand.u32 %v4931, 4294901760
  %4933 = vmatpush1.msra.mxu0 %v4932
  %4934 = vmatprep.subr.mxu0 0.0
  %v4935 = vand.u32 %v4467, 4294901760
  %v4936 = vsub.f32 %v4467, %v4935
  %v4937 = vand.u32 %v4936, 4294901760
  %4938 = vmatpush1.msra.mxu0 %v4937
  %4939 = vmatprep.subr.mxu0 0.0
  %v4940 = vand.u32 %v4468, 4294901760
  %v4941 = vsub.f32 %v4468, %v4940
  %v4942 = vand.u32 %v4941, 4294901760
  %4943 = vmatpush1.msra.mxu0 %v4942
  %4944 = vmatprep.subr.mxu0 0.0
  %v4945 = vand.u32 %v4469, 4294901760
  %v4946 = vsub.f32 %v4469, %v4945
  %v4947 = vand.u32 %v4946, 4294901760
  %4948 = vmatpush1.msra.mxu0 %v4947
  %4949 = vmatprep.subr.mxu0 0.0
  %v4950 = vand.u32 %v4470, 4294901760
  %v4951 = vsub.f32 %v4470, %v4950
  %v4952 = vand.u32 %v4951, 4294901760
  %4953 = vmatpush1.msra.mxu0 %v4952
  %4954 = vmatprep.subr.mxu0 0.0
  %v4955 = vand.u32 %v4471, 4294901760
  %v4956 = vsub.f32 %v4471, %v4955
  %v4957 = vand.u32 %v4956, 4294901760
  %4958 = vmatpush1.msra.mxu0 %v4957
  %4959 = vmatprep.subr.mxu0 0.0
  %v4960 = vand.u32 %v4472, 4294901760
  %v4961 = vsub.f32 %v4472, %v4960
  %v4962 = vand.u32 %v4961, 4294901760
  %4963 = vmatpush1.msra.mxu0 %v4962
  %4964 = vmatprep.subr.mxu0 0.0
  %v4965 = vand.u32 %v4473, 4294901760
  %v4966 = vsub.f32 %v4473, %v4965
  %v4967 = vand.u32 %v4966, 4294901760
  %4968 = vmatpush1.msra.mxu0 %v4967
  %4969 = vmatprep.subr.mxu0 0.0
  %v4970 = vand.u32 %v4474, 4294901760
  %v4971 = vsub.f32 %v4474, %v4970
  %v4972 = vand.u32 %v4971, 4294901760
  %4973 = vmatpush1.msra.mxu0 %v4972
  %4974 = vmatprep.subr.mxu0 0.0
  %v4975 = vand.u32 %v4475, 4294901760
  %v4976 = vsub.f32 %v4475, %v4975
  %v4977 = vand.u32 %v4976, 4294901760
  %4978 = vmatpush1.msra.mxu0 %v4977
  %4979 = vmatprep.subr.mxu0 0.0
  %v4980 = vand.u32 %v4476, 4294901760
  %v4981 = vsub.f32 %v4476, %v4980
  %v4982 = vand.u32 %v4981, 4294901760
  %4983 = vmatpush1.msra.mxu0 %v4982
  %4984 = vmatprep.subr.mxu0 0.0
  %v4985 = vand.u32 %v4477, 4294901760
  %v4986 = vsub.f32 %v4477, %v4985
  %v4987 = vand.u32 %v4986, 4294901760
  %4988 = vmatpush1.msra.mxu0 %v4987
  %4989 = vmatprep.subr.mxu0 0.0
  %v4990 = vand.u32 %v4478, 4294901760
  %v4991 = vsub.f32 %v4478, %v4990
  %v4992 = vand.u32 %v4991, 4294901760
  %4993 = vmatpush1.msra.mxu0 %v4992
  %4994 = vmatprep.subr.mxu0 0.0
  %4995 = vmatpush1.msra.mxu0 0.0
  %4996 = vmatprep.subr.mxu0 0.0
  %4997 = vmatpush1.msra.mxu0 0.0
  %4998 = vmatprep.subr.mxu0 0.0
  %4999 = vmatpush1.msra.mxu0 0.0
  %5000 = vmatprep.subr.mxu0 0.0
  %5001 = vmatpush1.msra.mxu0 0.0
  %5002 = vmatprep.subr.mxu0 0.0
  %5003 = vmatpush1.msra.mxu0 0.0
  %5004 = vmatprep.subr.mxu0 0.0
  %5005 = vmatpush1.msra.mxu0 0.0
  %5006 = vmatprep.subr.mxu0 0.0
  %5007 = vmatpush1.msra.mxu0 0.0
  %5008 = vmatprep.subr.mxu0 0.0
  %5009 = vmatpush1.msra.mxu0 0.0
  %5010 = vmatprep.subr.mxu0 0.0
  %5011 = vmatpush1.msra.mxu0 0.0
  %5012 = vmatprep.subr.mxu0 0.0
  %5013 = vmatpush1.msra.mxu0 0.0
  %5014 = vmatprep.subr.mxu0 0.0
  %5015 = vmatpush1.msra.mxu0 0.0
  %5016 = vmatprep.subr.mxu0 0.0
  %5017 = vmatpush1.msra.mxu0 0.0
  %5018 = vmatprep.subr.mxu0 0.0
  %5019 = vmatpush1.msra.mxu0 0.0
  %5020 = vmatprep.subr.mxu0 0.0
  %5021 = vmatpush1.msra.mxu0 0.0
  %5022 = vmatprep.subr.mxu0 0.0
  %5023 = vmatpush1.msra.mxu0 0.0
  %5024 = vmatprep.subr.mxu0 0.0
  %5025 = vmatpush1.msra.mxu0 0.0
  %5026 = vmatprep.mubr.f32.mxu0 0.0
  %v5027 = vand.u32 %v4444, 4294901760
  %5028 = vmatmul.mubr.f32.gmra.mrb[0].mxu0 %v5027
  %v5029 = vpop.f32.mrb[0].mxu0
  %v5030 = vadd.f32 %v4911, %v5029
  %v5031 = vpop.f32.mrb[0].mxu0
  %5032 = vdwg.mxu0
  %5033 = vmatprep.subr.mxu0 0.0
  %v5034 = vand.u32 %v4463, 4294901760
  %5035 = vmatpush1.msra.mxu0 %v5034
  %5036 = vmatprep.subr.mxu0 0.0
  %v5037 = vand.u32 %v4464, 4294901760
  %5038 = vmatpush1.msra.mxu0 %v5037
  %5039 = vmatprep.subr.mxu0 0.0
  %v5040 = vand.u32 %v4465, 4294901760
  %5041 = vmatpush1.msra.mxu0 %v5040
  %5042 = vmatprep.subr.mxu0 0.0
  %v5043 = vand.u32 %v4466, 4294901760
  %5044 = vmatpush1.msra.mxu0 %v5043
  %5045 = vmatprep.subr.mxu0 0.0
  %v5046 = vand.u32 %v4467, 4294901760
  %5047 = vmatpush1.msra.mxu0 %v5046
  %5048 = vmatprep.subr.mxu0 0.0
  %v5049 = vand.u32 %v4468, 4294901760
  %5050 = vmatpush1.msra.mxu0 %v5049
  %5051 = vmatprep.subr.mxu0 0.0
  %v5052 = vand.u32 %v4469, 4294901760
  %5053 = vmatpush1.msra.mxu0 %v5052
  %5054 = vmatprep.subr.mxu0 0.0
  %v5055 = vand.u32 %v4470, 4294901760
  %5056 = vmatpush1.msra.mxu0 %v5055
  %5057 = vmatprep.subr.mxu0 0.0
  %v5058 = vand.u32 %v4471, 4294901760
  %5059 = vmatpush1.msra.mxu0 %v5058
  %5060 = vmatprep.subr.mxu0 0.0
  %v5061 = vand.u32 %v4472, 4294901760
  %5062 = vmatpush1.msra.mxu0 %v5061
  %5063 = vmatprep.subr.mxu0 0.0
  %v5064 = vand.u32 %v4473, 4294901760
  %5065 = vmatpush1.msra.mxu0 %v5064
  %5066 = vmatprep.subr.mxu0 0.0
  %v5067 = vand.u32 %v4474, 4294901760
  %5068 = vmatpush1.msra.mxu0 %v5067
  %5069 = vmatprep.subr.mxu0 0.0
  %v5070 = vand.u32 %v4475, 4294901760
  %5071 = vmatpush1.msra.mxu0 %v5070
  %5072 = vmatprep.subr.mxu0 0.0
  %v5073 = vand.u32 %v4476, 4294901760
  %5074 = vmatpush1.msra.mxu0 %v5073
  %5075 = vmatprep.subr.mxu0 0.0
  %v5076 = vand.u32 %v4477, 4294901760
  %5077 = vmatpush1.msra.mxu0 %v5076
  %5078 = vmatprep.subr.mxu0 0.0
  %v5079 = vand.u32 %v4478, 4294901760
  %5080 = vmatpush1.msra.mxu0 %v5079
  %5081 = vmatprep.subr.mxu0 0.0
  %5082 = vmatpush1.msra.mxu0 0.0
  %5083 = vmatprep.subr.mxu0 0.0
  %5084 = vmatpush1.msra.mxu0 0.0
  %5085 = vmatprep.subr.mxu0 0.0
  %5086 = vmatpush1.msra.mxu0 0.0
  %5087 = vmatprep.subr.mxu0 0.0
  %5088 = vmatpush1.msra.mxu0 0.0
  %5089 = vmatprep.subr.mxu0 0.0
  %5090 = vmatpush1.msra.mxu0 0.0
  %5091 = vmatprep.subr.mxu0 0.0
  %5092 = vmatpush1.msra.mxu0 0.0
  %5093 = vmatprep.subr.mxu0 0.0
  %5094 = vmatpush1.msra.mxu0 0.0
  %5095 = vmatprep.subr.mxu0 0.0
  %5096 = vmatpush1.msra.mxu0 0.0
  %5097 = vmatprep.subr.mxu0 0.0
  %5098 = vmatpush1.msra.mxu0 0.0
  %5099 = vmatprep.subr.mxu0 0.0
  %5100 = vmatpush1.msra.mxu0 0.0
  %5101 = vmatprep.subr.mxu0 0.0
  %5102 = vmatpush1.msra.mxu0 0.0
  %5103 = vmatprep.subr.mxu0 0.0
  %5104 = vmatpush1.msra.mxu0 0.0
  %5105 = vmatprep.subr.mxu0 0.0
  %5106 = vmatpush1.msra.mxu0 0.0
  %5107 = vmatprep.subr.mxu0 0.0
  %5108 = vmatpush1.msra.mxu0 0.0
  %5109 = vmatprep.subr.mxu0 0.0
  %5110 = vmatpush1.msra.mxu0 0.0
  %5111 = vmatprep.subr.mxu0 0.0
  %5112 = vmatpush1.msra.mxu0 0.0
  %5113 = vmatprep.mubr.f32.mxu0 0.0
  %v5114 = vand.u32 %v4444, 4294901760
  %5115 = vmatmul.mubr.f32.gmra.mrb[0].mxu0 %v5114
  %v5116 = vpop.f32.mrb[0].mxu0
  %v5117 = vadd.f32 %v5030, %v5116
  %v5118 = vpop.f32.mrb[0].mxu0
  %5119 = vdwg.mxu0
  %5120 = vmatprep.subr.mxu0 0.0
  %v5121 = vand.u32 %v4447, 4294901760
  %5122 = vmatpush1.msra.mxu0 %v5121
  %5123 = vmatprep.subr.mxu0 0.0
  %v5124 = vand.u32 %v4448, 4294901760
  %5125 = vmatpush1.msra.mxu0 %v5124
  %5126 = vmatprep.subr.mxu0 0.0
  %v5127 = vand.u32 %v4449, 4294901760
  %5128 = vmatpush1.msra.mxu0 %v5127
  %5129 = vmatprep.subr.mxu0 0.0
  %v5130 = vand.u32 %v4450, 4294901760
  %5131 = vmatpush1.msra.mxu0 %v5130
  %5132 = vmatprep.subr.mxu0 0.0
  %v5133 = vand.u32 %v4451, 4294901760
  %5134 = vmatpush1.msra.mxu0 %v5133
  %5135 = vmatprep.subr.mxu0 0.0
  %v5136 = vand.u32 %v4452, 4294901760
  %5137 = vmatpush1.msra.mxu0 %v5136
  %5138 = vmatprep.subr.mxu0 0.0
  %v5139 = vand.u32 %v4453, 4294901760
  %5140 = vmatpush1.msra.mxu0 %v5139
  %5141 = vmatprep.subr.mxu0 0.0
  %v5142 = vand.u32 %v4454, 4294901760
  %5143 = vmatpush1.msra.mxu0 %v5142
  %5144 = vmatprep.subr.mxu0 0.0
  %v5145 = vand.u32 %v4455, 4294901760
  %5146 = vmatpush1.msra.mxu0 %v5145
  %5147 = vmatprep.subr.mxu0 0.0
  %v5148 = vand.u32 %v4456, 4294901760
  %5149 = vmatpush1.msra.mxu0 %v5148
  %5150 = vmatprep.subr.mxu0 0.0
  %v5151 = vand.u32 %v4457, 4294901760
  %5152 = vmatpush1.msra.mxu0 %v5151
  %5153 = vmatprep.subr.mxu0 0.0
  %v5154 = vand.u32 %v4458, 4294901760
  %5155 = vmatpush1.msra.mxu0 %v5154
  %5156 = vmatprep.subr.mxu0 0.0
  %v5157 = vand.u32 %v4459, 4294901760
  %5158 = vmatpush1.msra.mxu0 %v5157
  %5159 = vmatprep.subr.mxu0 0.0
  %v5160 = vand.u32 %v4460, 4294901760
  %5161 = vmatpush1.msra.mxu0 %v5160
  %5162 = vmatprep.subr.mxu0 0.0
  %v5163 = vand.u32 %v4461, 4294901760
  %5164 = vmatpush1.msra.mxu0 %v5163
  %5165 = vmatprep.subr.mxu0 0.0
  %v5166 = vand.u32 %v4462, 4294901760
  %5167 = vmatpush1.msra.mxu0 %v5166
  %5168 = vmatprep.subr.mxu0 0.0
  %5169 = vmatpush1.msra.mxu0 0.0
  %5170 = vmatprep.subr.mxu0 0.0
  %5171 = vmatpush1.msra.mxu0 0.0
  %5172 = vmatprep.subr.mxu0 0.0
  %5173 = vmatpush1.msra.mxu0 0.0
  %5174 = vmatprep.subr.mxu0 0.0
  %5175 = vmatpush1.msra.mxu0 0.0
  %5176 = vmatprep.subr.mxu0 0.0
  %5177 = vmatpush1.msra.mxu0 0.0
  %5178 = vmatprep.subr.mxu0 0.0
  %5179 = vmatpush1.msra.mxu0 0.0
  %5180 = vmatprep.subr.mxu0 0.0
  %5181 = vmatpush1.msra.mxu0 0.0
  %5182 = vmatprep.subr.mxu0 0.0
  %5183 = vmatpush1.msra.mxu0 0.0
  %5184 = vmatprep.subr.mxu0 0.0
  %5185 = vmatpush1.msra.mxu0 0.0
  %5186 = vmatprep.subr.mxu0 0.0
  %5187 = vmatpush1.msra.mxu0 0.0
  %5188 = vmatprep.subr.mxu0 0.0
  %5189 = vmatpush1.msra.mxu0 0.0
  %5190 = vmatprep.subr.mxu0 0.0
  %5191 = vmatpush1.msra.mxu0 0.0
  %5192 = vmatprep.subr.mxu0 0.0
  %5193 = vmatpush1.msra.mxu0 0.0
  %5194 = vmatprep.subr.mxu0 0.0
  %5195 = vmatpush1.msra.mxu0 0.0
  %5196 = vmatprep.subr.mxu0 0.0
  %5197 = vmatpush1.msra.mxu0 0.0
  %5198 = vmatprep.subr.mxu0 0.0
  %5199 = vmatpush1.msra.mxu0 0.0
  %5200 = vmatprep.mubr.f32.mxu0 0.0
  %v5201 = vand.u32 %v4443, 4294901760
  %v5202 = vsub.f32 %v4443, %v5201
  %v5203 = vand.u32 %v5202, 4294901760
  %v5204 = vsub.f32 %v5202, %v5203
  %v5205 = vand.u32 %v5204, 4294901760
  %5206 = vmatmul.mubr.f32.gmra.mrb[0].mxu0 %v5205
  %v5207 = vpop.f32.mrb[0].mxu0
  %v5208 = vadd.f32 %v5117, %v5207
  %v5209 = vpop.f32.mrb[0].mxu0
  %5210 = vdwg.mxu0
  %5211 = vmatprep.subr.mxu0 0.0
  %v5212 = vand.u32 %v4447, 4294901760
  %v5213 = vsub.f32 %v4447, %v5212
  %v5214 = vand.u32 %v5213, 4294901760
  %v5215 = vsub.f32 %v5213, %v5214
  %v5216 = vand.u32 %v5215, 4294901760
  %5217 = vmatpush1.msra.mxu0 %v5216
  %5218 = vmatprep.subr.mxu0 0.0
  %v5219 = vand.u32 %v4448, 4294901760
  %v5220 = vsub.f32 %v4448, %v5219
  %v5221 = vand.u32 %v5220, 4294901760
  %v5222 = vsub.f32 %v5220, %v5221
  %v5223 = vand.u32 %v5222, 4294901760
  %5224 = vmatpush1.msra.mxu0 %v5223
  %5225 = vmatprep.subr.mxu0 0.0
  %v5226 = vand.u32 %v4449, 4294901760
  %v5227 = vsub.f32 %v4449, %v5226
  %v5228 = vand.u32 %v5227, 4294901760
  %v5229 = vsub.f32 %v5227, %v5228
  %v5230 = vand.u32 %v5229, 4294901760
  %5231 = vmatpush1.msra.mxu0 %v5230
  %5232 = vmatprep.subr.mxu0 0.0
  %v5233 = vand.u32 %v4450, 4294901760
  %v5234 = vsub.f32 %v4450, %v5233
  %v5235 = vand.u32 %v5234, 4294901760
  %v5236 = vsub.f32 %v5234, %v5235
  %v5237 = vand.u32 %v5236, 4294901760
  %5238 = vmatpush1.msra.mxu0 %v5237
  %5239 = vmatprep.subr.mxu0 0.0
  %v5240 = vand.u32 %v4451, 4294901760
  %v5241 = vsub.f32 %v4451, %v5240
  %v5242 = vand.u32 %v5241, 4294901760
  %v5243 = vsub.f32 %v5241, %v5242
  %v5244 = vand.u32 %v5243, 4294901760
  %5245 = vmatpush1.msra.mxu0 %v5244
  %5246 = vmatprep.subr.mxu0 0.0
  %v5247 = vand.u32 %v4452, 4294901760
  %v5248 = vsub.f32 %v4452, %v5247
  %v5249 = vand.u32 %v5248, 4294901760
  %v5250 = vsub.f32 %v5248, %v5249
  %v5251 = vand.u32 %v5250, 4294901760
  %5252 = vmatpush1.msra.mxu0 %v5251
  %5253 = vmatprep.subr.mxu0 0.0
  %v5254 = vand.u32 %v4453, 4294901760
  %v5255 = vsub.f32 %v4453, %v5254
  %v5256 = vand.u32 %v5255, 4294901760
  %v5257 = vsub.f32 %v5255, %v5256
  %v5258 = vand.u32 %v5257, 4294901760
  %5259 = vmatpush1.msra.mxu0 %v5258
  %5260 = vmatprep.subr.mxu0 0.0
  %v5261 = vand.u32 %v4454, 4294901760
  %v5262 = vsub.f32 %v4454, %v5261
  %v5263 = vand.u32 %v5262, 4294901760
  %v5264 = vsub.f32 %v5262, %v5263
  %v5265 = vand.u32 %v5264, 4294901760
  %5266 = vmatpush1.msra.mxu0 %v5265
  %5267 = vmatprep.subr.mxu0 0.0
  %v5268 = vand.u32 %v4455, 4294901760
  %v5269 = vsub.f32 %v4455, %v5268
  %v5270 = vand.u32 %v5269, 4294901760
  %v5271 = vsub.f32 %v5269, %v5270
  %v5272 = vand.u32 %v5271, 4294901760
  %5273 = vmatpush1.msra.mxu0 %v5272
  %5274 = vmatprep.subr.mxu0 0.0
  %v5275 = vand.u32 %v4456, 4294901760
  %v5276 = vsub.f32 %v4456, %v5275
  %v5277 = vand.u32 %v5276, 4294901760
  %v5278 = vsub.f32 %v5276, %v5277
  %v5279 = vand.u32 %v5278, 4294901760
  %5280 = vmatpush1.msra.mxu0 %v5279
  %5281 = vmatprep.subr.mxu0 0.0
  %v5282 = vand.u32 %v4457, 4294901760
  %v5283 = vsub.f32 %v4457, %v5282
  %v5284 = vand.u32 %v5283, 4294901760
  %v5285 = vsub.f32 %v5283, %v5284
  %v5286 = vand.u32 %v5285, 4294901760
  %5287 = vmatpush1.msra.mxu0 %v5286
  %5288 = vmatprep.subr.mxu0 0.0
  %v5289 = vand.u32 %v4458, 4294901760
  %v5290 = vsub.f32 %v4458, %v5289
  %v5291 = vand.u32 %v5290, 4294901760
  %v5292 = vsub.f32 %v5290, %v5291
  %v5293 = vand.u32 %v5292, 4294901760
  %5294 = vmatpush1.msra.mxu0 %v5293
  %5295 = vmatprep.subr.mxu0 0.0
  %v5296 = vand.u32 %v4459, 4294901760
  %v5297 = vsub.f32 %v4459, %v5296
  %v5298 = vand.u32 %v5297, 4294901760
  %v5299 = vsub.f32 %v5297, %v5298
  %v5300 = vand.u32 %v5299, 4294901760
  %5301 = vmatpush1.msra.mxu0 %v5300
  %5302 = vmatprep.subr.mxu0 0.0
  %v5303 = vand.u32 %v4460, 4294901760
  %v5304 = vsub.f32 %v4460, %v5303
  %v5305 = vand.u32 %v5304, 4294901760
  %v5306 = vsub.f32 %v5304, %v5305
  %v5307 = vand.u32 %v5306, 4294901760
  %5308 = vmatpush1.msra.mxu0 %v5307
  %5309 = vmatprep.subr.mxu0 0.0
  %v5310 = vand.u32 %v4461, 4294901760
  %v5311 = vsub.f32 %v4461, %v5310
  %v5312 = vand.u32 %v5311, 4294901760
  %v5313 = vsub.f32 %v5311, %v5312
  %v5314 = vand.u32 %v5313, 4294901760
  %5315 = vmatpush1.msra.mxu0 %v5314
  %5316 = vmatprep.subr.mxu0 0.0
  %v5317 = vand.u32 %v4462, 4294901760
  %v5318 = vsub.f32 %v4462, %v5317
  %v5319 = vand.u32 %v5318, 4294901760
  %v5320 = vsub.f32 %v5318, %v5319
  %v5321 = vand.u32 %v5320, 4294901760
  %5322 = vmatpush1.msra.mxu0 %v5321
  %5323 = vmatprep.subr.mxu0 0.0
  %5324 = vmatpush1.msra.mxu0 0.0
  %5325 = vmatprep.subr.mxu0 0.0
  %5326 = vmatpush1.msra.mxu0 0.0
  %5327 = vmatprep.subr.mxu0 0.0
  %5328 = vmatpush1.msra.mxu0 0.0
  %5329 = vmatprep.subr.mxu0 0.0
  %5330 = vmatpush1.msra.mxu0 0.0
  %5331 = vmatprep.subr.mxu0 0.0
  %5332 = vmatpush1.msra.mxu0 0.0
  %5333 = vmatprep.subr.mxu0 0.0
  %5334 = vmatpush1.msra.mxu0 0.0
  %5335 = vmatprep.subr.mxu0 0.0
  %5336 = vmatpush1.msra.mxu0 0.0
  %5337 = vmatprep.subr.mxu0 0.0
  %5338 = vmatpush1.msra.mxu0 0.0
  %5339 = vmatprep.subr.mxu0 0.0
  %5340 = vmatpush1.msra.mxu0 0.0
  %5341 = vmatprep.subr.mxu0 0.0
  %5342 = vmatpush1.msra.mxu0 0.0
  %5343 = vmatprep.subr.mxu0 0.0
  %5344 = vmatpush1.msra.mxu0 0.0
  %5345 = vmatprep.subr.mxu0 0.0
  %5346 = vmatpush1.msra.mxu0 0.0
  %5347 = vmatprep.subr.mxu0 0.0
  %5348 = vmatpush1.msra.mxu0 0.0
  %5349 = vmatprep.subr.mxu0 0.0
  %5350 = vmatpush1.msra.mxu0 0.0
  %5351 = vmatprep.subr.mxu0 0.0
  %5352 = vmatpush1.msra.mxu0 0.0
  %5353 = vmatprep.subr.mxu0 0.0
  %5354 = vmatpush1.msra.mxu0 0.0
  %5355 = vmatprep.mubr.f32.mxu0 0.0
  %v5356 = vand.u32 %v4443, 4294901760
  %5357 = vmatmul.mubr.f32.gmra.mrb[0].mxu0 %v5356
  %v5358 = vpop.f32.mrb[0].mxu0
  %v5359 = vadd.f32 %v5208, %v5358
  %v5360 = vpop.f32.mrb[0].mxu0
  %5361 = vdwg.mxu0
  %5362 = vmatprep.subr.mxu0 0.0
  %v5363 = vand.u32 %v4447, 4294901760
  %v5364 = vsub.f32 %v4447, %v5363
  %5365 = vmatpush1.msra.mxu0 %v5364
  %5366 = vmatprep.subr.mxu0 0.0
  %v5367 = vand.u32 %v4448, 4294901760
  %v5368 = vsub.f32 %v4448, %v5367
  %5369 = vmatpush1.msra.mxu0 %v5368
  %5370 = vmatprep.subr.mxu0 0.0
  %v5371 = vand.u32 %v4449, 4294901760
  %v5372 = vsub.f32 %v4449, %v5371
  %5373 = vmatpush1.msra.mxu0 %v5372
  %5374 = vmatprep.subr.mxu0 0.0
  %v5375 = vand.u32 %v4450, 4294901760
  %v5376 = vsub.f32 %v4450, %v5375
  %5377 = vmatpush1.msra.mxu0 %v5376
  %5378 = vmatprep.subr.mxu0 0.0
  %v5379 = vand.u32 %v4451, 4294901760
  %v5380 = vsub.f32 %v4451, %v5379
  %5381 = vmatpush1.msra.mxu0 %v5380
  %5382 = vmatprep.subr.mxu0 0.0
  %v5383 = vand.u32 %v4452, 4294901760
  %v5384 = vsub.f32 %v4452, %v5383
  %5385 = vmatpush1.msra.mxu0 %v5384
  %5386 = vmatprep.subr.mxu0 0.0
  %v5387 = vand.u32 %v4453, 4294901760
  %v5388 = vsub.f32 %v4453, %v5387
  %5389 = vmatpush1.msra.mxu0 %v5388
  %5390 = vmatprep.subr.mxu0 0.0
  %v5391 = vand.u32 %v4454, 4294901760
  %v5392 = vsub.f32 %v4454, %v5391
  %5393 = vmatpush1.msra.mxu0 %v5392
  %5394 = vmatprep.subr.mxu0 0.0
  %v5395 = vand.u32 %v4455, 4294901760
  %v5396 = vsub.f32 %v4455, %v5395
  %5397 = vmatpush1.msra.mxu0 %v5396
  %5398 = vmatprep.subr.mxu0 0.0
  %v5399 = vand.u32 %v4456, 4294901760
  %v5400 = vsub.f32 %v4456, %v5399
  %5401 = vmatpush1.msra.mxu0 %v5400
  %5402 = vmatprep.subr.mxu0 0.0
  %v5403 = vand.u32 %v4457, 4294901760
  %v5404 = vsub.f32 %v4457, %v5403
  %5405 = vmatpush1.msra.mxu0 %v5404
  %5406 = vmatprep.subr.mxu0 0.0
  %v5407 = vand.u32 %v4458, 4294901760
  %v5408 = vsub.f32 %v4458, %v5407
  %5409 = vmatpush1.msra.mxu0 %v5408
  %5410 = vmatprep.subr.mxu0 0.0
  %v5411 = vand.u32 %v4459, 4294901760
  %v5412 = vsub.f32 %v4459, %v5411
  %5413 = vmatpush1.msra.mxu0 %v5412
  %5414 = vmatprep.subr.mxu0 0.0
  %v5415 = vand.u32 %v4460, 4294901760
  %v5416 = vsub.f32 %v4460, %v5415
  %5417 = vmatpush1.msra.mxu0 %v5416
  %5418 = vmatprep.subr.mxu0 0.0
  %v5419 = vand.u32 %v4461, 4294901760
  %v5420 = vsub.f32 %v4461, %v5419
  %5421 = vmatpush1.msra.mxu0 %v5420
  %5422 = vmatprep.subr.mxu0 0.0
  %v5423 = vand.u32 %v4462, 4294901760
  %v5424 = vsub.f32 %v4462, %v5423
  %5425 = vmatpush1.msra.mxu0 %v5424
  %5426 = vmatprep.subr.mxu0 0.0
  %5427 = vmatpush1.msra.mxu0 0.0
  %5428 = vmatprep.subr.mxu0 0.0
  %5429 = vmatpush1.msra.mxu0 0.0
  %5430 = vmatprep.subr.mxu0 0.0
  %5431 = vmatpush1.msra.mxu0 0.0
  %5432 = vmatprep.subr.mxu0 0.0
  %5433 = vmatpush1.msra.mxu0 0.0
  %5434 = vmatprep.subr.mxu0 0.0
  %5435 = vmatpush1.msra.mxu0 0.0
  %5436 = vmatprep.subr.mxu0 0.0
  %5437 = vmatpush1.msra.mxu0 0.0
  %5438 = vmatprep.subr.mxu0 0.0
  %5439 = vmatpush1.msra.mxu0 0.0
  %5440 = vmatprep.subr.mxu0 0.0
  %5441 = vmatpush1.msra.mxu0 0.0
  %5442 = vmatprep.subr.mxu0 0.0
  %5443 = vmatpush1.msra.mxu0 0.0
  %5444 = vmatprep.subr.mxu0 0.0
  %5445 = vmatpush1.msra.mxu0 0.0
  %5446 = vmatprep.subr.mxu0 0.0
  %5447 = vmatpush1.msra.mxu0 0.0
  %5448 = vmatprep.subr.mxu0 0.0
  %5449 = vmatpush1.msra.mxu0 0.0
  %5450 = vmatprep.subr.mxu0 0.0
  %5451 = vmatpush1.msra.mxu0 0.0
  %5452 = vmatprep.subr.mxu0 0.0
  %5453 = vmatpush1.msra.mxu0 0.0
  %5454 = vmatprep.subr.mxu0 0.0
  %5455 = vmatpush1.msra.mxu0 0.0
  %5456 = vmatprep.subr.mxu0 0.0
  %5457 = vmatpush1.msra.mxu0 0.0
  %5458 = vmatprep.mubr.f32.mxu0 0.0
  %v5459 = vand.u32 %v4443, 4294901760
  %v5460 = vsub.f32 %v4443, %v5459
  %5461 = vmatmul.mubr.f32.gmra.mrb[0].mxu0 %v5460
  %v5462 = vpop.f32.mrb[0].mxu0
  %v5463 = vadd.f32 %v5359, %v5462
  %v5464 = vpop.f32.mrb[0].mxu0
  %5465 = vdwg.mxu0
  %5466 = vmatprep.subr.mxu0 0.0
  %v5467 = vand.u32 %v4447, 4294901760
  %5468 = vmatpush1.msra.mxu0 %v5467
  %5469 = vmatprep.subr.mxu0 0.0
  %v5470 = vand.u32 %v4448, 4294901760
  %5471 = vmatpush1.msra.mxu0 %v5470
  %5472 = vmatprep.subr.mxu0 0.0
  %v5473 = vand.u32 %v4449, 4294901760
  %5474 = vmatpush1.msra.mxu0 %v5473
  %5475 = vmatprep.subr.mxu0 0.0
  %v5476 = vand.u32 %v4450, 4294901760
  %5477 = vmatpush1.msra.mxu0 %v5476
  %5478 = vmatprep.subr.mxu0 0.0
  %v5479 = vand.u32 %v4451, 4294901760
  %5480 = vmatpush1.msra.mxu0 %v5479
  %5481 = vmatprep.subr.mxu0 0.0
  %v5482 = vand.u32 %v4452, 4294901760
  %5483 = vmatpush1.msra.mxu0 %v5482
  %5484 = vmatprep.subr.mxu0 0.0
  %v5485 = vand.u32 %v4453, 4294901760
  %5486 = vmatpush1.msra.mxu0 %v5485
  %5487 = vmatprep.subr.mxu0 0.0
  %v5488 = vand.u32 %v4454, 4294901760
  %5489 = vmatpush1.msra.mxu0 %v5488
  %5490 = vmatprep.subr.mxu0 0.0
  %v5491 = vand.u32 %v4455, 4294901760
  %5492 = vmatpush1.msra.mxu0 %v5491
  %5493 = vmatprep.subr.mxu0 0.0
  %v5494 = vand.u32 %v4456, 4294901760
  %5495 = vmatpush1.msra.mxu0 %v5494
  %5496 = vmatprep.subr.mxu0 0.0
  %v5497 = vand.u32 %v4457, 4294901760
  %5498 = vmatpush1.msra.mxu0 %v5497
  %5499 = vmatprep.subr.mxu0 0.0
  %v5500 = vand.u32 %v4458, 4294901760
  %5501 = vmatpush1.msra.mxu0 %v5500
  %5502 = vmatprep.subr.mxu0 0.0
  %v5503 = vand.u32 %v4459, 4294901760
  %5504 = vmatpush1.msra.mxu0 %v5503
  %5505 = vmatprep.subr.mxu0 0.0
  %v5506 = vand.u32 %v4460, 4294901760
  %5507 = vmatpush1.msra.mxu0 %v5506
  %5508 = vmatprep.subr.mxu0 0.0
  %v5509 = vand.u32 %v4461, 4294901760
  %5510 = vmatpush1.msra.mxu0 %v5509
  %5511 = vmatprep.subr.mxu0 0.0
  %v5512 = vand.u32 %v4462, 4294901760
  %5513 = vmatpush1.msra.mxu0 %v5512
  %5514 = vmatprep.subr.mxu0 0.0
  %5515 = vmatpush1.msra.mxu0 0.0
  %5516 = vmatprep.subr.mxu0 0.0
  %5517 = vmatpush1.msra.mxu0 0.0
  %5518 = vmatprep.subr.mxu0 0.0
  %5519 = vmatpush1.msra.mxu0 0.0
  %5520 = vmatprep.subr.mxu0 0.0
  %5521 = vmatpush1.msra.mxu0 0.0
  %5522 = vmatprep.subr.mxu0 0.0
  %5523 = vmatpush1.msra.mxu0 0.0
  %5524 = vmatprep.subr.mxu0 0.0
  %5525 = vmatpush1.msra.mxu0 0.0
  %5526 = vmatprep.subr.mxu0 0.0
  %5527 = vmatpush1.msra.mxu0 0.0
  %5528 = vmatprep.subr.mxu0 0.0
  %5529 = vmatpush1.msra.mxu0 0.0
  %5530 = vmatprep.subr.mxu0 0.0
  %5531 = vmatpush1.msra.mxu0 0.0
  %5532 = vmatprep.subr.mxu0 0.0
  %5533 = vmatpush1.msra.mxu0 0.0
  %5534 = vmatprep.subr.mxu0 0.0
  %5535 = vmatpush1.msra.mxu0 0.0
  %5536 = vmatprep.subr.mxu0 0.0
  %5537 = vmatpush1.msra.mxu0 0.0
  %5538 = vmatprep.subr.mxu0 0.0
  %5539 = vmatpush1.msra.mxu0 0.0
  %5540 = vmatprep.subr.mxu0 0.0
  %5541 = vmatpush1.msra.mxu0 0.0
  %5542 = vmatprep.subr.mxu0 0.0
  %5543 = vmatpush1.msra.mxu0 0.0
  %5544 = vmatprep.subr.mxu0 0.0
  %5545 = vmatpush1.msra.mxu0 0.0
  %5546 = vmatprep.mubr.f32.mxu0 0.0
  %v5547 = vand.u32 %v4443, 4294901760
  %v5548 = vsub.f32 %v4443, %v5547
  %v5549 = vand.u32 %v5548, 4294901760
  %5550 = vmatmul.mubr.f32.gmra.mrb[0].mxu0 %v5549
  %v5551 = vpop.f32.mrb[0].mxu0
  %v5552 = vadd.f32 %v5463, %v5551
  %v5553 = vpop.f32.mrb[0].mxu0
  %5554 = vdwg.mxu0
  %5555 = vmatprep.subr.mxu0 0.0
  %v5556 = vand.u32 %v4447, 4294901760
  %v5557 = vsub.f32 %v4447, %v5556
  %v5558 = vand.u32 %v5557, 4294901760
  %5559 = vmatpush1.msra.mxu0 %v5558
  %5560 = vmatprep.subr.mxu0 0.0
  %v5561 = vand.u32 %v4448, 4294901760
  %v5562 = vsub.f32 %v4448, %v5561
  %v5563 = vand.u32 %v5562, 4294901760
  %5564 = vmatpush1.msra.mxu0 %v5563
  %5565 = vmatprep.subr.mxu0 0.0
  %v5566 = vand.u32 %v4449, 4294901760
  %v5567 = vsub.f32 %v4449, %v5566
  %v5568 = vand.u32 %v5567, 4294901760
  %5569 = vmatpush1.msra.mxu0 %v5568
  %5570 = vmatprep.subr.mxu0 0.0
  %v5571 = vand.u32 %v4450, 4294901760
  %v5572 = vsub.f32 %v4450, %v5571
  %v5573 = vand.u32 %v5572, 4294901760
  %5574 = vmatpush1.msra.mxu0 %v5573
  %5575 = vmatprep.subr.mxu0 0.0
  %v5576 = vand.u32 %v4451, 4294901760
  %v5577 = vsub.f32 %v4451, %v5576
  %v5578 = vand.u32 %v5577, 4294901760
  %5579 = vmatpush1.msra.mxu0 %v5578
  %5580 = vmatprep.subr.mxu0 0.0
  %v5581 = vand.u32 %v4452, 4294901760
  %v5582 = vsub.f32 %v4452, %v5581
  %v5583 = vand.u32 %v5582, 4294901760
  %5584 = vmatpush1.msra.mxu0 %v5583
  %5585 = vmatprep.subr.mxu0 0.0
  %v5586 = vand.u32 %v4453, 4294901760
  %v5587 = vsub.f32 %v4453, %v5586
  %v5588 = vand.u32 %v5587, 4294901760
  %5589 = vmatpush1.msra.mxu0 %v5588
  %5590 = vmatprep.subr.mxu0 0.0
  %v5591 = vand.u32 %v4454, 4294901760
  %v5592 = vsub.f32 %v4454, %v5591
  %v5593 = vand.u32 %v5592, 4294901760
  %5594 = vmatpush1.msra.mxu0 %v5593
  %5595 = vmatprep.subr.mxu0 0.0
  %v5596 = vand.u32 %v4455, 4294901760
  %v5597 = vsub.f32 %v4455, %v5596
  %v5598 = vand.u32 %v5597, 4294901760
  %5599 = vmatpush1.msra.mxu0 %v5598
  %5600 = vmatprep.subr.mxu0 0.0
  %v5601 = vand.u32 %v4456, 4294901760
  %v5602 = vsub.f32 %v4456, %v5601
  %v5603 = vand.u32 %v5602, 4294901760
  %5604 = vmatpush1.msra.mxu0 %v5603
  %5605 = vmatprep.subr.mxu0 0.0
  %v5606 = vand.u32 %v4457, 4294901760
  %v5607 = vsub.f32 %v4457, %v5606
  %v5608 = vand.u32 %v5607, 4294901760
  %5609 = vmatpush1.msra.mxu0 %v5608
  %5610 = vmatprep.subr.mxu0 0.0
  %v5611 = vand.u32 %v4458, 4294901760
  %v5612 = vsub.f32 %v4458, %v5611
  %v5613 = vand.u32 %v5612, 4294901760
  %5614 = vmatpush1.msra.mxu0 %v5613
  %5615 = vmatprep.subr.mxu0 0.0
  %v5616 = vand.u32 %v4459, 4294901760
  %v5617 = vsub.f32 %v4459, %v5616
  %v5618 = vand.u32 %v5617, 4294901760
  %5619 = vmatpush1.msra.mxu0 %v5618
  %5620 = vmatprep.subr.mxu0 0.0
  %v5621 = vand.u32 %v4460, 4294901760
  %v5622 = vsub.f32 %v4460, %v5621
  %v5623 = vand.u32 %v5622, 4294901760
  %5624 = vmatpush1.msra.mxu0 %v5623
  %5625 = vmatprep.subr.mxu0 0.0
  %v5626 = vand.u32 %v4461, 4294901760
  %v5627 = vsub.f32 %v4461, %v5626
  %v5628 = vand.u32 %v5627, 4294901760
  %5629 = vmatpush1.msra.mxu0 %v5628
  %5630 = vmatprep.subr.mxu0 0.0
  %v5631 = vand.u32 %v4462, 4294901760
  %v5632 = vsub.f32 %v4462, %v5631
  %v5633 = vand.u32 %v5632, 4294901760
  %5634 = vmatpush1.msra.mxu0 %v5633
  %5635 = vmatprep.subr.mxu0 0.0
  %5636 = vmatpush1.msra.mxu0 0.0
  %5637 = vmatprep.subr.mxu0 0.0
  %5638 = vmatpush1.msra.mxu0 0.0
  %5639 = vmatprep.subr.mxu0 0.0
  %5640 = vmatpush1.msra.mxu0 0.0
  %5641 = vmatprep.subr.mxu0 0.0
  %5642 = vmatpush1.msra.mxu0 0.0
  %5643 = vmatprep.subr.mxu0 0.0
  %5644 = vmatpush1.msra.mxu0 0.0
  %5645 = vmatprep.subr.mxu0 0.0
  %5646 = vmatpush1.msra.mxu0 0.0
  %5647 = vmatprep.subr.mxu0 0.0
  %5648 = vmatpush1.msra.mxu0 0.0
  %5649 = vmatprep.subr.mxu0 0.0
  %5650 = vmatpush1.msra.mxu0 0.0
  %5651 = vmatprep.subr.mxu0 0.0
  %5652 = vmatpush1.msra.mxu0 0.0
  %5653 = vmatprep.subr.mxu0 0.0
  %5654 = vmatpush1.msra.mxu0 0.0
  %5655 = vmatprep.subr.mxu0 0.0
  %5656 = vmatpush1.msra.mxu0 0.0
  %5657 = vmatprep.subr.mxu0 0.0
  %5658 = vmatpush1.msra.mxu0 0.0
  %5659 = vmatprep.subr.mxu0 0.0
  %5660 = vmatpush1.msra.mxu0 0.0
  %5661 = vmatprep.subr.mxu0 0.0
  %5662 = vmatpush1.msra.mxu0 0.0
  %5663 = vmatprep.subr.mxu0 0.0
  %5664 = vmatpush1.msra.mxu0 0.0
  %5665 = vmatprep.subr.mxu0 0.0
  %5666 = vmatpush1.msra.mxu0 0.0
  %5667 = vmatprep.mubr.f32.mxu0 0.0
  %v5668 = vand.u32 %v4443, 4294901760
  %5669 = vmatmul.mubr.f32.gmra.mrb[0].mxu0 %v5668
  %v5670 = vpop.f32.mrb[0].mxu0
  %v5671 = vadd.f32 %v5552, %v5670
  %v5672 = vpop.f32.mrb[0].mxu0
  %5673 = vdwg.mxu0
  %5674 = vmatprep.subr.mxu0 0.0
  %v5675 = vand.u32 %v4447, 4294901760
  %5676 = vmatpush1.msra.mxu0 %v5675
  %5677 = vmatprep.subr.mxu0 0.0
  %v5678 = vand.u32 %v4448, 4294901760
  %5679 = vmatpush1.msra.mxu0 %v5678
  %5680 = vmatprep.subr.mxu0 0.0
  %v5681 = vand.u32 %v4449, 4294901760
  %5682 = vmatpush1.msra.mxu0 %v5681
  %5683 = vmatprep.subr.mxu0 0.0
  %v5684 = vand.u32 %v4450, 4294901760
  %5685 = vmatpush1.msra.mxu0 %v5684
  %5686 = vmatprep.subr.mxu0 0.0
  %v5687 = vand.u32 %v4451, 4294901760
  %5688 = vmatpush1.msra.mxu0 %v5687
  %5689 = vmatprep.subr.mxu0 0.0
  %v5690 = vand.u32 %v4452, 4294901760
  %5691 = vmatpush1.msra.mxu0 %v5690
  %5692 = vmatprep.subr.mxu0 0.0
  %v5693 = vand.u32 %v4453, 4294901760
  %5694 = vmatpush1.msra.mxu0 %v5693
  %5695 = vmatprep.subr.mxu0 0.0
  %v5696 = vand.u32 %v4454, 4294901760
  %5697 = vmatpush1.msra.mxu0 %v5696
  %5698 = vmatprep.subr.mxu0 0.0
  %v5699 = vand.u32 %v4455, 4294901760
  %5700 = vmatpush1.msra.mxu0 %v5699
  %5701 = vmatprep.subr.mxu0 0.0
  %v5702 = vand.u32 %v4456, 4294901760
  %5703 = vmatpush1.msra.mxu0 %v5702
  %5704 = vmatprep.subr.mxu0 0.0
  %v5705 = vand.u32 %v4457, 4294901760
  %5706 = vmatpush1.msra.mxu0 %v5705
  %5707 = vmatprep.subr.mxu0 0.0
  %v5708 = vand.u32 %v4458, 4294901760
  %5709 = vmatpush1.msra.mxu0 %v5708
  %5710 = vmatprep.subr.mxu0 0.0
  %v5711 = vand.u32 %v4459, 4294901760
  %5712 = vmatpush1.msra.mxu0 %v5711
  %5713 = vmatprep.subr.mxu0 0.0
  %v5714 = vand.u32 %v4460, 4294901760
  %5715 = vmatpush1.msra.mxu0 %v5714
  %5716 = vmatprep.subr.mxu0 0.0
  %v5717 = vand.u32 %v4461, 4294901760
  %5718 = vmatpush1.msra.mxu0 %v5717
  %5719 = vmatprep.subr.mxu0 0.0
  %v5720 = vand.u32 %v4462, 4294901760
  %5721 = vmatpush1.msra.mxu0 %v5720
  %5722 = vmatprep.subr.mxu0 0.0
  %5723 = vmatpush1.msra.mxu0 0.0
  %5724 = vmatprep.subr.mxu0 0.0
  %5725 = vmatpush1.msra.mxu0 0.0
  %5726 = vmatprep.subr.mxu0 0.0
  %5727 = vmatpush1.msra.mxu0 0.0
  %5728 = vmatprep.subr.mxu0 0.0
  %5729 = vmatpush1.msra.mxu0 0.0
  %5730 = vmatprep.subr.mxu0 0.0
  %5731 = vmatpush1.msra.mxu0 0.0
  %5732 = vmatprep.subr.mxu0 0.0
  %5733 = vmatpush1.msra.mxu0 0.0
  %5734 = vmatprep.subr.mxu0 0.0
  %5735 = vmatpush1.msra.mxu0 0.0
  %5736 = vmatprep.subr.mxu0 0.0
  %5737 = vmatpush1.msra.mxu0 0.0
  %5738 = vmatprep.subr.mxu0 0.0
  %5739 = vmatpush1.msra.mxu0 0.0
  %5740 = vmatprep.subr.mxu0 0.0
  %5741 = vmatpush1.msra.mxu0 0.0
  %5742 = vmatprep.subr.mxu0 0.0
  %5743 = vmatpush1.msra.mxu0 0.0
  %5744 = vmatprep.subr.mxu0 0.0
  %5745 = vmatpush1.msra.mxu0 0.0
  %5746 = vmatprep.subr.mxu0 0.0
  %5747 = vmatpush1.msra.mxu0 0.0
  %5748 = vmatprep.subr.mxu0 0.0
  %5749 = vmatpush1.msra.mxu0 0.0
  %5750 = vmatprep.subr.mxu0 0.0
  %5751 = vmatpush1.msra.mxu0 0.0
  %5752 = vmatprep.subr.mxu0 0.0
  %5753 = vmatpush1.msra.mxu0 0.0
  %5754 = vmatprep.mubr.f32.mxu0 0.0
  %v5755 = vand.u32 %v4443, 4294901760
  %5756 = vmatmul.mubr.f32.gmra.mrb[0].mxu0 %v5755
  %v5757 = vpop.f32.mrb[0].mxu0
  %v5758 = vadd.f32 %v5671, %v5757
  %v5759 = vpop.f32.mrb[0].mxu0
  %5760 = vdwg.mxu0
  %v5761 = vld [vmem:[%s1 + $0x1b8] sm:$0xff]
  %v5762 = vld [vmem:[%s1 + $0x1c0] sm:$0xff]
  %v5763 = vld [vmem:[%s1 + $0x1c8] sm:$0xff]
  %v5764 = vld [vmem:[%s1 + $0x1d0] sm:$0xff]
  %v5765 = vld [vmem:[%s1 + $0x1d8] sm:$0xff]
  %v5766 = vld [vmem:[%s1 + $0x1e0] sm:$0xff]
  %v5767 = vld [vmem:[%s1 + $0x1e8] sm:$0xff]
  %v5768 = vld [vmem:[%s1 + $0x1f0] sm:$0xff]
  %v5769 = vld [vmem:[%s1 + $0x1f8] sm:$0xff]
  %v5770 = vld [vmem:[%s1 + $0x200] sm:$0xff]
  %v5771 = vld [vmem:[%s1 + $0x208] sm:$0xff]
  %v5772 = vld [vmem:[%s1 + $0x210] sm:$0xff]
  %v5773 = vld [vmem:[%s1 + $0x218] sm:$0xff]
  %v5774 = vld [vmem:[%s1 + $0x220] sm:$0xff]
  %v5775 = vld [vmem:[%s1 + $0x228] sm:$0xff]
  %v5776 = vld [vmem:[%s1 + $0x230] sm:$0xff]
  %5777 = vmatprep.subr.mxu0 0.0
  %v5778 = vand.u32 %v5761, 4294901760
  %5779 = vmatpush1.msra.mxu0 %v5778
  %5780 = vmatprep.subr.mxu0 0.0
  %v5781 = vand.u32 %v5762, 4294901760
  %5782 = vmatpush1.msra.mxu0 %v5781
  %5783 = vmatprep.subr.mxu0 0.0
  %v5784 = vand.u32 %v5763, 4294901760
  %5785 = vmatpush1.msra.mxu0 %v5784
  %5786 = vmatprep.subr.mxu0 0.0
  %v5787 = vand.u32 %v5764, 4294901760
  %5788 = vmatpush1.msra.mxu0 %v5787
  %5789 = vmatprep.subr.mxu0 0.0
  %v5790 = vand.u32 %v5765, 4294901760
  %5791 = vmatpush1.msra.mxu0 %v5790
  %5792 = vmatprep.subr.mxu0 0.0
  %v5793 = vand.u32 %v5766, 4294901760
  %5794 = vmatpush1.msra.mxu0 %v5793
  %5795 = vmatprep.subr.mxu0 0.0
  %v5796 = vand.u32 %v5767, 4294901760
  %5797 = vmatpush1.msra.mxu0 %v5796
  %5798 = vmatprep.subr.mxu0 0.0
  %v5799 = vand.u32 %v5768, 4294901760
  %5800 = vmatpush1.msra.mxu0 %v5799
  %5801 = vmatprep.subr.mxu0 0.0
  %v5802 = vand.u32 %v5769, 4294901760
  %5803 = vmatpush1.msra.mxu0 %v5802
  %5804 = vmatprep.subr.mxu0 0.0
  %v5805 = vand.u32 %v5770, 4294901760
  %5806 = vmatpush1.msra.mxu0 %v5805
  %5807 = vmatprep.subr.mxu0 0.0
  %v5808 = vand.u32 %v5771, 4294901760
  %5809 = vmatpush1.msra.mxu0 %v5808
  %5810 = vmatprep.subr.mxu0 0.0
  %v5811 = vand.u32 %v5772, 4294901760
  %5812 = vmatpush1.msra.mxu0 %v5811
  %5813 = vmatprep.subr.mxu0 0.0
  %v5814 = vand.u32 %v5773, 4294901760
  %5815 = vmatpush1.msra.mxu0 %v5814
  %5816 = vmatprep.subr.mxu0 0.0
  %v5817 = vand.u32 %v5774, 4294901760
  %5818 = vmatpush1.msra.mxu0 %v5817
  %5819 = vmatprep.subr.mxu0 0.0
  %v5820 = vand.u32 %v5775, 4294901760
  %5821 = vmatpush1.msra.mxu0 %v5820
  %5822 = vmatprep.subr.mxu0 0.0
  %v5823 = vand.u32 %v5776, 4294901760
  %5824 = vmatpush1.msra.mxu0 %v5823
  %5825 = vmatprep.subr.mxu0 0.0
  %5826 = vmatpush1.msra.mxu0 0.0
  %5827 = vmatprep.subr.mxu0 0.0
  %5828 = vmatpush1.msra.mxu0 0.0
  %5829 = vmatprep.subr.mxu0 0.0
  %5830 = vmatpush1.msra.mxu0 0.0
  %5831 = vmatprep.subr.mxu0 0.0
  %5832 = vmatpush1.msra.mxu0 0.0
  %5833 = vmatprep.subr.mxu0 0.0
  %5834 = vmatpush1.msra.mxu0 0.0
  %5835 = vmatprep.subr.mxu0 0.0
  %5836 = vmatpush1.msra.mxu0 0.0
  %5837 = vmatprep.subr.mxu0 0.0
  %5838 = vmatpush1.msra.mxu0 0.0
  %5839 = vmatprep.subr.mxu0 0.0
  %5840 = vmatpush1.msra.mxu0 0.0
  %5841 = vmatprep.subr.mxu0 0.0
  %5842 = vmatpush1.msra.mxu0 0.0
  %5843 = vmatprep.subr.mxu0 0.0
  %5844 = vmatpush1.msra.mxu0 0.0
  %5845 = vmatprep.subr.mxu0 0.0
  %5846 = vmatpush1.msra.mxu0 0.0
  %5847 = vmatprep.subr.mxu0 0.0
  %5848 = vmatpush1.msra.mxu0 0.0
  %5849 = vmatprep.subr.mxu0 0.0
  %5850 = vmatpush1.msra.mxu0 0.0
  %5851 = vmatprep.subr.mxu0 0.0
  %5852 = vmatpush1.msra.mxu0 0.0
  %5853 = vmatprep.subr.mxu0 0.0
  %5854 = vmatpush1.msra.mxu0 0.0
  %5855 = vmatprep.subr.mxu0 0.0
  %5856 = vmatpush1.msra.mxu0 0.0
  %5857 = vmatprep.mubr.f32.mxu0 0.0
  %v5858 = vand.u32 %v4445, 4294901760
  %v5859 = vsub.f32 %v4445, %v5858
  %v5860 = vand.u32 %v5859, 4294901760
  %v5861 = vsub.f32 %v5859, %v5860
  %v5862 = vand.u32 %v5861, 4294901760
  %5863 = vmatmul.mubr.f32.gmra.mrb[0].mxu0 %v5862
  %v5864 = vpop.f32.mrb[0].mxu0
  %v5865 = vadd.f32 0.0, %v5864
  %v5866 = vpop.f32.mrb[0].mxu0
  %5867 = vdwg.mxu0
  %5868 = vmatprep.subr.mxu0 0.0
  %v5869 = vand.u32 %v5761, 4294901760
  %v5870 = vsub.f32 %v5761, %v5869
  %v5871 = vand.u32 %v5870, 4294901760
  %v5872 = vsub.f32 %v5870, %v5871
  %v5873 = vand.u32 %v5872, 4294901760
  %5874 = vmatpush1.msra.mxu0 %v5873
  %5875 = vmatprep.subr.mxu0 0.0
  %v5876 = vand.u32 %v5762, 4294901760
  %v5877 = vsub.f32 %v5762, %v5876
  %v5878 = vand.u32 %v5877, 4294901760
  %v5879 = vsub.f32 %v5877, %v5878
  %v5880 = vand.u32 %v5879, 4294901760
  %5881 = vmatpush1.msra.mxu0 %v5880
  %5882 = vmatprep.subr.mxu0 0.0
  %v5883 = vand.u32 %v5763, 4294901760
  %v5884 = vsub.f32 %v5763, %v5883
  %v5885 = vand.u32 %v5884, 4294901760
  %v5886 = vsub.f32 %v5884, %v5885
  %v5887 = vand.u32 %v5886, 4294901760
  %5888 = vmatpush1.msra.mxu0 %v5887
  %5889 = vmatprep.subr.mxu0 0.0
  %v5890 = vand.u32 %v5764, 4294901760
  %v5891 = vsub.f32 %v5764, %v5890
  %v5892 = vand.u32 %v5891, 4294901760
  %v5893 = vsub.f32 %v5891, %v5892
  %v5894 = vand.u32 %v5893, 4294901760
  %5895 = vmatpush1.msra.mxu0 %v5894
  %5896 = vmatprep.subr.mxu0 0.0
  %v5897 = vand.u32 %v5765, 4294901760
  %v5898 = vsub.f32 %v5765, %v5897
  %v5899 = vand.u32 %v5898, 4294901760
  %v5900 = vsub.f32 %v5898, %v5899
  %v5901 = vand.u32 %v5900, 4294901760
  %5902 = vmatpush1.msra.mxu0 %v5901
  %5903 = vmatprep.subr.mxu0 0.0
  %v5904 = vand.u32 %v5766, 4294901760
  %v5905 = vsub.f32 %v5766, %v5904
  %v5906 = vand.u32 %v5905, 4294901760
  %v5907 = vsub.f32 %v5905, %v5906
  %v5908 = vand.u32 %v5907, 4294901760
  %5909 = vmatpush1.msra.mxu0 %v5908
  %5910 = vmatprep.subr.mxu0 0.0
  %v5911 = vand.u32 %v5767, 4294901760
  %v5912 = vsub.f32 %v5767, %v5911
  %v5913 = vand.u32 %v5912, 4294901760
  %v5914 = vsub.f32 %v5912, %v5913
  %v5915 = vand.u32 %v5914, 4294901760
  %5916 = vmatpush1.msra.mxu0 %v5915
  %5917 = vmatprep.subr.mxu0 0.0
  %v5918 = vand.u32 %v5768, 4294901760
  %v5919 = vsub.f32 %v5768, %v5918
  %v5920 = vand.u32 %v5919, 4294901760
  %v5921 = vsub.f32 %v5919, %v5920
  %v5922 = vand.u32 %v5921, 4294901760
  %5923 = vmatpush1.msra.mxu0 %v5922
  %5924 = vmatprep.subr.mxu0 0.0
  %v5925 = vand.u32 %v5769, 4294901760
  %v5926 = vsub.f32 %v5769, %v5925
  %v5927 = vand.u32 %v5926, 4294901760
  %v5928 = vsub.f32 %v5926, %v5927
  %v5929 = vand.u32 %v5928, 4294901760
  %5930 = vmatpush1.msra.mxu0 %v5929
  %5931 = vmatprep.subr.mxu0 0.0
  %v5932 = vand.u32 %v5770, 4294901760
  %v5933 = vsub.f32 %v5770, %v5932
  %v5934 = vand.u32 %v5933, 4294901760
  %v5935 = vsub.f32 %v5933, %v5934
  %v5936 = vand.u32 %v5935, 4294901760
  %5937 = vmatpush1.msra.mxu0 %v5936
  %5938 = vmatprep.subr.mxu0 0.0
  %v5939 = vand.u32 %v5771, 4294901760
  %v5940 = vsub.f32 %v5771, %v5939
  %v5941 = vand.u32 %v5940, 4294901760
  %v5942 = vsub.f32 %v5940, %v5941
  %v5943 = vand.u32 %v5942, 4294901760
  %5944 = vmatpush1.msra.mxu0 %v5943
  %5945 = vmatprep.subr.mxu0 0.0
  %v5946 = vand.u32 %v5772, 4294901760
  %v5947 = vsub.f32 %v5772, %v5946
  %v5948 = vand.u32 %v5947, 4294901760
  %v5949 = vsub.f32 %v5947, %v5948
  %v5950 = vand.u32 %v5949, 4294901760
  %5951 = vmatpush1.msra.mxu0 %v5950
  %5952 = vmatprep.subr.mxu0 0.0
  %v5953 = vand.u32 %v5773, 4294901760
  %v5954 = vsub.f32 %v5773, %v5953
  %v5955 = vand.u32 %v5954, 4294901760
  %v5956 = vsub.f32 %v5954, %v5955
  %v5957 = vand.u32 %v5956, 4294901760
  %5958 = vmatpush1.msra.mxu0 %v5957
  %5959 = vmatprep.subr.mxu0 0.0
  %v5960 = vand.u32 %v5774, 4294901760
  %v5961 = vsub.f32 %v5774, %v5960
  %v5962 = vand.u32 %v5961, 4294901760
  %v5963 = vsub.f32 %v5961, %v5962
  %v5964 = vand.u32 %v5963, 4294901760
  %5965 = vmatpush1.msra.mxu0 %v5964
  %5966 = vmatprep.subr.mxu0 0.0
  %v5967 = vand.u32 %v5775, 4294901760
  %v5968 = vsub.f32 %v5775, %v5967
  %v5969 = vand.u32 %v5968, 4294901760
  %v5970 = vsub.f32 %v5968, %v5969
  %v5971 = vand.u32 %v5970, 4294901760
  %5972 = vmatpush1.msra.mxu0 %v5971
  %5973 = vmatprep.subr.mxu0 0.0
  %v5974 = vand.u32 %v5776, 4294901760
  %v5975 = vsub.f32 %v5776, %v5974
  %v5976 = vand.u32 %v5975, 4294901760
  %v5977 = vsub.f32 %v5975, %v5976
  %v5978 = vand.u32 %v5977, 4294901760
  %5979 = vmatpush1.msra.mxu0 %v5978
  %5980 = vmatprep.subr.mxu0 0.0
  %5981 = vmatpush1.msra.mxu0 0.0
  %5982 = vmatprep.subr.mxu0 0.0
  %5983 = vmatpush1.msra.mxu0 0.0
  %5984 = vmatprep.subr.mxu0 0.0
  %5985 = vmatpush1.msra.mxu0 0.0
  %5986 = vmatprep.subr.mxu0 0.0
  %5987 = vmatpush1.msra.mxu0 0.0
  %5988 = vmatprep.subr.mxu0 0.0
  %5989 = vmatpush1.msra.mxu0 0.0
  %5990 = vmatprep.subr.mxu0 0.0
  %5991 = vmatpush1.msra.mxu0 0.0
  %5992 = vmatprep.subr.mxu0 0.0
  %5993 = vmatpush1.msra.mxu0 0.0
  %5994 = vmatprep.subr.mxu0 0.0
  %5995 = vmatpush1.msra.mxu0 0.0
  %5996 = vmatprep.subr.mxu0 0.0
  %5997 = vmatpush1.msra.mxu0 0.0
  %5998 = vmatprep.subr.mxu0 0.0
  %5999 = vmatpush1.msra.mxu0 0.0
  %6000 = vmatprep.subr.mxu0 0.0
  %6001 = vmatpush1.msra.mxu0 0.0
  %6002 = vmatprep.subr.mxu0 0.0
  %6003 = vmatpush1.msra.mxu0 0.0
  %6004 = vmatprep.subr.mxu0 0.0
  %6005 = vmatpush1.msra.mxu0 0.0
  %6006 = vmatprep.subr.mxu0 0.0
  %6007 = vmatpush1.msra.mxu0 0.0
  %6008 = vmatprep.subr.mxu0 0.0
  %6009 = vmatpush1.msra.mxu0 0.0
  %6010 = vmatprep.subr.mxu0 0.0
  %6011 = vmatpush1.msra.mxu0 0.0
  %6012 = vmatprep.mubr.f32.mxu0 0.0
  %v6013 = vand.u32 %v4445, 4294901760
  %6014 = vmatmul.mubr.f32.gmra.mrb[0].mxu0 %v6013
  %v6015 = vpop.f32.mrb[0].mxu0
  %v6016 = vadd.f32 %v5865, %v6015
  %v6017 = vpop.f32.mrb[0].mxu0
  %6018 = vdwg.mxu0
  %6019 = vmatprep.subr.mxu0 0.0
  %v6020 = vand.u32 %v5761, 4294901760
  %v6021 = vsub.f32 %v5761, %v6020
  %6022 = vmatpush1.msra.mxu0 %v6021
  %6023 = vmatprep.subr.mxu0 0.0
  %v6024 = vand.u32 %v5762, 4294901760
  %v6025 = vsub.f32 %v5762, %v6024
  %6026 = vmatpush1.msra.mxu0 %v6025
  %6027 = vmatprep.subr.mxu0 0.0
  %v6028 = vand.u32 %v5763, 4294901760
  %v6029 = vsub.f32 %v5763, %v6028
  %6030 = vmatpush1.msra.mxu0 %v6029
  %6031 = vmatprep.subr.mxu0 0.0
  %v6032 = vand.u32 %v5764, 4294901760
  %v6033 = vsub.f32 %v5764, %v6032
  %6034 = vmatpush1.msra.mxu0 %v6033
  %6035 = vmatprep.subr.mxu0 0.0
  %v6036 = vand.u32 %v5765, 4294901760
  %v6037 = vsub.f32 %v5765, %v6036
  %6038 = vmatpush1.msra.mxu0 %v6037
  %6039 = vmatprep.subr.mxu0 0.0
  %v6040 = vand.u32 %v5766, 4294901760
  %v6041 = vsub.f32 %v5766, %v6040
  %6042 = vmatpush1.msra.mxu0 %v6041
  %6043 = vmatprep.subr.mxu0 0.0
  %v6044 = vand.u32 %v5767, 4294901760
  %v6045 = vsub.f32 %v5767, %v6044
  %6046 = vmatpush1.msra.mxu0 %v6045
  %6047 = vmatprep.subr.mxu0 0.0
  %v6048 = vand.u32 %v5768, 4294901760
  %v6049 = vsub.f32 %v5768, %v6048
  %6050 = vmatpush1.msra.mxu0 %v6049
  %6051 = vmatprep.subr.mxu0 0.0
  %v6052 = vand.u32 %v5769, 4294901760
  %v6053 = vsub.f32 %v5769, %v6052
  %6054 = vmatpush1.msra.mxu0 %v6053
  %6055 = vmatprep.subr.mxu0 0.0
  %v6056 = vand.u32 %v5770, 4294901760
  %v6057 = vsub.f32 %v5770, %v6056
  %6058 = vmatpush1.msra.mxu0 %v6057
  %6059 = vmatprep.subr.mxu0 0.0
  %v6060 = vand.u32 %v5771, 4294901760
  %v6061 = vsub.f32 %v5771, %v6060
  %6062 = vmatpush1.msra.mxu0 %v6061
  %6063 = vmatprep.subr.mxu0 0.0
  %v6064 = vand.u32 %v5772, 4294901760
  %v6065 = vsub.f32 %v5772, %v6064
  %6066 = vmatpush1.msra.mxu0 %v6065
  %6067 = vmatprep.subr.mxu0 0.0
  %v6068 = vand.u32 %v5773, 4294901760
  %v6069 = vsub.f32 %v5773, %v6068
  %6070 = vmatpush1.msra.mxu0 %v6069
  %6071 = vmatprep.subr.mxu0 0.0
  %v6072 = vand.u32 %v5774, 4294901760
  %v6073 = vsub.f32 %v5774, %v6072
  %6074 = vmatpush1.msra.mxu0 %v6073
  %6075 = vmatprep.subr.mxu0 0.0
  %v6076 = vand.u32 %v5775, 4294901760
  %v6077 = vsub.f32 %v5775, %v6076
  %6078 = vmatpush1.msra.mxu0 %v6077
  %6079 = vmatprep.subr.mxu0 0.0
  %v6080 = vand.u32 %v5776, 4294901760
  %v6081 = vsub.f32 %v5776, %v6080
  %6082 = vmatpush1.msra.mxu0 %v6081
  %6083 = vmatprep.subr.mxu0 0.0
  %6084 = vmatpush1.msra.mxu0 0.0
  %6085 = vmatprep.subr.mxu0 0.0
  %6086 = vmatpush1.msra.mxu0 0.0
  %6087 = vmatprep.subr.mxu0 0.0
  %6088 = vmatpush1.msra.mxu0 0.0
  %6089 = vmatprep.subr.mxu0 0.0
  %6090 = vmatpush1.msra.mxu0 0.0
  %6091 = vmatprep.subr.mxu0 0.0
  %6092 = vmatpush1.msra.mxu0 0.0
  %6093 = vmatprep.subr.mxu0 0.0
  %6094 = vmatpush1.msra.mxu0 0.0
  %6095 = vmatprep.subr.mxu0 0.0
  %6096 = vmatpush1.msra.mxu0 0.0
  %6097 = vmatprep.subr.mxu0 0.0
  %6098 = vmatpush1.msra.mxu0 0.0
  %6099 = vmatprep.subr.mxu0 0.0
  %6100 = vmatpush1.msra.mxu0 0.0
  %6101 = vmatprep.subr.mxu0 0.0
  %6102 = vmatpush1.msra.mxu0 0.0
  %6103 = vmatprep.subr.mxu0 0.0
  %6104 = vmatpush1.msra.mxu0 0.0
  %6105 = vmatprep.subr.mxu0 0.0
  %6106 = vmatpush1.msra.mxu0 0.0
  %6107 = vmatprep.subr.mxu0 0.0
  %6108 = vmatpush1.msra.mxu0 0.0
  %6109 = vmatprep.subr.mxu0 0.0
  %6110 = vmatpush1.msra.mxu0 0.0
  %6111 = vmatprep.subr.mxu0 0.0
  %6112 = vmatpush1.msra.mxu0 0.0
  %6113 = vmatprep.subr.mxu0 0.0
  %6114 = vmatpush1.msra.mxu0 0.0
  %6115 = vmatprep.mubr.f32.mxu0 0.0
  %v6116 = vand.u32 %v4445, 4294901760
  %v6117 = vsub.f32 %v4445, %v6116
  %6118 = vmatmul.mubr.f32.gmra.mrb[0].mxu0 %v6117
  %v6119 = vpop.f32.mrb[0].mxu0
  %v6120 = vadd.f32 %v6016, %v6119
  %v6121 = vpop.f32.mrb[0].mxu0
  %6122 = vdwg.mxu0
  %6123 = vmatprep.subr.mxu0 0.0
  %v6124 = vand.u32 %v5761, 4294901760
  %6125 = vmatpush1.msra.mxu0 %v6124
  %6126 = vmatprep.subr.mxu0 0.0
  %v6127 = vand.u32 %v5762, 4294901760
  %6128 = vmatpush1.msra.mxu0 %v6127
  %6129 = vmatprep.subr.mxu0 0.0
  %v6130 = vand.u32 %v5763, 4294901760
  %6131 = vmatpush1.msra.mxu0 %v6130
  %6132 = vmatprep.subr.mxu0 0.0
  %v6133 = vand.u32 %v5764, 4294901760
  %6134 = vmatpush1.msra.mxu0 %v6133
  %6135 = vmatprep.subr.mxu0 0.0
  %v6136 = vand.u32 %v5765, 4294901760
  %6137 = vmatpush1.msra.mxu0 %v6136
  %6138 = vmatprep.subr.mxu0 0.0
  %v6139 = vand.u32 %v5766, 4294901760
  %6140 = vmatpush1.msra.mxu0 %v6139
  %6141 = vmatprep.subr.mxu0 0.0
  %v6142 = vand.u32 %v5767, 4294901760
  %6143 = vmatpush1.msra.mxu0 %v6142
  %6144 = vmatprep.subr.mxu0 0.0
  %v6145 = vand.u32 %v5768, 4294901760
  %6146 = vmatpush1.msra.mxu0 %v6145
  %6147 = vmatprep.subr.mxu0 0.0
  %v6148 = vand.u32 %v5769, 4294901760
  %6149 = vmatpush1.msra.mxu0 %v6148
  %6150 = vmatprep.subr.mxu0 0.0
  %v6151 = vand.u32 %v5770, 4294901760
  %6152 = vmatpush1.msra.mxu0 %v6151
  %6153 = vmatprep.subr.mxu0 0.0
  %v6154 = vand.u32 %v5771, 4294901760
  %6155 = vmatpush1.msra.mxu0 %v6154
  %6156 = vmatprep.subr.mxu0 0.0
  %v6157 = vand.u32 %v5772, 4294901760
  %6158 = vmatpush1.msra.mxu0 %v6157
  %6159 = vmatprep.subr.mxu0 0.0
  %v6160 = vand.u32 %v5773, 4294901760
  %6161 = vmatpush1.msra.mxu0 %v6160
  %6162 = vmatprep.subr.mxu0 0.0
  %v6163 = vand.u32 %v5774, 4294901760
  %6164 = vmatpush1.msra.mxu0 %v6163
  %6165 = vmatprep.subr.mxu0 0.0
  %v6166 = vand.u32 %v5775, 4294901760
  %6167 = vmatpush1.msra.mxu0 %v6166
  %6168 = vmatprep.subr.mxu0 0.0
  %v6169 = vand.u32 %v5776, 4294901760
  %6170 = vmatpush1.msra.mxu0 %v6169
  %6171 = vmatprep.subr.mxu0 0.0
  %6172 = vmatpush1.msra.mxu0 0.0
  %6173 = vmatprep.subr.mxu0 0.0
  %6174 = vmatpush1.msra.mxu0 0.0
  %6175 = vmatprep.subr.mxu0 0.0
  %6176 = vmatpush1.msra.mxu0 0.0
  %6177 = vmatprep.subr.mxu0 0.0
  %6178 = vmatpush1.msra.mxu0 0.0
  %6179 = vmatprep.subr.mxu0 0.0
  %6180 = vmatpush1.msra.mxu0 0.0
  %6181 = vmatprep.subr.mxu0 0.0
  %6182 = vmatpush1.msra.mxu0 0.0
  %6183 = vmatprep.subr.mxu0 0.0
  %6184 = vmatpush1.msra.mxu0 0.0
  %6185 = vmatprep.subr.mxu0 0.0
  %6186 = vmatpush1.msra.mxu0 0.0
  %6187 = vmatprep.subr.mxu0 0.0
  %6188 = vmatpush1.msra.mxu0 0.0
  %6189 = vmatprep.subr.mxu0 0.0
  %6190 = vmatpush1.msra.mxu0 0.0
  %6191 = vmatprep.subr.mxu0 0.0
  %6192 = vmatpush1.msra.mxu0 0.0
  %6193 = vmatprep.subr.mxu0 0.0
  %6194 = vmatpush1.msra.mxu0 0.0
  %6195 = vmatprep.subr.mxu0 0.0
  %6196 = vmatpush1.msra.mxu0 0.0
  %6197 = vmatprep.subr.mxu0 0.0
  %6198 = vmatpush1.msra.mxu0 0.0
  %6199 = vmatprep.subr.mxu0 0.0
  %6200 = vmatpush1.msra.mxu0 0.0
  %6201 = vmatprep.subr.mxu0 0.0
  %6202 = vmatpush1.msra.mxu0 0.0
  %6203 = vmatprep.mubr.f32.mxu0 0.0
  %v6204 = vand.u32 %v4445, 4294901760
  %v6205 = vsub.f32 %v4445, %v6204
  %v6206 = vand.u32 %v6205, 4294901760
  %6207 = vmatmul.mubr.f32.gmra.mrb[0].mxu0 %v6206
  %v6208 = vpop.f32.mrb[0].mxu0
  %v6209 = vadd.f32 %v6120, %v6208
  %v6210 = vpop.f32.mrb[0].mxu0
  %6211 = vdwg.mxu0
  %6212 = vmatprep.subr.mxu0 0.0
  %v6213 = vand.u32 %v5761, 4294901760
  %v6214 = vsub.f32 %v5761, %v6213
  %v6215 = vand.u32 %v6214, 4294901760
  %6216 = vmatpush1.msra.mxu0 %v6215
  %6217 = vmatprep.subr.mxu0 0.0
  %v6218 = vand.u32 %v5762, 4294901760
  %v6219 = vsub.f32 %v5762, %v6218
  %v6220 = vand.u32 %v6219, 4294901760
  %6221 = vmatpush1.msra.mxu0 %v6220
  %6222 = vmatprep.subr.mxu0 0.0
  %v6223 = vand.u32 %v5763, 4294901760
  %v6224 = vsub.f32 %v5763, %v6223
  %v6225 = vand.u32 %v6224, 4294901760
  %6226 = vmatpush1.msra.mxu0 %v6225
  %6227 = vmatprep.subr.mxu0 0.0
  %v6228 = vand.u32 %v5764, 4294901760
  %v6229 = vsub.f32 %v5764, %v6228
  %v6230 = vand.u32 %v6229, 4294901760
  %6231 = vmatpush1.msra.mxu0 %v6230
  %6232 = vmatprep.subr.mxu0 0.0
  %v6233 = vand.u32 %v5765, 4294901760
  %v6234 = vsub.f32 %v5765, %v6233
  %v6235 = vand.u32 %v6234, 4294901760
  %6236 = vmatpush1.msra.mxu0 %v6235
  %6237 = vmatprep.subr.mxu0 0.0
  %v6238 = vand.u32 %v5766, 4294901760
  %v6239 = vsub.f32 %v5766, %v6238
  %v6240 = vand.u32 %v6239, 4294901760
  %6241 = vmatpush1.msra.mxu0 %v6240
  %6242 = vmatprep.subr.mxu0 0.0
  %v6243 = vand.u32 %v5767, 4294901760
  %v6244 = vsub.f32 %v5767, %v6243
  %v6245 = vand.u32 %v6244, 4294901760
  %6246 = vmatpush1.msra.mxu0 %v6245
  %6247 = vmatprep.subr.mxu0 0.0
  %v6248 = vand.u32 %v5768, 4294901760
  %v6249 = vsub.f32 %v5768, %v6248
  %v6250 = vand.u32 %v6249, 4294901760
  %6251 = vmatpush1.msra.mxu0 %v6250
  %6252 = vmatprep.subr.mxu0 0.0
  %v6253 = vand.u32 %v5769, 4294901760
  %v6254 = vsub.f32 %v5769, %v6253
  %v6255 = vand.u32 %v6254, 4294901760
  %6256 = vmatpush1.msra.mxu0 %v6255
  %6257 = vmatprep.subr.mxu0 0.0
  %v6258 = vand.u32 %v5770, 4294901760
  %v6259 = vsub.f32 %v5770, %v6258
  %v6260 = vand.u32 %v6259, 4294901760
  %6261 = vmatpush1.msra.mxu0 %v6260
  %6262 = vmatprep.subr.mxu0 0.0
  %v6263 = vand.u32 %v5771, 4294901760
  %v6264 = vsub.f32 %v5771, %v6263
  %v6265 = vand.u32 %v6264, 4294901760
  %6266 = vmatpush1.msra.mxu0 %v6265
  %6267 = vmatprep.subr.mxu0 0.0
  %v6268 = vand.u32 %v5772, 4294901760
  %v6269 = vsub.f32 %v5772, %v6268
  %v6270 = vand.u32 %v6269, 4294901760
  %6271 = vmatpush1.msra.mxu0 %v6270
  %6272 = vmatprep.subr.mxu0 0.0
  %v6273 = vand.u32 %v5773, 4294901760
  %v6274 = vsub.f32 %v5773, %v6273
  %v6275 = vand.u32 %v6274, 4294901760
  %6276 = vmatpush1.msra.mxu0 %v6275
  %6277 = vmatprep.subr.mxu0 0.0
  %v6278 = vand.u32 %v5774, 4294901760
  %v6279 = vsub.f32 %v5774, %v6278
  %v6280 = vand.u32 %v6279, 4294901760
  %6281 = vmatpush1.msra.mxu0 %v6280
  %6282 = vmatprep.subr.mxu0 0.0
  %v6283 = vand.u32 %v5775, 4294901760
  %v6284 = vsub.f32 %v5775, %v6283
  %v6285 = vand.u32 %v6284, 4294901760
  %6286 = vmatpush1.msra.mxu0 %v6285
  %6287 = vmatprep.subr.mxu0 0.0
  %v6288 = vand.u32 %v5776, 4294901760
  %v6289 = vsub.f32 %v5776, %v6288
  %v6290 = vand.u32 %v6289, 4294901760
  %6291 = vmatpush1.msra.mxu0 %v6290
  %6292 = vmatprep.subr.mxu0 0.0
  %6293 = vmatpush1.msra.mxu0 0.0
  %6294 = vmatprep.subr.mxu0 0.0
  %6295 = vmatpush1.msra.mxu0 0.0
  %6296 = vmatprep.subr.mxu0 0.0
  %6297 = vmatpush1.msra.mxu0 0.0
  %6298 = vmatprep.subr.mxu0 0.0
  %6299 = vmatpush1.msra.mxu0 0.0
  %6300 = vmatprep.subr.mxu0 0.0
  %6301 = vmatpush1.msra.mxu0 0.0
  %6302 = vmatprep.subr.mxu0 0.0
  %6303 = vmatpush1.msra.mxu0 0.0
  %6304 = vmatprep.subr.mxu0 0.0
  %6305 = vmatpush1.msra.mxu0 0.0
  %6306 = vmatprep.subr.mxu0 0.0
  %6307 = vmatpush1.msra.mxu0 0.0
  %6308 = vmatprep.subr.mxu0 0.0
  %6309 = vmatpush1.msra.mxu0 0.0
  %6310 = vmatprep.subr.mxu0 0.0
  %6311 = vmatpush1.msra.mxu0 0.0
  %6312 = vmatprep.subr.mxu0 0.0
  %6313 = vmatpush1.msra.mxu0 0.0
  %6314 = vmatprep.subr.mxu0 0.0
  %6315 = vmatpush1.msra.mxu0 0.0
  %6316 = vmatprep.subr.mxu0 0.0
  %6317 = vmatpush1.msra.mxu0 0.0
  %6318 = vmatprep.subr.mxu0 0.0
  %6319 = vmatpush1.msra.mxu0 0.0
  %6320 = vmatprep.subr.mxu0 0.0
  %6321 = vmatpush1.msra.mxu0 0.0
  %6322 = vmatprep.subr.mxu0 0.0
  %6323 = vmatpush1.msra.mxu0 0.0
  %6324 = vmatprep.mubr.f32.mxu0 0.0
  %v6325 = vand.u32 %v4445, 4294901760
  %6326 = vmatmul.mubr.f32.gmra.mrb[0].mxu0 %v6325
  %v6327 = vpop.f32.mrb[0].mxu0
  %v6328 = vadd.f32 %v6209, %v6327
  %v6329 = vpop.f32.mrb[0].mxu0
  %6330 = vdwg.mxu0
  %6331 = vmatprep.subr.mxu0 0.0
  %v6332 = vand.u32 %v5761, 4294901760
  %6333 = vmatpush1.msra.mxu0 %v6332
  %6334 = vmatprep.subr.mxu0 0.0
  %v6335 = vand.u32 %v5762, 4294901760
  %6336 = vmatpush1.msra.mxu0 %v6335
  %6337 = vmatprep.subr.mxu0 0.0
  %v6338 = vand.u32 %v5763, 4294901760
  %6339 = vmatpush1.msra.mxu0 %v6338
  %6340 = vmatprep.subr.mxu0 0.0
  %v6341 = vand.u32 %v5764, 4294901760
  %6342 = vmatpush1.msra.mxu0 %v6341
  %6343 = vmatprep.subr.mxu0 0.0
  %v6344 = vand.u32 %v5765, 4294901760
  %6345 = vmatpush1.msra.mxu0 %v6344
  %6346 = vmatprep.subr.mxu0 0.0
  %v6347 = vand.u32 %v5766, 4294901760
  %6348 = vmatpush1.msra.mxu0 %v6347
  %6349 = vmatprep.subr.mxu0 0.0
  %v6350 = vand.u32 %v5767, 4294901760
  %6351 = vmatpush1.msra.mxu0 %v6350
  %6352 = vmatprep.subr.mxu0 0.0
  %v6353 = vand.u32 %v5768, 4294901760
  %6354 = vmatpush1.msra.mxu0 %v6353
  %6355 = vmatprep.subr.mxu0 0.0
  %v6356 = vand.u32 %v5769, 4294901760
  %6357 = vmatpush1.msra.mxu0 %v6356
  %6358 = vmatprep.subr.mxu0 0.0
  %v6359 = vand.u32 %v5770, 4294901760
  %6360 = vmatpush1.msra.mxu0 %v6359
  %6361 = vmatprep.subr.mxu0 0.0
  %v6362 = vand.u32 %v5771, 4294901760
  %6363 = vmatpush1.msra.mxu0 %v6362
  %6364 = vmatprep.subr.mxu0 0.0
  %v6365 = vand.u32 %v5772, 4294901760
  %6366 = vmatpush1.msra.mxu0 %v6365
  %6367 = vmatprep.subr.mxu0 0.0
  %v6368 = vand.u32 %v5773, 4294901760
  %6369 = vmatpush1.msra.mxu0 %v6368
  %6370 = vmatprep.subr.mxu0 0.0
  %v6371 = vand.u32 %v5774, 4294901760
  %6372 = vmatpush1.msra.mxu0 %v6371
  %6373 = vmatprep.subr.mxu0 0.0
  %v6374 = vand.u32 %v5775, 4294901760
  %6375 = vmatpush1.msra.mxu0 %v6374
  %6376 = vmatprep.subr.mxu0 0.0
  %v6377 = vand.u32 %v5776, 4294901760
  %6378 = vmatpush1.msra.mxu0 %v6377
  %6379 = vmatprep.subr.mxu0 0.0
  %6380 = vmatpush1.msra.mxu0 0.0
  %6381 = vmatprep.subr.mxu0 0.0
  %6382 = vmatpush1.msra.mxu0 0.0
  %6383 = vmatprep.subr.mxu0 0.0
  %6384 = vmatpush1.msra.mxu0 0.0
  %6385 = vmatprep.subr.mxu0 0.0
  %6386 = vmatpush1.msra.mxu0 0.0
  %6387 = vmatprep.subr.mxu0 0.0
  %6388 = vmatpush1.msra.mxu0 0.0
  %6389 = vmatprep.subr.mxu0 0.0
  %6390 = vmatpush1.msra.mxu0 0.0
  %6391 = vmatprep.subr.mxu0 0.0
  %6392 = vmatpush1.msra.mxu0 0.0
  %6393 = vmatprep.subr.mxu0 0.0
  %6394 = vmatpush1.msra.mxu0 0.0
  %6395 = vmatprep.subr.mxu0 0.0
  %6396 = vmatpush1.msra.mxu0 0.0
  %6397 = vmatprep.subr.mxu0 0.0
  %6398 = vmatpush1.msra.mxu0 0.0
  %6399 = vmatprep.subr.mxu0 0.0
  %6400 = vmatpush1.msra.mxu0 0.0
  %6401 = vmatprep.subr.mxu0 0.0
  %6402 = vmatpush1.msra.mxu0 0.0
  %6403 = vmatprep.subr.mxu0 0.0
  %6404 = vmatpush1.msra.mxu0 0.0
  %6405 = vmatprep.subr.mxu0 0.0
  %6406 = vmatpush1.msra.mxu0 0.0
  %6407 = vmatprep.subr.mxu0 0.0
  %6408 = vmatpush1.msra.mxu0 0.0
  %6409 = vmatprep.subr.mxu0 0.0
  %6410 = vmatpush1.msra.mxu0 0.0
  %6411 = vmatprep.mubr.f32.mxu0 0.0
  %v6412 = vand.u32 %v4445, 4294901760
  %6413 = vmatmul.mubr.f32.gmra.mrb[0].mxu0 %v6412
  %v6414 = vpop.f32.mrb[0].mxu0
  %v6415 = vadd.f32 %v6328, %v6414
  %v6416 = vpop.f32.mrb[0].mxu0
  %6417 = vdwg.mxu0
  %v6418 = vadd.f32 %v5758, %v6415
  %v6419 = vld [vmem:[%s1 + $0x238] sm:$0xff]
  %v6420 = vld [vmem:[%s1 + $0x240] sm:$0xff]
  %v6421 = vld [vmem:[%s1 + $0x248] sm:$0xff]
  %v6422 = vld [vmem:[%s1 + $0x250] sm:$0xff]
  %v6423 = vld [vmem:[%s1 + $0x258] sm:$0xff]
  %v6424 = vld [vmem:[%s1 + $0x260] sm:$0xff]
  %v6425 = vld [vmem:[%s1 + $0x268] sm:$0xff]
  %v6426 = vld [vmem:[%s1 + $0x270] sm:$0xff]
  %v6427 = vld [vmem:[%s1 + $0x278] sm:$0xff]
  %v6428 = vld [vmem:[%s1 + $0x280] sm:$0xff]
  %v6429 = vld [vmem:[%s1 + $0x288] sm:$0xff]
  %v6430 = vld [vmem:[%s1 + $0x290] sm:$0xff]
  %v6431 = vld [vmem:[%s1 + $0x298] sm:$0xff]
  %v6432 = vld [vmem:[%s1 + $0x2a0] sm:$0xff]
  %v6433 = vld [vmem:[%s1 + $0x2a8] sm:$0xff]
  %v6434 = vld [vmem:[%s1 + $0x2b0] sm:$0xff]
  %6435 = vmatprep.subr.mxu0 0.0
  %v6436 = vand.u32 %v6419, 4294901760
  %6437 = vmatpush1.msra.mxu0 %v6436
  %6438 = vmatprep.subr.mxu0 0.0
  %v6439 = vand.u32 %v6420, 4294901760
  %6440 = vmatpush1.msra.mxu0 %v6439
  %6441 = vmatprep.subr.mxu0 0.0
  %v6442 = vand.u32 %v6421, 4294901760
  %6443 = vmatpush1.msra.mxu0 %v6442
  %6444 = vmatprep.subr.mxu0 0.0
  %v6445 = vand.u32 %v6422, 4294901760
  %6446 = vmatpush1.msra.mxu0 %v6445
  %6447 = vmatprep.subr.mxu0 0.0
  %v6448 = vand.u32 %v6423, 4294901760
  %6449 = vmatpush1.msra.mxu0 %v6448
  %6450 = vmatprep.subr.mxu0 0.0
  %v6451 = vand.u32 %v6424, 4294901760
  %6452 = vmatpush1.msra.mxu0 %v6451
  %6453 = vmatprep.subr.mxu0 0.0
  %v6454 = vand.u32 %v6425, 4294901760
  %6455 = vmatpush1.msra.mxu0 %v6454
  %6456 = vmatprep.subr.mxu0 0.0
  %v6457 = vand.u32 %v6426, 4294901760
  %6458 = vmatpush1.msra.mxu0 %v6457
  %6459 = vmatprep.subr.mxu0 0.0
  %v6460 = vand.u32 %v6427, 4294901760
  %6461 = vmatpush1.msra.mxu0 %v6460
  %6462 = vmatprep.subr.mxu0 0.0
  %v6463 = vand.u32 %v6428, 4294901760
  %6464 = vmatpush1.msra.mxu0 %v6463
  %6465 = vmatprep.subr.mxu0 0.0
  %v6466 = vand.u32 %v6429, 4294901760
  %6467 = vmatpush1.msra.mxu0 %v6466
  %6468 = vmatprep.subr.mxu0 0.0
  %v6469 = vand.u32 %v6430, 4294901760
  %6470 = vmatpush1.msra.mxu0 %v6469
  %6471 = vmatprep.subr.mxu0 0.0
  %v6472 = vand.u32 %v6431, 4294901760
  %6473 = vmatpush1.msra.mxu0 %v6472
  %6474 = vmatprep.subr.mxu0 0.0
  %v6475 = vand.u32 %v6432, 4294901760
  %6476 = vmatpush1.msra.mxu0 %v6475
  %6477 = vmatprep.subr.mxu0 0.0
  %v6478 = vand.u32 %v6433, 4294901760
  %6479 = vmatpush1.msra.mxu0 %v6478
  %6480 = vmatprep.subr.mxu0 0.0
  %v6481 = vand.u32 %v6434, 4294901760
  %6482 = vmatpush1.msra.mxu0 %v6481
  %6483 = vmatprep.subr.mxu0 0.0
  %6484 = vmatpush1.msra.mxu0 0.0
  %6485 = vmatprep.subr.mxu0 0.0
  %6486 = vmatpush1.msra.mxu0 0.0
  %6487 = vmatprep.subr.mxu0 0.0
  %6488 = vmatpush1.msra.mxu0 0.0
  %6489 = vmatprep.subr.mxu0 0.0
  %6490 = vmatpush1.msra.mxu0 0.0
  %6491 = vmatprep.subr.mxu0 0.0
  %6492 = vmatpush1.msra.mxu0 0.0
  %6493 = vmatprep.subr.mxu0 0.0
  %6494 = vmatpush1.msra.mxu0 0.0
  %6495 = vmatprep.subr.mxu0 0.0
  %6496 = vmatpush1.msra.mxu0 0.0
  %6497 = vmatprep.subr.mxu0 0.0
  %6498 = vmatpush1.msra.mxu0 0.0
  %6499 = vmatprep.subr.mxu0 0.0
  %6500 = vmatpush1.msra.mxu0 0.0
  %6501 = vmatprep.subr.mxu0 0.0
  %6502 = vmatpush1.msra.mxu0 0.0
  %6503 = vmatprep.subr.mxu0 0.0
  %6504 = vmatpush1.msra.mxu0 0.0
  %6505 = vmatprep.subr.mxu0 0.0
  %6506 = vmatpush1.msra.mxu0 0.0
  %6507 = vmatprep.subr.mxu0 0.0
  %6508 = vmatpush1.msra.mxu0 0.0
  %6509 = vmatprep.subr.mxu0 0.0
  %6510 = vmatpush1.msra.mxu0 0.0
  %6511 = vmatprep.subr.mxu0 0.0
  %6512 = vmatpush1.msra.mxu0 0.0
  %6513 = vmatprep.subr.mxu0 0.0
  %6514 = vmatpush1.msra.mxu0 0.0
  %6515 = vmatprep.mubr.f32.mxu0 0.0
  %v6516 = vand.u32 %v4446, 4294901760
  %v6517 = vsub.f32 %v4446, %v6516
  %v6518 = vand.u32 %v6517, 4294901760
  %v6519 = vsub.f32 %v6517, %v6518
  %v6520 = vand.u32 %v6519, 4294901760
  %6521 = vmatmul.mubr.f32.gmra.mrb[0].mxu0 %v6520
  %v6522 = vpop.f32.mrb[0].mxu0
  %v6523 = vadd.f32 0.0, %v6522
  %v6524 = vpop.f32.mrb[0].mxu0
  %6525 = vdwg.mxu0
  %6526 = vmatprep.subr.mxu0 0.0
  %v6527 = vand.u32 %v6419, 4294901760
  %v6528 = vsub.f32 %v6419, %v6527
  %v6529 = vand.u32 %v6528, 4294901760
  %v6530 = vsub.f32 %v6528, %v6529
  %v6531 = vand.u32 %v6530, 4294901760
  %6532 = vmatpush1.msra.mxu0 %v6531
  %6533 = vmatprep.subr.mxu0 0.0
  %v6534 = vand.u32 %v6420, 4294901760
  %v6535 = vsub.f32 %v6420, %v6534
  %v6536 = vand.u32 %v6535, 4294901760
  %v6537 = vsub.f32 %v6535, %v6536
  %v6538 = vand.u32 %v6537, 4294901760
  %6539 = vmatpush1.msra.mxu0 %v6538
  %6540 = vmatprep.subr.mxu0 0.0
  %v6541 = vand.u32 %v6421, 4294901760
  %v6542 = vsub.f32 %v6421, %v6541
  %v6543 = vand.u32 %v6542, 4294901760
  %v6544 = vsub.f32 %v6542, %v6543
  %v6545 = vand.u32 %v6544, 4294901760
  %6546 = vmatpush1.msra.mxu0 %v6545
  %6547 = vmatprep.subr.mxu0 0.0
  %v6548 = vand.u32 %v6422, 4294901760
  %v6549 = vsub.f32 %v6422, %v6548
  %v6550 = vand.u32 %v6549, 4294901760
  %v6551 = vsub.f32 %v6549, %v6550
  %v6552 = vand.u32 %v6551, 4294901760
  %6553 = vmatpush1.msra.mxu0 %v6552
  %6554 = vmatprep.subr.mxu0 0.0
  %v6555 = vand.u32 %v6423, 4294901760
  %v6556 = vsub.f32 %v6423, %v6555
  %v6557 = vand.u32 %v6556, 4294901760
  %v6558 = vsub.f32 %v6556, %v6557
  %v6559 = vand.u32 %v6558, 4294901760
  %6560 = vmatpush1.msra.mxu0 %v6559
  %6561 = vmatprep.subr.mxu0 0.0
  %v6562 = vand.u32 %v6424, 4294901760
  %v6563 = vsub.f32 %v6424, %v6562
  %v6564 = vand.u32 %v6563, 4294901760
  %v6565 = vsub.f32 %v6563, %v6564
  %v6566 = vand.u32 %v6565, 4294901760
  %6567 = vmatpush1.msra.mxu0 %v6566
  %6568 = vmatprep.subr.mxu0 0.0
  %v6569 = vand.u32 %v6425, 4294901760
  %v6570 = vsub.f32 %v6425, %v6569
  %v6571 = vand.u32 %v6570, 4294901760
  %v6572 = vsub.f32 %v6570, %v6571
  %v6573 = vand.u32 %v6572, 4294901760
  %6574 = vmatpush1.msra.mxu0 %v6573
  %6575 = vmatprep.subr.mxu0 0.0
  %v6576 = vand.u32 %v6426, 4294901760
  %v6577 = vsub.f32 %v6426, %v6576
  %v6578 = vand.u32 %v6577, 4294901760
  %v6579 = vsub.f32 %v6577, %v6578
  %v6580 = vand.u32 %v6579, 4294901760
  %6581 = vmatpush1.msra.mxu0 %v6580
  %6582 = vmatprep.subr.mxu0 0.0
  %v6583 = vand.u32 %v6427, 4294901760
  %v6584 = vsub.f32 %v6427, %v6583
  %v6585 = vand.u32 %v6584, 4294901760
  %v6586 = vsub.f32 %v6584, %v6585
  %v6587 = vand.u32 %v6586, 4294901760
  %6588 = vmatpush1.msra.mxu0 %v6587
  %6589 = vmatprep.subr.mxu0 0.0
  %v6590 = vand.u32 %v6428, 4294901760
  %v6591 = vsub.f32 %v6428, %v6590
  %v6592 = vand.u32 %v6591, 4294901760
  %v6593 = vsub.f32 %v6591, %v6592
  %v6594 = vand.u32 %v6593, 4294901760
  %6595 = vmatpush1.msra.mxu0 %v6594
  %6596 = vmatprep.subr.mxu0 0.0
  %v6597 = vand.u32 %v6429, 4294901760
  %v6598 = vsub.f32 %v6429, %v6597
  %v6599 = vand.u32 %v6598, 4294901760
  %v6600 = vsub.f32 %v6598, %v6599
  %v6601 = vand.u32 %v6600, 4294901760
  %6602 = vmatpush1.msra.mxu0 %v6601
  %6603 = vmatprep.subr.mxu0 0.0
  %v6604 = vand.u32 %v6430, 4294901760
  %v6605 = vsub.f32 %v6430, %v6604
  %v6606 = vand.u32 %v6605, 4294901760
  %v6607 = vsub.f32 %v6605, %v6606
  %v6608 = vand.u32 %v6607, 4294901760
  %6609 = vmatpush1.msra.mxu0 %v6608
  %6610 = vmatprep.subr.mxu0 0.0
  %v6611 = vand.u32 %v6431, 4294901760
  %v6612 = vsub.f32 %v6431, %v6611
  %v6613 = vand.u32 %v6612, 4294901760
  %v6614 = vsub.f32 %v6612, %v6613
  %v6615 = vand.u32 %v6614, 4294901760
  %6616 = vmatpush1.msra.mxu0 %v6615
  %6617 = vmatprep.subr.mxu0 0.0
  %v6618 = vand.u32 %v6432, 4294901760
  %v6619 = vsub.f32 %v6432, %v6618
  %v6620 = vand.u32 %v6619, 4294901760
  %v6621 = vsub.f32 %v6619, %v6620
  %v6622 = vand.u32 %v6621, 4294901760
  %6623 = vmatpush1.msra.mxu0 %v6622
  %6624 = vmatprep.subr.mxu0 0.0
  %v6625 = vand.u32 %v6433, 4294901760
  %v6626 = vsub.f32 %v6433, %v6625
  %v6627 = vand.u32 %v6626, 4294901760
  %v6628 = vsub.f32 %v6626, %v6627
  %v6629 = vand.u32 %v6628, 4294901760
  %6630 = vmatpush1.msra.mxu0 %v6629
  %6631 = vmatprep.subr.mxu0 0.0
  %v6632 = vand.u32 %v6434, 4294901760
  %v6633 = vsub.f32 %v6434, %v6632
  %v6634 = vand.u32 %v6633, 4294901760
  %v6635 = vsub.f32 %v6633, %v6634
  %v6636 = vand.u32 %v6635, 4294901760
  %6637 = vmatpush1.msra.mxu0 %v6636
  %6638 = vmatprep.subr.mxu0 0.0
  %6639 = vmatpush1.msra.mxu0 0.0
  %6640 = vmatprep.subr.mxu0 0.0
  %6641 = vmatpush1.msra.mxu0 0.0
  %6642 = vmatprep.subr.mxu0 0.0
  %6643 = vmatpush1.msra.mxu0 0.0
  %6644 = vmatprep.subr.mxu0 0.0
  %6645 = vmatpush1.msra.mxu0 0.0
  %6646 = vmatprep.subr.mxu0 0.0
  %6647 = vmatpush1.msra.mxu0 0.0
  %6648 = vmatprep.subr.mxu0 0.0
  %6649 = vmatpush1.msra.mxu0 0.0
  %6650 = vmatprep.subr.mxu0 0.0
  %6651 = vmatpush1.msra.mxu0 0.0
  %6652 = vmatprep.subr.mxu0 0.0
  %6653 = vmatpush1.msra.mxu0 0.0
  %6654 = vmatprep.subr.mxu0 0.0
  %6655 = vmatpush1.msra.mxu0 0.0
  %6656 = vmatprep.subr.mxu0 0.0
  %6657 = vmatpush1.msra.mxu0 0.0
  %6658 = vmatprep.subr.mxu0 0.0
  %6659 = vmatpush1.msra.mxu0 0.0
  %6660 = vmatprep.subr.mxu0 0.0
  %6661 = vmatpush1.msra.mxu0 0.0
  %6662 = vmatprep.subr.mxu0 0.0
  %6663 = vmatpush1.msra.mxu0 0.0
  %6664 = vmatprep.subr.mxu0 0.0
  %6665 = vmatpush1.msra.mxu0 0.0
  %6666 = vmatprep.subr.mxu0 0.0
  %6667 = vmatpush1.msra.mxu0 0.0
  %6668 = vmatprep.subr.mxu0 0.0
  %6669 = vmatpush1.msra.mxu0 0.0
  %6670 = vmatprep.mubr.f32.mxu0 0.0
  %v6671 = vand.u32 %v4446, 4294901760
  %6672 = vmatmul.mubr.f32.gmra.mrb[0].mxu0 %v6671
  %v6673 = vpop.f32.mrb[0].mxu0
  %v6674 = vadd.f32 %v6523, %v6673
  %v6675 = vpop.f32.mrb[0].mxu0
  %6676 = vdwg.mxu0
  %6677 = vmatprep.subr.mxu0 0.0
  %v6678 = vand.u32 %v6419, 4294901760
  %v6679 = vsub.f32 %v6419, %v6678
  %6680 = vmatpush1.msra.mxu0 %v6679
  %6681 = vmatprep.subr.mxu0 0.0
  %v6682 = vand.u32 %v6420, 4294901760
  %v6683 = vsub.f32 %v6420, %v6682
  %6684 = vmatpush1.msra.mxu0 %v6683
  %6685 = vmatprep.subr.mxu0 0.0
  %v6686 = vand.u32 %v6421, 4294901760
  %v6687 = vsub.f32 %v6421, %v6686
  %6688 = vmatpush1.msra.mxu0 %v6687
  %6689 = vmatprep.subr.mxu0 0.0
  %v6690 = vand.u32 %v6422, 4294901760
  %v6691 = vsub.f32 %v6422, %v6690
  %6692 = vmatpush1.msra.mxu0 %v6691
  %6693 = vmatprep.subr.mxu0 0.0
  %v6694 = vand.u32 %v6423, 4294901760
  %v6695 = vsub.f32 %v6423, %v6694
  %6696 = vmatpush1.msra.mxu0 %v6695
  %6697 = vmatprep.subr.mxu0 0.0
  %v6698 = vand.u32 %v6424, 4294901760
  %v6699 = vsub.f32 %v6424, %v6698
  %6700 = vmatpush1.msra.mxu0 %v6699
  %6701 = vmatprep.subr.mxu0 0.0
  %v6702 = vand.u32 %v6425, 4294901760
  %v6703 = vsub.f32 %v6425, %v6702
  %6704 = vmatpush1.msra.mxu0 %v6703
  %6705 = vmatprep.subr.mxu0 0.0
  %v6706 = vand.u32 %v6426, 4294901760
  %v6707 = vsub.f32 %v6426, %v6706
  %6708 = vmatpush1.msra.mxu0 %v6707
  %6709 = vmatprep.subr.mxu0 0.0
  %v6710 = vand.u32 %v6427, 4294901760
  %v6711 = vsub.f32 %v6427, %v6710
  %6712 = vmatpush1.msra.mxu0 %v6711
  %6713 = vmatprep.subr.mxu0 0.0
  %v6714 = vand.u32 %v6428, 4294901760
  %v6715 = vsub.f32 %v6428, %v6714
  %6716 = vmatpush1.msra.mxu0 %v6715
  %6717 = vmatprep.subr.mxu0 0.0
  %v6718 = vand.u32 %v6429, 4294901760
  %v6719 = vsub.f32 %v6429, %v6718
  %6720 = vmatpush1.msra.mxu0 %v6719
  %6721 = vmatprep.subr.mxu0 0.0
  %v6722 = vand.u32 %v6430, 4294901760
  %v6723 = vsub.f32 %v6430, %v6722
  %6724 = vmatpush1.msra.mxu0 %v6723
  %6725 = vmatprep.subr.mxu0 0.0
  %v6726 = vand.u32 %v6431, 4294901760
  %v6727 = vsub.f32 %v6431, %v6726
  %6728 = vmatpush1.msra.mxu0 %v6727
  %6729 = vmatprep.subr.mxu0 0.0
  %v6730 = vand.u32 %v6432, 4294901760
  %v6731 = vsub.f32 %v6432, %v6730
  %6732 = vmatpush1.msra.mxu0 %v6731
  %6733 = vmatprep.subr.mxu0 0.0
  %v6734 = vand.u32 %v6433, 4294901760
  %v6735 = vsub.f32 %v6433, %v6734
  %6736 = vmatpush1.msra.mxu0 %v6735
  %6737 = vmatprep.subr.mxu0 0.0
  %v6738 = vand.u32 %v6434, 4294901760
  %v6739 = vsub.f32 %v6434, %v6738
  %6740 = vmatpush1.msra.mxu0 %v6739
  %6741 = vmatprep.subr.mxu0 0.0
  %6742 = vmatpush1.msra.mxu0 0.0
  %6743 = vmatprep.subr.mxu0 0.0
  %6744 = vmatpush1.msra.mxu0 0.0
  %6745 = vmatprep.subr.mxu0 0.0
  %6746 = vmatpush1.msra.mxu0 0.0
  %6747 = vmatprep.subr.mxu0 0.0
  %6748 = vmatpush1.msra.mxu0 0.0
  %6749 = vmatprep.subr.mxu0 0.0
  %6750 = vmatpush1.msra.mxu0 0.0
  %6751 = vmatprep.subr.mxu0 0.0
  %6752 = vmatpush1.msra.mxu0 0.0
  %6753 = vmatprep.subr.mxu0 0.0
  %6754 = vmatpush1.msra.mxu0 0.0
  %6755 = vmatprep.subr.mxu0 0.0
  %6756 = vmatpush1.msra.mxu0 0.0
  %6757 = vmatprep.subr.mxu0 0.0
  %6758 = vmatpush1.msra.mxu0 0.0
  %6759 = vmatprep.subr.mxu0 0.0
  %6760 = vmatpush1.msra.mxu0 0.0
  %6761 = vmatprep.subr.mxu0 0.0
  %6762 = vmatpush1.msra.mxu0 0.0
  %6763 = vmatprep.subr.mxu0 0.0
  %6764 = vmatpush1.msra.mxu0 0.0
  %6765 = vmatprep.subr.mxu0 0.0
  %6766 = vmatpush1.msra.mxu0 0.0
  %6767 = vmatprep.subr.mxu0 0.0
  %6768 = vmatpush1.msra.mxu0 0.0
  %6769 = vmatprep.subr.mxu0 0.0
  %6770 = vmatpush1.msra.mxu0 0.0
  %6771 = vmatprep.subr.mxu0 0.0
  %6772 = vmatpush1.msra.mxu0 0.0
  %6773 = vmatprep.mubr.f32.mxu0 0.0
  %v6774 = vand.u32 %v4446, 4294901760
  %v6775 = vsub.f32 %v4446, %v6774
  %6776 = vmatmul.mubr.f32.gmra.mrb[0].mxu0 %v6775
  %v6777 = vpop.f32.mrb[0].mxu0
  %v6778 = vadd.f32 %v6674, %v6777
  %v6779 = vpop.f32.mrb[0].mxu0
  %6780 = vdwg.mxu0
  %6781 = vmatprep.subr.mxu0 0.0
  %v6782 = vand.u32 %v6419, 4294901760
  %6783 = vmatpush1.msra.mxu0 %v6782
  %6784 = vmatprep.subr.mxu0 0.0
  %v6785 = vand.u32 %v6420, 4294901760
  %6786 = vmatpush1.msra.mxu0 %v6785
  %6787 = vmatprep.subr.mxu0 0.0
  %v6788 = vand.u32 %v6421, 4294901760
  %6789 = vmatpush1.msra.mxu0 %v6788
  %6790 = vmatprep.subr.mxu0 0.0
  %v6791 = vand.u32 %v6422, 4294901760
  %6792 = vmatpush1.msra.mxu0 %v6791
  %6793 = vmatprep.subr.mxu0 0.0
  %v6794 = vand.u32 %v6423, 4294901760
  %6795 = vmatpush1.msra.mxu0 %v6794
  %6796 = vmatprep.subr.mxu0 0.0
  %v6797 = vand.u32 %v6424, 4294901760
  %6798 = vmatpush1.msra.mxu0 %v6797
  %6799 = vmatprep.subr.mxu0 0.0
  %v6800 = vand.u32 %v6425, 4294901760
  %6801 = vmatpush1.msra.mxu0 %v6800
  %6802 = vmatprep.subr.mxu0 0.0
  %v6803 = vand.u32 %v6426, 4294901760
  %6804 = vmatpush1.msra.mxu0 %v6803
  %6805 = vmatprep.subr.mxu0 0.0
  %v6806 = vand.u32 %v6427, 4294901760
  %6807 = vmatpush1.msra.mxu0 %v6806
  %6808 = vmatprep.subr.mxu0 0.0
  %v6809 = vand.u32 %v6428, 4294901760
  %6810 = vmatpush1.msra.mxu0 %v6809
  %6811 = vmatprep.subr.mxu0 0.0
  %v6812 = vand.u32 %v6429, 4294901760
  %6813 = vmatpush1.msra.mxu0 %v6812
  %6814 = vmatprep.subr.mxu0 0.0
  %v6815 = vand.u32 %v6430, 4294901760
  %6816 = vmatpush1.msra.mxu0 %v6815
  %6817 = vmatprep.subr.mxu0 0.0
  %v6818 = vand.u32 %v6431, 4294901760
  %6819 = vmatpush1.msra.mxu0 %v6818
  %6820 = vmatprep.subr.mxu0 0.0
  %v6821 = vand.u32 %v6432, 4294901760
  %6822 = vmatpush1.msra.mxu0 %v6821
  %6823 = vmatprep.subr.mxu0 0.0
  %v6824 = vand.u32 %v6433, 4294901760
  %6825 = vmatpush1.msra.mxu0 %v6824
  %6826 = vmatprep.subr.mxu0 0.0
  %v6827 = vand.u32 %v6434, 4294901760
  %6828 = vmatpush1.msra.mxu0 %v6827
  %6829 = vmatprep.subr.mxu0 0.0
  %6830 = vmatpush1.msra.mxu0 0.0
  %6831 = vmatprep.subr.mxu0 0.0
  %6832 = vmatpush1.msra.mxu0 0.0
  %6833 = vmatprep.subr.mxu0 0.0
  %6834 = vmatpush1.msra.mxu0 0.0
  %6835 = vmatprep.subr.mxu0 0.0
  %6836 = vmatpush1.msra.mxu0 0.0
  %6837 = vmatprep.subr.mxu0 0.0
  %6838 = vmatpush1.msra.mxu0 0.0
  %6839 = vmatprep.subr.mxu0 0.0
  %6840 = vmatpush1.msra.mxu0 0.0
  %6841 = vmatprep.subr.mxu0 0.0
  %6842 = vmatpush1.msra.mxu0 0.0
  %6843 = vmatprep.subr.mxu0 0.0
  %6844 = vmatpush1.msra.mxu0 0.0
  %6845 = vmatprep.subr.mxu0 0.0
  %6846 = vmatpush1.msra.mxu0 0.0
  %6847 = vmatprep.subr.mxu0 0.0
  %6848 = vmatpush1.msra.mxu0 0.0
  %6849 = vmatprep.subr.mxu0 0.0
  %6850 = vmatpush1.msra.mxu0 0.0
  %6851 = vmatprep.subr.mxu0 0.0
  %6852 = vmatpush1.msra.mxu0 0.0
  %6853 = vmatprep.subr.mxu0 0.0
  %6854 = vmatpush1.msra.mxu0 0.0
  %6855 = vmatprep.subr.mxu0 0.0
  %6856 = vmatpush1.msra.mxu0 0.0
  %6857 = vmatprep.subr.mxu0 0.0
  %6858 = vmatpush1.msra.mxu0 0.0
  %6859 = vmatprep.subr.mxu0 0.0
  %6860 = vmatpush1.msra.mxu0 0.0
  %6861 = vmatprep.mubr.f32.mxu0 0.0
  %v6862 = vand.u32 %v4446, 4294901760
  %v6863 = vsub.f32 %v4446, %v6862
  %v6864 = vand.u32 %v6863, 4294901760
  %6865 = vmatmul.mubr.f32.gmra.mrb[0].mxu0 %v6864
  %v6866 = vpop.f32.mrb[0].mxu0
  %v6867 = vadd.f32 %v6778, %v6866
  %v6868 = vpop.f32.mrb[0].mxu0
  %6869 = vdwg.mxu0
  %6870 = vmatprep.subr.mxu0 0.0
  %v6871 = vand.u32 %v6419, 4294901760
  %v6872 = vsub.f32 %v6419, %v6871
  %v6873 = vand.u32 %v6872, 4294901760
  %6874 = vmatpush1.msra.mxu0 %v6873
  %6875 = vmatprep.subr.mxu0 0.0
  %v6876 = vand.u32 %v6420, 4294901760
  %v6877 = vsub.f32 %v6420, %v6876
  %v6878 = vand.u32 %v6877, 4294901760
  %6879 = vmatpush1.msra.mxu0 %v6878
  %6880 = vmatprep.subr.mxu0 0.0
  %v6881 = vand.u32 %v6421, 4294901760
  %v6882 = vsub.f32 %v6421, %v6881
  %v6883 = vand.u32 %v6882, 4294901760
  %6884 = vmatpush1.msra.mxu0 %v6883
  %6885 = vmatprep.subr.mxu0 0.0
  %v6886 = vand.u32 %v6422, 4294901760
  %v6887 = vsub.f32 %v6422, %v6886
  %v6888 = vand.u32 %v6887, 4294901760
  %6889 = vmatpush1.msra.mxu0 %v6888
  %6890 = vmatprep.subr.mxu0 0.0
  %v6891 = vand.u32 %v6423, 4294901760
  %v6892 = vsub.f32 %v6423, %v6891
  %v6893 = vand.u32 %v6892, 4294901760
  %6894 = vmatpush1.msra.mxu0 %v6893
  %6895 = vmatprep.subr.mxu0 0.0
  %v6896 = vand.u32 %v6424, 4294901760
  %v6897 = vsub.f32 %v6424, %v6896
  %v6898 = vand.u32 %v6897, 4294901760
  %6899 = vmatpush1.msra.mxu0 %v6898
  %6900 = vmatprep.subr.mxu0 0.0
  %v6901 = vand.u32 %v6425, 4294901760
  %v6902 = vsub.f32 %v6425, %v6901
  %v6903 = vand.u32 %v6902, 4294901760
  %6904 = vmatpush1.msra.mxu0 %v6903
  %6905 = vmatprep.subr.mxu0 0.0
  %v6906 = vand.u32 %v6426, 4294901760
  %v6907 = vsub.f32 %v6426, %v6906
  %v6908 = vand.u32 %v6907, 4294901760
  %6909 = vmatpush1.msra.mxu0 %v6908
  %6910 = vmatprep.subr.mxu0 0.0
  %v6911 = vand.u32 %v6427, 4294901760
  %v6912 = vsub.f32 %v6427, %v6911
  %v6913 = vand.u32 %v6912, 4294901760
  %6914 = vmatpush1.msra.mxu0 %v6913
  %6915 = vmatprep.subr.mxu0 0.0
  %v6916 = vand.u32 %v6428, 4294901760
  %v6917 = vsub.f32 %v6428, %v6916
  %v6918 = vand.u32 %v6917, 4294901760
  %6919 = vmatpush1.msra.mxu0 %v6918
  %6920 = vmatprep.subr.mxu0 0.0
  %v6921 = vand.u32 %v6429, 4294901760
  %v6922 = vsub.f32 %v6429, %v6921
  %v6923 = vand.u32 %v6922, 4294901760
  %6924 = vmatpush1.msra.mxu0 %v6923
  %6925 = vmatprep.subr.mxu0 0.0
  %v6926 = vand.u32 %v6430, 4294901760
  %v6927 = vsub.f32 %v6430, %v6926
  %v6928 = vand.u32 %v6927, 4294901760
  %6929 = vmatpush1.msra.mxu0 %v6928
  %6930 = vmatprep.subr.mxu0 0.0
  %v6931 = vand.u32 %v6431, 4294901760
  %v6932 = vsub.f32 %v6431, %v6931
  %v6933 = vand.u32 %v6932, 4294901760
  %6934 = vmatpush1.msra.mxu0 %v6933
  %6935 = vmatprep.subr.mxu0 0.0
  %v6936 = vand.u32 %v6432, 4294901760
  %v6937 = vsub.f32 %v6432, %v6936
  %v6938 = vand.u32 %v6937, 4294901760
  %6939 = vmatpush1.msra.mxu0 %v6938
  %6940 = vmatprep.subr.mxu0 0.0
  %v6941 = vand.u32 %v6433, 4294901760
  %v6942 = vsub.f32 %v6433, %v6941
  %v6943 = vand.u32 %v6942, 4294901760
  %6944 = vmatpush1.msra.mxu0 %v6943
  %6945 = vmatprep.subr.mxu0 0.0
  %v6946 = vand.u32 %v6434, 4294901760
  %v6947 = vsub.f32 %v6434, %v6946
  %v6948 = vand.u32 %v6947, 4294901760
  %6949 = vmatpush1.msra.mxu0 %v6948
  %6950 = vmatprep.subr.mxu0 0.0
  %6951 = vmatpush1.msra.mxu0 0.0
  %6952 = vmatprep.subr.mxu0 0.0
  %6953 = vmatpush1.msra.mxu0 0.0
  %6954 = vmatprep.subr.mxu0 0.0
  %6955 = vmatpush1.msra.mxu0 0.0
  %6956 = vmatprep.subr.mxu0 0.0
  %6957 = vmatpush1.msra.mxu0 0.0
  %6958 = vmatprep.subr.mxu0 0.0
  %6959 = vmatpush1.msra.mxu0 0.0
  %6960 = vmatprep.subr.mxu0 0.0
  %6961 = vmatpush1.msra.mxu0 0.0
  %6962 = vmatprep.subr.mxu0 0.0
  %6963 = vmatpush1.msra.mxu0 0.0
  %6964 = vmatprep.subr.mxu0 0.0
  %6965 = vmatpush1.msra.mxu0 0.0
  %6966 = vmatprep.subr.mxu0 0.0
  %6967 = vmatpush1.msra.mxu0 0.0
  %6968 = vmatprep.subr.mxu0 0.0
  %6969 = vmatpush1.msra.mxu0 0.0
  %6970 = vmatprep.subr.mxu0 0.0
  %6971 = vmatpush1.msra.mxu0 0.0
  %6972 = vmatprep.subr.mxu0 0.0
  %6973 = vmatpush1.msra.mxu0 0.0
  %6974 = vmatprep.subr.mxu0 0.0
  %6975 = vmatpush1.msra.mxu0 0.0
  %6976 = vmatprep.subr.mxu0 0.0
  %6977 = vmatpush1.msra.mxu0 0.0
  %6978 = vmatprep.subr.mxu0 0.0
  %6979 = vmatpush1.msra.mxu0 0.0
  %6980 = vmatprep.subr.mxu0 0.0
  %6981 = vmatpush1.msra.mxu0 0.0
  %6982 = vmatprep.mubr.f32.mxu0 0.0
  %v6983 = vand.u32 %v4446, 4294901760
  %6984 = vmatmul.mubr.f32.gmra.mrb[0].mxu0 %v6983
  %v6985 = vpop.f32.mrb[0].mxu0
  %v6986 = vadd.f32 %v6867, %v6985
  %v6987 = vpop.f32.mrb[0].mxu0
  %6988 = vdwg.mxu0
  %6989 = vmatprep.subr.mxu0 0.0
  %v6990 = vand.u32 %v6419, 4294901760
  %6991 = vmatpush1.msra.mxu0 %v6990
  %6992 = vmatprep.subr.mxu0 0.0
  %v6993 = vand.u32 %v6420, 4294901760
  %6994 = vmatpush1.msra.mxu0 %v6993
  %6995 = vmatprep.subr.mxu0 0.0
  %v6996 = vand.u32 %v6421, 4294901760
  %6997 = vmatpush1.msra.mxu0 %v6996
  %6998 = vmatprep.subr.mxu0 0.0
  %v6999 = vand.u32 %v6422, 4294901760
  %7000 = vmatpush1.msra.mxu0 %v6999
  %7001 = vmatprep.subr.mxu0 0.0
  %v7002 = vand.u32 %v6423, 4294901760
  %7003 = vmatpush1.msra.mxu0 %v7002
  %7004 = vmatprep.subr.mxu0 0.0
  %v7005 = vand.u32 %v6424, 4294901760
  %7006 = vmatpush1.msra.mxu0 %v7005
  %7007 = vmatprep.subr.mxu0 0.0
  %v7008 = vand.u32 %v6425, 4294901760
  %7009 = vmatpush1.msra.mxu0 %v7008
  %7010 = vmatprep.subr.mxu0 0.0
  %v7011 = vand.u32 %v6426, 4294901760
  %7012 = vmatpush1.msra.mxu0 %v7011
  %7013 = vmatprep.subr.mxu0 0.0
  %v7014 = vand.u32 %v6427, 4294901760
  %7015 = vmatpush1.msra.mxu0 %v7014
  %7016 = vmatprep.subr.mxu0 0.0
  %v7017 = vand.u32 %v6428, 4294901760
  %7018 = vmatpush1.msra.mxu0 %v7017
  %7019 = vmatprep.subr.mxu0 0.0
  %v7020 = vand.u32 %v6429, 4294901760
  %7021 = vmatpush1.msra.mxu0 %v7020
  %7022 = vmatprep.subr.mxu0 0.0
  %v7023 = vand.u32 %v6430, 4294901760
  %7024 = vmatpush1.msra.mxu0 %v7023
  %7025 = vmatprep.subr.mxu0 0.0
  %v7026 = vand.u32 %v6431, 4294901760
  %7027 = vmatpush1.msra.mxu0 %v7026
  %7028 = vmatprep.subr.mxu0 0.0
  %v7029 = vand.u32 %v6432, 4294901760
  %7030 = vmatpush1.msra.mxu0 %v7029
  %7031 = vmatprep.subr.mxu0 0.0
  %v7032 = vand.u32 %v6433, 4294901760
  %7033 = vmatpush1.msra.mxu0 %v7032
  %7034 = vmatprep.subr.mxu0 0.0
  %v7035 = vand.u32 %v6434, 4294901760
  %7036 = vmatpush1.msra.mxu0 %v7035
  %7037 = vmatprep.subr.mxu0 0.0
  %7038 = vmatpush1.msra.mxu0 0.0
  %7039 = vmatprep.subr.mxu0 0.0
  %7040 = vmatpush1.msra.mxu0 0.0
  %7041 = vmatprep.subr.mxu0 0.0
  %7042 = vmatpush1.msra.mxu0 0.0
  %7043 = vmatprep.subr.mxu0 0.0
  %7044 = vmatpush1.msra.mxu0 0.0
  %7045 = vmatprep.subr.mxu0 0.0
  %7046 = vmatpush1.msra.mxu0 0.0
  %7047 = vmatprep.subr.mxu0 0.0
  %7048 = vmatpush1.msra.mxu0 0.0
  %7049 = vmatprep.subr.mxu0 0.0
  %7050 = vmatpush1.msra.mxu0 0.0
  %7051 = vmatprep.subr.mxu0 0.0
  %7052 = vmatpush1.msra.mxu0 0.0
  %7053 = vmatprep.subr.mxu0 0.0
  %7054 = vmatpush1.msra.mxu0 0.0
  %7055 = vmatprep.subr.mxu0 0.0
  %7056 = vmatpush1.msra.mxu0 0.0
  %7057 = vmatprep.subr.mxu0 0.0
  %7058 = vmatpush1.msra.mxu0 0.0
  %7059 = vmatprep.subr.mxu0 0.0
  %7060 = vmatpush1.msra.mxu0 0.0
  %7061 = vmatprep.subr.mxu0 0.0
  %7062 = vmatpush1.msra.mxu0 0.0
  %7063 = vmatprep.subr.mxu0 0.0
  %7064 = vmatpush1.msra.mxu0 0.0
  %7065 = vmatprep.subr.mxu0 0.0
  %7066 = vmatpush1.msra.mxu0 0.0
  %7067 = vmatprep.subr.mxu0 0.0
  %7068 = vmatpush1.msra.mxu0 0.0
  %7069 = vmatprep.mubr.f32.mxu0 0.0
  %v7070 = vand.u32 %v4446, 4294901760
  %7071 = vmatmul.mubr.f32.gmra.mrb[0].mxu0 %v7070
  %v7072 = vpop.f32.mrb[0].mxu0
  %v7073 = vadd.f32 %v6986, %v7072
  %v7074 = vpop.f32.mrb[0].mxu0
  %7075 = vdwg.mxu0
  %v7076 = vadd.f32 %v6418, %v7073
  %v7077 = vld [vmem:[%s1 + $0x2b8] sm:$0x1]
  %v7078 = vlaneseq
  %v7079 = vshrl.u32 %v7078, 7
  %v7080 = vsub.s32 0, %v7079
  %v7081 = vrot.slane %v7077, %v7080
  %7083 = vrot.lane.b32.xlu0 %v7081, 96
  %v7084 = vpop.permute.xlu0 %7083
  %v7086 = vadd.f32 %v7076, %v7084
  %v7087 = vmax.f32 %v7086, 0.0
  %v7088 = vmul.f32 %v7087, %v7081
  %vm7089 = vcmask 162816
  %v7090 = vsel %vm7089, %v7088, 0.0
  %7091 = vadd.xlane.f32.xlu0 %v7090
  %v7092 = vpop.xlane.xlu0 %7091
  %v7093 = vadd.f32 %v7092, %v7081
  %v7094 = vsub.f32 0.0, %v7093
  %v7095 = vmul.f32 %v7094, 1.442695
  %v7096 = vpow.pop %v7095
  %v7097 = vadd.f32 %v7096, 1.0
  %v7098 = vrcp.pop %v7097
  %v7099 = vmul.f32 1.0, %v7098
  %7101 = vrot.lane.b32.xlu0 %v7099, 108
  %v7102 = vpop.permute.xlu0 %7101
  %vm7104 = vcmask 1024
  %7105 = vst.msk [vmem:[%s2] sm:$0x3] %vm7104, %v7102
  // Predicated region
  $region10: #{pwave_forward.1} parent=0 // pred_check
    _
  $region11: #{pwave_forward.1} parent=0 // pred_check_branch
    %7107 = sbr.rel (0) target = $region13
  $region12: #{pwave_forward.1} parent=0 // pred_region
    _
  $region13: #{pwave_forward.1} parent=0 // pred_fallthru
    _
  // Predicated region
  $region14: #{pwave_forward.1} parent=0 // pred_check
    _
  $region15: #{pwave_forward.1} parent=0 // pred_check_branch
    %7109 = sbr.rel (0) target = $region17
  $region16: #{pwave_forward.1} parent=0 // pred_region
    _
  $region17: #{pwave_forward.1} parent=0 // pred_fallthru
    _

</llo_original>
